<compile_context>
chip_gen: v7x
topology: tpu7x:2x2x1
jax: 0.10.0
libtpu: 0.0.40
codegen_flags: <defaults>
</compile_context>

<pallas_src>
import functools

import numpy as np
import jax
import jax.numpy as jnp
from jax.experimental import pallas as pl
from jax.experimental.pallas import tpu as pltpu

# ----------------------------- geometry --------------------------------------
H1, W1 = 28, 14            # conv1/conv2 spatial size (half Fashion-MNIST image)
H2, W2 = 14, 7             # spatial size after the 2x2 max pool (conv3/conv4)
C0, C1, C2 = 1, 32, 64     # channel counts
NPAD = 512                 # padded conv-activation row width (448 real -> 4x128)
NHALF = 256                # pooled row width (224 real + 32 zero) = NPAD // 2
FLAT = H2 * W2 * C2        # 6272: Linear fan-in (real part)
FEAT = 256                 # Linear fan-out
NCLS = 10                  # classifier fan-out


# ------------------------- fused client kernel -------------------------------
def _client_kernel(B,
                   x_ref, wb1_ref, bb1_ref, wb2_ref, bb2_ref, esel_ref,
                   bb3_ref, bb4_ref, bl_ref, wc_ref, bc_ref,
                   wb3_hbm, wb4_hbm, wl_hbm,
                   feat_ref, out_ref,
                   s1_ref, s2_ref, s3_ref, wb3_v, wb4_v, wl_v, sems):
    f32, bf16 = jnp.float32, jnp.bfloat16
    M1, M2 = H1 * B, H2 * B        # conv1/conv2 and conv3/conv4 output rows

    # 1) Kick off the late-layer weight DMAs immediately so the ~6 MB stream is
    #    hidden behind conv1/conv2 compute (first needed at conv3 / conv4 / Linear).
    cp3 = pltpu.make_async_copy(wb3_hbm, wb3_v, sems.at[0])
    cp4 = pltpu.make_async_copy(wb4_hbm, wb4_v, sems.at[1])
    cpl = pltpu.make_async_copy(wl_hbm, wl_v, sems.at[2])
    cp3.start()
    cp4.start()
    cpl.start()

    # 2) Zero the activation scratch (only the shared padding row-blocks truly
    #    need zeros; the interior rows are fully overwritten below).
    s1_ref[...] = jnp.zeros_like(s1_ref)
    s2_ref[...] = jnp.zeros_like(s2_ref)
    s3_ref[...] = jnp.zeros_like(s3_ref)

    def conv(src, wb_ref, bb_ref, m_out):
        # 3x3 'same' conv as 3 row-shifted matmuls on the interleaved layout
        # (row = height*B + batch).  Width taps + width zero padding are baked
        # into the host-built band weights.  `src` is a bf16 value: one load,
        # one cast, three cheap sublane slices (offsets 0, B, 2B are even).
        acc = jnp.dot(src[0:m_out], wb_ref[0], preferred_element_type=f32)
        for ky in (1, 2):
            acc = acc + jnp.dot(src[ky * B:ky * B + m_out], wb_ref[ky],
                                preferred_element_type=f32)
        return jnp.maximum(acc + bb_ref[...], 0.0)          # bias + ReLU (f32)

    # conv1 + ReLU : (H1+2)*B x 14  ->  H1*B x 512
    x = x_ref[...].astype(bf16)
    s1_ref[pl.ds(B, M1), :] = conv(x, wb1_ref, bb1_ref, M1).astype(bf16)

    # conv2 + ReLU, output columns permuted to [even-w | 0 | odd-w | 0], then the
    # fused 2x2 max pool: row pairs via tiny 0/1 selection matmuls, width pairs
    # via the column permutation (ReLU keeps the pad lanes exactly zero).
    a1 = s1_ref[...]                                          # (R1, 512) bf16
    y2 = conv(a1, wb2_ref, bb2_ref, M1).astype(bf16)          # (M1, 512)
    r_ev = jnp.dot(esel_ref[0], y2, preferred_element_type=f32)   # (M2, 512)
    r_od = jnp.dot(esel_ref[1], y2, preferred_element_type=f32)
    rmax = jnp.maximum(r_ev, r_od)
    pooled = jnp.maximum(rmax[:, 0:NHALF], rmax[:, NHALF:2 * NHALF])   # (M2, 256)
    s2_ref[pl.ds(B, M2), :] = pooled.astype(bf16)

    # conv3 + ReLU : (H2+2)*B x 256 -> H2*B x 512
    cp3.wait()
    a2 = s2_ref[...]
    s3_ref[pl.ds(B, M2), :] = conv(a2, wb3_v, bb3_ref, M2).astype(bf16)

    # conv4 + ReLU : (H2+2)*B x 512 -> H2*B x 512   (rows ordered h*B + b)
    cp4.wait()
    a3 = s3_ref[...]
    y4 = conv(a3, wb4_v, bb4_ref, M2).astype(bf16)

    # Linear (6272 -> 256): the NCHW .view() flatten is folded host-side into
    # per-height-row weight blocks wl[i]; feat accumulates 14 small matmuls over
    # contiguous (B, 512) slices of y4 -- no flatten scratch, no masked stores.
    cpl.wait()
    facc = jnp.zeros((B, FEAT), f32)
    for i in range(H2):
        facc = facc + jnp.dot(y4[i * B:(i + 1) * B, :], wl_v[i],
                              preferred_element_type=f32)
    feat = facc + bl_ref[...]
    feat_ref[...] = feat

    # Classifier head (256 -> 10).
    out_ref[...] = jnp.dot(feat.astype(bf16), wc_ref[...],
                           preferred_element_type=f32) + bc_ref[...]


def make_client_forward(B):
    R1, R2 = (H1 + 2) * B, (H2 + 2) * B
    vmem = pltpu.MemorySpace.VMEM

    call = pl.pallas_call(
        functools.partial(_client_kernel, B),
        out_shape=(jax.ShapeDtypeStruct((B, FEAT), jnp.float32),
                   jax.ShapeDtypeStruct((B, NCLS), jnp.float32)),
        in_specs=([pl.BlockSpec(memory_space=vmem)] * 11
                  + [pl.BlockSpec(memory_space=pl.ANY)] * 3),     # wb3, wb4, wl stay in HBM
        out_specs=(pl.BlockSpec(memory_space=vmem),
                   pl.BlockSpec(memory_space=vmem)),
        scratch_shapes=[
            pltpu.VMEM((R1, NPAD), jnp.bfloat16),     # s1: padded conv1 output
            pltpu.VMEM((R2, NHALF), jnp.bfloat16),    # s2: padded pooled output
            pltpu.VMEM((R2, NPAD), jnp.bfloat16),     # s3: padded conv3 output
            pltpu.VMEM((3, NHALF, NPAD), jnp.bfloat16),   # wb3 landing buffer
            pltpu.VMEM((3, NPAD, NPAD), jnp.bfloat16),    # wb4 landing buffer
            pltpu.VMEM((H2, NPAD, FEAT), jnp.bfloat16),   # wl  landing buffer
            pltpu.SemaphoreType.DMA((3,)),
        ],
        compiler_params=pltpu.CompilerParams(vmem_limit_bytes=16 * 1024 * 1024),
    )

    def fwd(x_nchw, kp):
        # NCHW (B,1,28,14) -> interleaved padded row layout: row (h+1)*B + b,
        # with shared zero padding row-blocks at h = -1 and h = H1.
        xs = x_nchw.reshape(B, H1, W1)
        xt = jnp.transpose(xs, (1, 0, 2))                       # (H1, B, W1)
        xr = jnp.pad(xt, ((1, 1), (0, 0), (0, 0))).reshape(R1, W1)
        return call(xr, kp["wb1"], kp["bb1"], kp["wb2"], kp["bb2"], kp["esel"],
                    kp["bb3"], kp["bb4"], kp["bl"], kp["wc"], kp["bc"],
                    kp["wb3"], kp["wb4"], kp["wl"])

    return jax.jit(fwd)


# -------------------- one-time weight preparation (host) ---------------------
def _band(w_hwio, width, in_cols, out_cols, out_col_of_w=None):
    """Width-band matrix per kernel row ky: maps (w_in, c_in) input lanes to
    (w_out, c_out) output lanes with 'same' zero padding along width baked in.
    in_cols/out_cols may be larger than width*channels (zero-padded lanes)."""
    cin, cout = w_hwio.shape[2], w_hwio.shape[3]
    band = np.zeros((3, in_cols, out_cols), np.float32)
    for ky in range(3):
        for wo in range(width):
            co = wo * cout if out_col_of_w is None else out_col_of_w[wo]
            for kx in range(3):
                wi = wo + kx - 1
                if 0 <= wi < width:
                    band[ky, wi * cin:(wi + 1) * cin, co:co + cout] = w_hwio[ky, kx]
    return band


def prepare_params(torch_params, B):
    """Convert PyTorch-layout weights (Conv2d OIHW, Linear (out,in)) into the
    kernel layout: 512-lane-padded band matrices (im2col folded into weights),
    bf16 storage, conv2 even/odd column permutation for the fused pool, pool
    row selectors for the interleaved layout, and per-height-row Linear blocks
    with the NCHW flatten folded in."""
    p = {k: np.asarray(jax.device_get(v), np.float32) for k, v in torch_params.items()}
    w1 = p["conv1_w"].transpose(2, 3, 1, 0)       # OIHW -> HWIO
    w2 = p["conv2_w"].transpose(2, 3, 1, 0)
    w3 = p["conv3_w"].transpose(2, 3, 1, 0)
    w4 = p["conv4_w"].transpose(2, 3, 1, 0)

    # conv1: 14 input lanes (w, cin=1) -> 512 output lanes (w*32 + c, padded).
    wb1 = _band(w1, W1, W1 * C0, NPAD)                          # (3, 14, 512)
    bb1 = np.zeros((1, NPAD), np.float32)
    bb1[0, :W1 * C1] = np.tile(p["conv1_b"], W1)

    # conv2: 512 -> 512, output columns permuted to [even-w | 0 | odd-w | 0].
    perm2 = [(wo // 2) * C1 if wo % 2 == 0 else NHALF + (wo // 2) * C1
             for wo in range(W1)]
    wb2 = _band(w2, W1, NPAD, NPAD, out_col_of_w=perm2)         # (3, 512, 512)
    bb2 = np.zeros((1, NPAD), np.float32)
    for wo in range(W1):
        bb2[0, perm2[wo]:perm2[wo] + C1] = p["conv2_b"]

    # conv3: 256 pooled lanes (w*32 + c, 224 real) -> 512 lanes (w*64 + c).
    wb3 = _band(w3, W2, NHALF, NPAD)                            # (3, 256, 512)
    bb3 = np.zeros((1, NPAD), np.float32)
    bb3[0, :W2 * C2] = np.tile(p["conv3_b"], W2)

    # conv4: 512 -> 512.
    wb4 = _band(w4, W2, NPAD, NPAD)                             # (3, 512, 512)
    bb4 = np.zeros((1, NPAD), np.float32)
    bb4[0, :W2 * C2] = np.tile(p["conv4_b"], W2)

    # 0/1 row selectors for the pool: conv2-output rows (2i)*B+b / (2i+1)*B+b
    # out of the interleaved layout (row = h*B + b) -> pooled row i*B + b.
    M1r, M2r = H1 * B, H2 * B
    se = np.zeros((M2r, M1r), np.float32)
    so = np.zeros((M2r, M1r), np.float32)
    for i in range(H2):
        for b in range(B):
            se[i * B + b, (2 * i) * B + b] = 1.0
            so[i * B + b, (2 * i + 1) * B + b] = 1.0
    esel = np.stack([se, so])                                   # (2, M2r, M1r)

    # Linear: PyTorch stores (256, 6272) with NCHW-flattened columns; the kernel
    # consumes per-height blocks wl[i] of shape (512, 256) whose rows follow the
    # conv4 lane order (w*64 + c), last 64 rows zero.
    wl_t = p["lin_w"].T                                         # (6272, 256), NCHW rows
    hh, ww, cc = np.meshgrid(np.arange(H2), np.arange(W2), np.arange(C2),
                             indexing="ij")
    nchw_idx = (cc * (H2 * W2) + hh * W2 + ww).reshape(H2, W2 * C2)
    wl = np.zeros((H2, NPAD, FEAT), np.float32)
    wl[:, :W2 * C2, :] = wl_t[nchw_idx]                         # (14, 512, 256)
    bl = p["lin_b"][None, :]
    wc = p["cls_w"].T                                           # (256, 10)
    bc = p["cls_b"][None, :]

    bf, f32 = jnp.bfloat16, jnp.float32
    return {
        "wb1": jnp.asarray(wb1, bf), "bb1": jnp.asarray(bb1, f32),
        "wb2": jnp.asarray(wb2, bf), "bb2": jnp.asarray(bb2, f32),
        "esel": jnp.asarray(esel, bf),
        "wb3": jnp.asarray(wb3, bf), "bb3": jnp.asarray(bb3, f32),
        "wb4": jnp.asarray(wb4, bf), "bb4": jnp.asarray(bb4, f32),
        "wl": jnp.asarray(wl, bf), "bl": jnp.asarray(bl, f32),
        "wc": jnp.asarray(wc, bf), "bc": jnp.asarray(bc, f32),
    }


# --------------------- init + pure-JAX reference (f32) -----------------------
def init_torch_params(key):
    """Random weights in native PyTorch layouts (Conv2d: OIHW, Linear: (out, in))."""
    def u(k, shape, fan_in):
        bound = 1.0 / np.sqrt(fan_in)
        return jax.random.uniform(k, shape, jnp.float32, -bound, bound)

    ks = jax.random.split(key, 12)
    return {
        "conv1_w": u(ks[0], (C1, C0, 3, 3), C0 * 9), "conv1_b": u(ks[1], (C1,), C0 * 9),
        "conv2_w": u(ks[2], (C1, C1, 3, 3), C1 * 9), "conv2_b": u(ks[3], (C1,), C1 * 9),
        "conv3_w": u(ks[4], (C2, C1, 3, 3), C1 * 9), "conv3_b": u(ks[5], (C2,), C1 * 9),
        "conv4_w": u(ks[6], (C2, C2, 3, 3), C2 * 9), "conv4_b": u(ks[7], (C2,), C2 * 9),
        "lin_w": u(ks[8], (FEAT, FLAT), FLAT),       "lin_b": u(ks[9], (FEAT,), FLAT),
        "cls_w": u(ks[10], (NCLS, FEAT), FEAT),      "cls_b": u(ks[11], (NCLS,), FEAT),
    }


def reference_forward(x_nchw, p):
    """Pure-JAX reference with PyTorch semantics (sanity check only)."""
    def conv_relu(a, w_oihw, b):
        w_hwio = jnp.transpose(w_oihw, (2, 3, 1, 0))
        y = jax.lax.conv_general_dilated(
            a, w_hwio, window_strides=(1, 1), padding="SAME",
            dimension_numbers=("NHWC", "HWIO", "NHWC"))
        return jax.nn.relu(y + b)

    a = jnp.transpose(x_nchw, (0, 2, 3, 1))                       # NCHW -> NHWC
    a = conv_relu(a, p["conv1_w"], p["conv1_b"])
    a = conv_relu(a, p["conv2_w"], p["conv2_b"])
    a = jax.lax.reduce_window(a, -jnp.inf, jax.lax.max,
                              (1, 2, 2, 1), (1, 2, 2, 1), "VALID")
    a = conv_relu(a, p["conv3_w"], p["conv3_b"])
    a = conv_relu(a, p["conv4_w"], p["conv4_b"])
    flat = jnp.transpose(a, (0, 3, 1, 2)).reshape(a.shape[0], -1)  # PyTorch .view()
    feat = flat @ p["lin_w"].T + p["lin_b"]
    logits = feat @ p["cls_w"].T + p["cls_b"]
    return feat, logits


# --------------------------------- main ---------------------------------------
if __name__ == "__main__":
    key = jax.random.PRNGKey(0)
    kx, kp = jax.random.split(key)

    B = 2
    # VFL_Client consumes one 28x14 half of a Fashion-MNIST image (NCHW).
    x = jax.random.normal(kx, (B, C0, H1, W1), dtype=jnp.float32)

    torch_params = init_torch_params(kp)          # PyTorch-layout weights
    kparams = prepare_params(torch_params, B)     # kernel-layout (bf16) weights

    client_forward = make_client_forward(B)
    feat, logits = jax.block_until_ready(client_forward(x, kparams))

    assert feat.shape == (B, FEAT) and logits.shape == (B, NCLS)

    # Loose check against the pure-JAX f32 reference (kernel uses bf16 matmul
    # operands / bf16 activation scratch with f32 accumulation).
    feat_ref, logits_ref = reference_forward(x, torch_params)
    assert np.allclose(np.asarray(feat), np.asarray(feat_ref), rtol=5e-2, atol=5e-2)
    assert np.allclose(np.asarray(logits), np.asarray(logits_ref), rtol=5e-2, atol=5e-2)

    print("KERNEL_OK")
</pallas_src>

<mosaic_0001>
module attributes {stable_mosaic.version = 11 : i64} {
  func.func @_client_kernel(%arg0: memref<60x14xf32, #tpu.memory_space<vmem>>, %arg1: memref<3x14x512xbf16, #tpu.memory_space<vmem>>, %arg2: memref<1x512xf32, #tpu.memory_space<vmem>>, %arg3: memref<3x512x512xbf16, #tpu.memory_space<vmem>>, %arg4: memref<1x512xf32, #tpu.memory_space<vmem>>, %arg5: memref<2x28x56xbf16, #tpu.memory_space<vmem>>, %arg6: memref<1x512xf32, #tpu.memory_space<vmem>>, %arg7: memref<1x512xf32, #tpu.memory_space<vmem>>, %arg8: memref<1x256xf32, #tpu.memory_space<vmem>>, %arg9: memref<256x10xbf16, #tpu.memory_space<vmem>>, %arg10: memref<1x10xf32, #tpu.memory_space<vmem>>, %arg11: memref<3x256x512xbf16, #tpu.memory_space<any>>, %arg12: memref<3x512x512xbf16, #tpu.memory_space<any>>, %arg13: memref<14x512x256xbf16, #tpu.memory_space<any>>, %arg14: memref<2x256xf32, #tpu.memory_space<vmem>>, %arg15: memref<2x10xf32, #tpu.memory_space<vmem>>, %arg16: memref<60x512xbf16, #tpu.memory_space<vmem>>, %arg17: memref<32x256xbf16, #tpu.memory_space<vmem>>, %arg18: memref<32x512xbf16, #tpu.memory_space<vmem>>, %arg19: memref<3x256x512xbf16, #tpu.memory_space<vmem>>, %arg20: memref<3x512x512xbf16, #tpu.memory_space<vmem>>, %arg21: memref<14x512x256xbf16, #tpu.memory_space<vmem>>, %arg22: memref<3x!tpu.dma_semaphore, #tpu.memory_space<semaphore_mem>>) attributes {dimension_semantics = [], scalar_prefetch = 0 : i64, scratch_operands = 7 : i64, tpu.core_type = #tpu.core_type<tc>} {
    %c0_i32 = arith.constant 0 : i32
    %0 = tpu.memref_slice %arg22[%c0_i32] : memref<3x!tpu.dma_semaphore, #tpu.memory_space<semaphore_mem>> -> memref<1x!tpu.dma_semaphore, #tpu.memory_space<semaphore_mem>>
    %1 = tpu.memref_squeeze %0 : memref<1x!tpu.dma_semaphore, #tpu.memory_space<semaphore_mem>> -> memref<!tpu.dma_semaphore, #tpu.memory_space<semaphore_mem>>
    tpu.enqueue_dma source(%arg11 : memref<3x256x512xbf16, #tpu.memory_space<any>>) target(%arg19 : memref<3x256x512xbf16, #tpu.memory_space<vmem>>) target_semaphore(%1 : memref<!tpu.dma_semaphore, #tpu.memory_space<semaphore_mem>>)
    %c1_i32 = arith.constant 1 : i32
    %2 = tpu.memref_slice %arg22[%c1_i32] : memref<3x!tpu.dma_semaphore, #tpu.memory_space<semaphore_mem>> -> memref<1x!tpu.dma_semaphore, #tpu.memory_space<semaphore_mem>>
    %3 = tpu.memref_squeeze %2 : memref<1x!tpu.dma_semaphore, #tpu.memory_space<semaphore_mem>> -> memref<!tpu.dma_semaphore, #tpu.memory_space<semaphore_mem>>
    tpu.enqueue_dma source(%arg12 : memref<3x512x512xbf16, #tpu.memory_space<any>>) target(%arg20 : memref<3x512x512xbf16, #tpu.memory_space<vmem>>) target_semaphore(%3 : memref<!tpu.dma_semaphore, #tpu.memory_space<semaphore_mem>>)
    %c2_i32 = arith.constant 2 : i32
    %4 = tpu.memref_slice %arg22[%c2_i32] : memref<3x!tpu.dma_semaphore, #tpu.memory_space<semaphore_mem>> -> memref<1x!tpu.dma_semaphore, #tpu.memory_space<semaphore_mem>>
    %5 = tpu.memref_squeeze %4 : memref<1x!tpu.dma_semaphore, #tpu.memory_space<semaphore_mem>> -> memref<!tpu.dma_semaphore, #tpu.memory_space<semaphore_mem>>
    tpu.enqueue_dma source(%arg13 : memref<14x512x256xbf16, #tpu.memory_space<any>>) target(%arg21 : memref<14x512x256xbf16, #tpu.memory_space<vmem>>) target_semaphore(%5 : memref<!tpu.dma_semaphore, #tpu.memory_space<semaphore_mem>>)
    %cst = arith.constant 0.000000e+00 : bf16
    %6 = vector.broadcast %cst : bf16 to vector<60x512xbf16>
    %c0 = arith.constant 0 : index
    %c0_0 = arith.constant 0 : index
    %7 = vector.load %arg16[%c0, %c0_0] : memref<60x512xbf16, #tpu.memory_space<vmem>>, vector<60x512xbf16>
    tpu.vector_store %arg16[%c0, %c0_0], %6 {strides = array<i32>} : memref<60x512xbf16, #tpu.memory_space<vmem>>, vector<60x512xbf16>,
    %cst_1 = arith.constant 0.000000e+00 : bf16
    %8 = vector.broadcast %cst_1 : bf16 to vector<32x256xbf16>
    %c0_2 = arith.constant 0 : index
    %c0_3 = arith.constant 0 : index
    %9 = vector.load %arg17[%c0_2, %c0_3] : memref<32x256xbf16, #tpu.memory_space<vmem>>, vector<32x256xbf16>
    tpu.vector_store %arg17[%c0_2, %c0_3], %8 {strides = array<i32>} : memref<32x256xbf16, #tpu.memory_space<vmem>>, vector<32x256xbf16>,
    %cst_4 = arith.constant 0.000000e+00 : bf16
    %10 = vector.broadcast %cst_4 : bf16 to vector<32x512xbf16>
    %c0_5 = arith.constant 0 : index
    %c0_6 = arith.constant 0 : index
    %11 = vector.load %arg18[%c0_5, %c0_6] : memref<32x512xbf16, #tpu.memory_space<vmem>>, vector<32x512xbf16>
    tpu.vector_store %arg18[%c0_5, %c0_6], %10 {strides = array<i32>} : memref<32x512xbf16, #tpu.memory_space<vmem>>, vector<32x512xbf16>,
    %c0_7 = arith.constant 0 : index
    %c0_8 = arith.constant 0 : index
    %12 = vector.load %arg0[%c0_7, %c0_8] : memref<60x14xf32, #tpu.memory_space<vmem>>, vector<60x14xf32>
    %13 = arith.truncf %12 : vector<60x14xf32> to vector<60x14xbf16>
    %14 = vector.extract_strided_slice %13 {offsets = [0, 0], sizes = [56, 14], strides = [1, 1]} : vector<60x14xbf16> to vector<56x14xbf16>
    %c0_9 = arith.constant 0 : index
    %c0_10 = arith.constant 0 : index
    %c0_11 = arith.constant 0 : index
    %15 = vector.load %arg1[%c0_9, %c0_10, %c0_11] : memref<3x14x512xbf16, #tpu.memory_space<vmem>>, vector<1x14x512xbf16>
    %16 = vector.shape_cast %15 : vector<1x14x512xbf16> to vector<14x512xbf16>
    %cst_12 = arith.constant dense<0.000000e+00> : vector<56x512xf32>
    %17 = tpu.matmul %14, %16, %cst_12 {dimension_numbers = #tpu.dot_dimension_numbers<[1], [0], [0], [1], [0, 0, 1, 1], [], []>} : vector<56x14xbf16>, vector<14x512xbf16>, vector<56x512xf32> -> vector<56x512xf32>
    %18 = vector.extract_strided_slice %13 {offsets = [2, 0], sizes = [56, 14], strides = [1, 1]} : vector<60x14xbf16> to vector<56x14xbf16>
    %c1 = arith.constant 1 : index
    %c0_13 = arith.constant 0 : index
    %c0_14 = arith.constant 0 : index
    %19 = vector.load %arg1[%c1, %c0_13, %c0_14] : memref<3x14x512xbf16, #tpu.memory_space<vmem>>, vector<1x14x512xbf16>
    %20 = vector.shape_cast %19 : vector<1x14x512xbf16> to vector<14x512xbf16>
    %cst_15 = arith.constant dense<0.000000e+00> : vector<56x512xf32>
    %21 = tpu.matmul %18, %20, %cst_15 {dimension_numbers = #tpu.dot_dimension_numbers<[1], [0], [0], [1], [0, 0, 1, 1], [], []>} : vector<56x14xbf16>, vector<14x512xbf16>, vector<56x512xf32> -> vector<56x512xf32>
    %22 = arith.addf %17, %21 : vector<56x512xf32>
    %23 = vector.extract_strided_slice %13 {offsets = [4, 0], sizes = [56, 14], strides = [1, 1]} : vector<60x14xbf16> to vector<56x14xbf16>
    %c2 = arith.constant 2 : index
    %c0_16 = arith.constant 0 : index
    %c0_17 = arith.constant 0 : index
    %24 = vector.load %arg1[%c2, %c0_16, %c0_17] : memref<3x14x512xbf16, #tpu.memory_space<vmem>>, vector<1x14x512xbf16>
    %25 = vector.shape_cast %24 : vector<1x14x512xbf16> to vector<14x512xbf16>
    %cst_18 = arith.constant dense<0.000000e+00> : vector<56x512xf32>
    %26 = tpu.matmul %23, %25, %cst_18 {dimension_numbers = #tpu.dot_dimension_numbers<[1], [0], [0], [1], [0, 0, 1, 1], [], []>} : vector<56x14xbf16>, vector<14x512xbf16>, vector<56x512xf32> -> vector<56x512xf32>
    %27 = arith.addf %22, %26 : vector<56x512xf32>
    %c0_19 = arith.constant 0 : index
    %c0_20 = arith.constant 0 : index
    %28 = vector.load %arg2[%c0_19, %c0_20] : memref<1x512xf32, #tpu.memory_space<vmem>>, vector<1x512xf32>
    %29 = vector.broadcast %28 : vector<1x512xf32> to vector<56x512xf32>
    %30 = arith.addf %27, %29 : vector<56x512xf32>
    %cst_21 = arith.constant 0.000000e+00 : f32
    %31 = vector.broadcast %cst_21 : f32 to vector<56x512xf32>
    %32 = arith.maximumf %30, %31 : vector<56x512xf32>
    %33 = arith.truncf %32 : vector<56x512xf32> to vector<56x512xbf16>
    %c2_22 = arith.constant 2 : index
    %c0_23 = arith.constant 0 : index
    %34 = vector.load %arg16[%c2_22, %c0_23] : memref<60x512xbf16, #tpu.memory_space<vmem>>, vector<56x512xbf16>
    tpu.vector_store %arg16[%c2_22, %c0_23], %33 {strides = array<i32>} : memref<60x512xbf16, #tpu.memory_space<vmem>>, vector<56x512xbf16>,
    %c0_24 = arith.constant 0 : index
    %c0_25 = arith.constant 0 : index
    %35 = vector.load %arg16[%c0_24, %c0_25] : memref<60x512xbf16, #tpu.memory_space<vmem>>, vector<60x512xbf16>
    %36 = vector.extract_strided_slice %35 {offsets = [0, 0], sizes = [56, 512], strides = [1, 1]} : vector<60x512xbf16> to vector<56x512xbf16>
    %c0_26 = arith.constant 0 : index
    %c0_27 = arith.constant 0 : index
    %c0_28 = arith.constant 0 : index
    %37 = vector.load %arg3[%c0_26, %c0_27, %c0_28] : memref<3x512x512xbf16, #tpu.memory_space<vmem>>, vector<1x512x512xbf16>
    %38 = vector.shape_cast %37 : vector<1x512x512xbf16> to vector<512x512xbf16>
    %cst_29 = arith.constant dense<0.000000e+00> : vector<56x512xf32>
    %39 = tpu.matmul %36, %38, %cst_29 {dimension_numbers = #tpu.dot_dimension_numbers<[1], [0], [0], [1], [0, 0, 1, 1], [], []>} : vector<56x512xbf16>, vector<512x512xbf16>, vector<56x512xf32> -> vector<56x512xf32>
    %40 = vector.extract_strided_slice %35 {offsets = [2, 0], sizes = [56, 512], strides = [1, 1]} : vector<60x512xbf16> to vector<56x512xbf16>
    %c1_30 = arith.constant 1 : index
    %c0_31 = arith.constant 0 : index
    %c0_32 = arith.constant 0 : index
    %41 = vector.load %arg3[%c1_30, %c0_31, %c0_32] : memref<3x512x512xbf16, #tpu.memory_space<vmem>>, vector<1x512x512xbf16>
    %42 = vector.shape_cast %41 : vector<1x512x512xbf16> to vector<512x512xbf16>
    %cst_33 = arith.constant dense<0.000000e+00> : vector<56x512xf32>
    %43 = tpu.matmul %40, %42, %cst_33 {dimension_numbers = #tpu.dot_dimension_numbers<[1], [0], [0], [1], [0, 0, 1, 1], [], []>} : vector<56x512xbf16>, vector<512x512xbf16>, vector<56x512xf32> -> vector<56x512xf32>
    %44 = arith.addf %39, %43 : vector<56x512xf32>
    %45 = vector.extract_strided_slice %35 {offsets = [4, 0], sizes = [56, 512], strides = [1, 1]} : vector<60x512xbf16> to vector<56x512xbf16>
    %c2_34 = arith.constant 2 : index
    %c0_35 = arith.constant 0 : index
    %c0_36 = arith.constant 0 : index
    %46 = vector.load %arg3[%c2_34, %c0_35, %c0_36] : memref<3x512x512xbf16, #tpu.memory_space<vmem>>, vector<1x512x512xbf16>
    %47 = vector.shape_cast %46 : vector<1x512x512xbf16> to vector<512x512xbf16>
    %cst_37 = arith.constant dense<0.000000e+00> : vector<56x512xf32>
    %48 = tpu.matmul %45, %47, %cst_37 {dimension_numbers = #tpu.dot_dimension_numbers<[1], [0], [0], [1], [0, 0, 1, 1], [], []>} : vector<56x512xbf16>, vector<512x512xbf16>, vector<56x512xf32> -> vector<56x512xf32>
    %49 = arith.addf %44, %48 : vector<56x512xf32>
    %c0_38 = arith.constant 0 : index
    %c0_39 = arith.constant 0 : index
    %50 = vector.load %arg4[%c0_38, %c0_39] : memref<1x512xf32, #tpu.memory_space<vmem>>, vector<1x512xf32>
    %51 = vector.broadcast %50 : vector<1x512xf32> to vector<56x512xf32>
    %52 = arith.addf %49, %51 : vector<56x512xf32>
    %cst_40 = arith.constant 0.000000e+00 : f32
    %53 = vector.broadcast %cst_40 : f32 to vector<56x512xf32>
    %54 = arith.maximumf %52, %53 : vector<56x512xf32>
    %55 = arith.truncf %54 : vector<56x512xf32> to vector<56x512xbf16>
    %c0_41 = arith.constant 0 : index
    %c0_42 = arith.constant 0 : index
    %c0_43 = arith.constant 0 : index
    %56 = vector.load %arg5[%c0_41, %c0_42, %c0_43] : memref<2x28x56xbf16, #tpu.memory_space<vmem>>, vector<1x28x56xbf16>
    %57 = vector.shape_cast %56 : vector<1x28x56xbf16> to vector<28x56xbf16>
    %cst_44 = arith.constant dense<0.000000e+00> : vector<28x512xf32>
    %58 = tpu.matmul %57, %55, %cst_44 {dimension_numbers = #tpu.dot_dimension_numbers<[1], [0], [0], [1], [0, 0, 1, 1], [], []>} : vector<28x56xbf16>, vector<56x512xbf16>, vector<28x512xf32> -> vector<28x512xf32>
    %c1_45 = arith.constant 1 : index
    %c0_46 = arith.constant 0 : index
    %c0_47 = arith.constant 0 : index
    %59 = vector.load %arg5[%c1_45, %c0_46, %c0_47] : memref<2x28x56xbf16, #tpu.memory_space<vmem>>, vector<1x28x56xbf16>
    %60 = vector.shape_cast %59 : vector<1x28x56xbf16> to vector<28x56xbf16>
    %cst_48 = arith.constant dense<0.000000e+00> : vector<28x512xf32>
    %61 = tpu.matmul %60, %55, %cst_48 {dimension_numbers = #tpu.dot_dimension_numbers<[1], [0], [0], [1], [0, 0, 1, 1], [], []>} : vector<28x56xbf16>, vector<56x512xbf16>, vector<28x512xf32> -> vector<28x512xf32>
    %62 = arith.maximumf %58, %61 : vector<28x512xf32>
    %63 = vector.extract_strided_slice %62 {offsets = [0, 0], sizes = [28, 256], strides = [1, 1]} : vector<28x512xf32> to vector<28x256xf32>
    %64 = vector.extract_strided_slice %62 {offsets = [0, 256], sizes = [28, 256], strides = [1, 1]} : vector<28x512xf32> to vector<28x256xf32>
    %65 = arith.maximumf %63, %64 : vector<28x256xf32>
    %66 = arith.truncf %65 : vector<28x256xf32> to vector<28x256xbf16>
    %c2_49 = arith.constant 2 : index
    %c0_50 = arith.constant 0 : index
    %67 = vector.load %arg17[%c2_49, %c0_50] : memref<32x256xbf16, #tpu.memory_space<vmem>>, vector<28x256xbf16>
    tpu.vector_store %arg17[%c2_49, %c0_50], %66 {strides = array<i32>} : memref<32x256xbf16, #tpu.memory_space<vmem>>, vector<28x256xbf16>,
    %c0_i32_51 = arith.constant 0 : i32
    %68 = tpu.memref_slice %arg22[%c0_i32_51] : memref<3x!tpu.dma_semaphore, #tpu.memory_space<semaphore_mem>> -> memref<1x!tpu.dma_semaphore, #tpu.memory_space<semaphore_mem>>
    %69 = tpu.memref_squeeze %68 : memref<1x!tpu.dma_semaphore, #tpu.memory_space<semaphore_mem>> -> memref<!tpu.dma_semaphore, #tpu.memory_space<semaphore_mem>>
    tpu.wait_dma2 semaphore(%69 : memref<!tpu.dma_semaphore, #tpu.memory_space<semaphore_mem>>) src(%arg11 : memref<3x256x512xbf16, #tpu.memory_space<any>>) dst(%arg19 : memref<3x256x512xbf16, #tpu.memory_space<vmem>>)
    %c0_52 = arith.constant 0 : index
    %c0_53 = arith.constant 0 : index
    %70 = vector.load %arg17[%c0_52, %c0_53] : memref<32x256xbf16, #tpu.memory_space<vmem>>, vector<32x256xbf16>
    %71 = vector.extract_strided_slice %70 {offsets = [0, 0], sizes = [28, 256], strides = [1, 1]} : vector<32x256xbf16> to vector<28x256xbf16>
    %c0_54 = arith.constant 0 : index
    %c0_55 = arith.constant 0 : index
    %c0_56 = arith.constant 0 : index
    %72 = vector.load %arg19[%c0_54, %c0_55, %c0_56] : memref<3x256x512xbf16, #tpu.memory_space<vmem>>, vector<1x256x512xbf16>
    %73 = vector.shape_cast %72 : vector<1x256x512xbf16> to vector<256x512xbf16>
    %cst_57 = arith.constant dense<0.000000e+00> : vector<28x512xf32>
    %74 = tpu.matmul %71, %73, %cst_57 {dimension_numbers = #tpu.dot_dimension_numbers<[1], [0], [0], [1], [0, 0, 1, 1], [], []>} : vector<28x256xbf16>, vector<256x512xbf16>, vector<28x512xf32> -> vector<28x512xf32>
    %75 = vector.extract_strided_slice %70 {offsets = [2, 0], sizes = [28, 256], strides = [1, 1]} : vector<32x256xbf16> to vector<28x256xbf16>
    %c1_58 = arith.constant 1 : index
    %c0_59 = arith.constant 0 : index
    %c0_60 = arith.constant 0 : index
    %76 = vector.load %arg19[%c1_58, %c0_59, %c0_60] : memref<3x256x512xbf16, #tpu.memory_space<vmem>>, vector<1x256x512xbf16>
    %77 = vector.shape_cast %76 : vector<1x256x512xbf16> to vector<256x512xbf16>
    %cst_61 = arith.constant dense<0.000000e+00> : vector<28x512xf32>
    %78 = tpu.matmul %75, %77, %cst_61 {dimension_numbers = #tpu.dot_dimension_numbers<[1], [0], [0], [1], [0, 0, 1, 1], [], []>} : vector<28x256xbf16>, vector<256x512xbf16>, vector<28x512xf32> -> vector<28x512xf32>
    %79 = arith.addf %74, %78 : vector<28x512xf32>
    %80 = vector.extract_strided_slice %70 {offsets = [4, 0], sizes = [28, 256], strides = [1, 1]} : vector<32x256xbf16> to vector<28x256xbf16>
    %c2_62 = arith.constant 2 : index
    %c0_63 = arith.constant 0 : index
    %c0_64 = arith.constant 0 : index
    %81 = vector.load %arg19[%c2_62, %c0_63, %c0_64] : memref<3x256x512xbf16, #tpu.memory_space<vmem>>, vector<1x256x512xbf16>
    %82 = vector.shape_cast %81 : vector<1x256x512xbf16> to vector<256x512xbf16>
    %cst_65 = arith.constant dense<0.000000e+00> : vector<28x512xf32>
    %83 = tpu.matmul %80, %82, %cst_65 {dimension_numbers = #tpu.dot_dimension_numbers<[1], [0], [0], [1], [0, 0, 1, 1], [], []>} : vector<28x256xbf16>, vector<256x512xbf16>, vector<28x512xf32> -> vector<28x512xf32>
    %84 = arith.addf %79, %83 : vector<28x512xf32>
    %c0_66 = arith.constant 0 : index
    %c0_67 = arith.constant 0 : index
    %85 = vector.load %arg6[%c0_66, %c0_67] : memref<1x512xf32, #tpu.memory_space<vmem>>, vector<1x512xf32>
    %86 = vector.broadcast %85 : vector<1x512xf32> to vector<28x512xf32>
    %87 = arith.addf %84, %86 : vector<28x512xf32>
    %cst_68 = arith.constant 0.000000e+00 : f32
    %88 = vector.broadcast %cst_68 : f32 to vector<28x512xf32>
    %89 = arith.maximumf %87, %88 : vector<28x512xf32>
    %90 = arith.truncf %89 : vector<28x512xf32> to vector<28x512xbf16>
    %c2_69 = arith.constant 2 : index
    %c0_70 = arith.constant 0 : index
    %91 = vector.load %arg18[%c2_69, %c0_70] : memref<32x512xbf16, #tpu.memory_space<vmem>>, vector<28x512xbf16>
    tpu.vector_store %arg18[%c2_69, %c0_70], %90 {strides = array<i32>} : memref<32x512xbf16, #tpu.memory_space<vmem>>, vector<28x512xbf16>,
    %c1_i32_71 = arith.constant 1 : i32
    %92 = tpu.memref_slice %arg22[%c1_i32_71] : memref<3x!tpu.dma_semaphore, #tpu.memory_space<semaphore_mem>> -> memref<1x!tpu.dma_semaphore, #tpu.memory_space<semaphore_mem>>
    %93 = tpu.memref_squeeze %92 : memref<1x!tpu.dma_semaphore, #tpu.memory_space<semaphore_mem>> -> memref<!tpu.dma_semaphore, #tpu.memory_space<semaphore_mem>>
    tpu.wait_dma2 semaphore(%93 : memref<!tpu.dma_semaphore, #tpu.memory_space<semaphore_mem>>) src(%arg12 : memref<3x512x512xbf16, #tpu.memory_space<any>>) dst(%arg20 : memref<3x512x512xbf16, #tpu.memory_space<vmem>>)
    %c0_72 = arith.constant 0 : index
    %c0_73 = arith.constant 0 : index
    %94 = vector.load %arg18[%c0_72, %c0_73] : memref<32x512xbf16, #tpu.memory_space<vmem>>, vector<32x512xbf16>
    %95 = vector.extract_strided_slice %94 {offsets = [0, 0], sizes = [28, 512], strides = [1, 1]} : vector<32x512xbf16> to vector<28x512xbf16>
    %c0_74 = arith.constant 0 : index
    %c0_75 = arith.constant 0 : index
    %c0_76 = arith.constant 0 : index
    %96 = vector.load %arg20[%c0_74, %c0_75, %c0_76] : memref<3x512x512xbf16, #tpu.memory_space<vmem>>, vector<1x512x512xbf16>
    %97 = vector.shape_cast %96 : vector<1x512x512xbf16> to vector<512x512xbf16>
    %cst_77 = arith.constant dense<0.000000e+00> : vector<28x512xf32>
    %98 = tpu.matmul %95, %97, %cst_77 {dimension_numbers = #tpu.dot_dimension_numbers<[1], [0], [0], [1], [0, 0, 1, 1], [], []>} : vector<28x512xbf16>, vector<512x512xbf16>, vector<28x512xf32> -> vector<28x512xf32>
    %99 = vector.extract_strided_slice %94 {offsets = [2, 0], sizes = [28, 512], strides = [1, 1]} : vector<32x512xbf16> to vector<28x512xbf16>
    %c1_78 = arith.constant 1 : index
    %c0_79 = arith.constant 0 : index
    %c0_80 = arith.constant 0 : index
    %100 = vector.load %arg20[%c1_78, %c0_79, %c0_80] : memref<3x512x512xbf16, #tpu.memory_space<vmem>>, vector<1x512x512xbf16>
    %101 = vector.shape_cast %100 : vector<1x512x512xbf16> to vector<512x512xbf16>
    %cst_81 = arith.constant dense<0.000000e+00> : vector<28x512xf32>
    %102 = tpu.matmul %99, %101, %cst_81 {dimension_numbers = #tpu.dot_dimension_numbers<[1], [0], [0], [1], [0, 0, 1, 1], [], []>} : vector<28x512xbf16>, vector<512x512xbf16>, vector<28x512xf32> -> vector<28x512xf32>
    %103 = arith.addf %98, %102 : vector<28x512xf32>
    %104 = vector.extract_strided_slice %94 {offsets = [4, 0], sizes = [28, 512], strides = [1, 1]} : vector<32x512xbf16> to vector<28x512xbf16>
    %c2_82 = arith.constant 2 : index
    %c0_83 = arith.constant 0 : index
    %c0_84 = arith.constant 0 : index
    %105 = vector.load %arg20[%c2_82, %c0_83, %c0_84] : memref<3x512x512xbf16, #tpu.memory_space<vmem>>, vector<1x512x512xbf16>
    %106 = vector.shape_cast %105 : vector<1x512x512xbf16> to vector<512x512xbf16>
    %cst_85 = arith.constant dense<0.000000e+00> : vector<28x512xf32>
    %107 = tpu.matmul %104, %106, %cst_85 {dimension_numbers = #tpu.dot_dimension_numbers<[1], [0], [0], [1], [0, 0, 1, 1], [], []>} : vector<28x512xbf16>, vector<512x512xbf16>, vector<28x512xf32> -> vector<28x512xf32>
    %108 = arith.addf %103, %107 : vector<28x512xf32>
    %c0_86 = arith.constant 0 : index
    %c0_87 = arith.constant 0 : index
    %109 = vector.load %arg7[%c0_86, %c0_87] : memref<1x512xf32, #tpu.memory_space<vmem>>, vector<1x512xf32>
    %110 = vector.broadcast %109 : vector<1x512xf32> to vector<28x512xf32>
    %111 = arith.addf %108, %110 : vector<28x512xf32>
    %cst_88 = arith.constant 0.000000e+00 : f32
    %112 = vector.broadcast %cst_88 : f32 to vector<28x512xf32>
    %113 = arith.maximumf %111, %112 : vector<28x512xf32>
    %114 = arith.truncf %113 : vector<28x512xf32> to vector<28x512xbf16>
    %c2_i32_89 = arith.constant 2 : i32
    %115 = tpu.memref_slice %arg22[%c2_i32_89] : memref<3x!tpu.dma_semaphore, #tpu.memory_space<semaphore_mem>> -> memref<1x!tpu.dma_semaphore, #tpu.memory_space<semaphore_mem>>
    %116 = tpu.memref_squeeze %115 : memref<1x!tpu.dma_semaphore, #tpu.memory_space<semaphore_mem>> -> memref<!tpu.dma_semaphore, #tpu.memory_space<semaphore_mem>>
    tpu.wait_dma2 semaphore(%116 : memref<!tpu.dma_semaphore, #tpu.memory_space<semaphore_mem>>) src(%arg13 : memref<14x512x256xbf16, #tpu.memory_space<any>>) dst(%arg21 : memref<14x512x256xbf16, #tpu.memory_space<vmem>>)
    %cst_90 = arith.constant 0.000000e+00 : f32
    %117 = vector.broadcast %cst_90 : f32 to vector<2x256xf32>
    %118 = vector.extract_strided_slice %114 {offsets = [0, 0], sizes = [2, 512], strides = [1, 1]} : vector<28x512xbf16> to vector<2x512xbf16>
    %c0_91 = arith.constant 0 : index
    %c0_92 = arith.constant 0 : index
    %c0_93 = arith.constant 0 : index
    %119 = vector.load %arg21[%c0_91, %c0_92, %c0_93] : memref<14x512x256xbf16, #tpu.memory_space<vmem>>, vector<1x512x256xbf16>
    %120 = vector.shape_cast %119 : vector<1x512x256xbf16> to vector<512x256xbf16>
    %cst_94 = arith.constant dense<0.000000e+00> : vector<2x256xf32>
    %121 = tpu.matmul %118, %120, %cst_94 {dimension_numbers = #tpu.dot_dimension_numbers<[1], [0], [0], [1], [0, 0, 1, 1], [], []>} : vector<2x512xbf16>, vector<512x256xbf16>, vector<2x256xf32> -> vector<2x256xf32>
    %122 = arith.addf %117, %121 : vector<2x256xf32>
    %123 = vector.extract_strided_slice %114 {offsets = [2, 0], sizes = [2, 512], strides = [1, 1]} : vector<28x512xbf16> to vector<2x512xbf16>
    %c1_95 = arith.constant 1 : index
    %c0_96 = arith.constant 0 : index
    %c0_97 = arith.constant 0 : index
    %124 = vector.load %arg21[%c1_95, %c0_96, %c0_97] : memref<14x512x256xbf16, #tpu.memory_space<vmem>>, vector<1x512x256xbf16>
    %125 = vector.shape_cast %124 : vector<1x512x256xbf16> to vector<512x256xbf16>
    %cst_98 = arith.constant dense<0.000000e+00> : vector<2x256xf32>
    %126 = tpu.matmul %123, %125, %cst_98 {dimension_numbers = #tpu.dot_dimension_numbers<[1], [0], [0], [1], [0, 0, 1, 1], [], []>} : vector<2x512xbf16>, vector<512x256xbf16>, vector<2x256xf32> -> vector<2x256xf32>
    %127 = arith.addf %122, %126 : vector<2x256xf32>
    %128 = vector.extract_strided_slice %114 {offsets = [4, 0], sizes = [2, 512], strides = [1, 1]} : vector<28x512xbf16> to vector<2x512xbf16>
    %c2_99 = arith.constant 2 : index
    %c0_100 = arith.constant 0 : index
    %c0_101 = arith.constant 0 : index
    %129 = vector.load %arg21[%c2_99, %c0_100, %c0_101] : memref<14x512x256xbf16, #tpu.memory_space<vmem>>, vector<1x512x256xbf16>
    %130 = vector.shape_cast %129 : vector<1x512x256xbf16> to vector<512x256xbf16>
    %cst_102 = arith.constant dense<0.000000e+00> : vector<2x256xf32>
    %131 = tpu.matmul %128, %130, %cst_102 {dimension_numbers = #tpu.dot_dimension_numbers<[1], [0], [0], [1], [0, 0, 1, 1], [], []>} : vector<2x512xbf16>, vector<512x256xbf16>, vector<2x256xf32> -> vector<2x256xf32>
    %132 = arith.addf %127, %131 : vector<2x256xf32>
    %133 = vector.extract_strided_slice %114 {offsets = [6, 0], sizes = [2, 512], strides = [1, 1]} : vector<28x512xbf16> to vector<2x512xbf16>
    %c3 = arith.constant 3 : index
    %c0_103 = arith.constant 0 : index
    %c0_104 = arith.constant 0 : index
    %134 = vector.load %arg21[%c3, %c0_103, %c0_104] : memref<14x512x256xbf16, #tpu.memory_space<vmem>>, vector<1x512x256xbf16>
    %135 = vector.shape_cast %134 : vector<1x512x256xbf16> to vector<512x256xbf16>
    %cst_105 = arith.constant dense<0.000000e+00> : vector<2x256xf32>
    %136 = tpu.matmul %133, %135, %cst_105 {dimension_numbers = #tpu.dot_dimension_numbers<[1], [0], [0], [1], [0, 0, 1, 1], [], []>} : vector<2x512xbf16>, vector<512x256xbf16>, vector<2x256xf32> -> vector<2x256xf32>
    %137 = arith.addf %132, %136 : vector<2x256xf32>
    %138 = vector.extract_strided_slice %114 {offsets = [8, 0], sizes = [2, 512], strides = [1, 1]} : vector<28x512xbf16> to vector<2x512xbf16>
    %c4 = arith.constant 4 : index
    %c0_106 = arith.constant 0 : index
    %c0_107 = arith.constant 0 : index
    %139 = vector.load %arg21[%c4, %c0_106, %c0_107] : memref<14x512x256xbf16, #tpu.memory_space<vmem>>, vector<1x512x256xbf16>
    %140 = vector.shape_cast %139 : vector<1x512x256xbf16> to vector<512x256xbf16>
    %cst_108 = arith.constant dense<0.000000e+00> : vector<2x256xf32>
    %141 = tpu.matmul %138, %140, %cst_108 {dimension_numbers = #tpu.dot_dimension_numbers<[1], [0], [0], [1], [0, 0, 1, 1], [], []>} : vector<2x512xbf16>, vector<512x256xbf16>, vector<2x256xf32> -> vector<2x256xf32>
    %142 = arith.addf %137, %141 : vector<2x256xf32>
    %143 = vector.extract_strided_slice %114 {offsets = [10, 0], sizes = [2, 512], strides = [1, 1]} : vector<28x512xbf16> to vector<2x512xbf16>
    %c5 = arith.constant 5 : index
    %c0_109 = arith.constant 0 : index
    %c0_110 = arith.constant 0 : index
    %144 = vector.load %arg21[%c5, %c0_109, %c0_110] : memref<14x512x256xbf16, #tpu.memory_space<vmem>>, vector<1x512x256xbf16>
    %145 = vector.shape_cast %144 : vector<1x512x256xbf16> to vector<512x256xbf16>
    %cst_111 = arith.constant dense<0.000000e+00> : vector<2x256xf32>
    %146 = tpu.matmul %143, %145, %cst_111 {dimension_numbers = #tpu.dot_dimension_numbers<[1], [0], [0], [1], [0, 0, 1, 1], [], []>} : vector<2x512xbf16>, vector<512x256xbf16>, vector<2x256xf32> -> vector<2x256xf32>
    %147 = arith.addf %142, %146 : vector<2x256xf32>
    %148 = vector.extract_strided_slice %114 {offsets = [12, 0], sizes = [2, 512], strides = [1, 1]} : vector<28x512xbf16> to vector<2x512xbf16>
    %c6 = arith.constant 6 : index
    %c0_112 = arith.constant 0 : index
    %c0_113 = arith.constant 0 : index
    %149 = vector.load %arg21[%c6, %c0_112, %c0_113] : memref<14x512x256xbf16, #tpu.memory_space<vmem>>, vector<1x512x256xbf16>
    %150 = vector.shape_cast %149 : vector<1x512x256xbf16> to vector<512x256xbf16>
    %cst_114 = arith.constant dense<0.000000e+00> : vector<2x256xf32>
    %151 = tpu.matmul %148, %150, %cst_114 {dimension_numbers = #tpu.dot_dimension_numbers<[1], [0], [0], [1], [0, 0, 1, 1], [], []>} : vector<2x512xbf16>, vector<512x256xbf16>, vector<2x256xf32> -> vector<2x256xf32>
    %152 = arith.addf %147, %151 : vector<2x256xf32>
    %153 = vector.extract_strided_slice %114 {offsets = [14, 0], sizes = [2, 512], strides = [1, 1]} : vector<28x512xbf16> to vector<2x512xbf16>
    %c7 = arith.constant 7 : index
    %c0_115 = arith.constant 0 : index
    %c0_116 = arith.constant 0 : index
    %154 = vector.load %arg21[%c7, %c0_115, %c0_116] : memref<14x512x256xbf16, #tpu.memory_space<vmem>>, vector<1x512x256xbf16>
    %155 = vector.shape_cast %154 : vector<1x512x256xbf16> to vector<512x256xbf16>
    %cst_117 = arith.constant dense<0.000000e+00> : vector<2x256xf32>
    %156 = tpu.matmul %153, %155, %cst_117 {dimension_numbers = #tpu.dot_dimension_numbers<[1], [0], [0], [1], [0, 0, 1, 1], [], []>} : vector<2x512xbf16>, vector<512x256xbf16>, vector<2x256xf32> -> vector<2x256xf32>
    %157 = arith.addf %152, %156 : vector<2x256xf32>
    %158 = vector.extract_strided_slice %114 {offsets = [16, 0], sizes = [2, 512], strides = [1, 1]} : vector<28x512xbf16> to vector<2x512xbf16>
    %c8 = arith.constant 8 : index
    %c0_118 = arith.constant 0 : index
    %c0_119 = arith.constant 0 : index
    %159 = vector.load %arg21[%c8, %c0_118, %c0_119] : memref<14x512x256xbf16, #tpu.memory_space<vmem>>, vector<1x512x256xbf16>
    %160 = vector.shape_cast %159 : vector<1x512x256xbf16> to vector<512x256xbf16>
    %cst_120 = arith.constant dense<0.000000e+00> : vector<2x256xf32>
    %161 = tpu.matmul %158, %160, %cst_120 {dimension_numbers = #tpu.dot_dimension_numbers<[1], [0], [0], [1], [0, 0, 1, 1], [], []>} : vector<2x512xbf16>, vector<512x256xbf16>, vector<2x256xf32> -> vector<2x256xf32>
    %162 = arith.addf %157, %161 : vector<2x256xf32>
    %163 = vector.extract_strided_slice %114 {offsets = [18, 0], sizes = [2, 512], strides = [1, 1]} : vector<28x512xbf16> to vector<2x512xbf16>
    %c9 = arith.constant 9 : index
    %c0_121 = arith.constant 0 : index
    %c0_122 = arith.constant 0 : index
    %164 = vector.load %arg21[%c9, %c0_121, %c0_122] : memref<14x512x256xbf16, #tpu.memory_space<vmem>>, vector<1x512x256xbf16>
    %165 = vector.shape_cast %164 : vector<1x512x256xbf16> to vector<512x256xbf16>
    %cst_123 = arith.constant dense<0.000000e+00> : vector<2x256xf32>
    %166 = tpu.matmul %163, %165, %cst_123 {dimension_numbers = #tpu.dot_dimension_numbers<[1], [0], [0], [1], [0, 0, 1, 1], [], []>} : vector<2x512xbf16>, vector<512x256xbf16>, vector<2x256xf32> -> vector<2x256xf32>
    %167 = arith.addf %162, %166 : vector<2x256xf32>
    %168 = vector.extract_strided_slice %114 {offsets = [20, 0], sizes = [2, 512], strides = [1, 1]} : vector<28x512xbf16> to vector<2x512xbf16>
    %c10 = arith.constant 10 : index
    %c0_124 = arith.constant 0 : index
    %c0_125 = arith.constant 0 : index
    %169 = vector.load %arg21[%c10, %c0_124, %c0_125] : memref<14x512x256xbf16, #tpu.memory_space<vmem>>, vector<1x512x256xbf16>
    %170 = vector.shape_cast %169 : vector<1x512x256xbf16> to vector<512x256xbf16>
    %cst_126 = arith.constant dense<0.000000e+00> : vector<2x256xf32>
    %171 = tpu.matmul %168, %170, %cst_126 {dimension_numbers = #tpu.dot_dimension_numbers<[1], [0], [0], [1], [0, 0, 1, 1], [], []>} : vector<2x512xbf16>, vector<512x256xbf16>, vector<2x256xf32> -> vector<2x256xf32>
    %172 = arith.addf %167, %171 : vector<2x256xf32>
    %173 = vector.extract_strided_slice %114 {offsets = [22, 0], sizes = [2, 512], strides = [1, 1]} : vector<28x512xbf16> to vector<2x512xbf16>
    %c11 = arith.constant 11 : index
    %c0_127 = arith.constant 0 : index
    %c0_128 = arith.constant 0 : index
    %174 = vector.load %arg21[%c11, %c0_127, %c0_128] : memref<14x512x256xbf16, #tpu.memory_space<vmem>>, vector<1x512x256xbf16>
    %175 = vector.shape_cast %174 : vector<1x512x256xbf16> to vector<512x256xbf16>
    %cst_129 = arith.constant dense<0.000000e+00> : vector<2x256xf32>
    %176 = tpu.matmul %173, %175, %cst_129 {dimension_numbers = #tpu.dot_dimension_numbers<[1], [0], [0], [1], [0, 0, 1, 1], [], []>} : vector<2x512xbf16>, vector<512x256xbf16>, vector<2x256xf32> -> vector<2x256xf32>
    %177 = arith.addf %172, %176 : vector<2x256xf32>
    %178 = vector.extract_strided_slice %114 {offsets = [24, 0], sizes = [2, 512], strides = [1, 1]} : vector<28x512xbf16> to vector<2x512xbf16>
    %c12 = arith.constant 12 : index
    %c0_130 = arith.constant 0 : index
    %c0_131 = arith.constant 0 : index
    %179 = vector.load %arg21[%c12, %c0_130, %c0_131] : memref<14x512x256xbf16, #tpu.memory_space<vmem>>, vector<1x512x256xbf16>
    %180 = vector.shape_cast %179 : vector<1x512x256xbf16> to vector<512x256xbf16>
    %cst_132 = arith.constant dense<0.000000e+00> : vector<2x256xf32>
    %181 = tpu.matmul %178, %180, %cst_132 {dimension_numbers = #tpu.dot_dimension_numbers<[1], [0], [0], [1], [0, 0, 1, 1], [], []>} : vector<2x512xbf16>, vector<512x256xbf16>, vector<2x256xf32> -> vector<2x256xf32>
    %182 = arith.addf %177, %181 : vector<2x256xf32>
    %183 = vector.extract_strided_slice %114 {offsets = [26, 0], sizes = [2, 512], strides = [1, 1]} : vector<28x512xbf16> to vector<2x512xbf16>
    %c13 = arith.constant 13 : index
    %c0_133 = arith.constant 0 : index
    %c0_134 = arith.constant 0 : index
    %184 = vector.load %arg21[%c13, %c0_133, %c0_134] : memref<14x512x256xbf16, #tpu.memory_space<vmem>>, vector<1x512x256xbf16>
    %185 = vector.shape_cast %184 : vector<1x512x256xbf16> to vector<512x256xbf16>
    %cst_135 = arith.constant dense<0.000000e+00> : vector<2x256xf32>
    %186 = tpu.matmul %183, %185, %cst_135 {dimension_numbers = #tpu.dot_dimension_numbers<[1], [0], [0], [1], [0, 0, 1, 1], [], []>} : vector<2x512xbf16>, vector<512x256xbf16>, vector<2x256xf32> -> vector<2x256xf32>
    %187 = arith.addf %182, %186 : vector<2x256xf32>
    %c0_136 = arith.constant 0 : index
    %c0_137 = arith.constant 0 : index
    %188 = vector.load %arg8[%c0_136, %c0_137] : memref<1x256xf32, #tpu.memory_space<vmem>>, vector<1x256xf32>
    %189 = vector.broadcast %188 : vector<1x256xf32> to vector<2x256xf32>
    %190 = arith.addf %187, %189 : vector<2x256xf32>
    %c0_138 = arith.constant 0 : index
    %c0_139 = arith.constant 0 : index
    %191 = vector.load %arg14[%c0_138, %c0_139] : memref<2x256xf32, #tpu.memory_space<vmem>>, vector<2x256xf32>
    tpu.vector_store %arg14[%c0_138, %c0_139], %190 {strides = array<i32>} : memref<2x256xf32, #tpu.memory_space<vmem>>, vector<2x256xf32>,
    %192 = arith.truncf %190 : vector<2x256xf32> to vector<2x256xbf16>
    %c0_140 = arith.constant 0 : index
    %c0_141 = arith.constant 0 : index
    %193 = vector.load %arg9[%c0_140, %c0_141] : memref<256x10xbf16, #tpu.memory_space<vmem>>, vector<256x10xbf16>
    %cst_142 = arith.constant dense<0.000000e+00> : vector<2x10xf32>
    %194 = tpu.matmul %192, %193, %cst_142 {dimension_numbers = #tpu.dot_dimension_numbers<[1], [0], [0], [1], [0, 0, 1, 1], [], []>} : vector<2x256xbf16>, vector<256x10xbf16>, vector<2x10xf32> -> vector<2x10xf32>
    %c0_143 = arith.constant 0 : index
    %c0_144 = arith.constant 0 : index
    %195 = vector.load %arg10[%c0_143, %c0_144] : memref<1x10xf32, #tpu.memory_space<vmem>>, vector<1x10xf32>
    %196 = vector.broadcast %195 : vector<1x10xf32> to vector<2x10xf32>
    %197 = arith.addf %194, %196 : vector<2x10xf32>
    %c0_145 = arith.constant 0 : index
    %c0_146 = arith.constant 0 : index
    %198 = vector.load %arg15[%c0_145, %c0_146] : memref<2x10xf32, #tpu.memory_space<vmem>>, vector<2x10xf32>
    tpu.vector_store %arg15[%c0_145, %c0_146], %197 {strides = array<i32>} : memref<2x10xf32, #tpu.memory_space<vmem>>, vector<2x10xf32>,
    return
  }
}

</mosaic_0001>

<llo_original>
// kernel: fwd.1
$region0: #{fwd.1}
  #allocation0 [shape = 'u32[]', space=smem, size = 0x4, offset = 0x4, fixed_abs, tag = 'smem constant byte address 0x4 - core index']
  #allocation1 [shape = 'u32[144,128]{1,0:T(1,128)}', space=vmem, size = 0x12000, scoped, tag = 'internal scratch']
  #allocation2 [shape = 'bf16[60,512]{1,0:T(8,128)(2,1)}', space=vmem, size = 0x10000, scoped, tag = 'scratch operand']
  #allocation3 [shape = 'bf16[32,256]{1,0:T(16,128)(2,1)}', space=vmem, size = 0x4000, scoped, tag = 'scratch operand']
  #allocation4 [shape = 'bf16[32,512]{1,0:T(16,128)(2,1)}', space=vmem, size = 0x8000, scoped, tag = 'scratch operand']
  #allocation5 [shape = 'bf16[3,256,512]{2,1,0:T(16,128)(2,1)}', space=vmem, size = 0xc0000, scoped, tag = 'scratch operand']
  #allocation6 [shape = 'bf16[3,512,512]{2,1,0:T(16,128)(2,1)}', space=vmem, size = 0x180000, scoped, tag = 'scratch operand']
  #allocation7 [shape = 'bf16[14,512,256]{2,1,0:T(16,128)(2,1)}', space=vmem, size = 0x380000, scoped, tag = 'scratch operand']
  #allocation8 [shape = 's32[3]{0}', space=sflag, size = 0xc, scoped, tag = 'scratch operand']
  #allocation26 [shape = 's32[]', space=sflag, size = 0x4, offset = 0, fixed_abs, tag = 'sflag constant byte address 0x0 - dummy sync flag']
  #allocation28 [shape = 's32[]', space=sflag, size = 0x4, offset = 0, fixed_abs, tag = 'sflag constant byte address 0x0 - dummy sync flag']
  #allocation30 [shape = 's32[]', space=sflag, size = 0x4, offset = 0, fixed_abs, tag = 'sflag constant byte address 0x0 - dummy sync flag']
  %s0 = inlined_call_operand.vmem [shape: f32[60,14], index: 0, kind: input, shape index: {}]
  %s1 = inlined_call_operand.hbm [shape: bf16[3,14,512], index: 1, kind: input, shape index: {}]
  %s2 = inlined_call_operand.hbm [shape: f32[1,512], index: 2, kind: input, shape index: {}]
  %s3 = inlined_call_operand.hbm [shape: bf16[3,512,512], index: 3, kind: input, shape index: {}]
  %s4 = inlined_call_operand.hbm [shape: f32[1,512], index: 4, kind: input, shape index: {}]
  %s5 = inlined_call_operand.vmem [shape: bf16[2,28,56], index: 5, kind: input, shape index: {}]
  %s6 = inlined_call_operand.hbm [shape: f32[1,512], index: 6, kind: input, shape index: {}]
  %s7 = inlined_call_operand.hbm [shape: f32[1,512], index: 7, kind: input, shape index: {}]
  %s8 = inlined_call_operand.hbm [shape: f32[1,256], index: 8, kind: input, shape index: {}]
  %s9 = inlined_call_operand.vmem [shape: bf16[256,10], index: 9, kind: input, shape index: {}]
  %s10 = inlined_call_operand.hbm [shape: f32[1,10], index: 10, kind: input, shape index: {}]
  %s11 = inlined_call_operand.hbm [shape: bf16[3,256,512], index: 11, kind: input, shape index: {}]
  %s12 = inlined_call_operand.hbm [shape: bf16[3,512,512], index: 12, kind: input, shape index: {}]
  %s13 = inlined_call_operand.hbm [shape: bf16[14,512,256], index: 13, kind: input, shape index: {}]
  %s14 = inlined_call_operand.hbm [shape: f32[2,256], index: 14, kind: output, shape index: {0}]
  %s15 = inlined_call_operand.hbm [shape: f32[2,10], index: 15, kind: output, shape index: {1}]
  %16 = xla_tuple %s14, %s15
  %s17 = sld [smem:[#allocation0]]
  $region94: #{fwd.1} parent=0
    _
  %s19 = ssub.s32 1, %s17
  %s20 = scalar_select 0, %s19, %s17
  $region1: #{fwd.1} parent=0
    #allocation9 [shape = 'u8[49152]{0}', space=vmem, size = 0xc000, scoped, tag = 'input window, operand 1, single buffered']
    #allocation10 [shape = 's32[1]{0}', space=sflag, size = 0x4, scoped, tag = 'scoped memory for fwd.1']
    #allocation11 [shape = 's32[1]{0}', space=sflag, size = 0x4, scoped, tag = 'scoped memory for fwd.1']
    #allocation12 [shape = 'u8[2048]{0}', space=vmem, size = 0x800, scoped, tag = 'input window, operand 2, single buffered']
    #allocation13 [shape = 's32[1]{0}', space=sflag, size = 0x4, scoped, tag = 'scoped memory for fwd.1']
    #allocation14 [shape = 'u8[1572864]{0}', space=vmem, size = 0x180000, scoped, tag = 'input window, operand 3, single buffered']
    #allocation15 [shape = 'u8[2048]{0}', space=vmem, size = 0x800, scoped, tag = 'input window, operand 4, single buffered']
    #allocation16 [shape = 's32[1]{0}', space=sflag, size = 0x4, scoped, tag = 'scoped memory for fwd.1']
    #allocation17 [shape = 'u8[2048]{0}', space=vmem, size = 0x800, scoped, tag = 'input window, operand 6, single buffered']
    #allocation18 [shape = 'u8[2048]{0}', space=vmem, size = 0x800, scoped, tag = 'input window, operand 7, single buffered']
    #allocation19 [shape = 's32[1]{0}', space=sflag, size = 0x4, scoped, tag = 'scoped memory for fwd.1']
    #allocation20 [shape = 'u8[1024]{0}', space=vmem, size = 0x400, scoped, tag = 'input window, operand 8, single buffered']
    #allocation21 [shape = 'u8[512]{0}', space=vmem, size = 0x400, scoped, tag = 'input window, operand 10, single buffered']
    #allocation22 [shape = 's32[1]{0}', space=sflag, size = 0x4, scoped, tag = 'scoped memory for fwd.1']
    #allocation23 [shape = 'u8[2048]{0}', space=vmem, size = 0x800, scoped, tag = 'output window, operand 0, single buffered']
    #allocation24 [shape = 'u8[1024]{0}', space=vmem, size = 0x400, scoped, tag = 'output window, operand 1, single buffered']
    #allocation25 [shape = 's32[1]{0}', space=sflag, size = 0x4, scoped, tag = 'scoped memory for fwd.1']
    #allocation27 [shape = 'u32[9]{0}', space=smem, size = 0x24, scoped, tag = 'DMA stride descriptor']
    #allocation29 [shape = 'u32[9]{0}', space=smem, size = 0x24, scoped, tag = 'DMA stride descriptor']
    #allocation31 [shape = 'u32[9]{0}', space=smem, size = 0x24, scoped, tag = 'DMA stride descriptor']
    %21 = vsyncpa [#allocation10], 0
    %22 = vsyncpa [#allocation13], 0
    %23 = vsyncpa [#allocation16], 0
    %24 = vsyncpa [#allocation19], 0
    %25 = vsyncpa [#allocation22], 0
    %26 = vsyncpa [#allocation11], 0
    %27 = vsyncpa [#allocation25], 0
    // Predicated region
    $region2: #{fwd.1} parent=1 // pred_check
      _
    $region3: #{fwd.1} parent=1 // pred_check_branch
      %29 = sbr.rel (0) target = $region5
    $region4: #{fwd.1} parent=1 // pred_region
      _
    $region5: #{fwd.1} parent=1 // pred_fallthru
      _
    // Predicated region
    $region6: #{fwd.1} parent=1 // pred_check
      _
    $region7: #{fwd.1} parent=1 // pred_check_branch
      %31 = sbr.rel (0) target = $region9
    $region8: #{fwd.1} parent=1 // pred_region
      %s33 = ssub.s32 1536, 1536
      %34 = vsyncadd [#allocation10], %s33
      %s35 = sshll.u32 [#allocation9], 4
      %s36 = int_to_ptr.vmem [resolvable:$true] %s35
      %41 = dma.hbm_to_vmem [thread:$0]  %s1, 1536, %s36, [#allocation10], 256, 256, 16
    $region9: #{fwd.1} parent=1 // pred_fallthru
      _
    // Predicated region
    $region10: #{fwd.1} parent=1 // pred_check
      _
    $region11: #{fwd.1} parent=1 // pred_check_branch
      %43 = sbr.rel (0) target = $region13
    $region12: #{fwd.1} parent=1 // pred_region
      %s45 = ssub.s32 64, 64
      %46 = vsyncadd [#allocation13], %s45
      %s48 = sshll.u32 [#allocation12], 4
      %s49 = int_to_ptr.vmem [resolvable:$true] %s48
      %51 = dma.hbm_to_vmem [thread:$0]  %s2, 64, %s49, [#allocation13]
    $region13: #{fwd.1} parent=1 // pred_fallthru
      _
    // Predicated region
    $region14: #{fwd.1} parent=1 // pred_check
      _
    $region15: #{fwd.1} parent=1 // pred_check_branch
      %53 = sbr.rel (0) target = $region17
    $region16: #{fwd.1} parent=1 // pred_region
      %s55 = ssub.s32 49152, 49152
      %56 = vsyncadd [#allocation13], %s55
      %s57 = sshll.u32 [#allocation14], 4
      %s58 = int_to_ptr.vmem [resolvable:$true] %s57
      %63 = dma.hbm_to_vmem [thread:$0]  %s3, 49152, %s58, [#allocation13], 256, 256, 16
    $region17: #{fwd.1} parent=1 // pred_fallthru
      _
    // Predicated region
    $region18: #{fwd.1} parent=1 // pred_check
      _
    $region19: #{fwd.1} parent=1 // pred_check_branch
      %65 = sbr.rel (0) target = $region21
    $region20: #{fwd.1} parent=1 // pred_region
      %s67 = ssub.s32 64, 64
      %68 = vsyncadd [#allocation16], %s67
      %s70 = sshll.u32 [#allocation15], 4
      %s71 = int_to_ptr.vmem [resolvable:$true] %s70
      %73 = dma.hbm_to_vmem [thread:$0]  %s4, 64, %s71, [#allocation16]
    $region21: #{fwd.1} parent=1 // pred_fallthru
      _
    // Predicated region
    $region22: #{fwd.1} parent=1 // pred_check
      _
    $region23: #{fwd.1} parent=1 // pred_check_branch
      %75 = sbr.rel (0) target = $region25
    $region24: #{fwd.1} parent=1 // pred_region
      _
    $region25: #{fwd.1} parent=1 // pred_fallthru
      _
    // Predicated region
    $region26: #{fwd.1} parent=1 // pred_check
      _
    $region27: #{fwd.1} parent=1 // pred_check_branch
      %77 = sbr.rel (0) target = $region29
    $region28: #{fwd.1} parent=1 // pred_region
      %s79 = ssub.s32 64, 64
      %80 = vsyncadd [#allocation16], %s79
      %s82 = sshll.u32 [#allocation17], 4
      %s83 = int_to_ptr.vmem [resolvable:$true] %s82
      %85 = dma.hbm_to_vmem [thread:$0]  %s6, 64, %s83, [#allocation16]
    $region29: #{fwd.1} parent=1 // pred_fallthru
      _
    // Predicated region
    $region30: #{fwd.1} parent=1 // pred_check
      _
    $region31: #{fwd.1} parent=1 // pred_check_branch
      %87 = sbr.rel (0) target = $region33
    $region32: #{fwd.1} parent=1 // pred_region
      %s89 = ssub.s32 64, 64
      %90 = vsyncadd [#allocation19], %s89
      %s92 = sshll.u32 [#allocation18], 4
      %s93 = int_to_ptr.vmem [resolvable:$true] %s92
      %95 = dma.hbm_to_vmem [thread:$0]  %s7, 64, %s93, [#allocation19]
    $region33: #{fwd.1} parent=1 // pred_fallthru
      _
    // Predicated region
    $region34: #{fwd.1} parent=1 // pred_check
      _
    $region35: #{fwd.1} parent=1 // pred_check_branch
      %97 = sbr.rel (0) target = $region37
    $region36: #{fwd.1} parent=1 // pred_region
      %s99 = ssub.s32 32, 32
      %100 = vsyncadd [#allocation19], %s99
      %s102 = sshll.u32 [#allocation20], 4
      %s103 = int_to_ptr.vmem [resolvable:$true] %s102
      %105 = dma.hbm_to_vmem [thread:$0]  %s8, 32, %s103, [#allocation19]
    $region37: #{fwd.1} parent=1 // pred_fallthru
      _
    // Predicated region
    $region38: #{fwd.1} parent=1 // pred_check
      _
    $region39: #{fwd.1} parent=1 // pred_check_branch
      %107 = sbr.rel (0) target = $region41
    $region40: #{fwd.1} parent=1 // pred_region
      _
    $region41: #{fwd.1} parent=1 // pred_fallthru
      _
    // Predicated region
    $region42: #{fwd.1} parent=1 // pred_check
      _
    $region43: #{fwd.1} parent=1 // pred_check_branch
      %109 = sbr.rel (0) target = $region45
    $region44: #{fwd.1} parent=1 // pred_region
      %s111 = ssub.s32 16, 16
      %112 = vsyncadd [#allocation22], %s111
      %s114 = sshll.u32 [#allocation21], 4
      %s115 = int_to_ptr.vmem [resolvable:$true] %s114
      %117 = dma.hbm_to_vmem [thread:$0]  %s10, 16, %s115, [#allocation22]
    $region45: #{fwd.1} parent=1 // pred_fallthru
      _
    // Predicated region
    $region46: #{fwd.1} parent=1 // pred_check
      _
    $region47: #{fwd.1} parent=1 // pred_check_branch
      %119 = sbr.rel (0) target = $region49
    $region48: #{fwd.1} parent=1 // pred_region
      %120 = dma.done [#allocation10], 1536
    $region49: #{fwd.1} parent=1 // pred_fallthru
      _
    // Predicated region
    $region50: #{fwd.1} parent=1 // pred_check
      _
    $region51: #{fwd.1} parent=1 // pred_check_branch
      %122 = sbr.rel (0) target = $region53
    $region52: #{fwd.1} parent=1 // pred_region
      %123 = dma.done [#allocation13], 64
    $region53: #{fwd.1} parent=1 // pred_fallthru
      _
    // Predicated region
    $region54: #{fwd.1} parent=1 // pred_check
      _
    $region55: #{fwd.1} parent=1 // pred_check_branch
      %125 = sbr.rel (0) target = $region57
    $region56: #{fwd.1} parent=1 // pred_region
      %126 = dma.done [#allocation13], 49152
    $region57: #{fwd.1} parent=1 // pred_fallthru
      _
    // Predicated region
    $region58: #{fwd.1} parent=1 // pred_check
      _
    $region59: #{fwd.1} parent=1 // pred_check_branch
      %128 = sbr.rel (0) target = $region61
    $region60: #{fwd.1} parent=1 // pred_region
      %129 = dma.done [#allocation16], 64
    $region61: #{fwd.1} parent=1 // pred_fallthru
      _
    // Predicated region
    $region62: #{fwd.1} parent=1 // pred_check
      _
    $region63: #{fwd.1} parent=1 // pred_check_branch
      %131 = sbr.rel (0) target = $region65
    $region64: #{fwd.1} parent=1 // pred_region
      %132 = dma.done [#allocation16], 64
    $region65: #{fwd.1} parent=1 // pred_fallthru
      _
    // Predicated region
    $region66: #{fwd.1} parent=1 // pred_check
      _
    $region67: #{fwd.1} parent=1 // pred_check_branch
      %134 = sbr.rel (0) target = $region69
    $region68: #{fwd.1} parent=1 // pred_region
      %135 = dma.done [#allocation19], 64
    $region69: #{fwd.1} parent=1 // pred_fallthru
      _
    // Predicated region
    $region70: #{fwd.1} parent=1 // pred_check
      _
    $region71: #{fwd.1} parent=1 // pred_check_branch
      %137 = sbr.rel (0) target = $region73
    $region72: #{fwd.1} parent=1 // pred_region
      %138 = dma.done [#allocation19], 32
    $region73: #{fwd.1} parent=1 // pred_fallthru
      _
    // Predicated region
    $region74: #{fwd.1} parent=1 // pred_check
      _
    $region75: #{fwd.1} parent=1 // pred_check_branch
      %140 = sbr.rel (0) target = $region77
    $region76: #{fwd.1} parent=1 // pred_region
      %141 = dma.done [#allocation22], 16
    $region77: #{fwd.1} parent=1 // pred_fallthru
      _
    %s144 = sshll.u32 1, 14
    %s145 = sxor.u32 4294967295, %s144
    %s147 = sld [smem:[#allocation0]]
    %s148 = sadd.s32 2, %s147
    %s150 = sshll.u32 7, 26
    %s151 = sxor.u32 4294967295, %s150
    %s152 = sand.u32 0, %s151
    %s153 = sshll.u32 %s148, 26
    %s154 = sor.u32 %s152, %s153
    %s155 = sshll.u32 [#allocation5], 4
    %s156 = int_to_ptr.vmem [resolvable:$true] %s155
    %159 = sst [smem:[#allocation27]] 512
    %s160 = scalar_lea.smem [#allocation27], 1
    %161 = sst [smem:[%s160]] 512
    %s162 = scalar_lea.smem [#allocation27], 2
    %163 = sst [smem:[%s162]] 4
    %s164 = scalar_lea.smem [#allocation27], 3
    %165 = sst [smem:[%s164]] 64
    %s166 = scalar_lea.smem [#allocation27], 4
    %167 = sst [smem:[%s166]] 128
    %s168 = scalar_lea.smem [#allocation27], 5
    %169 = sst [smem:[%s168]] 2
    %s170 = scalar_lea.smem [#allocation27], 6
    %171 = sst [smem:[%s170]] 256
    %s172 = scalar_lea.smem [#allocation27], 7
    %173 = sst [smem:[%s172]] 64
    %s174 = scalar_lea.smem [#allocation27], 8
    %175 = sst [smem:[%s174]] 4
    %177 = dma.general %s11, 24576, %s156, [#allocation8], [#allocation26], [#allocation27], %s154, 0
    %s178 = scalar_lea.sflag [#allocation8], 1
    %s180 = sshll.u32 1, 14
    %s181 = sxor.u32 4294967295, %s180
    %s183 = sadd.s32 2, %s147
    %s185 = sshll.u32 7, 26
    %s186 = sxor.u32 4294967295, %s185
    %s187 = sand.u32 0, %s186
    %s188 = sshll.u32 %s183, 26
    %s189 = sor.u32 %s187, %s188
    %s190 = sshll.u32 [#allocation6], 4
    %s191 = int_to_ptr.vmem [resolvable:$true] %s190
    %194 = sst [smem:[#allocation29]] 512
    %s195 = scalar_lea.smem [#allocation29], 1
    %196 = sst [smem:[%s195]] 512
    %s197 = scalar_lea.smem [#allocation29], 2
    %198 = sst [smem:[%s197]] 4
    %s199 = scalar_lea.smem [#allocation29], 3
    %200 = sst [smem:[%s199]] 64
    %s201 = scalar_lea.smem [#allocation29], 4
    %202 = sst [smem:[%s201]] 128
    %s203 = scalar_lea.smem [#allocation29], 5
    %204 = sst [smem:[%s203]] 2
    %s205 = scalar_lea.smem [#allocation29], 6
    %206 = sst [smem:[%s205]] 256
    %s207 = scalar_lea.smem [#allocation29], 7
    %208 = sst [smem:[%s207]] 64
    %s209 = scalar_lea.smem [#allocation29], 8
    %210 = sst [smem:[%s209]] 4
    %212 = dma.general %s12, 49152, %s191, %s178, [#allocation28], [#allocation29], %s189, 0
    %s213 = scalar_lea.sflag [#allocation8], 2
    %s215 = sshll.u32 1, 14
    %s216 = sxor.u32 4294967295, %s215
    %s218 = sadd.s32 2, %s147
    %s220 = sshll.u32 7, 26
    %s221 = sxor.u32 4294967295, %s220
    %s222 = sand.u32 0, %s221
    %s223 = sshll.u32 %s218, 26
    %s224 = sor.u32 %s222, %s223
    %s225 = sshll.u32 [#allocation7], 4
    %s226 = int_to_ptr.vmem [resolvable:$true] %s225
    %229 = sst [smem:[#allocation31]] 256
    %s230 = scalar_lea.smem [#allocation31], 1
    %231 = sst [smem:[%s230]] 256
    %s232 = scalar_lea.smem [#allocation31], 2
    %233 = sst [smem:[%s232]] 2
    %s234 = scalar_lea.smem [#allocation31], 3
    %235 = sst [smem:[%s234]] 64
    %s236 = scalar_lea.smem [#allocation31], 4
    %237 = sst [smem:[%s236]] 128
    %s238 = scalar_lea.smem [#allocation31], 5
    %239 = sst [smem:[%s238]] 2
    %s240 = scalar_lea.smem [#allocation31], 6
    %241 = sst [smem:[%s240]] 128
    %s242 = scalar_lea.smem [#allocation31], 7
    %243 = sst [smem:[%s242]] 64
    %s244 = scalar_lea.smem [#allocation31], 8
    %245 = sst [smem:[%s244]] 4
    %247 = dma.general %s13, 114688, %s226, %s213, [#allocation30], [#allocation31], %s224, 0
    %248 = vst [vmem:[#allocation2] sm:$0xff] 0
    %249 = vst [vmem:[#allocation2 + $0x8] sm:$0xff] 0
    %250 = vst [vmem:[#allocation2 + $0x10] sm:$0xff] 0
    %251 = vst [vmem:[#allocation2 + $0x18] sm:$0xff] 0
    %252 = vst [vmem:[#allocation2 + $0x20] sm:$0xff] 0
    %253 = vst [vmem:[#allocation2 + $0x28] sm:$0xff] 0
    %254 = vst [vmem:[#allocation2 + $0x30] sm:$0xff] 0
    %255 = vst [vmem:[#allocation2 + $0x38] sm:$0xff] 0
    %256 = vst [vmem:[#allocation2 + $0x40] sm:$0xff] 0
    %257 = vst [vmem:[#allocation2 + $0x48] sm:$0xff] 0
    %258 = vst [vmem:[#allocation2 + $0x50] sm:$0xff] 0
    %259 = vst [vmem:[#allocation2 + $0x58] sm:$0xff] 0
    %260 = vst [vmem:[#allocation2 + $0x60] sm:$0xff] 0
    %261 = vst [vmem:[#allocation2 + $0x68] sm:$0xff] 0
    %262 = vst [vmem:[#allocation2 + $0x70] sm:$0x33] 0
    %263 = vst [vmem:[#allocation2 + $0x78] sm:$0x33] 0
    %264 = vst [vmem:[#allocation3] sm:$0xff] 0
    %265 = vst [vmem:[#allocation3 + $0x8] sm:$0xff] 0
    %266 = vst [vmem:[#allocation3 + $0x10] sm:$0xff] 0
    %267 = vst [vmem:[#allocation3 + $0x18] sm:$0xff] 0
    %268 = vst [vmem:[#allocation4] sm:$0xff] 0
    %269 = vst [vmem:[#allocation4 + $0x8] sm:$0xff] 0
    %270 = vst [vmem:[#allocation4 + $0x10] sm:$0xff] 0
    %271 = vst [vmem:[#allocation4 + $0x18] sm:$0xff] 0
    %272 = vst [vmem:[#allocation4 + $0x20] sm:$0xff] 0
    %273 = vst [vmem:[#allocation4 + $0x28] sm:$0xff] 0
    %274 = vst [vmem:[#allocation4 + $0x30] sm:$0xff] 0
    %275 = vst [vmem:[#allocation4 + $0x38] sm:$0xff] 0
    %v276 = vld [vmem:[%s0] sm:$0xff]
    %v277 = vld [vmem:[%s0 + $0x8] sm:$0xff]
    %v278 = vld [vmem:[%s0 + $0x10] sm:$0xff]
    %v279 = vld [vmem:[%s0 + $0x18] sm:$0xff]
    %v280 = vld [vmem:[%s0 + $0x20] sm:$0xff]
    %v281 = vld [vmem:[%s0 + $0x28] sm:$0xff]
    %v282 = vld [vmem:[%s0 + $0x30] sm:$0xff]
    %v283 = vld [vmem:[%s0 + $0x38] sm:$0xf]
    %v284 = vpack.c.bf16 %v277, %v276
    %v285 = vpack.c.bf16 %v279, %v278
    %v286 = vpack.c.bf16 %v281, %v280
    %v287 = vpack.c.bf16 %v283, %v282
    %v288 = vld [vmem:[#allocation9] sm:$0xff]
    %v289 = vld [vmem:[#allocation9 + $0x8] sm:$0xff]
    %v290 = vld [vmem:[#allocation9 + $0x10] sm:$0x77]
    %v291 = vld [vmem:[#allocation9 + $0x18] sm:$0x77]
    %s292 = scalar_lea.vmem [#allocation9], 32
    %v293 = vld [vmem:[%s292] sm:$0xff]
    %v294 = vld [vmem:[%s292 + $0x8] sm:$0xff]
    %v295 = vld [vmem:[%s292 + $0x10] sm:$0x77]
    %v296 = vld [vmem:[%s292 + $0x18] sm:$0x77]
    %vm301 = vcmask 1046528
    %v302 = vrot.slane %v284, 1
    %v303 = vrot.slane %v285, 1
    %v304 = vsel %vm301, %v302, %v303
    %v305 = vrot.slane %v286, 1
    %v306 = vsel %vm301, %v303, %v305
    %v307 = vrot.slane %v287, 1
    %v308 = vsel %vm301, %v305, %v307
    %v313 = vunpack.c.l.b16 %v293
    %v314 = vunpack.c.h.b16 %v293
    %v315 = vunpack.c.l.b16 %v294
    %v316 = vunpack.c.h.b16 %v294
    %v317 = vunpack.c.l.b16 %v295
    %v318 = vunpack.c.h.b16 %v295
    %v319 = vunpack.c.l.b16 %v296
    %v320 = vunpack.c.h.b16 %v296
    %v321 = vpack.c.b16 %v317, %v313
    %v322 = vpack.c.b16 %v318, %v314
    %v323 = vpack.c.b16 %v319, %v315
    %v324 = vpack.c.b16 %v320, %v316
    %vm325 = vcmask 113664
    %v327 = vsel %vm325, %v304, 0
    %v330 = vsel %vm325, %v306, 0
    %v333 = vsel %vm325, %v308, 0
    %v336 = vsel %vm325, %v307, 0
    %vm338 = vcmask 1046528
    %v340 = vsel %vm338, %v321, 0
    %v343 = vsel %vm338, %v322, 0
    %v346 = vsel %vm338, %v323, 0
    %v349 = vsel %vm338, %v324, 0
    %351 = vmatprep.subr.bf16.mxu0 %v343
    %352 = vmatpush1.bf16.msra.mxu0 %v340
    %353 = vmatprep.subr.bf16.mxu0 0
    %354 = vmatpush1.bf16.msra.mxu0 0
    %355 = vmatprep.subr.bf16.mxu0 0
    %356 = vmatpush1.bf16.msra.mxu0 0
    %357 = vmatprep.subr.bf16.mxu0 0
    %358 = vmatpush1.bf16.msra.mxu0 0
    %359 = vmatprep.subr.bf16.mxu0 0
    %360 = vmatpush1.bf16.msra.mxu0 0
    %361 = vmatprep.subr.bf16.mxu0 0
    %362 = vmatpush1.bf16.msra.mxu0 0
    %363 = vmatprep.subr.bf16.mxu0 0
    %364 = vmatpush1.bf16.msra.mxu0 0
    %365 = vmatprep.subr.bf16.mxu0 0
    %366 = vmatpush1.bf16.msra.mxu0 0
    %367 = vmatprep.subr.bf16.mxu0 0
    %368 = vmatpush1.bf16.msra.mxu0 0
    %369 = vmatprep.subr.bf16.mxu0 0
    %370 = vmatpush1.bf16.msra.mxu0 0
    %371 = vmatprep.subr.bf16.mxu0 0
    %372 = vmatpush1.bf16.msra.mxu0 0
    %373 = vmatprep.subr.bf16.mxu0 0
    %374 = vmatpush1.bf16.msra.mxu0 0
    %375 = vmatprep.subr.bf16.mxu0 0
    %376 = vmatpush1.bf16.msra.mxu0 0
    %377 = vmatprep.subr.bf16.mxu0 0
    %378 = vmatpush1.bf16.msra.mxu0 0
    %379 = vmatprep.subr.bf16.mxu0 0
    %380 = vmatpush1.bf16.msra.mxu0 0
    %381 = vmatprep.subr.bf16.mxu0 0
    %382 = vmatpush1.bf16.msra.mxu0 0
    %383 = vmatprep.mubr.bf16.mxu0 0
    %384 = vmatmul.mubr.bf16.gmra.mrb[0].mxu0 %v327
    %v385 = vpop.f32.mrb[0].mxu0
    %v386 = vadd.f32 0.0, %v385
    %v387 = vpop.f32.mrb[0].mxu0
    %v388 = vadd.f32 0.0, %v387
    %v389 = vpop.f32.mrb[0].mxu0
    %v390 = vadd.f32 0.0, %v389
    %v391 = vpop.f32.mrb[0].mxu0
    %v392 = vadd.f32 0.0, %v391
    %393 = vmatprep.mubr.bf16.mxu0 0
    %394 = vmatmul.mubr.bf16.gmra.mrb[0].mxu0 %v330
    %v395 = vpop.f32.mrb[0].mxu0
    %v396 = vadd.f32 0.0, %v395
    %v397 = vpop.f32.mrb[0].mxu0
    %v398 = vadd.f32 0.0, %v397
    %v399 = vpop.f32.mrb[0].mxu0
    %v400 = vadd.f32 0.0, %v399
    %v401 = vpop.f32.mrb[0].mxu0
    %v402 = vadd.f32 0.0, %v401
    %403 = vmatprep.mubr.bf16.mxu0 0
    %404 = vmatmul.mubr.bf16.gmra.mrb[0].mxu0 %v333
    %v405 = vpop.f32.mrb[0].mxu0
    %v406 = vadd.f32 0.0, %v405
    %v407 = vpop.f32.mrb[0].mxu0
    %v408 = vadd.f32 0.0, %v407
    %v409 = vpop.f32.mrb[0].mxu0
    %v410 = vadd.f32 0.0, %v409
    %v411 = vpop.f32.mrb[0].mxu0
    %v412 = vadd.f32 0.0, %v411
    %413 = vmatprep.mubr.bf16.mxu0 0
    %414 = vmatmul.mubr.bf16.gmra.mrb[0].mxu0 %v336
    %v415 = vpop.f32.mrb[0].mxu0
    %v416 = vadd.f32 0.0, %v415
    %v417 = vpop.f32.mrb[0].mxu0
    %v418 = vadd.f32 0.0, %v417
    %v419 = vpop.f32.mrb[0].mxu0
    %v420 = vpop.f32.mrb[0].mxu0
    %421 = vdwg.mxu0
    %422 = vmatprep.subr.bf16.mxu0 %v349
    %423 = vmatpush1.bf16.msra.mxu0 %v346
    %424 = vmatprep.subr.bf16.mxu0 0
    %425 = vmatpush1.bf16.msra.mxu0 0
    %426 = vmatprep.subr.bf16.mxu0 0
    %427 = vmatpush1.bf16.msra.mxu0 0
    %428 = vmatprep.subr.bf16.mxu0 0
    %429 = vmatpush1.bf16.msra.mxu0 0
    %430 = vmatprep.subr.bf16.mxu0 0
    %431 = vmatpush1.bf16.msra.mxu0 0
    %432 = vmatprep.subr.bf16.mxu0 0
    %433 = vmatpush1.bf16.msra.mxu0 0
    %434 = vmatprep.subr.bf16.mxu0 0
    %435 = vmatpush1.bf16.msra.mxu0 0
    %436 = vmatprep.subr.bf16.mxu0 0
    %437 = vmatpush1.bf16.msra.mxu0 0
    %438 = vmatprep.subr.bf16.mxu0 0
    %439 = vmatpush1.bf16.msra.mxu0 0
    %440 = vmatprep.subr.bf16.mxu0 0
    %441 = vmatpush1.bf16.msra.mxu0 0
    %442 = vmatprep.subr.bf16.mxu0 0
    %443 = vmatpush1.bf16.msra.mxu0 0
    %444 = vmatprep.subr.bf16.mxu0 0
    %445 = vmatpush1.bf16.msra.mxu0 0
    %446 = vmatprep.subr.bf16.mxu0 0
    %447 = vmatpush1.bf16.msra.mxu0 0
    %448 = vmatprep.subr.bf16.mxu0 0
    %449 = vmatpush1.bf16.msra.mxu0 0
    %450 = vmatprep.subr.bf16.mxu0 0
    %451 = vmatpush1.bf16.msra.mxu0 0
    %452 = vmatprep.subr.bf16.mxu0 0
    %453 = vmatpush1.bf16.msra.mxu0 0
    %454 = vmatprep.mubr.bf16.mxu0 0
    %455 = vmatmul.mubr.bf16.gmra.mrb[0].mxu0 %v327
    %v456 = vpop.f32.mrb[0].mxu0
    %v457 = vadd.f32 0.0, %v456
    %v458 = vpop.f32.mrb[0].mxu0
    %v459 = vadd.f32 0.0, %v458
    %v460 = vpop.f32.mrb[0].mxu0
    %v461 = vadd.f32 0.0, %v460
    %v462 = vpop.f32.mrb[0].mxu0
    %v463 = vadd.f32 0.0, %v462
    %464 = vmatprep.mubr.bf16.mxu0 0
    %465 = vmatmul.mubr.bf16.gmra.mrb[0].mxu0 %v330
    %v466 = vpop.f32.mrb[0].mxu0
    %v467 = vadd.f32 0.0, %v466
    %v468 = vpop.f32.mrb[0].mxu0
    %v469 = vadd.f32 0.0, %v468
    %v470 = vpop.f32.mrb[0].mxu0
    %v471 = vadd.f32 0.0, %v470
    %v472 = vpop.f32.mrb[0].mxu0
    %v473 = vadd.f32 0.0, %v472
    %474 = vmatprep.mubr.bf16.mxu0 0
    %475 = vmatmul.mubr.bf16.gmra.mrb[0].mxu0 %v333
    %v476 = vpop.f32.mrb[0].mxu0
    %v477 = vadd.f32 0.0, %v476
    %v478 = vpop.f32.mrb[0].mxu0
    %v479 = vadd.f32 0.0, %v478
    %v480 = vpop.f32.mrb[0].mxu0
    %v481 = vadd.f32 0.0, %v480
    %v482 = vpop.f32.mrb[0].mxu0
    %v483 = vadd.f32 0.0, %v482
    %484 = vmatprep.mubr.bf16.mxu0 0
    %485 = vmatmul.mubr.bf16.gmra.mrb[0].mxu0 %v336
    %v486 = vpop.f32.mrb[0].mxu0
    %v487 = vadd.f32 0.0, %v486
    %v488 = vpop.f32.mrb[0].mxu0
    %v489 = vadd.f32 0.0, %v488
    %v490 = vpop.f32.mrb[0].mxu0
    %v491 = vpop.f32.mrb[0].mxu0
    %492 = vdwg.mxu0
    %v497 = vunpack.c.l.b16 %v288
    %v498 = vunpack.c.h.b16 %v288
    %v499 = vunpack.c.l.b16 %v289
    %v500 = vunpack.c.h.b16 %v289
    %v501 = vunpack.c.l.b16 %v290
    %v502 = vunpack.c.h.b16 %v290
    %v503 = vunpack.c.l.b16 %v291
    %v504 = vunpack.c.h.b16 %v291
    %v505 = vpack.c.b16 %v501, %v497
    %v506 = vpack.c.b16 %v502, %v498
    %v507 = vpack.c.b16 %v503, %v499
    %v508 = vpack.c.b16 %v504, %v500
    %v510 = vsel %vm325, %v284, 0
    %v513 = vsel %vm325, %v285, 0
    %v516 = vsel %vm325, %v286, 0
    %v519 = vsel %vm325, %v287, 0
    %v522 = vsel %vm338, %v505, 0
    %v525 = vsel %vm338, %v506, 0
    %v528 = vsel %vm338, %v507, 0
    %v531 = vsel %vm338, %v508, 0
    %533 = vmatprep.subr.bf16.mxu0 %v525
    %534 = vmatpush1.bf16.msra.mxu0 %v522
    %535 = vmatprep.subr.bf16.mxu0 0
    %536 = vmatpush1.bf16.msra.mxu0 0
    %537 = vmatprep.subr.bf16.mxu0 0
    %538 = vmatpush1.bf16.msra.mxu0 0
    %539 = vmatprep.subr.bf16.mxu0 0
    %540 = vmatpush1.bf16.msra.mxu0 0
    %541 = vmatprep.subr.bf16.mxu0 0
    %542 = vmatpush1.bf16.msra.mxu0 0
    %543 = vmatprep.subr.bf16.mxu0 0
    %544 = vmatpush1.bf16.msra.mxu0 0
    %545 = vmatprep.subr.bf16.mxu0 0
    %546 = vmatpush1.bf16.msra.mxu0 0
    %547 = vmatprep.subr.bf16.mxu0 0
    %548 = vmatpush1.bf16.msra.mxu0 0
    %549 = vmatprep.subr.bf16.mxu0 0
    %550 = vmatpush1.bf16.msra.mxu0 0
    %551 = vmatprep.subr.bf16.mxu0 0
    %552 = vmatpush1.bf16.msra.mxu0 0
    %553 = vmatprep.subr.bf16.mxu0 0
    %554 = vmatpush1.bf16.msra.mxu0 0
    %555 = vmatprep.subr.bf16.mxu0 0
    %556 = vmatpush1.bf16.msra.mxu0 0
    %557 = vmatprep.subr.bf16.mxu0 0
    %558 = vmatpush1.bf16.msra.mxu0 0
    %559 = vmatprep.subr.bf16.mxu0 0
    %560 = vmatpush1.bf16.msra.mxu0 0
    %561 = vmatprep.subr.bf16.mxu0 0
    %562 = vmatpush1.bf16.msra.mxu0 0
    %563 = vmatprep.subr.bf16.mxu0 0
    %564 = vmatpush1.bf16.msra.mxu0 0
    %565 = vmatprep.mubr.bf16.mxu0 0
    %566 = vmatmul.mubr.bf16.gmra.mrb[0].mxu0 %v510
    %v567 = vpop.f32.mrb[0].mxu0
    %v568 = vadd.f32 %v386, %v567
    %v569 = vpop.f32.mrb[0].mxu0
    %v570 = vadd.f32 %v388, %v569
    %v571 = vpop.f32.mrb[0].mxu0
    %v572 = vadd.f32 %v390, %v571
    %v573 = vpop.f32.mrb[0].mxu0
    %v574 = vadd.f32 %v392, %v573
    %575 = vmatprep.mubr.bf16.mxu0 0
    %576 = vmatmul.mubr.bf16.gmra.mrb[0].mxu0 %v513
    %v577 = vpop.f32.mrb[0].mxu0
    %v578 = vadd.f32 %v396, %v577
    %v579 = vpop.f32.mrb[0].mxu0
    %v580 = vadd.f32 %v398, %v579
    %v581 = vpop.f32.mrb[0].mxu0
    %v582 = vadd.f32 %v400, %v581
    %v583 = vpop.f32.mrb[0].mxu0
    %v584 = vadd.f32 %v402, %v583
    %585 = vmatprep.mubr.bf16.mxu0 0
    %586 = vmatmul.mubr.bf16.gmra.mrb[0].mxu0 %v516
    %v587 = vpop.f32.mrb[0].mxu0
    %v588 = vadd.f32 %v406, %v587
    %v589 = vpop.f32.mrb[0].mxu0
    %v590 = vadd.f32 %v408, %v589
    %v591 = vpop.f32.mrb[0].mxu0
    %v592 = vadd.f32 %v410, %v591
    %v593 = vpop.f32.mrb[0].mxu0
    %v594 = vadd.f32 %v412, %v593
    %595 = vmatprep.mubr.bf16.mxu0 0
    %596 = vmatmul.mubr.bf16.gmra.mrb[0].mxu0 %v519
    %v597 = vpop.f32.mrb[0].mxu0
    %v598 = vadd.f32 %v416, %v597
    %v599 = vpop.f32.mrb[0].mxu0
    %v600 = vadd.f32 %v418, %v599
    %v601 = vpop.f32.mrb[0].mxu0
    %v602 = vpop.f32.mrb[0].mxu0
    %603 = vdwg.mxu0
    %604 = vmatprep.subr.bf16.mxu0 %v531
    %605 = vmatpush1.bf16.msra.mxu0 %v528
    %606 = vmatprep.subr.bf16.mxu0 0
    %607 = vmatpush1.bf16.msra.mxu0 0
    %608 = vmatprep.subr.bf16.mxu0 0
    %609 = vmatpush1.bf16.msra.mxu0 0
    %610 = vmatprep.subr.bf16.mxu0 0
    %611 = vmatpush1.bf16.msra.mxu0 0
    %612 = vmatprep.subr.bf16.mxu0 0
    %613 = vmatpush1.bf16.msra.mxu0 0
    %614 = vmatprep.subr.bf16.mxu0 0
    %615 = vmatpush1.bf16.msra.mxu0 0
    %616 = vmatprep.subr.bf16.mxu0 0
    %617 = vmatpush1.bf16.msra.mxu0 0
    %618 = vmatprep.subr.bf16.mxu0 0
    %619 = vmatpush1.bf16.msra.mxu0 0
    %620 = vmatprep.subr.bf16.mxu0 0
    %621 = vmatpush1.bf16.msra.mxu0 0
    %622 = vmatprep.subr.bf16.mxu0 0
    %623 = vmatpush1.bf16.msra.mxu0 0
    %624 = vmatprep.subr.bf16.mxu0 0
    %625 = vmatpush1.bf16.msra.mxu0 0
    %626 = vmatprep.subr.bf16.mxu0 0
    %627 = vmatpush1.bf16.msra.mxu0 0
    %628 = vmatprep.subr.bf16.mxu0 0
    %629 = vmatpush1.bf16.msra.mxu0 0
    %630 = vmatprep.subr.bf16.mxu0 0
    %631 = vmatpush1.bf16.msra.mxu0 0
    %632 = vmatprep.subr.bf16.mxu0 0
    %633 = vmatpush1.bf16.msra.mxu0 0
    %634 = vmatprep.subr.bf16.mxu0 0
    %635 = vmatpush1.bf16.msra.mxu0 0
    %636 = vmatprep.mubr.bf16.mxu0 0
    %637 = vmatmul.mubr.bf16.gmra.mrb[0].mxu0 %v510
    %v638 = vpop.f32.mrb[0].mxu0
    %v639 = vadd.f32 %v457, %v638
    %v640 = vpop.f32.mrb[0].mxu0
    %v641 = vadd.f32 %v459, %v640
    %v642 = vpop.f32.mrb[0].mxu0
    %v643 = vadd.f32 %v461, %v642
    %v644 = vpop.f32.mrb[0].mxu0
    %v645 = vadd.f32 %v463, %v644
    %646 = vmatprep.mubr.bf16.mxu0 0
    %647 = vmatmul.mubr.bf16.gmra.mrb[0].mxu0 %v513
    %v648 = vpop.f32.mrb[0].mxu0
    %v649 = vadd.f32 %v467, %v648
    %v650 = vpop.f32.mrb[0].mxu0
    %v651 = vadd.f32 %v469, %v650
    %v652 = vpop.f32.mrb[0].mxu0
    %v653 = vadd.f32 %v471, %v652
    %v654 = vpop.f32.mrb[0].mxu0
    %v655 = vadd.f32 %v473, %v654
    %656 = vmatprep.mubr.bf16.mxu0 0
    %657 = vmatmul.mubr.bf16.gmra.mrb[0].mxu0 %v516
    %v658 = vpop.f32.mrb[0].mxu0
    %v659 = vadd.f32 %v477, %v658
    %v660 = vpop.f32.mrb[0].mxu0
    %v661 = vadd.f32 %v479, %v660
    %v662 = vpop.f32.mrb[0].mxu0
    %v663 = vadd.f32 %v481, %v662
    %v664 = vpop.f32.mrb[0].mxu0
    %v665 = vadd.f32 %v483, %v664
    %666 = vmatprep.mubr.bf16.mxu0 0
    %667 = vmatmul.mubr.bf16.gmra.mrb[0].mxu0 %v519
    %v668 = vpop.f32.mrb[0].mxu0
    %v669 = vadd.f32 %v487, %v668
    %v670 = vpop.f32.mrb[0].mxu0
    %v671 = vadd.f32 %v489, %v670
    %v672 = vpop.f32.mrb[0].mxu0
    %v673 = vpop.f32.mrb[0].mxu0
    %674 = vdwg.mxu0
    %s675 = scalar_lea.vmem [#allocation9], 64
    %v676 = vld [vmem:[%s675] sm:$0xff]
    %v677 = vld [vmem:[%s675 + $0x8] sm:$0xff]
    %v678 = vld [vmem:[%s675 + $0x10] sm:$0x77]
    %v679 = vld [vmem:[%s675 + $0x18] sm:$0x77]
    %vm680 = vcmask 1045504
    %v681 = vrot.slane %v284, 2
    %v682 = vrot.slane %v285, 2
    %v683 = vsel %vm680, %v681, %v682
    %v684 = vrot.slane %v286, 2
    %v685 = vsel %vm680, %v682, %v684
    %v686 = vrot.slane %v287, 2
    %v687 = vsel %vm680, %v684, %v686
    %v692 = vunpack.c.l.b16 %v676
    %v693 = vunpack.c.h.b16 %v676
    %v694 = vunpack.c.l.b16 %v677
    %v695 = vunpack.c.h.b16 %v677
    %v696 = vunpack.c.l.b16 %v678
    %v697 = vunpack.c.h.b16 %v678
    %v698 = vunpack.c.l.b16 %v679
    %v699 = vunpack.c.h.b16 %v679
    %v700 = vpack.c.b16 %v696, %v692
    %v701 = vpack.c.b16 %v697, %v693
    %v702 = vpack.c.b16 %v698, %v694
    %v703 = vpack.c.b16 %v699, %v695
    %v705 = vsel %vm325, %v683, 0
    %v708 = vsel %vm325, %v685, 0
    %v711 = vsel %vm325, %v687, 0
    %v714 = vsel %vm325, %v686, 0
    %v717 = vsel %vm338, %v700, 0
    %v720 = vsel %vm338, %v701, 0
    %v723 = vsel %vm338, %v702, 0
    %v726 = vsel %vm338, %v703, 0
    %728 = vmatprep.subr.bf16.mxu0 %v720
    %729 = vmatpush1.bf16.msra.mxu0 %v717
    %730 = vmatprep.subr.bf16.mxu0 0
    %731 = vmatpush1.bf16.msra.mxu0 0
    %732 = vmatprep.subr.bf16.mxu0 0
    %733 = vmatpush1.bf16.msra.mxu0 0
    %734 = vmatprep.subr.bf16.mxu0 0
    %735 = vmatpush1.bf16.msra.mxu0 0
    %736 = vmatprep.subr.bf16.mxu0 0
    %737 = vmatpush1.bf16.msra.mxu0 0
    %738 = vmatprep.subr.bf16.mxu0 0
    %739 = vmatpush1.bf16.msra.mxu0 0
    %740 = vmatprep.subr.bf16.mxu0 0
    %741 = vmatpush1.bf16.msra.mxu0 0
    %742 = vmatprep.subr.bf16.mxu0 0
    %743 = vmatpush1.bf16.msra.mxu0 0
    %744 = vmatprep.subr.bf16.mxu0 0
    %745 = vmatpush1.bf16.msra.mxu0 0
    %746 = vmatprep.subr.bf16.mxu0 0
    %747 = vmatpush1.bf16.msra.mxu0 0
    %748 = vmatprep.subr.bf16.mxu0 0
    %749 = vmatpush1.bf16.msra.mxu0 0
    %750 = vmatprep.subr.bf16.mxu0 0
    %751 = vmatpush1.bf16.msra.mxu0 0
    %752 = vmatprep.subr.bf16.mxu0 0
    %753 = vmatpush1.bf16.msra.mxu0 0
    %754 = vmatprep.subr.bf16.mxu0 0
    %755 = vmatpush1.bf16.msra.mxu0 0
    %756 = vmatprep.subr.bf16.mxu0 0
    %757 = vmatpush1.bf16.msra.mxu0 0
    %758 = vmatprep.subr.bf16.mxu0 0
    %759 = vmatpush1.bf16.msra.mxu0 0
    %760 = vmatprep.mubr.bf16.mxu0 0
    %761 = vmatmul.mubr.bf16.gmra.mrb[0].mxu0 %v705
    %v762 = vpop.f32.mrb[0].mxu0
    %v763 = vadd.f32 0.0, %v762
    %v764 = vpop.f32.mrb[0].mxu0
    %v765 = vadd.f32 0.0, %v764
    %v766 = vpop.f32.mrb[0].mxu0
    %v767 = vadd.f32 0.0, %v766
    %v768 = vpop.f32.mrb[0].mxu0
    %v769 = vadd.f32 0.0, %v768
    %770 = vmatprep.mubr.bf16.mxu0 0
    %771 = vmatmul.mubr.bf16.gmra.mrb[0].mxu0 %v708
    %v772 = vpop.f32.mrb[0].mxu0
    %v773 = vadd.f32 0.0, %v772
    %v774 = vpop.f32.mrb[0].mxu0
    %v775 = vadd.f32 0.0, %v774
    %v776 = vpop.f32.mrb[0].mxu0
    %v777 = vadd.f32 0.0, %v776
    %v778 = vpop.f32.mrb[0].mxu0
    %v779 = vadd.f32 0.0, %v778
    %780 = vmatprep.mubr.bf16.mxu0 0
    %781 = vmatmul.mubr.bf16.gmra.mrb[0].mxu0 %v711
    %v782 = vpop.f32.mrb[0].mxu0
    %v783 = vadd.f32 0.0, %v782
    %v784 = vpop.f32.mrb[0].mxu0
    %v785 = vadd.f32 0.0, %v784
    %v786 = vpop.f32.mrb[0].mxu0
    %v787 = vadd.f32 0.0, %v786
    %v788 = vpop.f32.mrb[0].mxu0
    %v789 = vadd.f32 0.0, %v788
    %790 = vmatprep.mubr.bf16.mxu0 0
    %791 = vmatmul.mubr.bf16.gmra.mrb[0].mxu0 %v714
    %v792 = vpop.f32.mrb[0].mxu0
    %v793 = vadd.f32 0.0, %v792
    %v794 = vpop.f32.mrb[0].mxu0
    %v795 = vadd.f32 0.0, %v794
    %v796 = vpop.f32.mrb[0].mxu0
    %v797 = vpop.f32.mrb[0].mxu0
    %798 = vdwg.mxu0
    %799 = vmatprep.subr.bf16.mxu0 %v726
    %800 = vmatpush1.bf16.msra.mxu0 %v723
    %801 = vmatprep.subr.bf16.mxu0 0
    %802 = vmatpush1.bf16.msra.mxu0 0
    %803 = vmatprep.subr.bf16.mxu0 0
    %804 = vmatpush1.bf16.msra.mxu0 0
    %805 = vmatprep.subr.bf16.mxu0 0
    %806 = vmatpush1.bf16.msra.mxu0 0
    %807 = vmatprep.subr.bf16.mxu0 0
    %808 = vmatpush1.bf16.msra.mxu0 0
    %809 = vmatprep.subr.bf16.mxu0 0
    %810 = vmatpush1.bf16.msra.mxu0 0
    %811 = vmatprep.subr.bf16.mxu0 0
    %812 = vmatpush1.bf16.msra.mxu0 0
    %813 = vmatprep.subr.bf16.mxu0 0
    %814 = vmatpush1.bf16.msra.mxu0 0
    %815 = vmatprep.subr.bf16.mxu0 0
    %816 = vmatpush1.bf16.msra.mxu0 0
    %817 = vmatprep.subr.bf16.mxu0 0
    %818 = vmatpush1.bf16.msra.mxu0 0
    %819 = vmatprep.subr.bf16.mxu0 0
    %820 = vmatpush1.bf16.msra.mxu0 0
    %821 = vmatprep.subr.bf16.mxu0 0
    %822 = vmatpush1.bf16.msra.mxu0 0
    %823 = vmatprep.subr.bf16.mxu0 0
    %824 = vmatpush1.bf16.msra.mxu0 0
    %825 = vmatprep.subr.bf16.mxu0 0
    %826 = vmatpush1.bf16.msra.mxu0 0
    %827 = vmatprep.subr.bf16.mxu0 0
    %828 = vmatpush1.bf16.msra.mxu0 0
    %829 = vmatprep.subr.bf16.mxu0 0
    %830 = vmatpush1.bf16.msra.mxu0 0
    %831 = vmatprep.mubr.bf16.mxu0 0
    %832 = vmatmul.mubr.bf16.gmra.mrb[0].mxu0 %v705
    %v833 = vpop.f32.mrb[0].mxu0
    %v834 = vadd.f32 0.0, %v833
    %v835 = vpop.f32.mrb[0].mxu0
    %v836 = vadd.f32 0.0, %v835
    %v837 = vpop.f32.mrb[0].mxu0
    %v838 = vadd.f32 0.0, %v837
    %v839 = vpop.f32.mrb[0].mxu0
    %v840 = vadd.f32 0.0, %v839
    %841 = vmatprep.mubr.bf16.mxu0 0
    %842 = vmatmul.mubr.bf16.gmra.mrb[0].mxu0 %v708
    %v843 = vpop.f32.mrb[0].mxu0
    %v844 = vadd.f32 0.0, %v843
    %v845 = vpop.f32.mrb[0].mxu0
    %v846 = vadd.f32 0.0, %v845
    %v847 = vpop.f32.mrb[0].mxu0
    %v848 = vadd.f32 0.0, %v847
    %v849 = vpop.f32.mrb[0].mxu0
    %v850 = vadd.f32 0.0, %v849
    %851 = vmatprep.mubr.bf16.mxu0 0
    %852 = vmatmul.mubr.bf16.gmra.mrb[0].mxu0 %v711
    %v853 = vpop.f32.mrb[0].mxu0
    %v854 = vadd.f32 0.0, %v853
    %v855 = vpop.f32.mrb[0].mxu0
    %v856 = vadd.f32 0.0, %v855
    %v857 = vpop.f32.mrb[0].mxu0
    %v858 = vadd.f32 0.0, %v857
    %v859 = vpop.f32.mrb[0].mxu0
    %v860 = vadd.f32 0.0, %v859
    %861 = vmatprep.mubr.bf16.mxu0 0
    %862 = vmatmul.mubr.bf16.gmra.mrb[0].mxu0 %v714
    %v863 = vpop.f32.mrb[0].mxu0
    %v864 = vadd.f32 0.0, %v863
    %v865 = vpop.f32.mrb[0].mxu0
    %v866 = vadd.f32 0.0, %v865
    %v867 = vpop.f32.mrb[0].mxu0
    %v868 = vpop.f32.mrb[0].mxu0
    %869 = vdwg.mxu0
    %v870 = vadd.f32 %v568, %v763
    %v871 = vadd.f32 %v570, %v765
    %v872 = vadd.f32 %v639, %v834
    %v873 = vadd.f32 %v641, %v836
    %v874 = vadd.f32 %v572, %v767
    %v875 = vadd.f32 %v574, %v769
    %v876 = vadd.f32 %v643, %v838
    %v877 = vadd.f32 %v645, %v840
    %v878 = vadd.f32 %v578, %v773
    %v879 = vadd.f32 %v580, %v775
    %v880 = vadd.f32 %v649, %v844
    %v881 = vadd.f32 %v651, %v846
    %v882 = vadd.f32 %v582, %v777
    %v883 = vadd.f32 %v584, %v779
    %v884 = vadd.f32 %v653, %v848
    %v885 = vadd.f32 %v655, %v850
    %v886 = vadd.f32 %v588, %v783
    %v887 = vadd.f32 %v590, %v785
    %v888 = vadd.f32 %v659, %v854
    %v889 = vadd.f32 %v661, %v856
    %v890 = vadd.f32 %v592, %v787
    %v891 = vadd.f32 %v594, %v789
    %v892 = vadd.f32 %v663, %v858
    %v893 = vadd.f32 %v665, %v860
    %v894 = vadd.f32 %v598, %v793
    %v895 = vadd.f32 %v600, %v795
    %v896 = vadd.f32 %v669, %v864
    %v897 = vadd.f32 %v671, %v866
    %v898 = vld [vmem:[#allocation12] sm:$0xf]
    %v900 = vlaneseq
    %v901 = vshrl.u32 %v900, 7
    %v902 = vsub.s32 0, %v901
    %v903 = vrot.slane %v898, %v902
    %v904 = vlaneseq
    %v905 = vshrl.u32 %v904, 7
    %v906 = vsub.s32 1, %v905
    %v907 = vrot.slane %v898, %v906
    %v908 = vlaneseq
    %v909 = vshrl.u32 %v908, 7
    %v910 = vsub.s32 2, %v909
    %v911 = vrot.slane %v898, %v910
    %v912 = vlaneseq
    %v913 = vshrl.u32 %v912, 7
    %v914 = vsub.s32 3, %v913
    %v915 = vrot.slane %v898, %v914
    %v920 = vadd.f32 %v870, %v903
    %v921 = vadd.f32 %v871, %v907
    %v922 = vadd.f32 %v872, %v911
    %v923 = vadd.f32 %v873, %v915
    %v924 = vadd.f32 %v874, %v903
    %v925 = vadd.f32 %v875, %v907
    %v926 = vadd.f32 %v876, %v911
    %v927 = vadd.f32 %v877, %v915
    %v928 = vadd.f32 %v878, %v903
    %v929 = vadd.f32 %v879, %v907
    %v930 = vadd.f32 %v880, %v911
    %v931 = vadd.f32 %v881, %v915
    %v932 = vadd.f32 %v882, %v903
    %v933 = vadd.f32 %v883, %v907
    %v934 = vadd.f32 %v884, %v911
    %v935 = vadd.f32 %v885, %v915
    %v936 = vadd.f32 %v886, %v903
    %v937 = vadd.f32 %v887, %v907
    %v938 = vadd.f32 %v888, %v911
    %v939 = vadd.f32 %v889, %v915
    %v940 = vadd.f32 %v890, %v903
    %v941 = vadd.f32 %v891, %v907
    %v942 = vadd.f32 %v892, %v911
    %v943 = vadd.f32 %v893, %v915
    %v944 = vadd.f32 %v894, %v903
    %v945 = vadd.f32 %v895, %v907
    %v946 = vadd.f32 %v896, %v911
    %v947 = vadd.f32 %v897, %v915
    %v948 = vmax.f32 %v920, 0.0
    %v949 = vmax.f32 %v921, 0.0
    %v950 = vmax.f32 %v922, 0.0
    %v951 = vmax.f32 %v923, 0.0
    %v952 = vmax.f32 %v924, 0.0
    %v953 = vmax.f32 %v925, 0.0
    %v954 = vmax.f32 %v926, 0.0
    %v955 = vmax.f32 %v927, 0.0
    %v956 = vmax.f32 %v928, 0.0
    %v957 = vmax.f32 %v929, 0.0
    %v958 = vmax.f32 %v930, 0.0
    %v959 = vmax.f32 %v931, 0.0
    %v960 = vmax.f32 %v932, 0.0
    %v961 = vmax.f32 %v933, 0.0
    %v962 = vmax.f32 %v934, 0.0
    %v963 = vmax.f32 %v935, 0.0
    %v964 = vmax.f32 %v936, 0.0
    %v965 = vmax.f32 %v937, 0.0
    %v966 = vmax.f32 %v938, 0.0
    %v967 = vmax.f32 %v939, 0.0
    %v968 = vmax.f32 %v940, 0.0
    %v969 = vmax.f32 %v941, 0.0
    %v970 = vmax.f32 %v942, 0.0
    %v971 = vmax.f32 %v943, 0.0
    %v972 = vmax.f32 %v944, 0.0
    %v973 = vmax.f32 %v945, 0.0
    %v974 = vmax.f32 %v946, 0.0
    %v975 = vmax.f32 %v947, 0.0
    %v976 = vpack.c.bf16 %v952, %v948
    %v977 = vpack.c.bf16 %v953, %v949
    %v978 = vpack.c.bf16 %v954, %v950
    %v979 = vpack.c.bf16 %v955, %v951
    %v980 = vpack.c.bf16 %v960, %v956
    %v981 = vpack.c.bf16 %v961, %v957
    %v982 = vpack.c.bf16 %v962, %v958
    %v983 = vpack.c.bf16 %v963, %v959
    %v984 = vpack.c.bf16 %v968, %v964
    %v985 = vpack.c.bf16 %v969, %v965
    %v986 = vpack.c.bf16 %v970, %v966
    %v987 = vpack.c.bf16 %v971, %v967
    %v988 = vpack.c.bf16 %v972, %v972
    %v989 = vpack.c.bf16 %v973, %v973
    %v990 = vpack.c.bf16 %v974, %v974
    %v991 = vpack.c.bf16 %v975, %v975
    %v1008 = vunpack.c.l.b16 %v976
    %v1009 = vunpack.c.l.b16 %v977
    %v1010 = vunpack.c.l.b16 %v978
    %v1011 = vunpack.c.l.b16 %v979
    %v1012 = vunpack.c.h.b16 %v976
    %v1013 = vunpack.c.h.b16 %v977
    %v1014 = vunpack.c.h.b16 %v978
    %v1015 = vunpack.c.h.b16 %v979
    %v1016 = vunpack.c.l.b16 %v980
    %v1017 = vunpack.c.l.b16 %v981
    %v1018 = vunpack.c.l.b16 %v982
    %v1019 = vunpack.c.l.b16 %v983
    %v1020 = vunpack.c.h.b16 %v980
    %v1021 = vunpack.c.h.b16 %v981
    %v1022 = vunpack.c.h.b16 %v982
    %v1023 = vunpack.c.h.b16 %v983
    %v1024 = vunpack.c.l.b16 %v984
    %v1025 = vunpack.c.l.b16 %v985
    %v1026 = vunpack.c.l.b16 %v986
    %v1027 = vunpack.c.l.b16 %v987
    %v1028 = vunpack.c.h.b16 %v984
    %v1029 = vunpack.c.h.b16 %v985
    %v1030 = vunpack.c.h.b16 %v986
    %v1031 = vunpack.c.h.b16 %v987
    %v1032 = vunpack.c.l.b16 %v988
    %v1033 = vunpack.c.l.b16 %v989
    %v1034 = vunpack.c.l.b16 %v990
    %v1035 = vunpack.c.l.b16 %v991
    %v1036 = vpack.c.b16 %v1009, %v1008
    %v1037 = vpack.c.b16 %v1011, %v1010
    %v1038 = vpack.c.b16 %v1013, %v1012
    %v1039 = vpack.c.b16 %v1015, %v1014
    %v1040 = vpack.c.b16 %v1017, %v1016
    %v1041 = vpack.c.b16 %v1019, %v1018
    %v1042 = vpack.c.b16 %v1021, %v1020
    %v1043 = vpack.c.b16 %v1023, %v1022
    %v1044 = vpack.c.b16 %v1025, %v1024
    %v1045 = vpack.c.b16 %v1027, %v1026
    %v1046 = vpack.c.b16 %v1029, %v1028
    %v1047 = vpack.c.b16 %v1031, %v1030
    %v1048 = vpack.c.b16 %v1033, %v1032
    %v1049 = vpack.c.b16 %v1035, %v1034
    %vm1050 = vcmask 1040384
    %vm1051 = vcmask 1044484
    %vm1052 = vmor %vm1050, %vm1051
    %v1053 = vrot.slane %v1036, 7
    %v1054 = vrot.slane %v1037, 7
    %v1055 = vrot.slane %v1053, 4
    %v1056 = vrot.slane %v1038, 7
    %v1057 = vsel %vm1052, %v1055, %v1056
    %v1058 = vrot.slane %v1054, 4
    %v1059 = vrot.slane %v1039, 7
    %v1060 = vsel %vm1052, %v1058, %v1059
    %v1061 = vrot.slane %v1056, 4
    %v1062 = vrot.slane %v1040, 7
    %v1063 = vsel %vm1052, %v1061, %v1062
    %v1064 = vrot.slane %v1059, 4
    %v1065 = vrot.slane %v1041, 7
    %v1066 = vsel %vm1052, %v1064, %v1065
    %v1067 = vrot.slane %v1062, 4
    %v1068 = vrot.slane %v1042, 7
    %v1069 = vsel %vm1052, %v1067, %v1068
    %v1070 = vrot.slane %v1065, 4
    %v1071 = vrot.slane %v1043, 7
    %v1072 = vsel %vm1052, %v1070, %v1071
    %v1073 = vrot.slane %v1068, 4
    %v1074 = vrot.slane %v1044, 7
    %v1075 = vsel %vm1052, %v1073, %v1074
    %v1076 = vrot.slane %v1071, 4
    %v1077 = vrot.slane %v1045, 7
    %v1078 = vsel %vm1052, %v1076, %v1077
    %v1079 = vrot.slane %v1074, 4
    %v1080 = vrot.slane %v1046, 7
    %v1081 = vsel %vm1052, %v1079, %v1080
    %v1082 = vrot.slane %v1077, 4
    %v1083 = vrot.slane %v1047, 7
    %v1084 = vsel %vm1052, %v1082, %v1083
    %v1085 = vrot.slane %v1080, 4
    %v1086 = vrot.slane %v1048, 7
    %v1087 = vsel %vm1052, %v1085, %v1086
    %v1088 = vrot.slane %v1083, 4
    %v1089 = vrot.slane %v1049, 7
    %v1090 = vsel %vm1052, %v1088, %v1089
    %v1091 = vrot.slane %v1086, 4
    %v1092 = vrot.slane %v1089, 4
    %1109 = vst [vmem:[#allocation2] sm:$0xee] %v1053
    %1110 = vst [vmem:[#allocation2 + $0x8] sm:$0xee] %v1054
    %1111 = vst [vmem:[#allocation2 + $0x10] sm:$0xff] %v1057
    %1112 = vst [vmem:[#allocation2 + $0x18] sm:$0xff] %v1060
    %1113 = vst [vmem:[#allocation2 + $0x20] sm:$0xff] %v1063
    %1114 = vst [vmem:[#allocation2 + $0x28] sm:$0xff] %v1066
    %1115 = vst [vmem:[#allocation2 + $0x30] sm:$0xff] %v1069
    %1116 = vst [vmem:[#allocation2 + $0x38] sm:$0xff] %v1072
    %1117 = vst [vmem:[#allocation2 + $0x40] sm:$0xff] %v1075
    %1118 = vst [vmem:[#allocation2 + $0x48] sm:$0xff] %v1078
    %1119 = vst [vmem:[#allocation2 + $0x50] sm:$0xff] %v1081
    %1120 = vst [vmem:[#allocation2 + $0x58] sm:$0xff] %v1084
    %1121 = vst [vmem:[#allocation2 + $0x60] sm:$0xff] %v1087
    %1122 = vst [vmem:[#allocation2 + $0x68] sm:$0xff] %v1090
    %1123 = vst [vmem:[#allocation2 + $0x70] sm:$0x11] %v1091
    %1124 = vst [vmem:[#allocation2 + $0x78] sm:$0x11] %v1092
    %v1125 = vld [vmem:[#allocation2] sm:$0xff]
    %v1126 = vld [vmem:[#allocation2 + $0x8] sm:$0xff]
    %v1127 = vld [vmem:[#allocation2 + $0x10] sm:$0xff]
    %v1128 = vld [vmem:[#allocation2 + $0x18] sm:$0xff]
    %v1129 = vld [vmem:[#allocation2 + $0x20] sm:$0xff]
    %v1130 = vld [vmem:[#allocation2 + $0x28] sm:$0xff]
    %v1131 = vld [vmem:[#allocation2 + $0x30] sm:$0xff]
    %v1132 = vld [vmem:[#allocation2 + $0x38] sm:$0xff]
    %v1133 = vld [vmem:[#allocation2 + $0x40] sm:$0xff]
    %v1134 = vld [vmem:[#allocation2 + $0x48] sm:$0xff]
    %v1135 = vld [vmem:[#allocation2 + $0x50] sm:$0xff]
    %v1136 = vld [vmem:[#allocation2 + $0x58] sm:$0xff]
    %v1137 = vld [vmem:[#allocation2 + $0x60] sm:$0xff]
    %v1138 = vld [vmem:[#allocation2 + $0x68] sm:$0xff]
    %v1139 = vld [vmem:[#allocation2 + $0x70] sm:$0x33]
    %v1140 = vld [vmem:[#allocation2 + $0x78] sm:$0x33]
    %v1141 = vld [vmem:[#allocation14] sm:$0xff]
    %v1142 = vld [vmem:[#allocation14 + $0x8] sm:$0xff]
    %v1143 = vld [vmem:[#allocation14 + $0x10] sm:$0xff]
    %v1144 = vld [vmem:[#allocation14 + $0x18] sm:$0xff]
    %v1145 = vld [vmem:[#allocation14 + $0x20] sm:$0xff]
    %v1146 = vld [vmem:[#allocation14 + $0x28] sm:$0xff]
    %v1147 = vld [vmem:[#allocation14 + $0x30] sm:$0xff]
    %v1148 = vld [vmem:[#allocation14 + $0x38] sm:$0xff]
    %v1149 = vld [vmem:[#allocation14 + $0x40] sm:$0xff]
    %v1150 = vld [vmem:[#allocation14 + $0x48] sm:$0xff]
    %v1151 = vld [vmem:[#allocation14 + $0x50] sm:$0xff]
    %v1152 = vld [vmem:[#allocation14 + $0x58] sm:$0xff]
    %v1153 = vld [vmem:[#allocation14 + $0x60] sm:$0xff]
    %v1154 = vld [vmem:[#allocation14 + $0x68] sm:$0xff]
    %v1155 = vld [vmem:[#allocation14 + $0x70] sm:$0xff]
    %v1156 = vld [vmem:[#allocation14 + $0x78] sm:$0xff]
    %v1157 = vld [vmem:[#allocation14 + $0x80] sm:$0xff]
    %v1158 = vld [vmem:[#allocation14 + $0x88] sm:$0xff]
    %v1159 = vld [vmem:[#allocation14 + $0x90] sm:$0xff]
    %v1160 = vld [vmem:[#allocation14 + $0x98] sm:$0xff]
    %v1161 = vld [vmem:[#allocation14 + $0xa0] sm:$0xff]
    %v1162 = vld [vmem:[#allocation14 + $0xa8] sm:$0xff]
    %v1163 = vld [vmem:[#allocation14 + $0xb0] sm:$0xff]
    %v1164 = vld [vmem:[#allocation14 + $0xb8] sm:$0xff]
    %v1165 = vld [vmem:[#allocation14 + $0xc0] sm:$0xff]
    %v1166 = vld [vmem:[#allocation14 + $0xc8] sm:$0xff]
    %v1167 = vld [vmem:[#allocation14 + $0xd0] sm:$0xff]
    %v1168 = vld [vmem:[#allocation14 + $0xd8] sm:$0xff]
    %v1169 = vld [vmem:[#allocation14 + $0xe0] sm:$0xff]
    %v1170 = vld [vmem:[#allocation14 + $0xe8] sm:$0xff]
    %v1171 = vld [vmem:[#allocation14 + $0xf0] sm:$0xff]
    %v1172 = vld [vmem:[#allocation14 + $0xf8] sm:$0xff]
    %v1173 = vld [vmem:[#allocation14 + $0x100] sm:$0xff]
    %v1174 = vld [vmem:[#allocation14 + $0x108] sm:$0xff]
    %v1175 = vld [vmem:[#allocation14 + $0x110] sm:$0xff]
    %v1176 = vld [vmem:[#allocation14 + $0x118] sm:$0xff]
    %v1177 = vld [vmem:[#allocation14 + $0x120] sm:$0xff]
    %v1178 = vld [vmem:[#allocation14 + $0x128] sm:$0xff]
    %v1179 = vld [vmem:[#allocation14 + $0x130] sm:$0xff]
    %v1180 = vld [vmem:[#allocation14 + $0x138] sm:$0xff]
    %v1181 = vld [vmem:[#allocation14 + $0x140] sm:$0xff]
    %v1182 = vld [vmem:[#allocation14 + $0x148] sm:$0xff]
    %v1183 = vld [vmem:[#allocation14 + $0x150] sm:$0xff]
    %v1184 = vld [vmem:[#allocation14 + $0x158] sm:$0xff]
    %v1185 = vld [vmem:[#allocation14 + $0x160] sm:$0xff]
    %v1186 = vld [vmem:[#allocation14 + $0x168] sm:$0xff]
    %v1187 = vld [vmem:[#allocation14 + $0x170] sm:$0xff]
    %v1188 = vld [vmem:[#allocation14 + $0x178] sm:$0xff]
    %v1189 = vld [vmem:[#allocation14 + $0x180] sm:$0xff]
    %v1190 = vld [vmem:[#allocation14 + $0x188] sm:$0xff]
    %v1191 = vld [vmem:[#allocation14 + $0x190] sm:$0xff]
    %v1192 = vld [vmem:[#allocation14 + $0x198] sm:$0xff]
    %v1193 = vld [vmem:[#allocation14 + $0x1a0] sm:$0xff]
    %v1194 = vld [vmem:[#allocation14 + $0x1a8] sm:$0xff]
    %v1195 = vld [vmem:[#allocation14 + $0x1b0] sm:$0xff]
    %v1196 = vld [vmem:[#allocation14 + $0x1b8] sm:$0xff]
    %v1197 = vld [vmem:[#allocation14 + $0x1c0] sm:$0xff]
    %v1198 = vld [vmem:[#allocation14 + $0x1c8] sm:$0xff]
    %v1199 = vld [vmem:[#allocation14 + $0x1d0] sm:$0xff]
    %v1200 = vld [vmem:[#allocation14 + $0x1d8] sm:$0xff]
    %v1201 = vld [vmem:[#allocation14 + $0x1e0] sm:$0xff]
    %v1202 = vld [vmem:[#allocation14 + $0x1e8] sm:$0xff]
    %v1203 = vld [vmem:[#allocation14 + $0x1f0] sm:$0xff]
    %v1204 = vld [vmem:[#allocation14 + $0x1f8] sm:$0xff]
    %v1205 = vld [vmem:[#allocation14 + $0x200] sm:$0xff]
    %v1206 = vld [vmem:[#allocation14 + $0x208] sm:$0xff]
    %v1207 = vld [vmem:[#allocation14 + $0x210] sm:$0xff]
    %v1208 = vld [vmem:[#allocation14 + $0x218] sm:$0xff]
    %v1209 = vld [vmem:[#allocation14 + $0x220] sm:$0xff]
    %v1210 = vld [vmem:[#allocation14 + $0x228] sm:$0xff]
    %v1211 = vld [vmem:[#allocation14 + $0x230] sm:$0xff]
    %v1212 = vld [vmem:[#allocation14 + $0x238] sm:$0xff]
    %v1213 = vld [vmem:[#allocation14 + $0x240] sm:$0xff]
    %v1214 = vld [vmem:[#allocation14 + $0x248] sm:$0xff]
    %v1215 = vld [vmem:[#allocation14 + $0x250] sm:$0xff]
    %v1216 = vld [vmem:[#allocation14 + $0x258] sm:$0xff]
    %v1217 = vld [vmem:[#allocation14 + $0x260] sm:$0xff]
    %v1218 = vld [vmem:[#allocation14 + $0x268] sm:$0xff]
    %v1219 = vld [vmem:[#allocation14 + $0x270] sm:$0xff]
    %v1220 = vld [vmem:[#allocation14 + $0x278] sm:$0xff]
    %v1221 = vld [vmem:[#allocation14 + $0x280] sm:$0xff]
    %v1222 = vld [vmem:[#allocation14 + $0x288] sm:$0xff]
    %v1223 = vld [vmem:[#allocation14 + $0x290] sm:$0xff]
    %v1224 = vld [vmem:[#allocation14 + $0x298] sm:$0xff]
    %v1225 = vld [vmem:[#allocation14 + $0x2a0] sm:$0xff]
    %v1226 = vld [vmem:[#allocation14 + $0x2a8] sm:$0xff]
    %v1227 = vld [vmem:[#allocation14 + $0x2b0] sm:$0xff]
    %v1228 = vld [vmem:[#allocation14 + $0x2b8] sm:$0xff]
    %v1229 = vld [vmem:[#allocation14 + $0x2c0] sm:$0xff]
    %v1230 = vld [vmem:[#allocation14 + $0x2c8] sm:$0xff]
    %v1231 = vld [vmem:[#allocation14 + $0x2d0] sm:$0xff]
    %v1232 = vld [vmem:[#allocation14 + $0x2d8] sm:$0xff]
    %v1233 = vld [vmem:[#allocation14 + $0x2e0] sm:$0xff]
    %v1234 = vld [vmem:[#allocation14 + $0x2e8] sm:$0xff]
    %v1235 = vld [vmem:[#allocation14 + $0x2f0] sm:$0xff]
    %v1236 = vld [vmem:[#allocation14 + $0x2f8] sm:$0xff]
    %v1237 = vld [vmem:[#allocation14 + $0x300] sm:$0xff]
    %v1238 = vld [vmem:[#allocation14 + $0x308] sm:$0xff]
    %v1239 = vld [vmem:[#allocation14 + $0x310] sm:$0xff]
    %v1240 = vld [vmem:[#allocation14 + $0x318] sm:$0xff]
    %v1241 = vld [vmem:[#allocation14 + $0x320] sm:$0xff]
    %v1242 = vld [vmem:[#allocation14 + $0x328] sm:$0xff]
    %v1243 = vld [vmem:[#allocation14 + $0x330] sm:$0xff]
    %v1244 = vld [vmem:[#allocation14 + $0x338] sm:$0xff]
    %v1245 = vld [vmem:[#allocation14 + $0x340] sm:$0xff]
    %v1246 = vld [vmem:[#allocation14 + $0x348] sm:$0xff]
    %v1247 = vld [vmem:[#allocation14 + $0x350] sm:$0xff]
    %v1248 = vld [vmem:[#allocation14 + $0x358] sm:$0xff]
    %v1249 = vld [vmem:[#allocation14 + $0x360] sm:$0xff]
    %v1250 = vld [vmem:[#allocation14 + $0x368] sm:$0xff]
    %v1251 = vld [vmem:[#allocation14 + $0x370] sm:$0xff]
    %v1252 = vld [vmem:[#allocation14 + $0x378] sm:$0xff]
    %v1253 = vld [vmem:[#allocation14 + $0x380] sm:$0xff]
    %v1254 = vld [vmem:[#allocation14 + $0x388] sm:$0xff]
    %v1255 = vld [vmem:[#allocation14 + $0x390] sm:$0xff]
    %v1256 = vld [vmem:[#allocation14 + $0x398] sm:$0xff]
    %v1257 = vld [vmem:[#allocation14 + $0x3a0] sm:$0xff]
    %v1258 = vld [vmem:[#allocation14 + $0x3a8] sm:$0xff]
    %v1259 = vld [vmem:[#allocation14 + $0x3b0] sm:$0xff]
    %v1260 = vld [vmem:[#allocation14 + $0x3b8] sm:$0xff]
    %v1261 = vld [vmem:[#allocation14 + $0x3c0] sm:$0xff]
    %v1262 = vld [vmem:[#allocation14 + $0x3c8] sm:$0xff]
    %v1263 = vld [vmem:[#allocation14 + $0x3d0] sm:$0xff]
    %v1264 = vld [vmem:[#allocation14 + $0x3d8] sm:$0xff]
    %v1265 = vld [vmem:[#allocation14 + $0x3e0] sm:$0xff]
    %v1266 = vld [vmem:[#allocation14 + $0x3e8] sm:$0xff]
    %v1267 = vld [vmem:[#allocation14 + $0x3f0] sm:$0xff]
    %v1268 = vld [vmem:[#allocation14 + $0x3f8] sm:$0xff]
    %s1269 = scalar_lea.vmem [#allocation14], 1024
    %v1270 = vld [vmem:[%s1269] sm:$0xff]
    %v1271 = vld [vmem:[%s1269 + $0x8] sm:$0xff]
    %v1272 = vld [vmem:[%s1269 + $0x10] sm:$0xff]
    %v1273 = vld [vmem:[%s1269 + $0x18] sm:$0xff]
    %v1274 = vld [vmem:[%s1269 + $0x20] sm:$0xff]
    %v1275 = vld [vmem:[%s1269 + $0x28] sm:$0xff]
    %v1276 = vld [vmem:[%s1269 + $0x30] sm:$0xff]
    %v1277 = vld [vmem:[%s1269 + $0x38] sm:$0xff]
    %v1278 = vld [vmem:[%s1269 + $0x40] sm:$0xff]
    %v1279 = vld [vmem:[%s1269 + $0x48] sm:$0xff]
    %v1280 = vld [vmem:[%s1269 + $0x50] sm:$0xff]
    %v1281 = vld [vmem:[%s1269 + $0x58] sm:$0xff]
    %v1282 = vld [vmem:[%s1269 + $0x60] sm:$0xff]
    %v1283 = vld [vmem:[%s1269 + $0x68] sm:$0xff]
    %v1284 = vld [vmem:[%s1269 + $0x70] sm:$0xff]
    %v1285 = vld [vmem:[%s1269 + $0x78] sm:$0xff]
    %v1286 = vld [vmem:[%s1269 + $0x80] sm:$0xff]
    %v1287 = vld [vmem:[%s1269 + $0x88] sm:$0xff]
    %v1288 = vld [vmem:[%s1269 + $0x90] sm:$0xff]
    %v1289 = vld [vmem:[%s1269 + $0x98] sm:$0xff]
    %v1290 = vld [vmem:[%s1269 + $0xa0] sm:$0xff]
    %v1291 = vld [vmem:[%s1269 + $0xa8] sm:$0xff]
    %v1292 = vld [vmem:[%s1269 + $0xb0] sm:$0xff]
    %v1293 = vld [vmem:[%s1269 + $0xb8] sm:$0xff]
    %v1294 = vld [vmem:[%s1269 + $0xc0] sm:$0xff]
    %v1295 = vld [vmem:[%s1269 + $0xc8] sm:$0xff]
    %v1296 = vld [vmem:[%s1269 + $0xd0] sm:$0xff]
    %v1297 = vld [vmem:[%s1269 + $0xd8] sm:$0xff]
    %v1298 = vld [vmem:[%s1269 + $0xe0] sm:$0xff]
    %v1299 = vld [vmem:[%s1269 + $0xe8] sm:$0xff]
    %v1300 = vld [vmem:[%s1269 + $0xf0] sm:$0xff]
    %v1301 = vld [vmem:[%s1269 + $0xf8] sm:$0xff]
    %v1302 = vld [vmem:[%s1269 + $0x100] sm:$0xff]
    %v1303 = vld [vmem:[%s1269 + $0x108] sm:$0xff]
    %v1304 = vld [vmem:[%s1269 + $0x110] sm:$0xff]
    %v1305 = vld [vmem:[%s1269 + $0x118] sm:$0xff]
    %v1306 = vld [vmem:[%s1269 + $0x120] sm:$0xff]
    %v1307 = vld [vmem:[%s1269 + $0x128] sm:$0xff]
    %v1308 = vld [vmem:[%s1269 + $0x130] sm:$0xff]
    %v1309 = vld [vmem:[%s1269 + $0x138] sm:$0xff]
    %v1310 = vld [vmem:[%s1269 + $0x140] sm:$0xff]
    %v1311 = vld [vmem:[%s1269 + $0x148] sm:$0xff]
    %v1312 = vld [vmem:[%s1269 + $0x150] sm:$0xff]
    %v1313 = vld [vmem:[%s1269 + $0x158] sm:$0xff]
    %v1314 = vld [vmem:[%s1269 + $0x160] sm:$0xff]
    %v1315 = vld [vmem:[%s1269 + $0x168] sm:$0xff]
    %v1316 = vld [vmem:[%s1269 + $0x170] sm:$0xff]
    %v1317 = vld [vmem:[%s1269 + $0x178] sm:$0xff]
    %v1318 = vld [vmem:[%s1269 + $0x180] sm:$0xff]
    %v1319 = vld [vmem:[%s1269 + $0x188] sm:$0xff]
    %v1320 = vld [vmem:[%s1269 + $0x190] sm:$0xff]
    %v1321 = vld [vmem:[%s1269 + $0x198] sm:$0xff]
    %v1322 = vld [vmem:[%s1269 + $0x1a0] sm:$0xff]
    %v1323 = vld [vmem:[%s1269 + $0x1a8] sm:$0xff]
    %v1324 = vld [vmem:[%s1269 + $0x1b0] sm:$0xff]
    %v1325 = vld [vmem:[%s1269 + $0x1b8] sm:$0xff]
    %v1326 = vld [vmem:[%s1269 + $0x1c0] sm:$0xff]
    %v1327 = vld [vmem:[%s1269 + $0x1c8] sm:$0xff]
    %v1328 = vld [vmem:[%s1269 + $0x1d0] sm:$0xff]
    %v1329 = vld [vmem:[%s1269 + $0x1d8] sm:$0xff]
    %v1330 = vld [vmem:[%s1269 + $0x1e0] sm:$0xff]
    %v1331 = vld [vmem:[%s1269 + $0x1e8] sm:$0xff]
    %v1332 = vld [vmem:[%s1269 + $0x1f0] sm:$0xff]
    %v1333 = vld [vmem:[%s1269 + $0x1f8] sm:$0xff]
    %v1334 = vld [vmem:[%s1269 + $0x200] sm:$0xff]
    %v1335 = vld [vmem:[%s1269 + $0x208] sm:$0xff]
    %v1336 = vld [vmem:[%s1269 + $0x210] sm:$0xff]
    %v1337 = vld [vmem:[%s1269 + $0x218] sm:$0xff]
    %v1338 = vld [vmem:[%s1269 + $0x220] sm:$0xff]
    %v1339 = vld [vmem:[%s1269 + $0x228] sm:$0xff]
    %v1340 = vld [vmem:[%s1269 + $0x230] sm:$0xff]
    %v1341 = vld [vmem:[%s1269 + $0x238] sm:$0xff]
    %v1342 = vld [vmem:[%s1269 + $0x240] sm:$0xff]
    %v1343 = vld [vmem:[%s1269 + $0x248] sm:$0xff]
    %v1344 = vld [vmem:[%s1269 + $0x250] sm:$0xff]
    %v1345 = vld [vmem:[%s1269 + $0x258] sm:$0xff]
    %v1346 = vld [vmem:[%s1269 + $0x260] sm:$0xff]
    %v1347 = vld [vmem:[%s1269 + $0x268] sm:$0xff]
    %v1348 = vld [vmem:[%s1269 + $0x270] sm:$0xff]
    %v1349 = vld [vmem:[%s1269 + $0x278] sm:$0xff]
    %v1350 = vld [vmem:[%s1269 + $0x280] sm:$0xff]
    %v1351 = vld [vmem:[%s1269 + $0x288] sm:$0xff]
    %v1352 = vld [vmem:[%s1269 + $0x290] sm:$0xff]
    %v1353 = vld [vmem:[%s1269 + $0x298] sm:$0xff]
    %v1354 = vld [vmem:[%s1269 + $0x2a0] sm:$0xff]
    %v1355 = vld [vmem:[%s1269 + $0x2a8] sm:$0xff]
    %v1356 = vld [vmem:[%s1269 + $0x2b0] sm:$0xff]
    %v1357 = vld [vmem:[%s1269 + $0x2b8] sm:$0xff]
    %v1358 = vld [vmem:[%s1269 + $0x2c0] sm:$0xff]
    %v1359 = vld [vmem:[%s1269 + $0x2c8] sm:$0xff]
    %v1360 = vld [vmem:[%s1269 + $0x2d0] sm:$0xff]
    %v1361 = vld [vmem:[%s1269 + $0x2d8] sm:$0xff]
    %v1362 = vld [vmem:[%s1269 + $0x2e0] sm:$0xff]
    %v1363 = vld [vmem:[%s1269 + $0x2e8] sm:$0xff]
    %v1364 = vld [vmem:[%s1269 + $0x2f0] sm:$0xff]
    %v1365 = vld [vmem:[%s1269 + $0x2f8] sm:$0xff]
    %v1366 = vld [vmem:[%s1269 + $0x300] sm:$0xff]
    %v1367 = vld [vmem:[%s1269 + $0x308] sm:$0xff]
    %v1368 = vld [vmem:[%s1269 + $0x310] sm:$0xff]
    %v1369 = vld [vmem:[%s1269 + $0x318] sm:$0xff]
    %v1370 = vld [vmem:[%s1269 + $0x320] sm:$0xff]
    %v1371 = vld [vmem:[%s1269 + $0x328] sm:$0xff]
    %v1372 = vld [vmem:[%s1269 + $0x330] sm:$0xff]
    %v1373 = vld [vmem:[%s1269 + $0x338] sm:$0xff]
    %v1374 = vld [vmem:[%s1269 + $0x340] sm:$0xff]
    %v1375 = vld [vmem:[%s1269 + $0x348] sm:$0xff]
    %v1376 = vld [vmem:[%s1269 + $0x350] sm:$0xff]
    %v1377 = vld [vmem:[%s1269 + $0x358] sm:$0xff]
    %v1378 = vld [vmem:[%s1269 + $0x360] sm:$0xff]
    %v1379 = vld [vmem:[%s1269 + $0x368] sm:$0xff]
    %v1380 = vld [vmem:[%s1269 + $0x370] sm:$0xff]
    %v1381 = vld [vmem:[%s1269 + $0x378] sm:$0xff]
    %v1382 = vld [vmem:[%s1269 + $0x380] sm:$0xff]
    %v1383 = vld [vmem:[%s1269 + $0x388] sm:$0xff]
    %v1384 = vld [vmem:[%s1269 + $0x390] sm:$0xff]
    %v1385 = vld [vmem:[%s1269 + $0x398] sm:$0xff]
    %v1386 = vld [vmem:[%s1269 + $0x3a0] sm:$0xff]
    %v1387 = vld [vmem:[%s1269 + $0x3a8] sm:$0xff]
    %v1388 = vld [vmem:[%s1269 + $0x3b0] sm:$0xff]
    %v1389 = vld [vmem:[%s1269 + $0x3b8] sm:$0xff]
    %v1390 = vld [vmem:[%s1269 + $0x3c0] sm:$0xff]
    %v1391 = vld [vmem:[%s1269 + $0x3c8] sm:$0xff]
    %v1392 = vld [vmem:[%s1269 + $0x3d0] sm:$0xff]
    %v1393 = vld [vmem:[%s1269 + $0x3d8] sm:$0xff]
    %v1394 = vld [vmem:[%s1269 + $0x3e0] sm:$0xff]
    %v1395 = vld [vmem:[%s1269 + $0x3e8] sm:$0xff]
    %v1396 = vld [vmem:[%s1269 + $0x3f0] sm:$0xff]
    %v1397 = vld [vmem:[%s1269 + $0x3f8] sm:$0xff]
    %v1414 = vunpack.c.l.b16 %v1125
    %v1415 = vunpack.c.h.b16 %v1125
    %v1416 = vunpack.c.l.b16 %v1126
    %v1417 = vunpack.c.h.b16 %v1126
    %v1418 = vunpack.c.l.b16 %v1127
    %v1419 = vunpack.c.h.b16 %v1127
    %v1420 = vunpack.c.l.b16 %v1128
    %v1421 = vunpack.c.h.b16 %v1128
    %v1422 = vunpack.c.l.b16 %v1129
    %v1423 = vunpack.c.h.b16 %v1129
    %v1424 = vunpack.c.l.b16 %v1130
    %v1425 = vunpack.c.h.b16 %v1130
    %v1426 = vunpack.c.l.b16 %v1131
    %v1427 = vunpack.c.h.b16 %v1131
    %v1428 = vunpack.c.l.b16 %v1132
    %v1429 = vunpack.c.h.b16 %v1132
    %v1430 = vunpack.c.l.b16 %v1133
    %v1431 = vunpack.c.h.b16 %v1133
    %v1432 = vunpack.c.l.b16 %v1134
    %v1433 = vunpack.c.h.b16 %v1134
    %v1434 = vunpack.c.l.b16 %v1135
    %v1435 = vunpack.c.h.b16 %v1135
    %v1436 = vunpack.c.l.b16 %v1136
    %v1437 = vunpack.c.h.b16 %v1136
    %v1438 = vunpack.c.l.b16 %v1137
    %v1439 = vunpack.c.h.b16 %v1137
    %v1440 = vunpack.c.l.b16 %v1138
    %v1441 = vunpack.c.h.b16 %v1138
    %v1442 = vunpack.c.l.b16 %v1139
    %v1443 = vunpack.c.h.b16 %v1139
    %v1444 = vunpack.c.l.b16 %v1140
    %v1445 = vunpack.c.h.b16 %v1140
    %v1446 = vpack.c.b16 %v1418, %v1414
    %v1447 = vpack.c.b16 %v1419, %v1415
    %v1448 = vpack.c.b16 %v1420, %v1416
    %v1449 = vpack.c.b16 %v1421, %v1417
    %v1450 = vpack.c.b16 %v1426, %v1422
    %v1451 = vpack.c.b16 %v1427, %v1423
    %v1452 = vpack.c.b16 %v1428, %v1424
    %v1453 = vpack.c.b16 %v1429, %v1425
    %v1454 = vpack.c.b16 %v1434, %v1430
    %v1455 = vpack.c.b16 %v1435, %v1431
    %v1456 = vpack.c.b16 %v1436, %v1432
    %v1457 = vpack.c.b16 %v1437, %v1433
    %v1458 = vpack.c.b16 %v1442, %v1438
    %v1459 = vpack.c.b16 %v1443, %v1439
    %v1460 = vpack.c.b16 %v1444, %v1440
    %v1461 = vpack.c.b16 %v1445, %v1441
    %v1462 = vrot.slane %v1446, 1
    %v1463 = vrot.slane %v1450, 1
    %v1464 = vsel %vm301, %v1462, %v1463
    %v1465 = vrot.slane %v1447, 1
    %v1466 = vrot.slane %v1451, 1
    %v1467 = vsel %vm301, %v1465, %v1466
    %v1468 = vrot.slane %v1448, 1
    %v1469 = vrot.slane %v1452, 1
    %v1470 = vsel %vm301, %v1468, %v1469
    %v1471 = vrot.slane %v1449, 1
    %v1472 = vrot.slane %v1453, 1
    %v1473 = vsel %vm301, %v1471, %v1472
    %v1474 = vrot.slane %v1454, 1
    %v1475 = vsel %vm301, %v1463, %v1474
    %v1476 = vrot.slane %v1455, 1
    %v1477 = vsel %vm301, %v1466, %v1476
    %v1478 = vrot.slane %v1456, 1
    %v1479 = vsel %vm301, %v1469, %v1478
    %v1480 = vrot.slane %v1457, 1
    %v1481 = vsel %vm301, %v1472, %v1480
    %v1482 = vrot.slane %v1458, 1
    %v1483 = vsel %vm301, %v1474, %v1482
    %v1484 = vrot.slane %v1459, 1
    %v1485 = vsel %vm301, %v1476, %v1484
    %v1486 = vrot.slane %v1460, 1
    %v1487 = vsel %vm301, %v1478, %v1486
    %v1488 = vrot.slane %v1461, 1
    %v1489 = vsel %vm301, %v1480, %v1488
    %v1634 = vunpack.c.l.b16 %v1270
    %v1635 = vunpack.c.h.b16 %v1270
    %v1636 = vunpack.c.l.b16 %v1271
    %v1637 = vunpack.c.h.b16 %v1271
    %v1638 = vunpack.c.l.b16 %v1272
    %v1639 = vunpack.c.h.b16 %v1272
    %v1640 = vunpack.c.l.b16 %v1273
    %v1641 = vunpack.c.h.b16 %v1273
    %v1642 = vunpack.c.l.b16 %v1274
    %v1643 = vunpack.c.h.b16 %v1274
    %v1644 = vunpack.c.l.b16 %v1275
    %v1645 = vunpack.c.h.b16 %v1275
    %v1646 = vunpack.c.l.b16 %v1276
    %v1647 = vunpack.c.h.b16 %v1276
    %v1648 = vunpack.c.l.b16 %v1277
    %v1649 = vunpack.c.h.b16 %v1277
    %v1650 = vunpack.c.l.b16 %v1278
    %v1651 = vunpack.c.h.b16 %v1278
    %v1652 = vunpack.c.l.b16 %v1279
    %v1653 = vunpack.c.h.b16 %v1279
    %v1654 = vunpack.c.l.b16 %v1280
    %v1655 = vunpack.c.h.b16 %v1280
    %v1656 = vunpack.c.l.b16 %v1281
    %v1657 = vunpack.c.h.b16 %v1281
    %v1658 = vunpack.c.l.b16 %v1282
    %v1659 = vunpack.c.h.b16 %v1282
    %v1660 = vunpack.c.l.b16 %v1283
    %v1661 = vunpack.c.h.b16 %v1283
    %v1662 = vunpack.c.l.b16 %v1284
    %v1663 = vunpack.c.h.b16 %v1284
    %v1664 = vunpack.c.l.b16 %v1285
    %v1665 = vunpack.c.h.b16 %v1285
    %v1666 = vunpack.c.l.b16 %v1286
    %v1667 = vunpack.c.h.b16 %v1286
    %v1668 = vunpack.c.l.b16 %v1287
    %v1669 = vunpack.c.h.b16 %v1287
    %v1670 = vunpack.c.l.b16 %v1288
    %v1671 = vunpack.c.h.b16 %v1288
    %v1672 = vunpack.c.l.b16 %v1289
    %v1673 = vunpack.c.h.b16 %v1289
    %v1674 = vunpack.c.l.b16 %v1290
    %v1675 = vunpack.c.h.b16 %v1290
    %v1676 = vunpack.c.l.b16 %v1291
    %v1677 = vunpack.c.h.b16 %v1291
    %v1678 = vunpack.c.l.b16 %v1292
    %v1679 = vunpack.c.h.b16 %v1292
    %v1680 = vunpack.c.l.b16 %v1293
    %v1681 = vunpack.c.h.b16 %v1293
    %v1682 = vunpack.c.l.b16 %v1294
    %v1683 = vunpack.c.h.b16 %v1294
    %v1684 = vunpack.c.l.b16 %v1295
    %v1685 = vunpack.c.h.b16 %v1295
    %v1686 = vunpack.c.l.b16 %v1296
    %v1687 = vunpack.c.h.b16 %v1296
    %v1688 = vunpack.c.l.b16 %v1297
    %v1689 = vunpack.c.h.b16 %v1297
    %v1690 = vunpack.c.l.b16 %v1298
    %v1691 = vunpack.c.h.b16 %v1298
    %v1692 = vunpack.c.l.b16 %v1299
    %v1693 = vunpack.c.h.b16 %v1299
    %v1694 = vunpack.c.l.b16 %v1300
    %v1695 = vunpack.c.h.b16 %v1300
    %v1696 = vunpack.c.l.b16 %v1301
    %v1697 = vunpack.c.h.b16 %v1301
    %v1698 = vunpack.c.l.b16 %v1302
    %v1699 = vunpack.c.h.b16 %v1302
    %v1700 = vunpack.c.l.b16 %v1303
    %v1701 = vunpack.c.h.b16 %v1303
    %v1702 = vunpack.c.l.b16 %v1304
    %v1703 = vunpack.c.h.b16 %v1304
    %v1704 = vunpack.c.l.b16 %v1305
    %v1705 = vunpack.c.h.b16 %v1305
    %v1706 = vunpack.c.l.b16 %v1306
    %v1707 = vunpack.c.h.b16 %v1306
    %v1708 = vunpack.c.l.b16 %v1307
    %v1709 = vunpack.c.h.b16 %v1307
    %v1710 = vunpack.c.l.b16 %v1308
    %v1711 = vunpack.c.h.b16 %v1308
    %v1712 = vunpack.c.l.b16 %v1309
    %v1713 = vunpack.c.h.b16 %v1309
    %v1714 = vunpack.c.l.b16 %v1310
    %v1715 = vunpack.c.h.b16 %v1310
    %v1716 = vunpack.c.l.b16 %v1311
    %v1717 = vunpack.c.h.b16 %v1311
    %v1718 = vunpack.c.l.b16 %v1312
    %v1719 = vunpack.c.h.b16 %v1312
    %v1720 = vunpack.c.l.b16 %v1313
    %v1721 = vunpack.c.h.b16 %v1313
    %v1722 = vunpack.c.l.b16 %v1314
    %v1723 = vunpack.c.h.b16 %v1314
    %v1724 = vunpack.c.l.b16 %v1315
    %v1725 = vunpack.c.h.b16 %v1315
    %v1726 = vunpack.c.l.b16 %v1316
    %v1727 = vunpack.c.h.b16 %v1316
    %v1728 = vunpack.c.l.b16 %v1317
    %v1729 = vunpack.c.h.b16 %v1317
    %v1730 = vunpack.c.l.b16 %v1318
    %v1731 = vunpack.c.h.b16 %v1318
    %v1732 = vunpack.c.l.b16 %v1319
    %v1733 = vunpack.c.h.b16 %v1319
    %v1734 = vunpack.c.l.b16 %v1320
    %v1735 = vunpack.c.h.b16 %v1320
    %v1736 = vunpack.c.l.b16 %v1321
    %v1737 = vunpack.c.h.b16 %v1321
    %v1738 = vunpack.c.l.b16 %v1322
    %v1739 = vunpack.c.h.b16 %v1322
    %v1740 = vunpack.c.l.b16 %v1323
    %v1741 = vunpack.c.h.b16 %v1323
    %v1742 = vunpack.c.l.b16 %v1324
    %v1743 = vunpack.c.h.b16 %v1324
    %v1744 = vunpack.c.l.b16 %v1325
    %v1745 = vunpack.c.h.b16 %v1325
    %v1746 = vunpack.c.l.b16 %v1326
    %v1747 = vunpack.c.h.b16 %v1326
    %v1748 = vunpack.c.l.b16 %v1327
    %v1749 = vunpack.c.h.b16 %v1327
    %v1750 = vunpack.c.l.b16 %v1328
    %v1751 = vunpack.c.h.b16 %v1328
    %v1752 = vunpack.c.l.b16 %v1329
    %v1753 = vunpack.c.h.b16 %v1329
    %v1754 = vunpack.c.l.b16 %v1330
    %v1755 = vunpack.c.h.b16 %v1330
    %v1756 = vunpack.c.l.b16 %v1331
    %v1757 = vunpack.c.h.b16 %v1331
    %v1758 = vunpack.c.l.b16 %v1332
    %v1759 = vunpack.c.h.b16 %v1332
    %v1760 = vunpack.c.l.b16 %v1333
    %v1761 = vunpack.c.h.b16 %v1333
    %v1762 = vunpack.c.l.b16 %v1334
    %v1763 = vunpack.c.h.b16 %v1334
    %v1764 = vunpack.c.l.b16 %v1335
    %v1765 = vunpack.c.h.b16 %v1335
    %v1766 = vunpack.c.l.b16 %v1336
    %v1767 = vunpack.c.h.b16 %v1336
    %v1768 = vunpack.c.l.b16 %v1337
    %v1769 = vunpack.c.h.b16 %v1337
    %v1770 = vunpack.c.l.b16 %v1338
    %v1771 = vunpack.c.h.b16 %v1338
    %v1772 = vunpack.c.l.b16 %v1339
    %v1773 = vunpack.c.h.b16 %v1339
    %v1774 = vunpack.c.l.b16 %v1340
    %v1775 = vunpack.c.h.b16 %v1340
    %v1776 = vunpack.c.l.b16 %v1341
    %v1777 = vunpack.c.h.b16 %v1341
    %v1778 = vunpack.c.l.b16 %v1342
    %v1779 = vunpack.c.h.b16 %v1342
    %v1780 = vunpack.c.l.b16 %v1343
    %v1781 = vunpack.c.h.b16 %v1343
    %v1782 = vunpack.c.l.b16 %v1344
    %v1783 = vunpack.c.h.b16 %v1344
    %v1784 = vunpack.c.l.b16 %v1345
    %v1785 = vunpack.c.h.b16 %v1345
    %v1786 = vunpack.c.l.b16 %v1346
    %v1787 = vunpack.c.h.b16 %v1346
    %v1788 = vunpack.c.l.b16 %v1347
    %v1789 = vunpack.c.h.b16 %v1347
    %v1790 = vunpack.c.l.b16 %v1348
    %v1791 = vunpack.c.h.b16 %v1348
    %v1792 = vunpack.c.l.b16 %v1349
    %v1793 = vunpack.c.h.b16 %v1349
    %v1794 = vunpack.c.l.b16 %v1350
    %v1795 = vunpack.c.h.b16 %v1350
    %v1796 = vunpack.c.l.b16 %v1351
    %v1797 = vunpack.c.h.b16 %v1351
    %v1798 = vunpack.c.l.b16 %v1352
    %v1799 = vunpack.c.h.b16 %v1352
    %v1800 = vunpack.c.l.b16 %v1353
    %v1801 = vunpack.c.h.b16 %v1353
    %v1802 = vunpack.c.l.b16 %v1354
    %v1803 = vunpack.c.h.b16 %v1354
    %v1804 = vunpack.c.l.b16 %v1355
    %v1805 = vunpack.c.h.b16 %v1355
    %v1806 = vunpack.c.l.b16 %v1356
    %v1807 = vunpack.c.h.b16 %v1356
    %v1808 = vunpack.c.l.b16 %v1357
    %v1809 = vunpack.c.h.b16 %v1357
    %v1810 = vunpack.c.l.b16 %v1358
    %v1811 = vunpack.c.h.b16 %v1358
    %v1812 = vunpack.c.l.b16 %v1359
    %v1813 = vunpack.c.h.b16 %v1359
    %v1814 = vunpack.c.l.b16 %v1360
    %v1815 = vunpack.c.h.b16 %v1360
    %v1816 = vunpack.c.l.b16 %v1361
    %v1817 = vunpack.c.h.b16 %v1361
    %v1818 = vunpack.c.l.b16 %v1362
    %v1819 = vunpack.c.h.b16 %v1362
    %v1820 = vunpack.c.l.b16 %v1363
    %v1821 = vunpack.c.h.b16 %v1363
    %v1822 = vunpack.c.l.b16 %v1364
    %v1823 = vunpack.c.h.b16 %v1364
    %v1824 = vunpack.c.l.b16 %v1365
    %v1825 = vunpack.c.h.b16 %v1365
    %v1826 = vunpack.c.l.b16 %v1366
    %v1827 = vunpack.c.h.b16 %v1366
    %v1828 = vunpack.c.l.b16 %v1367
    %v1829 = vunpack.c.h.b16 %v1367
    %v1830 = vunpack.c.l.b16 %v1368
    %v1831 = vunpack.c.h.b16 %v1368
    %v1832 = vunpack.c.l.b16 %v1369
    %v1833 = vunpack.c.h.b16 %v1369
    %v1834 = vunpack.c.l.b16 %v1370
    %v1835 = vunpack.c.h.b16 %v1370
    %v1836 = vunpack.c.l.b16 %v1371
    %v1837 = vunpack.c.h.b16 %v1371
    %v1838 = vunpack.c.l.b16 %v1372
    %v1839 = vunpack.c.h.b16 %v1372
    %v1840 = vunpack.c.l.b16 %v1373
    %v1841 = vunpack.c.h.b16 %v1373
    %v1842 = vunpack.c.l.b16 %v1374
    %v1843 = vunpack.c.h.b16 %v1374
    %v1844 = vunpack.c.l.b16 %v1375
    %v1845 = vunpack.c.h.b16 %v1375
    %v1846 = vunpack.c.l.b16 %v1376
    %v1847 = vunpack.c.h.b16 %v1376
    %v1848 = vunpack.c.l.b16 %v1377
    %v1849 = vunpack.c.h.b16 %v1377
    %v1850 = vunpack.c.l.b16 %v1378
    %v1851 = vunpack.c.h.b16 %v1378
    %v1852 = vunpack.c.l.b16 %v1379
    %v1853 = vunpack.c.h.b16 %v1379
    %v1854 = vunpack.c.l.b16 %v1380
    %v1855 = vunpack.c.h.b16 %v1380
    %v1856 = vunpack.c.l.b16 %v1381
    %v1857 = vunpack.c.h.b16 %v1381
    %v1858 = vunpack.c.l.b16 %v1382
    %v1859 = vunpack.c.h.b16 %v1382
    %v1860 = vunpack.c.l.b16 %v1383
    %v1861 = vunpack.c.h.b16 %v1383
    %v1862 = vunpack.c.l.b16 %v1384
    %v1863 = vunpack.c.h.b16 %v1384
    %v1864 = vunpack.c.l.b16 %v1385
    %v1865 = vunpack.c.h.b16 %v1385
    %v1866 = vunpack.c.l.b16 %v1386
    %v1867 = vunpack.c.h.b16 %v1386
    %v1868 = vunpack.c.l.b16 %v1387
    %v1869 = vunpack.c.h.b16 %v1387
    %v1870 = vunpack.c.l.b16 %v1388
    %v1871 = vunpack.c.h.b16 %v1388
    %v1872 = vunpack.c.l.b16 %v1389
    %v1873 = vunpack.c.h.b16 %v1389
    %v1874 = vunpack.c.l.b16 %v1390
    %v1875 = vunpack.c.h.b16 %v1390
    %v1876 = vunpack.c.l.b16 %v1391
    %v1877 = vunpack.c.h.b16 %v1391
    %v1878 = vunpack.c.l.b16 %v1392
    %v1879 = vunpack.c.h.b16 %v1392
    %v1880 = vunpack.c.l.b16 %v1393
    %v1881 = vunpack.c.h.b16 %v1393
    %v1882 = vunpack.c.l.b16 %v1394
    %v1883 = vunpack.c.h.b16 %v1394
    %v1884 = vunpack.c.l.b16 %v1395
    %v1885 = vunpack.c.h.b16 %v1395
    %v1886 = vunpack.c.l.b16 %v1396
    %v1887 = vunpack.c.h.b16 %v1396
    %v1888 = vunpack.c.l.b16 %v1397
    %v1889 = vunpack.c.h.b16 %v1397
    %v1890 = vpack.c.b16 %v1638, %v1634
    %v1891 = vpack.c.b16 %v1639, %v1635
    %v1892 = vpack.c.b16 %v1640, %v1636
    %v1893 = vpack.c.b16 %v1641, %v1637
    %v1894 = vpack.c.b16 %v1646, %v1642
    %v1895 = vpack.c.b16 %v1647, %v1643
    %v1896 = vpack.c.b16 %v1648, %v1644
    %v1897 = vpack.c.b16 %v1649, %v1645
    %v1898 = vpack.c.b16 %v1654, %v1650
    %v1899 = vpack.c.b16 %v1655, %v1651
    %v1900 = vpack.c.b16 %v1656, %v1652
    %v1901 = vpack.c.b16 %v1657, %v1653
    %v1902 = vpack.c.b16 %v1662, %v1658
    %v1903 = vpack.c.b16 %v1663, %v1659
    %v1904 = vpack.c.b16 %v1664, %v1660
    %v1905 = vpack.c.b16 %v1665, %v1661
    %v1906 = vpack.c.b16 %v1670, %v1666
    %v1907 = vpack.c.b16 %v1671, %v1667
    %v1908 = vpack.c.b16 %v1672, %v1668
    %v1909 = vpack.c.b16 %v1673, %v1669
    %v1910 = vpack.c.b16 %v1678, %v1674
    %v1911 = vpack.c.b16 %v1679, %v1675
    %v1912 = vpack.c.b16 %v1680, %v1676
    %v1913 = vpack.c.b16 %v1681, %v1677
    %v1914 = vpack.c.b16 %v1686, %v1682
    %v1915 = vpack.c.b16 %v1687, %v1683
    %v1916 = vpack.c.b16 %v1688, %v1684
    %v1917 = vpack.c.b16 %v1689, %v1685
    %v1918 = vpack.c.b16 %v1694, %v1690
    %v1919 = vpack.c.b16 %v1695, %v1691
    %v1920 = vpack.c.b16 %v1696, %v1692
    %v1921 = vpack.c.b16 %v1697, %v1693
    %v1922 = vpack.c.b16 %v1702, %v1698
    %v1923 = vpack.c.b16 %v1703, %v1699
    %v1924 = vpack.c.b16 %v1704, %v1700
    %v1925 = vpack.c.b16 %v1705, %v1701
    %v1926 = vpack.c.b16 %v1710, %v1706
    %v1927 = vpack.c.b16 %v1711, %v1707
    %v1928 = vpack.c.b16 %v1712, %v1708
    %v1929 = vpack.c.b16 %v1713, %v1709
    %v1930 = vpack.c.b16 %v1718, %v1714
    %v1931 = vpack.c.b16 %v1719, %v1715
    %v1932 = vpack.c.b16 %v1720, %v1716
    %v1933 = vpack.c.b16 %v1721, %v1717
    %v1934 = vpack.c.b16 %v1726, %v1722
    %v1935 = vpack.c.b16 %v1727, %v1723
    %v1936 = vpack.c.b16 %v1728, %v1724
    %v1937 = vpack.c.b16 %v1729, %v1725
    %v1938 = vpack.c.b16 %v1734, %v1730
    %v1939 = vpack.c.b16 %v1735, %v1731
    %v1940 = vpack.c.b16 %v1736, %v1732
    %v1941 = vpack.c.b16 %v1737, %v1733
    %v1942 = vpack.c.b16 %v1742, %v1738
    %v1943 = vpack.c.b16 %v1743, %v1739
    %v1944 = vpack.c.b16 %v1744, %v1740
    %v1945 = vpack.c.b16 %v1745, %v1741
    %v1946 = vpack.c.b16 %v1750, %v1746
    %v1947 = vpack.c.b16 %v1751, %v1747
    %v1948 = vpack.c.b16 %v1752, %v1748
    %v1949 = vpack.c.b16 %v1753, %v1749
    %v1950 = vpack.c.b16 %v1758, %v1754
    %v1951 = vpack.c.b16 %v1759, %v1755
    %v1952 = vpack.c.b16 %v1760, %v1756
    %v1953 = vpack.c.b16 %v1761, %v1757
    %v1954 = vpack.c.b16 %v1766, %v1762
    %v1955 = vpack.c.b16 %v1767, %v1763
    %v1956 = vpack.c.b16 %v1768, %v1764
    %v1957 = vpack.c.b16 %v1769, %v1765
    %v1958 = vpack.c.b16 %v1774, %v1770
    %v1959 = vpack.c.b16 %v1775, %v1771
    %v1960 = vpack.c.b16 %v1776, %v1772
    %v1961 = vpack.c.b16 %v1777, %v1773
    %v1962 = vpack.c.b16 %v1782, %v1778
    %v1963 = vpack.c.b16 %v1783, %v1779
    %v1964 = vpack.c.b16 %v1784, %v1780
    %v1965 = vpack.c.b16 %v1785, %v1781
    %v1966 = vpack.c.b16 %v1790, %v1786
    %v1967 = vpack.c.b16 %v1791, %v1787
    %v1968 = vpack.c.b16 %v1792, %v1788
    %v1969 = vpack.c.b16 %v1793, %v1789
    %v1970 = vpack.c.b16 %v1798, %v1794
    %v1971 = vpack.c.b16 %v1799, %v1795
    %v1972 = vpack.c.b16 %v1800, %v1796
    %v1973 = vpack.c.b16 %v1801, %v1797
    %v1974 = vpack.c.b16 %v1806, %v1802
    %v1975 = vpack.c.b16 %v1807, %v1803
    %v1976 = vpack.c.b16 %v1808, %v1804
    %v1977 = vpack.c.b16 %v1809, %v1805
    %v1978 = vpack.c.b16 %v1814, %v1810
    %v1979 = vpack.c.b16 %v1815, %v1811
    %v1980 = vpack.c.b16 %v1816, %v1812
    %v1981 = vpack.c.b16 %v1817, %v1813
    %v1982 = vpack.c.b16 %v1822, %v1818
    %v1983 = vpack.c.b16 %v1823, %v1819
    %v1984 = vpack.c.b16 %v1824, %v1820
    %v1985 = vpack.c.b16 %v1825, %v1821
    %v1986 = vpack.c.b16 %v1830, %v1826
    %v1987 = vpack.c.b16 %v1831, %v1827
    %v1988 = vpack.c.b16 %v1832, %v1828
    %v1989 = vpack.c.b16 %v1833, %v1829
    %v1990 = vpack.c.b16 %v1838, %v1834
    %v1991 = vpack.c.b16 %v1839, %v1835
    %v1992 = vpack.c.b16 %v1840, %v1836
    %v1993 = vpack.c.b16 %v1841, %v1837
    %v1994 = vpack.c.b16 %v1846, %v1842
    %v1995 = vpack.c.b16 %v1847, %v1843
    %v1996 = vpack.c.b16 %v1848, %v1844
    %v1997 = vpack.c.b16 %v1849, %v1845
    %v1998 = vpack.c.b16 %v1854, %v1850
    %v1999 = vpack.c.b16 %v1855, %v1851
    %v2000 = vpack.c.b16 %v1856, %v1852
    %v2001 = vpack.c.b16 %v1857, %v1853
    %v2002 = vpack.c.b16 %v1862, %v1858
    %v2003 = vpack.c.b16 %v1863, %v1859
    %v2004 = vpack.c.b16 %v1864, %v1860
    %v2005 = vpack.c.b16 %v1865, %v1861
    %v2006 = vpack.c.b16 %v1870, %v1866
    %v2007 = vpack.c.b16 %v1871, %v1867
    %v2008 = vpack.c.b16 %v1872, %v1868
    %v2009 = vpack.c.b16 %v1873, %v1869
    %v2010 = vpack.c.b16 %v1878, %v1874
    %v2011 = vpack.c.b16 %v1879, %v1875
    %v2012 = vpack.c.b16 %v1880, %v1876
    %v2013 = vpack.c.b16 %v1881, %v1877
    %v2014 = vpack.c.b16 %v1886, %v1882
    %v2015 = vpack.c.b16 %v1887, %v1883
    %v2016 = vpack.c.b16 %v1888, %v1884
    %v2017 = vpack.c.b16 %v1889, %v1885
    %2146 = vmatprep.subr.bf16.mxu0 %v1891
    %2147 = vmatpush1.bf16.msra.mxu0 %v1890
    %2148 = vmatprep.subr.bf16.mxu0 %v1895
    %2149 = vmatpush1.bf16.msra.mxu0 %v1894
    %2150 = vmatprep.subr.bf16.mxu0 %v1899
    %2151 = vmatpush1.bf16.msra.mxu0 %v1898
    %2152 = vmatprep.subr.bf16.mxu0 %v1903
    %2153 = vmatpush1.bf16.msra.mxu0 %v1902
    %2154 = vmatprep.subr.bf16.mxu0 %v1907
    %2155 = vmatpush1.bf16.msra.mxu0 %v1906
    %2156 = vmatprep.subr.bf16.mxu0 %v1911
    %2157 = vmatpush1.bf16.msra.mxu0 %v1910
    %2158 = vmatprep.subr.bf16.mxu0 %v1915
    %2159 = vmatpush1.bf16.msra.mxu0 %v1914
    %2160 = vmatprep.subr.bf16.mxu0 %v1919
    %2161 = vmatpush1.bf16.msra.mxu0 %v1918
    %2162 = vmatprep.subr.bf16.mxu0 %v1923
    %2163 = vmatpush1.bf16.msra.mxu0 %v1922
    %2164 = vmatprep.subr.bf16.mxu0 %v1927
    %2165 = vmatpush1.bf16.msra.mxu0 %v1926
    %2166 = vmatprep.subr.bf16.mxu0 %v1931
    %2167 = vmatpush1.bf16.msra.mxu0 %v1930
    %2168 = vmatprep.subr.bf16.mxu0 %v1935
    %2169 = vmatpush1.bf16.msra.mxu0 %v1934
    %2170 = vmatprep.subr.bf16.mxu0 %v1939
    %2171 = vmatpush1.bf16.msra.mxu0 %v1938
    %2172 = vmatprep.subr.bf16.mxu0 %v1943
    %2173 = vmatpush1.bf16.msra.mxu0 %v1942
    %2174 = vmatprep.subr.bf16.mxu0 %v1947
    %2175 = vmatpush1.bf16.msra.mxu0 %v1946
    %2176 = vmatprep.subr.bf16.mxu0 %v1951
    %2177 = vmatpush1.bf16.msra.mxu0 %v1950
    %2178 = vmatprep.mubr.bf16.mxu0 %v1467
    %2179 = vmatmul.mubr.bf16.gmra.mrb[0].mxu0 %v1464
    %v2180 = vpop.f32.mrb[0].mxu0
    %v2181 = vadd.f32 0.0, %v2180
    %v2182 = vpop.f32.mrb[0].mxu0
    %v2183 = vadd.f32 0.0, %v2182
    %v2184 = vpop.f32.mrb[0].mxu0
    %v2185 = vadd.f32 0.0, %v2184
    %v2186 = vpop.f32.mrb[0].mxu0
    %v2187 = vadd.f32 0.0, %v2186
    %2188 = vmatprep.mubr.bf16.mxu0 %v1477
    %2189 = vmatmul.mubr.bf16.gmra.mrb[0].mxu0 %v1475
    %v2190 = vpop.f32.mrb[0].mxu0
    %v2191 = vadd.f32 0.0, %v2190
    %v2192 = vpop.f32.mrb[0].mxu0
    %v2193 = vadd.f32 0.0, %v2192
    %v2194 = vpop.f32.mrb[0].mxu0
    %v2195 = vadd.f32 0.0, %v2194
    %v2196 = vpop.f32.mrb[0].mxu0
    %v2197 = vadd.f32 0.0, %v2196
    %2198 = vmatprep.mubr.bf16.mxu0 %v1485
    %2199 = vmatmul.mubr.bf16.gmra.mrb[0].mxu0 %v1483
    %v2200 = vpop.f32.mrb[0].mxu0
    %v2201 = vadd.f32 0.0, %v2200
    %v2202 = vpop.f32.mrb[0].mxu0
    %v2203 = vadd.f32 0.0, %v2202
    %v2204 = vpop.f32.mrb[0].mxu0
    %v2205 = vadd.f32 0.0, %v2204
    %v2206 = vpop.f32.mrb[0].mxu0
    %v2207 = vadd.f32 0.0, %v2206
    %2208 = vmatprep.mubr.bf16.mxu0 %v1484
    %2209 = vmatmul.mubr.bf16.gmra.mrb[0].mxu0 %v1482
    %v2210 = vpop.f32.mrb[0].mxu0
    %v2211 = vadd.f32 0.0, %v2210
    %v2212 = vpop.f32.mrb[0].mxu0
    %v2213 = vadd.f32 0.0, %v2212
    %v2214 = vpop.f32.mrb[0].mxu0
    %v2215 = vpop.f32.mrb[0].mxu0
    %2216 = vdwg.mxu0
    %2217 = vmatprep.subr.bf16.mxu0 %v1955
    %2218 = vmatpush1.bf16.msra.mxu0 %v1954
    %2219 = vmatprep.subr.bf16.mxu0 %v1959
    %2220 = vmatpush1.bf16.msra.mxu0 %v1958
    %2221 = vmatprep.subr.bf16.mxu0 %v1963
    %2222 = vmatpush1.bf16.msra.mxu0 %v1962
    %2223 = vmatprep.subr.bf16.mxu0 %v1967
    %2224 = vmatpush1.bf16.msra.mxu0 %v1966
    %2225 = vmatprep.subr.bf16.mxu0 %v1971
    %2226 = vmatpush1.bf16.msra.mxu0 %v1970
    %2227 = vmatprep.subr.bf16.mxu0 %v1975
    %2228 = vmatpush1.bf16.msra.mxu0 %v1974
    %2229 = vmatprep.subr.bf16.mxu0 %v1979
    %2230 = vmatpush1.bf16.msra.mxu0 %v1978
    %2231 = vmatprep.subr.bf16.mxu0 %v1983
    %2232 = vmatpush1.bf16.msra.mxu0 %v1982
    %2233 = vmatprep.subr.bf16.mxu0 %v1987
    %2234 = vmatpush1.bf16.msra.mxu0 %v1986
    %2235 = vmatprep.subr.bf16.mxu0 %v1991
    %2236 = vmatpush1.bf16.msra.mxu0 %v1990
    %2237 = vmatprep.subr.bf16.mxu0 %v1995
    %2238 = vmatpush1.bf16.msra.mxu0 %v1994
    %2239 = vmatprep.subr.bf16.mxu0 %v1999
    %2240 = vmatpush1.bf16.msra.mxu0 %v1998
    %2241 = vmatprep.subr.bf16.mxu0 %v2003
    %2242 = vmatpush1.bf16.msra.mxu0 %v2002
    %2243 = vmatprep.subr.bf16.mxu0 %v2007
    %2244 = vmatpush1.bf16.msra.mxu0 %v2006
    %2245 = vmatprep.subr.bf16.mxu0 %v2011
    %2246 = vmatpush1.bf16.msra.mxu0 %v2010
    %2247 = vmatprep.subr.bf16.mxu0 %v2015
    %2248 = vmatpush1.bf16.msra.mxu0 %v2014
    %2249 = vmatprep.mubr.bf16.mxu0 %v1473
    %2250 = vmatmul.mubr.bf16.gmra.mrb[0].mxu0 %v1470
    %v2251 = vpop.f32.mrb[0].mxu0
    %v2252 = vadd.f32 %v2181, %v2251
    %v2253 = vpop.f32.mrb[0].mxu0
    %v2254 = vadd.f32 %v2183, %v2253
    %v2255 = vpop.f32.mrb[0].mxu0
    %v2256 = vadd.f32 %v2185, %v2255
    %v2257 = vpop.f32.mrb[0].mxu0
    %v2258 = vadd.f32 %v2187, %v2257
    %2259 = vmatprep.mubr.bf16.mxu0 %v1481
    %2260 = vmatmul.mubr.bf16.gmra.mrb[0].mxu0 %v1479
    %v2261 = vpop.f32.mrb[0].mxu0
    %v2262 = vadd.f32 %v2191, %v2261
    %v2263 = vpop.f32.mrb[0].mxu0
    %v2264 = vadd.f32 %v2193, %v2263
    %v2265 = vpop.f32.mrb[0].mxu0
    %v2266 = vadd.f32 %v2195, %v2265
    %v2267 = vpop.f32.mrb[0].mxu0
    %v2268 = vadd.f32 %v2197, %v2267
    %2269 = vmatprep.mubr.bf16.mxu0 %v1489
    %2270 = vmatmul.mubr.bf16.gmra.mrb[0].mxu0 %v1487
    %v2271 = vpop.f32.mrb[0].mxu0
    %v2272 = vadd.f32 %v2201, %v2271
    %v2273 = vpop.f32.mrb[0].mxu0
    %v2274 = vadd.f32 %v2203, %v2273
    %v2275 = vpop.f32.mrb[0].mxu0
    %v2276 = vadd.f32 %v2205, %v2275
    %v2277 = vpop.f32.mrb[0].mxu0
    %v2278 = vadd.f32 %v2207, %v2277
    %2279 = vmatprep.mubr.bf16.mxu0 %v1488
    %2280 = vmatmul.mubr.bf16.gmra.mrb[0].mxu0 %v1486
    %v2281 = vpop.f32.mrb[0].mxu0
    %v2282 = vadd.f32 %v2211, %v2281
    %v2283 = vpop.f32.mrb[0].mxu0
    %v2284 = vadd.f32 %v2213, %v2283
    %v2285 = vpop.f32.mrb[0].mxu0
    %v2286 = vpop.f32.mrb[0].mxu0
    %2287 = vdwg.mxu0
    %2288 = vmatprep.subr.bf16.mxu0 %v1893
    %2289 = vmatpush1.bf16.msra.mxu0 %v1892
    %2290 = vmatprep.subr.bf16.mxu0 %v1897
    %2291 = vmatpush1.bf16.msra.mxu0 %v1896
    %2292 = vmatprep.subr.bf16.mxu0 %v1901
    %2293 = vmatpush1.bf16.msra.mxu0 %v1900
    %2294 = vmatprep.subr.bf16.mxu0 %v1905
    %2295 = vmatpush1.bf16.msra.mxu0 %v1904
    %2296 = vmatprep.subr.bf16.mxu0 %v1909
    %2297 = vmatpush1.bf16.msra.mxu0 %v1908
    %2298 = vmatprep.subr.bf16.mxu0 %v1913
    %2299 = vmatpush1.bf16.msra.mxu0 %v1912
    %2300 = vmatprep.subr.bf16.mxu0 %v1917
    %2301 = vmatpush1.bf16.msra.mxu0 %v1916
    %2302 = vmatprep.subr.bf16.mxu0 %v1921
    %2303 = vmatpush1.bf16.msra.mxu0 %v1920
    %2304 = vmatprep.subr.bf16.mxu0 %v1925
    %2305 = vmatpush1.bf16.msra.mxu0 %v1924
    %2306 = vmatprep.subr.bf16.mxu0 %v1929
    %2307 = vmatpush1.bf16.msra.mxu0 %v1928
    %2308 = vmatprep.subr.bf16.mxu0 %v1933
    %2309 = vmatpush1.bf16.msra.mxu0 %v1932
    %2310 = vmatprep.subr.bf16.mxu0 %v1937
    %2311 = vmatpush1.bf16.msra.mxu0 %v1936
    %2312 = vmatprep.subr.bf16.mxu0 %v1941
    %2313 = vmatpush1.bf16.msra.mxu0 %v1940
    %2314 = vmatprep.subr.bf16.mxu0 %v1945
    %2315 = vmatpush1.bf16.msra.mxu0 %v1944
    %2316 = vmatprep.subr.bf16.mxu0 %v1949
    %2317 = vmatpush1.bf16.msra.mxu0 %v1948
    %2318 = vmatprep.subr.bf16.mxu0 %v1953
    %2319 = vmatpush1.bf16.msra.mxu0 %v1952
    %2320 = vmatprep.mubr.bf16.mxu0 %v1467
    %2321 = vmatmul.mubr.bf16.gmra.mrb[0].mxu0 %v1464
    %v2322 = vpop.f32.mrb[0].mxu0
    %v2323 = vadd.f32 0.0, %v2322
    %v2324 = vpop.f32.mrb[0].mxu0
    %v2325 = vadd.f32 0.0, %v2324
    %v2326 = vpop.f32.mrb[0].mxu0
    %v2327 = vadd.f32 0.0, %v2326
    %v2328 = vpop.f32.mrb[0].mxu0
    %v2329 = vadd.f32 0.0, %v2328
    %2330 = vmatprep.mubr.bf16.mxu0 %v1477
    %2331 = vmatmul.mubr.bf16.gmra.mrb[0].mxu0 %v1475
    %v2332 = vpop.f32.mrb[0].mxu0
    %v2333 = vadd.f32 0.0, %v2332
    %v2334 = vpop.f32.mrb[0].mxu0
    %v2335 = vadd.f32 0.0, %v2334
    %v2336 = vpop.f32.mrb[0].mxu0
    %v2337 = vadd.f32 0.0, %v2336
    %v2338 = vpop.f32.mrb[0].mxu0
    %v2339 = vadd.f32 0.0, %v2338
    %2340 = vmatprep.mubr.bf16.mxu0 %v1485
    %2341 = vmatmul.mubr.bf16.gmra.mrb[0].mxu0 %v1483
    %v2342 = vpop.f32.mrb[0].mxu0
    %v2343 = vadd.f32 0.0, %v2342
    %v2344 = vpop.f32.mrb[0].mxu0
    %v2345 = vadd.f32 0.0, %v2344
    %v2346 = vpop.f32.mrb[0].mxu0
    %v2347 = vadd.f32 0.0, %v2346
    %v2348 = vpop.f32.mrb[0].mxu0
    %v2349 = vadd.f32 0.0, %v2348
    %2350 = vmatprep.mubr.bf16.mxu0 %v1484
    %2351 = vmatmul.mubr.bf16.gmra.mrb[0].mxu0 %v1482
    %v2352 = vpop.f32.mrb[0].mxu0
    %v2353 = vadd.f32 0.0, %v2352
    %v2354 = vpop.f32.mrb[0].mxu0
    %v2355 = vadd.f32 0.0, %v2354
    %v2356 = vpop.f32.mrb[0].mxu0
    %v2357 = vpop.f32.mrb[0].mxu0
    %2358 = vdwg.mxu0
    %2359 = vmatprep.subr.bf16.mxu0 %v1957
    %2360 = vmatpush1.bf16.msra.mxu0 %v1956
    %2361 = vmatprep.subr.bf16.mxu0 %v1961
    %2362 = vmatpush1.bf16.msra.mxu0 %v1960
    %2363 = vmatprep.subr.bf16.mxu0 %v1965
    %2364 = vmatpush1.bf16.msra.mxu0 %v1964
    %2365 = vmatprep.subr.bf16.mxu0 %v1969
    %2366 = vmatpush1.bf16.msra.mxu0 %v1968
    %2367 = vmatprep.subr.bf16.mxu0 %v1973
    %2368 = vmatpush1.bf16.msra.mxu0 %v1972
    %2369 = vmatprep.subr.bf16.mxu0 %v1977
    %2370 = vmatpush1.bf16.msra.mxu0 %v1976
    %2371 = vmatprep.subr.bf16.mxu0 %v1981
    %2372 = vmatpush1.bf16.msra.mxu0 %v1980
    %2373 = vmatprep.subr.bf16.mxu0 %v1985
    %2374 = vmatpush1.bf16.msra.mxu0 %v1984
    %2375 = vmatprep.subr.bf16.mxu0 %v1989
    %2376 = vmatpush1.bf16.msra.mxu0 %v1988
    %2377 = vmatprep.subr.bf16.mxu0 %v1993
    %2378 = vmatpush1.bf16.msra.mxu0 %v1992
    %2379 = vmatprep.subr.bf16.mxu0 %v1997
    %2380 = vmatpush1.bf16.msra.mxu0 %v1996
    %2381 = vmatprep.subr.bf16.mxu0 %v2001
    %2382 = vmatpush1.bf16.msra.mxu0 %v2000
    %2383 = vmatprep.subr.bf16.mxu0 %v2005
    %2384 = vmatpush1.bf16.msra.mxu0 %v2004
    %2385 = vmatprep.subr.bf16.mxu0 %v2009
    %2386 = vmatpush1.bf16.msra.mxu0 %v2008
    %2387 = vmatprep.subr.bf16.mxu0 %v2013
    %2388 = vmatpush1.bf16.msra.mxu0 %v2012
    %2389 = vmatprep.subr.bf16.mxu0 %v2017
    %2390 = vmatpush1.bf16.msra.mxu0 %v2016
    %2391 = vmatprep.mubr.bf16.mxu0 %v1473
    %2392 = vmatmul.mubr.bf16.gmra.mrb[0].mxu0 %v1470
    %v2393 = vpop.f32.mrb[0].mxu0
    %v2394 = vadd.f32 %v2323, %v2393
    %v2395 = vpop.f32.mrb[0].mxu0
    %v2396 = vadd.f32 %v2325, %v2395
    %v2397 = vpop.f32.mrb[0].mxu0
    %v2398 = vadd.f32 %v2327, %v2397
    %v2399 = vpop.f32.mrb[0].mxu0
    %v2400 = vadd.f32 %v2329, %v2399
    %2401 = vmatprep.mubr.bf16.mxu0 %v1481
    %2402 = vmatmul.mubr.bf16.gmra.mrb[0].mxu0 %v1479
    %v2403 = vpop.f32.mrb[0].mxu0
    %v2404 = vadd.f32 %v2333, %v2403
    %v2405 = vpop.f32.mrb[0].mxu0
    %v2406 = vadd.f32 %v2335, %v2405
    %v2407 = vpop.f32.mrb[0].mxu0
    %v2408 = vadd.f32 %v2337, %v2407
    %v2409 = vpop.f32.mrb[0].mxu0
    %v2410 = vadd.f32 %v2339, %v2409
    %2411 = vmatprep.mubr.bf16.mxu0 %v1489
    %2412 = vmatmul.mubr.bf16.gmra.mrb[0].mxu0 %v1487
    %v2413 = vpop.f32.mrb[0].mxu0
    %v2414 = vadd.f32 %v2343, %v2413
    %v2415 = vpop.f32.mrb[0].mxu0
    %v2416 = vadd.f32 %v2345, %v2415
    %v2417 = vpop.f32.mrb[0].mxu0
    %v2418 = vadd.f32 %v2347, %v2417
    %v2419 = vpop.f32.mrb[0].mxu0
    %v2420 = vadd.f32 %v2349, %v2419
    %2421 = vmatprep.mubr.bf16.mxu0 %v1488
    %2422 = vmatmul.mubr.bf16.gmra.mrb[0].mxu0 %v1486
    %v2423 = vpop.f32.mrb[0].mxu0
    %v2424 = vadd.f32 %v2353, %v2423
    %v2425 = vpop.f32.mrb[0].mxu0
    %v2426 = vadd.f32 %v2355, %v2425
    %v2427 = vpop.f32.mrb[0].mxu0
    %v2428 = vpop.f32.mrb[0].mxu0
    %2429 = vdwg.mxu0
    %v2430 = vpack.c.b16 %v1438, %v1438
    %v2431 = vpack.c.b16 %v1439, %v1439
    %v2432 = vpack.c.b16 %v1440, %v1440
    %v2433 = vpack.c.b16 %v1441, %v1441
    %v2578 = vunpack.c.l.b16 %v1141
    %v2579 = vunpack.c.h.b16 %v1141
    %v2580 = vunpack.c.l.b16 %v1142
    %v2581 = vunpack.c.h.b16 %v1142
    %v2582 = vunpack.c.l.b16 %v1143
    %v2583 = vunpack.c.h.b16 %v1143
    %v2584 = vunpack.c.l.b16 %v1144
    %v2585 = vunpack.c.h.b16 %v1144
    %v2586 = vunpack.c.l.b16 %v1145
    %v2587 = vunpack.c.h.b16 %v1145
    %v2588 = vunpack.c.l.b16 %v1146
    %v2589 = vunpack.c.h.b16 %v1146
    %v2590 = vunpack.c.l.b16 %v1147
    %v2591 = vunpack.c.h.b16 %v1147
    %v2592 = vunpack.c.l.b16 %v1148
    %v2593 = vunpack.c.h.b16 %v1148
    %v2594 = vunpack.c.l.b16 %v1149
    %v2595 = vunpack.c.h.b16 %v1149
    %v2596 = vunpack.c.l.b16 %v1150
    %v2597 = vunpack.c.h.b16 %v1150
    %v2598 = vunpack.c.l.b16 %v1151
    %v2599 = vunpack.c.h.b16 %v1151
    %v2600 = vunpack.c.l.b16 %v1152
    %v2601 = vunpack.c.h.b16 %v1152
    %v2602 = vunpack.c.l.b16 %v1153
    %v2603 = vunpack.c.h.b16 %v1153
    %v2604 = vunpack.c.l.b16 %v1154
    %v2605 = vunpack.c.h.b16 %v1154
    %v2606 = vunpack.c.l.b16 %v1155
    %v2607 = vunpack.c.h.b16 %v1155
    %v2608 = vunpack.c.l.b16 %v1156
    %v2609 = vunpack.c.h.b16 %v1156
    %v2610 = vunpack.c.l.b16 %v1157
    %v2611 = vunpack.c.h.b16 %v1157
    %v2612 = vunpack.c.l.b16 %v1158
    %v2613 = vunpack.c.h.b16 %v1158
    %v2614 = vunpack.c.l.b16 %v1159
    %v2615 = vunpack.c.h.b16 %v1159
    %v2616 = vunpack.c.l.b16 %v1160
    %v2617 = vunpack.c.h.b16 %v1160
    %v2618 = vunpack.c.l.b16 %v1161
    %v2619 = vunpack.c.h.b16 %v1161
    %v2620 = vunpack.c.l.b16 %v1162
    %v2621 = vunpack.c.h.b16 %v1162
    %v2622 = vunpack.c.l.b16 %v1163
    %v2623 = vunpack.c.h.b16 %v1163
    %v2624 = vunpack.c.l.b16 %v1164
    %v2625 = vunpack.c.h.b16 %v1164
    %v2626 = vunpack.c.l.b16 %v1165
    %v2627 = vunpack.c.h.b16 %v1165
    %v2628 = vunpack.c.l.b16 %v1166
    %v2629 = vunpack.c.h.b16 %v1166
    %v2630 = vunpack.c.l.b16 %v1167
    %v2631 = vunpack.c.h.b16 %v1167
    %v2632 = vunpack.c.l.b16 %v1168
    %v2633 = vunpack.c.h.b16 %v1168
    %v2634 = vunpack.c.l.b16 %v1169
    %v2635 = vunpack.c.h.b16 %v1169
    %v2636 = vunpack.c.l.b16 %v1170
    %v2637 = vunpack.c.h.b16 %v1170
    %v2638 = vunpack.c.l.b16 %v1171
    %v2639 = vunpack.c.h.b16 %v1171
    %v2640 = vunpack.c.l.b16 %v1172
    %v2641 = vunpack.c.h.b16 %v1172
    %v2642 = vunpack.c.l.b16 %v1173
    %v2643 = vunpack.c.h.b16 %v1173
    %v2644 = vunpack.c.l.b16 %v1174
    %v2645 = vunpack.c.h.b16 %v1174
    %v2646 = vunpack.c.l.b16 %v1175
    %v2647 = vunpack.c.h.b16 %v1175
    %v2648 = vunpack.c.l.b16 %v1176
    %v2649 = vunpack.c.h.b16 %v1176
    %v2650 = vunpack.c.l.b16 %v1177
    %v2651 = vunpack.c.h.b16 %v1177
    %v2652 = vunpack.c.l.b16 %v1178
    %v2653 = vunpack.c.h.b16 %v1178
    %v2654 = vunpack.c.l.b16 %v1179
    %v2655 = vunpack.c.h.b16 %v1179
    %v2656 = vunpack.c.l.b16 %v1180
    %v2657 = vunpack.c.h.b16 %v1180
    %v2658 = vunpack.c.l.b16 %v1181
    %v2659 = vunpack.c.h.b16 %v1181
    %v2660 = vunpack.c.l.b16 %v1182
    %v2661 = vunpack.c.h.b16 %v1182
    %v2662 = vunpack.c.l.b16 %v1183
    %v2663 = vunpack.c.h.b16 %v1183
    %v2664 = vunpack.c.l.b16 %v1184
    %v2665 = vunpack.c.h.b16 %v1184
    %v2666 = vunpack.c.l.b16 %v1185
    %v2667 = vunpack.c.h.b16 %v1185
    %v2668 = vunpack.c.l.b16 %v1186
    %v2669 = vunpack.c.h.b16 %v1186
    %v2670 = vunpack.c.l.b16 %v1187
    %v2671 = vunpack.c.h.b16 %v1187
    %v2672 = vunpack.c.l.b16 %v1188
    %v2673 = vunpack.c.h.b16 %v1188
    %v2674 = vunpack.c.l.b16 %v1189
    %v2675 = vunpack.c.h.b16 %v1189
    %v2676 = vunpack.c.l.b16 %v1190
    %v2677 = vunpack.c.h.b16 %v1190
    %v2678 = vunpack.c.l.b16 %v1191
    %v2679 = vunpack.c.h.b16 %v1191
    %v2680 = vunpack.c.l.b16 %v1192
    %v2681 = vunpack.c.h.b16 %v1192
    %v2682 = vunpack.c.l.b16 %v1193
    %v2683 = vunpack.c.h.b16 %v1193
    %v2684 = vunpack.c.l.b16 %v1194
    %v2685 = vunpack.c.h.b16 %v1194
    %v2686 = vunpack.c.l.b16 %v1195
    %v2687 = vunpack.c.h.b16 %v1195
    %v2688 = vunpack.c.l.b16 %v1196
    %v2689 = vunpack.c.h.b16 %v1196
    %v2690 = vunpack.c.l.b16 %v1197
    %v2691 = vunpack.c.h.b16 %v1197
    %v2692 = vunpack.c.l.b16 %v1198
    %v2693 = vunpack.c.h.b16 %v1198
    %v2694 = vunpack.c.l.b16 %v1199
    %v2695 = vunpack.c.h.b16 %v1199
    %v2696 = vunpack.c.l.b16 %v1200
    %v2697 = vunpack.c.h.b16 %v1200
    %v2698 = vunpack.c.l.b16 %v1201
    %v2699 = vunpack.c.h.b16 %v1201
    %v2700 = vunpack.c.l.b16 %v1202
    %v2701 = vunpack.c.h.b16 %v1202
    %v2702 = vunpack.c.l.b16 %v1203
    %v2703 = vunpack.c.h.b16 %v1203
    %v2704 = vunpack.c.l.b16 %v1204
    %v2705 = vunpack.c.h.b16 %v1204
    %v2706 = vunpack.c.l.b16 %v1205
    %v2707 = vunpack.c.h.b16 %v1205
    %v2708 = vunpack.c.l.b16 %v1206
    %v2709 = vunpack.c.h.b16 %v1206
    %v2710 = vunpack.c.l.b16 %v1207
    %v2711 = vunpack.c.h.b16 %v1207
    %v2712 = vunpack.c.l.b16 %v1208
    %v2713 = vunpack.c.h.b16 %v1208
    %v2714 = vunpack.c.l.b16 %v1209
    %v2715 = vunpack.c.h.b16 %v1209
    %v2716 = vunpack.c.l.b16 %v1210
    %v2717 = vunpack.c.h.b16 %v1210
    %v2718 = vunpack.c.l.b16 %v1211
    %v2719 = vunpack.c.h.b16 %v1211
    %v2720 = vunpack.c.l.b16 %v1212
    %v2721 = vunpack.c.h.b16 %v1212
    %v2722 = vunpack.c.l.b16 %v1213
    %v2723 = vunpack.c.h.b16 %v1213
    %v2724 = vunpack.c.l.b16 %v1214
    %v2725 = vunpack.c.h.b16 %v1214
    %v2726 = vunpack.c.l.b16 %v1215
    %v2727 = vunpack.c.h.b16 %v1215
    %v2728 = vunpack.c.l.b16 %v1216
    %v2729 = vunpack.c.h.b16 %v1216
    %v2730 = vunpack.c.l.b16 %v1217
    %v2731 = vunpack.c.h.b16 %v1217
    %v2732 = vunpack.c.l.b16 %v1218
    %v2733 = vunpack.c.h.b16 %v1218
    %v2734 = vunpack.c.l.b16 %v1219
    %v2735 = vunpack.c.h.b16 %v1219
    %v2736 = vunpack.c.l.b16 %v1220
    %v2737 = vunpack.c.h.b16 %v1220
    %v2738 = vunpack.c.l.b16 %v1221
    %v2739 = vunpack.c.h.b16 %v1221
    %v2740 = vunpack.c.l.b16 %v1222
    %v2741 = vunpack.c.h.b16 %v1222
    %v2742 = vunpack.c.l.b16 %v1223
    %v2743 = vunpack.c.h.b16 %v1223
    %v2744 = vunpack.c.l.b16 %v1224
    %v2745 = vunpack.c.h.b16 %v1224
    %v2746 = vunpack.c.l.b16 %v1225
    %v2747 = vunpack.c.h.b16 %v1225
    %v2748 = vunpack.c.l.b16 %v1226
    %v2749 = vunpack.c.h.b16 %v1226
    %v2750 = vunpack.c.l.b16 %v1227
    %v2751 = vunpack.c.h.b16 %v1227
    %v2752 = vunpack.c.l.b16 %v1228
    %v2753 = vunpack.c.h.b16 %v1228
    %v2754 = vunpack.c.l.b16 %v1229
    %v2755 = vunpack.c.h.b16 %v1229
    %v2756 = vunpack.c.l.b16 %v1230
    %v2757 = vunpack.c.h.b16 %v1230
    %v2758 = vunpack.c.l.b16 %v1231
    %v2759 = vunpack.c.h.b16 %v1231
    %v2760 = vunpack.c.l.b16 %v1232
    %v2761 = vunpack.c.h.b16 %v1232
    %v2762 = vunpack.c.l.b16 %v1233
    %v2763 = vunpack.c.h.b16 %v1233
    %v2764 = vunpack.c.l.b16 %v1234
    %v2765 = vunpack.c.h.b16 %v1234
    %v2766 = vunpack.c.l.b16 %v1235
    %v2767 = vunpack.c.h.b16 %v1235
    %v2768 = vunpack.c.l.b16 %v1236
    %v2769 = vunpack.c.h.b16 %v1236
    %v2770 = vunpack.c.l.b16 %v1237
    %v2771 = vunpack.c.h.b16 %v1237
    %v2772 = vunpack.c.l.b16 %v1238
    %v2773 = vunpack.c.h.b16 %v1238
    %v2774 = vunpack.c.l.b16 %v1239
    %v2775 = vunpack.c.h.b16 %v1239
    %v2776 = vunpack.c.l.b16 %v1240
    %v2777 = vunpack.c.h.b16 %v1240
    %v2778 = vunpack.c.l.b16 %v1241
    %v2779 = vunpack.c.h.b16 %v1241
    %v2780 = vunpack.c.l.b16 %v1242
    %v2781 = vunpack.c.h.b16 %v1242
    %v2782 = vunpack.c.l.b16 %v1243
    %v2783 = vunpack.c.h.b16 %v1243
    %v2784 = vunpack.c.l.b16 %v1244
    %v2785 = vunpack.c.h.b16 %v1244
    %v2786 = vunpack.c.l.b16 %v1245
    %v2787 = vunpack.c.h.b16 %v1245
    %v2788 = vunpack.c.l.b16 %v1246
    %v2789 = vunpack.c.h.b16 %v1246
    %v2790 = vunpack.c.l.b16 %v1247
    %v2791 = vunpack.c.h.b16 %v1247
    %v2792 = vunpack.c.l.b16 %v1248
    %v2793 = vunpack.c.h.b16 %v1248
    %v2794 = vunpack.c.l.b16 %v1249
    %v2795 = vunpack.c.h.b16 %v1249
    %v2796 = vunpack.c.l.b16 %v1250
    %v2797 = vunpack.c.h.b16 %v1250
    %v2798 = vunpack.c.l.b16 %v1251
    %v2799 = vunpack.c.h.b16 %v1251
    %v2800 = vunpack.c.l.b16 %v1252
    %v2801 = vunpack.c.h.b16 %v1252
    %v2802 = vunpack.c.l.b16 %v1253
    %v2803 = vunpack.c.h.b16 %v1253
    %v2804 = vunpack.c.l.b16 %v1254
    %v2805 = vunpack.c.h.b16 %v1254
    %v2806 = vunpack.c.l.b16 %v1255
    %v2807 = vunpack.c.h.b16 %v1255
    %v2808 = vunpack.c.l.b16 %v1256
    %v2809 = vunpack.c.h.b16 %v1256
    %v2810 = vunpack.c.l.b16 %v1257
    %v2811 = vunpack.c.h.b16 %v1257
    %v2812 = vunpack.c.l.b16 %v1258
    %v2813 = vunpack.c.h.b16 %v1258
    %v2814 = vunpack.c.l.b16 %v1259
    %v2815 = vunpack.c.h.b16 %v1259
    %v2816 = vunpack.c.l.b16 %v1260
    %v2817 = vunpack.c.h.b16 %v1260
    %v2818 = vunpack.c.l.b16 %v1261
    %v2819 = vunpack.c.h.b16 %v1261
    %v2820 = vunpack.c.l.b16 %v1262
    %v2821 = vunpack.c.h.b16 %v1262
    %v2822 = vunpack.c.l.b16 %v1263
    %v2823 = vunpack.c.h.b16 %v1263
    %v2824 = vunpack.c.l.b16 %v1264
    %v2825 = vunpack.c.h.b16 %v1264
    %v2826 = vunpack.c.l.b16 %v1265
    %v2827 = vunpack.c.h.b16 %v1265
    %v2828 = vunpack.c.l.b16 %v1266
    %v2829 = vunpack.c.h.b16 %v1266
    %v2830 = vunpack.c.l.b16 %v1267
    %v2831 = vunpack.c.h.b16 %v1267
    %v2832 = vunpack.c.l.b16 %v1268
    %v2833 = vunpack.c.h.b16 %v1268
    %v2834 = vpack.c.b16 %v2582, %v2578
    %v2835 = vpack.c.b16 %v2583, %v2579
    %v2836 = vpack.c.b16 %v2584, %v2580
    %v2837 = vpack.c.b16 %v2585, %v2581
    %v2838 = vpack.c.b16 %v2590, %v2586
    %v2839 = vpack.c.b16 %v2591, %v2587
    %v2840 = vpack.c.b16 %v2592, %v2588
    %v2841 = vpack.c.b16 %v2593, %v2589
    %v2842 = vpack.c.b16 %v2598, %v2594
    %v2843 = vpack.c.b16 %v2599, %v2595
    %v2844 = vpack.c.b16 %v2600, %v2596
    %v2845 = vpack.c.b16 %v2601, %v2597
    %v2846 = vpack.c.b16 %v2606, %v2602
    %v2847 = vpack.c.b16 %v2607, %v2603
    %v2848 = vpack.c.b16 %v2608, %v2604
    %v2849 = vpack.c.b16 %v2609, %v2605
    %v2850 = vpack.c.b16 %v2614, %v2610
    %v2851 = vpack.c.b16 %v2615, %v2611
    %v2852 = vpack.c.b16 %v2616, %v2612
    %v2853 = vpack.c.b16 %v2617, %v2613
    %v2854 = vpack.c.b16 %v2622, %v2618
    %v2855 = vpack.c.b16 %v2623, %v2619
    %v2856 = vpack.c.b16 %v2624, %v2620
    %v2857 = vpack.c.b16 %v2625, %v2621
    %v2858 = vpack.c.b16 %v2630, %v2626
    %v2859 = vpack.c.b16 %v2631, %v2627
    %v2860 = vpack.c.b16 %v2632, %v2628
    %v2861 = vpack.c.b16 %v2633, %v2629
    %v2862 = vpack.c.b16 %v2638, %v2634
    %v2863 = vpack.c.b16 %v2639, %v2635
    %v2864 = vpack.c.b16 %v2640, %v2636
    %v2865 = vpack.c.b16 %v2641, %v2637
    %v2866 = vpack.c.b16 %v2646, %v2642
    %v2867 = vpack.c.b16 %v2647, %v2643
    %v2868 = vpack.c.b16 %v2648, %v2644
    %v2869 = vpack.c.b16 %v2649, %v2645
    %v2870 = vpack.c.b16 %v2654, %v2650
    %v2871 = vpack.c.b16 %v2655, %v2651
    %v2872 = vpack.c.b16 %v2656, %v2652
    %v2873 = vpack.c.b16 %v2657, %v2653
    %v2874 = vpack.c.b16 %v2662, %v2658
    %v2875 = vpack.c.b16 %v2663, %v2659
    %v2876 = vpack.c.b16 %v2664, %v2660
    %v2877 = vpack.c.b16 %v2665, %v2661
    %v2878 = vpack.c.b16 %v2670, %v2666
    %v2879 = vpack.c.b16 %v2671, %v2667
    %v2880 = vpack.c.b16 %v2672, %v2668
    %v2881 = vpack.c.b16 %v2673, %v2669
    %v2882 = vpack.c.b16 %v2678, %v2674
    %v2883 = vpack.c.b16 %v2679, %v2675
    %v2884 = vpack.c.b16 %v2680, %v2676
    %v2885 = vpack.c.b16 %v2681, %v2677
    %v2886 = vpack.c.b16 %v2686, %v2682
    %v2887 = vpack.c.b16 %v2687, %v2683
    %v2888 = vpack.c.b16 %v2688, %v2684
    %v2889 = vpack.c.b16 %v2689, %v2685
    %v2890 = vpack.c.b16 %v2694, %v2690
    %v2891 = vpack.c.b16 %v2695, %v2691
    %v2892 = vpack.c.b16 %v2696, %v2692
    %v2893 = vpack.c.b16 %v2697, %v2693
    %v2894 = vpack.c.b16 %v2702, %v2698
    %v2895 = vpack.c.b16 %v2703, %v2699
    %v2896 = vpack.c.b16 %v2704, %v2700
    %v2897 = vpack.c.b16 %v2705, %v2701
    %v2898 = vpack.c.b16 %v2710, %v2706
    %v2899 = vpack.c.b16 %v2711, %v2707
    %v2900 = vpack.c.b16 %v2712, %v2708
    %v2901 = vpack.c.b16 %v2713, %v2709
    %v2902 = vpack.c.b16 %v2718, %v2714
    %v2903 = vpack.c.b16 %v2719, %v2715
    %v2904 = vpack.c.b16 %v2720, %v2716
    %v2905 = vpack.c.b16 %v2721, %v2717
    %v2906 = vpack.c.b16 %v2726, %v2722
    %v2907 = vpack.c.b16 %v2727, %v2723
    %v2908 = vpack.c.b16 %v2728, %v2724
    %v2909 = vpack.c.b16 %v2729, %v2725
    %v2910 = vpack.c.b16 %v2734, %v2730
    %v2911 = vpack.c.b16 %v2735, %v2731
    %v2912 = vpack.c.b16 %v2736, %v2732
    %v2913 = vpack.c.b16 %v2737, %v2733
    %v2914 = vpack.c.b16 %v2742, %v2738
    %v2915 = vpack.c.b16 %v2743, %v2739
    %v2916 = vpack.c.b16 %v2744, %v2740
    %v2917 = vpack.c.b16 %v2745, %v2741
    %v2918 = vpack.c.b16 %v2750, %v2746
    %v2919 = vpack.c.b16 %v2751, %v2747
    %v2920 = vpack.c.b16 %v2752, %v2748
    %v2921 = vpack.c.b16 %v2753, %v2749
    %v2922 = vpack.c.b16 %v2758, %v2754
    %v2923 = vpack.c.b16 %v2759, %v2755
    %v2924 = vpack.c.b16 %v2760, %v2756
    %v2925 = vpack.c.b16 %v2761, %v2757
    %v2926 = vpack.c.b16 %v2766, %v2762
    %v2927 = vpack.c.b16 %v2767, %v2763
    %v2928 = vpack.c.b16 %v2768, %v2764
    %v2929 = vpack.c.b16 %v2769, %v2765
    %v2930 = vpack.c.b16 %v2774, %v2770
    %v2931 = vpack.c.b16 %v2775, %v2771
    %v2932 = vpack.c.b16 %v2776, %v2772
    %v2933 = vpack.c.b16 %v2777, %v2773
    %v2934 = vpack.c.b16 %v2782, %v2778
    %v2935 = vpack.c.b16 %v2783, %v2779
    %v2936 = vpack.c.b16 %v2784, %v2780
    %v2937 = vpack.c.b16 %v2785, %v2781
    %v2938 = vpack.c.b16 %v2790, %v2786
    %v2939 = vpack.c.b16 %v2791, %v2787
    %v2940 = vpack.c.b16 %v2792, %v2788
    %v2941 = vpack.c.b16 %v2793, %v2789
    %v2942 = vpack.c.b16 %v2798, %v2794
    %v2943 = vpack.c.b16 %v2799, %v2795
    %v2944 = vpack.c.b16 %v2800, %v2796
    %v2945 = vpack.c.b16 %v2801, %v2797
    %v2946 = vpack.c.b16 %v2806, %v2802
    %v2947 = vpack.c.b16 %v2807, %v2803
    %v2948 = vpack.c.b16 %v2808, %v2804
    %v2949 = vpack.c.b16 %v2809, %v2805
    %v2950 = vpack.c.b16 %v2814, %v2810
    %v2951 = vpack.c.b16 %v2815, %v2811
    %v2952 = vpack.c.b16 %v2816, %v2812
    %v2953 = vpack.c.b16 %v2817, %v2813
    %v2954 = vpack.c.b16 %v2822, %v2818
    %v2955 = vpack.c.b16 %v2823, %v2819
    %v2956 = vpack.c.b16 %v2824, %v2820
    %v2957 = vpack.c.b16 %v2825, %v2821
    %v2958 = vpack.c.b16 %v2830, %v2826
    %v2959 = vpack.c.b16 %v2831, %v2827
    %v2960 = vpack.c.b16 %v2832, %v2828
    %v2961 = vpack.c.b16 %v2833, %v2829
    %3090 = vmatprep.subr.bf16.mxu0 %v2835
    %3091 = vmatpush1.bf16.msra.mxu0 %v2834
    %3092 = vmatprep.subr.bf16.mxu0 %v2839
    %3093 = vmatpush1.bf16.msra.mxu0 %v2838
    %3094 = vmatprep.subr.bf16.mxu0 %v2843
    %3095 = vmatpush1.bf16.msra.mxu0 %v2842
    %3096 = vmatprep.subr.bf16.mxu0 %v2847
    %3097 = vmatpush1.bf16.msra.mxu0 %v2846
    %3098 = vmatprep.subr.bf16.mxu0 %v2851
    %3099 = vmatpush1.bf16.msra.mxu0 %v2850
    %3100 = vmatprep.subr.bf16.mxu0 %v2855
    %3101 = vmatpush1.bf16.msra.mxu0 %v2854
    %3102 = vmatprep.subr.bf16.mxu0 %v2859
    %3103 = vmatpush1.bf16.msra.mxu0 %v2858
    %3104 = vmatprep.subr.bf16.mxu0 %v2863
    %3105 = vmatpush1.bf16.msra.mxu0 %v2862
    %3106 = vmatprep.subr.bf16.mxu0 %v2867
    %3107 = vmatpush1.bf16.msra.mxu0 %v2866
    %3108 = vmatprep.subr.bf16.mxu0 %v2871
    %3109 = vmatpush1.bf16.msra.mxu0 %v2870
    %3110 = vmatprep.subr.bf16.mxu0 %v2875
    %3111 = vmatpush1.bf16.msra.mxu0 %v2874
    %3112 = vmatprep.subr.bf16.mxu0 %v2879
    %3113 = vmatpush1.bf16.msra.mxu0 %v2878
    %3114 = vmatprep.subr.bf16.mxu0 %v2883
    %3115 = vmatpush1.bf16.msra.mxu0 %v2882
    %3116 = vmatprep.subr.bf16.mxu0 %v2887
    %3117 = vmatpush1.bf16.msra.mxu0 %v2886
    %3118 = vmatprep.subr.bf16.mxu0 %v2891
    %3119 = vmatpush1.bf16.msra.mxu0 %v2890
    %3120 = vmatprep.subr.bf16.mxu0 %v2895
    %3121 = vmatpush1.bf16.msra.mxu0 %v2894
    %3122 = vmatprep.mubr.bf16.mxu0 %v1447
    %3123 = vmatmul.mubr.bf16.gmra.mrb[0].mxu0 %v1446
    %v3124 = vpop.f32.mrb[0].mxu0
    %v3125 = vadd.f32 %v2252, %v3124
    %v3126 = vpop.f32.mrb[0].mxu0
    %v3127 = vadd.f32 %v2254, %v3126
    %v3128 = vpop.f32.mrb[0].mxu0
    %v3129 = vadd.f32 %v2256, %v3128
    %v3130 = vpop.f32.mrb[0].mxu0
    %v3131 = vadd.f32 %v2258, %v3130
    %3132 = vmatprep.mubr.bf16.mxu0 %v1451
    %3133 = vmatmul.mubr.bf16.gmra.mrb[0].mxu0 %v1450
    %v3134 = vpop.f32.mrb[0].mxu0
    %v3135 = vadd.f32 %v2262, %v3134
    %v3136 = vpop.f32.mrb[0].mxu0
    %v3137 = vadd.f32 %v2264, %v3136
    %v3138 = vpop.f32.mrb[0].mxu0
    %v3139 = vadd.f32 %v2266, %v3138
    %v3140 = vpop.f32.mrb[0].mxu0
    %v3141 = vadd.f32 %v2268, %v3140
    %3142 = vmatprep.mubr.bf16.mxu0 %v1455
    %3143 = vmatmul.mubr.bf16.gmra.mrb[0].mxu0 %v1454
    %v3144 = vpop.f32.mrb[0].mxu0
    %v3145 = vadd.f32 %v2272, %v3144
    %v3146 = vpop.f32.mrb[0].mxu0
    %v3147 = vadd.f32 %v2274, %v3146
    %v3148 = vpop.f32.mrb[0].mxu0
    %v3149 = vadd.f32 %v2276, %v3148
    %v3150 = vpop.f32.mrb[0].mxu0
    %v3151 = vadd.f32 %v2278, %v3150
    %3152 = vmatprep.mubr.bf16.mxu0 %v2431
    %3153 = vmatmul.mubr.bf16.gmra.mrb[0].mxu0 %v2430
    %v3154 = vpop.f32.mrb[0].mxu0
    %v3155 = vadd.f32 %v2282, %v3154
    %v3156 = vpop.f32.mrb[0].mxu0
    %v3157 = vadd.f32 %v2284, %v3156
    %v3158 = vpop.f32.mrb[0].mxu0
    %v3159 = vpop.f32.mrb[0].mxu0
    %3160 = vdwg.mxu0
    %3161 = vmatprep.subr.bf16.mxu0 %v2899
    %3162 = vmatpush1.bf16.msra.mxu0 %v2898
    %3163 = vmatprep.subr.bf16.mxu0 %v2903
    %3164 = vmatpush1.bf16.msra.mxu0 %v2902
    %3165 = vmatprep.subr.bf16.mxu0 %v2907
    %3166 = vmatpush1.bf16.msra.mxu0 %v2906
    %3167 = vmatprep.subr.bf16.mxu0 %v2911
    %3168 = vmatpush1.bf16.msra.mxu0 %v2910
    %3169 = vmatprep.subr.bf16.mxu0 %v2915
    %3170 = vmatpush1.bf16.msra.mxu0 %v2914
    %3171 = vmatprep.subr.bf16.mxu0 %v2919
    %3172 = vmatpush1.bf16.msra.mxu0 %v2918
    %3173 = vmatprep.subr.bf16.mxu0 %v2923
    %3174 = vmatpush1.bf16.msra.mxu0 %v2922
    %3175 = vmatprep.subr.bf16.mxu0 %v2927
    %3176 = vmatpush1.bf16.msra.mxu0 %v2926
    %3177 = vmatprep.subr.bf16.mxu0 %v2931
    %3178 = vmatpush1.bf16.msra.mxu0 %v2930
    %3179 = vmatprep.subr.bf16.mxu0 %v2935
    %3180 = vmatpush1.bf16.msra.mxu0 %v2934
    %3181 = vmatprep.subr.bf16.mxu0 %v2939
    %3182 = vmatpush1.bf16.msra.mxu0 %v2938
    %3183 = vmatprep.subr.bf16.mxu0 %v2943
    %3184 = vmatpush1.bf16.msra.mxu0 %v2942
    %3185 = vmatprep.subr.bf16.mxu0 %v2947
    %3186 = vmatpush1.bf16.msra.mxu0 %v2946
    %3187 = vmatprep.subr.bf16.mxu0 %v2951
    %3188 = vmatpush1.bf16.msra.mxu0 %v2950
    %3189 = vmatprep.subr.bf16.mxu0 %v2955
    %3190 = vmatpush1.bf16.msra.mxu0 %v2954
    %3191 = vmatprep.subr.bf16.mxu0 %v2959
    %3192 = vmatpush1.bf16.msra.mxu0 %v2958
    %3193 = vmatprep.mubr.bf16.mxu0 %v1449
    %3194 = vmatmul.mubr.bf16.gmra.mrb[0].mxu0 %v1448
    %v3195 = vpop.f32.mrb[0].mxu0
    %v3196 = vadd.f32 %v3125, %v3195
    %v3197 = vpop.f32.mrb[0].mxu0
    %v3198 = vadd.f32 %v3127, %v3197
    %v3199 = vpop.f32.mrb[0].mxu0
    %v3200 = vadd.f32 %v3129, %v3199
    %v3201 = vpop.f32.mrb[0].mxu0
    %v3202 = vadd.f32 %v3131, %v3201
    %3203 = vmatprep.mubr.bf16.mxu0 %v1453
    %3204 = vmatmul.mubr.bf16.gmra.mrb[0].mxu0 %v1452
    %v3205 = vpop.f32.mrb[0].mxu0
    %v3206 = vadd.f32 %v3135, %v3205
    %v3207 = vpop.f32.mrb[0].mxu0
    %v3208 = vadd.f32 %v3137, %v3207
    %v3209 = vpop.f32.mrb[0].mxu0
    %v3210 = vadd.f32 %v3139, %v3209
    %v3211 = vpop.f32.mrb[0].mxu0
    %v3212 = vadd.f32 %v3141, %v3211
    %3213 = vmatprep.mubr.bf16.mxu0 %v1457
    %3214 = vmatmul.mubr.bf16.gmra.mrb[0].mxu0 %v1456
    %v3215 = vpop.f32.mrb[0].mxu0
    %v3216 = vadd.f32 %v3145, %v3215
    %v3217 = vpop.f32.mrb[0].mxu0
    %v3218 = vadd.f32 %v3147, %v3217
    %v3219 = vpop.f32.mrb[0].mxu0
    %v3220 = vadd.f32 %v3149, %v3219
    %v3221 = vpop.f32.mrb[0].mxu0
    %v3222 = vadd.f32 %v3151, %v3221
    %3223 = vmatprep.mubr.bf16.mxu0 %v2433
    %3224 = vmatmul.mubr.bf16.gmra.mrb[0].mxu0 %v2432
    %v3225 = vpop.f32.mrb[0].mxu0
    %v3226 = vadd.f32 %v3155, %v3225
    %v3227 = vpop.f32.mrb[0].mxu0
    %v3228 = vadd.f32 %v3157, %v3227
    %v3229 = vpop.f32.mrb[0].mxu0
    %v3230 = vpop.f32.mrb[0].mxu0
    %3231 = vdwg.mxu0
    %3232 = vmatprep.subr.bf16.mxu0 %v2837
    %3233 = vmatpush1.bf16.msra.mxu0 %v2836
    %3234 = vmatprep.subr.bf16.mxu0 %v2841
    %3235 = vmatpush1.bf16.msra.mxu0 %v2840
    %3236 = vmatprep.subr.bf16.mxu0 %v2845
    %3237 = vmatpush1.bf16.msra.mxu0 %v2844
    %3238 = vmatprep.subr.bf16.mxu0 %v2849
    %3239 = vmatpush1.bf16.msra.mxu0 %v2848
    %3240 = vmatprep.subr.bf16.mxu0 %v2853
    %3241 = vmatpush1.bf16.msra.mxu0 %v2852
    %3242 = vmatprep.subr.bf16.mxu0 %v2857
    %3243 = vmatpush1.bf16.msra.mxu0 %v2856
    %3244 = vmatprep.subr.bf16.mxu0 %v2861
    %3245 = vmatpush1.bf16.msra.mxu0 %v2860
    %3246 = vmatprep.subr.bf16.mxu0 %v2865
    %3247 = vmatpush1.bf16.msra.mxu0 %v2864
    %3248 = vmatprep.subr.bf16.mxu0 %v2869
    %3249 = vmatpush1.bf16.msra.mxu0 %v2868
    %3250 = vmatprep.subr.bf16.mxu0 %v2873
    %3251 = vmatpush1.bf16.msra.mxu0 %v2872
    %3252 = vmatprep.subr.bf16.mxu0 %v2877
    %3253 = vmatpush1.bf16.msra.mxu0 %v2876
    %3254 = vmatprep.subr.bf16.mxu0 %v2881
    %3255 = vmatpush1.bf16.msra.mxu0 %v2880
    %3256 = vmatprep.subr.bf16.mxu0 %v2885
    %3257 = vmatpush1.bf16.msra.mxu0 %v2884
    %3258 = vmatprep.subr.bf16.mxu0 %v2889
    %3259 = vmatpush1.bf16.msra.mxu0 %v2888
    %3260 = vmatprep.subr.bf16.mxu0 %v2893
    %3261 = vmatpush1.bf16.msra.mxu0 %v2892
    %3262 = vmatprep.subr.bf16.mxu0 %v2897
    %3263 = vmatpush1.bf16.msra.mxu0 %v2896
    %3264 = vmatprep.mubr.bf16.mxu0 %v1447
    %3265 = vmatmul.mubr.bf16.gmra.mrb[0].mxu0 %v1446
    %v3266 = vpop.f32.mrb[0].mxu0
    %v3267 = vadd.f32 %v2394, %v3266
    %v3268 = vpop.f32.mrb[0].mxu0
    %v3269 = vadd.f32 %v2396, %v3268
    %v3270 = vpop.f32.mrb[0].mxu0
    %v3271 = vadd.f32 %v2398, %v3270
    %v3272 = vpop.f32.mrb[0].mxu0
    %v3273 = vadd.f32 %v2400, %v3272
    %3274 = vmatprep.mubr.bf16.mxu0 %v1451
    %3275 = vmatmul.mubr.bf16.gmra.mrb[0].mxu0 %v1450
    %v3276 = vpop.f32.mrb[0].mxu0
    %v3277 = vadd.f32 %v2404, %v3276
    %v3278 = vpop.f32.mrb[0].mxu0
    %v3279 = vadd.f32 %v2406, %v3278
    %v3280 = vpop.f32.mrb[0].mxu0
    %v3281 = vadd.f32 %v2408, %v3280
    %v3282 = vpop.f32.mrb[0].mxu0
    %v3283 = vadd.f32 %v2410, %v3282
    %3284 = vmatprep.mubr.bf16.mxu0 %v1455
    %3285 = vmatmul.mubr.bf16.gmra.mrb[0].mxu0 %v1454
    %v3286 = vpop.f32.mrb[0].mxu0
    %v3287 = vadd.f32 %v2414, %v3286
    %v3288 = vpop.f32.mrb[0].mxu0
    %v3289 = vadd.f32 %v2416, %v3288
    %v3290 = vpop.f32.mrb[0].mxu0
    %v3291 = vadd.f32 %v2418, %v3290
    %v3292 = vpop.f32.mrb[0].mxu0
    %v3293 = vadd.f32 %v2420, %v3292
    %3294 = vmatprep.mubr.bf16.mxu0 %v2431
    %3295 = vmatmul.mubr.bf16.gmra.mrb[0].mxu0 %v2430
    %v3296 = vpop.f32.mrb[0].mxu0
    %v3297 = vadd.f32 %v2424, %v3296
    %v3298 = vpop.f32.mrb[0].mxu0
    %v3299 = vadd.f32 %v2426, %v3298
    %v3300 = vpop.f32.mrb[0].mxu0
    %v3301 = vpop.f32.mrb[0].mxu0
    %3302 = vdwg.mxu0
    %3303 = vmatprep.subr.bf16.mxu0 %v2901
    %3304 = vmatpush1.bf16.msra.mxu0 %v2900
    %3305 = vmatprep.subr.bf16.mxu0 %v2905
    %3306 = vmatpush1.bf16.msra.mxu0 %v2904
    %3307 = vmatprep.subr.bf16.mxu0 %v2909
    %3308 = vmatpush1.bf16.msra.mxu0 %v2908
    %3309 = vmatprep.subr.bf16.mxu0 %v2913
    %3310 = vmatpush1.bf16.msra.mxu0 %v2912
    %3311 = vmatprep.subr.bf16.mxu0 %v2917
    %3312 = vmatpush1.bf16.msra.mxu0 %v2916
    %3313 = vmatprep.subr.bf16.mxu0 %v2921
    %3314 = vmatpush1.bf16.msra.mxu0 %v2920
    %3315 = vmatprep.subr.bf16.mxu0 %v2925
    %3316 = vmatpush1.bf16.msra.mxu0 %v2924
    %3317 = vmatprep.subr.bf16.mxu0 %v2929
    %3318 = vmatpush1.bf16.msra.mxu0 %v2928
    %3319 = vmatprep.subr.bf16.mxu0 %v2933
    %3320 = vmatpush1.bf16.msra.mxu0 %v2932
    %3321 = vmatprep.subr.bf16.mxu0 %v2937
    %3322 = vmatpush1.bf16.msra.mxu0 %v2936
    %3323 = vmatprep.subr.bf16.mxu0 %v2941
    %3324 = vmatpush1.bf16.msra.mxu0 %v2940
    %3325 = vmatprep.subr.bf16.mxu0 %v2945
    %3326 = vmatpush1.bf16.msra.mxu0 %v2944
    %3327 = vmatprep.subr.bf16.mxu0 %v2949
    %3328 = vmatpush1.bf16.msra.mxu0 %v2948
    %3329 = vmatprep.subr.bf16.mxu0 %v2953
    %3330 = vmatpush1.bf16.msra.mxu0 %v2952
    %3331 = vmatprep.subr.bf16.mxu0 %v2957
    %3332 = vmatpush1.bf16.msra.mxu0 %v2956
    %3333 = vmatprep.subr.bf16.mxu0 %v2961
    %3334 = vmatpush1.bf16.msra.mxu0 %v2960
    %3335 = vmatprep.mubr.bf16.mxu0 %v1449
    %3336 = vmatmul.mubr.bf16.gmra.mrb[0].mxu0 %v1448
    %v3337 = vpop.f32.mrb[0].mxu0
    %v3338 = vadd.f32 %v3267, %v3337
    %v3339 = vpop.f32.mrb[0].mxu0
    %v3340 = vadd.f32 %v3269, %v3339
    %v3341 = vpop.f32.mrb[0].mxu0
    %v3342 = vadd.f32 %v3271, %v3341
    %v3343 = vpop.f32.mrb[0].mxu0
    %v3344 = vadd.f32 %v3273, %v3343
    %3345 = vmatprep.mubr.bf16.mxu0 %v1453
    %3346 = vmatmul.mubr.bf16.gmra.mrb[0].mxu0 %v1452
    %v3347 = vpop.f32.mrb[0].mxu0
    %v3348 = vadd.f32 %v3277, %v3347
    %v3349 = vpop.f32.mrb[0].mxu0
    %v3350 = vadd.f32 %v3279, %v3349
    %v3351 = vpop.f32.mrb[0].mxu0
    %v3352 = vadd.f32 %v3281, %v3351
    %v3353 = vpop.f32.mrb[0].mxu0
    %v3354 = vadd.f32 %v3283, %v3353
    %3355 = vmatprep.mubr.bf16.mxu0 %v1457
    %3356 = vmatmul.mubr.bf16.gmra.mrb[0].mxu0 %v1456
    %v3357 = vpop.f32.mrb[0].mxu0
    %v3358 = vadd.f32 %v3287, %v3357
    %v3359 = vpop.f32.mrb[0].mxu0
    %v3360 = vadd.f32 %v3289, %v3359
    %v3361 = vpop.f32.mrb[0].mxu0
    %v3362 = vadd.f32 %v3291, %v3361
    %v3363 = vpop.f32.mrb[0].mxu0
    %v3364 = vadd.f32 %v3293, %v3363
    %3365 = vmatprep.mubr.bf16.mxu0 %v2433
    %3366 = vmatmul.mubr.bf16.gmra.mrb[0].mxu0 %v2432
    %v3367 = vpop.f32.mrb[0].mxu0
    %v3368 = vadd.f32 %v3297, %v3367
    %v3369 = vpop.f32.mrb[0].mxu0
    %v3370 = vadd.f32 %v3299, %v3369
    %v3371 = vpop.f32.mrb[0].mxu0
    %v3372 = vpop.f32.mrb[0].mxu0
    %3373 = vdwg.mxu0
    %s3374 = scalar_lea.vmem [#allocation14], 2048
    %v3375 = vld [vmem:[%s3374] sm:$0xff]
    %v3376 = vld [vmem:[%s3374 + $0x8] sm:$0xff]
    %v3377 = vld [vmem:[%s3374 + $0x10] sm:$0xff]
    %v3378 = vld [vmem:[%s3374 + $0x18] sm:$0xff]
    %v3379 = vld [vmem:[%s3374 + $0x20] sm:$0xff]
    %v3380 = vld [vmem:[%s3374 + $0x28] sm:$0xff]
    %v3381 = vld [vmem:[%s3374 + $0x30] sm:$0xff]
    %v3382 = vld [vmem:[%s3374 + $0x38] sm:$0xff]
    %v3383 = vld [vmem:[%s3374 + $0x40] sm:$0xff]
    %v3384 = vld [vmem:[%s3374 + $0x48] sm:$0xff]
    %v3385 = vld [vmem:[%s3374 + $0x50] sm:$0xff]
    %v3386 = vld [vmem:[%s3374 + $0x58] sm:$0xff]
    %v3387 = vld [vmem:[%s3374 + $0x60] sm:$0xff]
    %v3388 = vld [vmem:[%s3374 + $0x68] sm:$0xff]
    %v3389 = vld [vmem:[%s3374 + $0x70] sm:$0xff]
    %v3390 = vld [vmem:[%s3374 + $0x78] sm:$0xff]
    %v3391 = vld [vmem:[%s3374 + $0x80] sm:$0xff]
    %v3392 = vld [vmem:[%s3374 + $0x88] sm:$0xff]
    %v3393 = vld [vmem:[%s3374 + $0x90] sm:$0xff]
    %v3394 = vld [vmem:[%s3374 + $0x98] sm:$0xff]
    %v3395 = vld [vmem:[%s3374 + $0xa0] sm:$0xff]
    %v3396 = vld [vmem:[%s3374 + $0xa8] sm:$0xff]
    %v3397 = vld [vmem:[%s3374 + $0xb0] sm:$0xff]
    %v3398 = vld [vmem:[%s3374 + $0xb8] sm:$0xff]
    %v3399 = vld [vmem:[%s3374 + $0xc0] sm:$0xff]
    %v3400 = vld [vmem:[%s3374 + $0xc8] sm:$0xff]
    %v3401 = vld [vmem:[%s3374 + $0xd0] sm:$0xff]
    %v3402 = vld [vmem:[%s3374 + $0xd8] sm:$0xff]
    %v3403 = vld [vmem:[%s3374 + $0xe0] sm:$0xff]
    %v3404 = vld [vmem:[%s3374 + $0xe8] sm:$0xff]
    %v3405 = vld [vmem:[%s3374 + $0xf0] sm:$0xff]
    %v3406 = vld [vmem:[%s3374 + $0xf8] sm:$0xff]
    %v3407 = vld [vmem:[%s3374 + $0x100] sm:$0xff]
    %v3408 = vld [vmem:[%s3374 + $0x108] sm:$0xff]
    %v3409 = vld [vmem:[%s3374 + $0x110] sm:$0xff]
    %v3410 = vld [vmem:[%s3374 + $0x118] sm:$0xff]
    %v3411 = vld [vmem:[%s3374 + $0x120] sm:$0xff]
    %v3412 = vld [vmem:[%s3374 + $0x128] sm:$0xff]
    %v3413 = vld [vmem:[%s3374 + $0x130] sm:$0xff]
    %v3414 = vld [vmem:[%s3374 + $0x138] sm:$0xff]
    %v3415 = vld [vmem:[%s3374 + $0x140] sm:$0xff]
    %v3416 = vld [vmem:[%s3374 + $0x148] sm:$0xff]
    %v3417 = vld [vmem:[%s3374 + $0x150] sm:$0xff]
    %v3418 = vld [vmem:[%s3374 + $0x158] sm:$0xff]
    %v3419 = vld [vmem:[%s3374 + $0x160] sm:$0xff]
    %v3420 = vld [vmem:[%s3374 + $0x168] sm:$0xff]
    %v3421 = vld [vmem:[%s3374 + $0x170] sm:$0xff]
    %v3422 = vld [vmem:[%s3374 + $0x178] sm:$0xff]
    %v3423 = vld [vmem:[%s3374 + $0x180] sm:$0xff]
    %v3424 = vld [vmem:[%s3374 + $0x188] sm:$0xff]
    %v3425 = vld [vmem:[%s3374 + $0x190] sm:$0xff]
    %v3426 = vld [vmem:[%s3374 + $0x198] sm:$0xff]
    %v3427 = vld [vmem:[%s3374 + $0x1a0] sm:$0xff]
    %v3428 = vld [vmem:[%s3374 + $0x1a8] sm:$0xff]
    %v3429 = vld [vmem:[%s3374 + $0x1b0] sm:$0xff]
    %v3430 = vld [vmem:[%s3374 + $0x1b8] sm:$0xff]
    %v3431 = vld [vmem:[%s3374 + $0x1c0] sm:$0xff]
    %v3432 = vld [vmem:[%s3374 + $0x1c8] sm:$0xff]
    %v3433 = vld [vmem:[%s3374 + $0x1d0] sm:$0xff]
    %v3434 = vld [vmem:[%s3374 + $0x1d8] sm:$0xff]
    %v3435 = vld [vmem:[%s3374 + $0x1e0] sm:$0xff]
    %v3436 = vld [vmem:[%s3374 + $0x1e8] sm:$0xff]
    %v3437 = vld [vmem:[%s3374 + $0x1f0] sm:$0xff]
    %v3438 = vld [vmem:[%s3374 + $0x1f8] sm:$0xff]
    %v3439 = vld [vmem:[%s3374 + $0x200] sm:$0xff]
    %v3440 = vld [vmem:[%s3374 + $0x208] sm:$0xff]
    %v3441 = vld [vmem:[%s3374 + $0x210] sm:$0xff]
    %v3442 = vld [vmem:[%s3374 + $0x218] sm:$0xff]
    %v3443 = vld [vmem:[%s3374 + $0x220] sm:$0xff]
    %v3444 = vld [vmem:[%s3374 + $0x228] sm:$0xff]
    %v3445 = vld [vmem:[%s3374 + $0x230] sm:$0xff]
    %v3446 = vld [vmem:[%s3374 + $0x238] sm:$0xff]
    %v3447 = vld [vmem:[%s3374 + $0x240] sm:$0xff]
    %v3448 = vld [vmem:[%s3374 + $0x248] sm:$0xff]
    %v3449 = vld [vmem:[%s3374 + $0x250] sm:$0xff]
    %v3450 = vld [vmem:[%s3374 + $0x258] sm:$0xff]
    %v3451 = vld [vmem:[%s3374 + $0x260] sm:$0xff]
    %v3452 = vld [vmem:[%s3374 + $0x268] sm:$0xff]
    %v3453 = vld [vmem:[%s3374 + $0x270] sm:$0xff]
    %v3454 = vld [vmem:[%s3374 + $0x278] sm:$0xff]
    %v3455 = vld [vmem:[%s3374 + $0x280] sm:$0xff]
    %v3456 = vld [vmem:[%s3374 + $0x288] sm:$0xff]
    %v3457 = vld [vmem:[%s3374 + $0x290] sm:$0xff]
    %v3458 = vld [vmem:[%s3374 + $0x298] sm:$0xff]
    %v3459 = vld [vmem:[%s3374 + $0x2a0] sm:$0xff]
    %v3460 = vld [vmem:[%s3374 + $0x2a8] sm:$0xff]
    %v3461 = vld [vmem:[%s3374 + $0x2b0] sm:$0xff]
    %v3462 = vld [vmem:[%s3374 + $0x2b8] sm:$0xff]
    %v3463 = vld [vmem:[%s3374 + $0x2c0] sm:$0xff]
    %v3464 = vld [vmem:[%s3374 + $0x2c8] sm:$0xff]
    %v3465 = vld [vmem:[%s3374 + $0x2d0] sm:$0xff]
    %v3466 = vld [vmem:[%s3374 + $0x2d8] sm:$0xff]
    %v3467 = vld [vmem:[%s3374 + $0x2e0] sm:$0xff]
    %v3468 = vld [vmem:[%s3374 + $0x2e8] sm:$0xff]
    %v3469 = vld [vmem:[%s3374 + $0x2f0] sm:$0xff]
    %v3470 = vld [vmem:[%s3374 + $0x2f8] sm:$0xff]
    %v3471 = vld [vmem:[%s3374 + $0x300] sm:$0xff]
    %v3472 = vld [vmem:[%s3374 + $0x308] sm:$0xff]
    %v3473 = vld [vmem:[%s3374 + $0x310] sm:$0xff]
    %v3474 = vld [vmem:[%s3374 + $0x318] sm:$0xff]
    %v3475 = vld [vmem:[%s3374 + $0x320] sm:$0xff]
    %v3476 = vld [vmem:[%s3374 + $0x328] sm:$0xff]
    %v3477 = vld [vmem:[%s3374 + $0x330] sm:$0xff]
    %v3478 = vld [vmem:[%s3374 + $0x338] sm:$0xff]
    %v3479 = vld [vmem:[%s3374 + $0x340] sm:$0xff]
    %v3480 = vld [vmem:[%s3374 + $0x348] sm:$0xff]
    %v3481 = vld [vmem:[%s3374 + $0x350] sm:$0xff]
    %v3482 = vld [vmem:[%s3374 + $0x358] sm:$0xff]
    %v3483 = vld [vmem:[%s3374 + $0x360] sm:$0xff]
    %v3484 = vld [vmem:[%s3374 + $0x368] sm:$0xff]
    %v3485 = vld [vmem:[%s3374 + $0x370] sm:$0xff]
    %v3486 = vld [vmem:[%s3374 + $0x378] sm:$0xff]
    %v3487 = vld [vmem:[%s3374 + $0x380] sm:$0xff]
    %v3488 = vld [vmem:[%s3374 + $0x388] sm:$0xff]
    %v3489 = vld [vmem:[%s3374 + $0x390] sm:$0xff]
    %v3490 = vld [vmem:[%s3374 + $0x398] sm:$0xff]
    %v3491 = vld [vmem:[%s3374 + $0x3a0] sm:$0xff]
    %v3492 = vld [vmem:[%s3374 + $0x3a8] sm:$0xff]
    %v3493 = vld [vmem:[%s3374 + $0x3b0] sm:$0xff]
    %v3494 = vld [vmem:[%s3374 + $0x3b8] sm:$0xff]
    %v3495 = vld [vmem:[%s3374 + $0x3c0] sm:$0xff]
    %v3496 = vld [vmem:[%s3374 + $0x3c8] sm:$0xff]
    %v3497 = vld [vmem:[%s3374 + $0x3d0] sm:$0xff]
    %v3498 = vld [vmem:[%s3374 + $0x3d8] sm:$0xff]
    %v3499 = vld [vmem:[%s3374 + $0x3e0] sm:$0xff]
    %v3500 = vld [vmem:[%s3374 + $0x3e8] sm:$0xff]
    %v3501 = vld [vmem:[%s3374 + $0x3f0] sm:$0xff]
    %v3502 = vld [vmem:[%s3374 + $0x3f8] sm:$0xff]
    %v3503 = vrot.slane %v1446, 2
    %v3504 = vrot.slane %v1450, 2
    %v3505 = vsel %vm680, %v3503, %v3504
    %v3506 = vrot.slane %v1447, 2
    %v3507 = vrot.slane %v1451, 2
    %v3508 = vsel %vm680, %v3506, %v3507
    %v3509 = vrot.slane %v1448, 2
    %v3510 = vrot.slane %v1452, 2
    %v3511 = vsel %vm680, %v3509, %v3510
    %v3512 = vrot.slane %v1449, 2
    %v3513 = vrot.slane %v1453, 2
    %v3514 = vsel %vm680, %v3512, %v3513
    %v3515 = vrot.slane %v1454, 2
    %v3516 = vsel %vm680, %v3504, %v3515
    %v3517 = vrot.slane %v1455, 2
    %v3518 = vsel %vm680, %v3507, %v3517
    %v3519 = vrot.slane %v1456, 2
    %v3520 = vsel %vm680, %v3510, %v3519
    %v3521 = vrot.slane %v1457, 2
    %v3522 = vsel %vm680, %v3513, %v3521
    %v3523 = vrot.slane %v1458, 2
    %v3524 = vsel %vm680, %v3515, %v3523
    %v3525 = vrot.slane %v1459, 2
    %v3526 = vsel %vm680, %v3517, %v3525
    %v3527 = vrot.slane %v1460, 2
    %v3528 = vsel %vm680, %v3519, %v3527
    %v3529 = vrot.slane %v1461, 2
    %v3530 = vsel %vm680, %v3521, %v3529
    %v3675 = vunpack.c.l.b16 %v3375
    %v3676 = vunpack.c.h.b16 %v3375
    %v3677 = vunpack.c.l.b16 %v3376
    %v3678 = vunpack.c.h.b16 %v3376
    %v3679 = vunpack.c.l.b16 %v3377
    %v3680 = vunpack.c.h.b16 %v3377
    %v3681 = vunpack.c.l.b16 %v3378
    %v3682 = vunpack.c.h.b16 %v3378
    %v3683 = vunpack.c.l.b16 %v3379
    %v3684 = vunpack.c.h.b16 %v3379
    %v3685 = vunpack.c.l.b16 %v3380
    %v3686 = vunpack.c.h.b16 %v3380
    %v3687 = vunpack.c.l.b16 %v3381
    %v3688 = vunpack.c.h.b16 %v3381
    %v3689 = vunpack.c.l.b16 %v3382
    %v3690 = vunpack.c.h.b16 %v3382
    %v3691 = vunpack.c.l.b16 %v3383
    %v3692 = vunpack.c.h.b16 %v3383
    %v3693 = vunpack.c.l.b16 %v3384
    %v3694 = vunpack.c.h.b16 %v3384
    %v3695 = vunpack.c.l.b16 %v3385
    %v3696 = vunpack.c.h.b16 %v3385
    %v3697 = vunpack.c.l.b16 %v3386
    %v3698 = vunpack.c.h.b16 %v3386
    %v3699 = vunpack.c.l.b16 %v3387
    %v3700 = vunpack.c.h.b16 %v3387
    %v3701 = vunpack.c.l.b16 %v3388
    %v3702 = vunpack.c.h.b16 %v3388
    %v3703 = vunpack.c.l.b16 %v3389
    %v3704 = vunpack.c.h.b16 %v3389
    %v3705 = vunpack.c.l.b16 %v3390
    %v3706 = vunpack.c.h.b16 %v3390
    %v3707 = vunpack.c.l.b16 %v3391
    %v3708 = vunpack.c.h.b16 %v3391
    %v3709 = vunpack.c.l.b16 %v3392
    %v3710 = vunpack.c.h.b16 %v3392
    %v3711 = vunpack.c.l.b16 %v3393
    %v3712 = vunpack.c.h.b16 %v3393
    %v3713 = vunpack.c.l.b16 %v3394
    %v3714 = vunpack.c.h.b16 %v3394
    %v3715 = vunpack.c.l.b16 %v3395
    %v3716 = vunpack.c.h.b16 %v3395
    %v3717 = vunpack.c.l.b16 %v3396
    %v3718 = vunpack.c.h.b16 %v3396
    %v3719 = vunpack.c.l.b16 %v3397
    %v3720 = vunpack.c.h.b16 %v3397
    %v3721 = vunpack.c.l.b16 %v3398
    %v3722 = vunpack.c.h.b16 %v3398
    %v3723 = vunpack.c.l.b16 %v3399
    %v3724 = vunpack.c.h.b16 %v3399
    %v3725 = vunpack.c.l.b16 %v3400
    %v3726 = vunpack.c.h.b16 %v3400
    %v3727 = vunpack.c.l.b16 %v3401
    %v3728 = vunpack.c.h.b16 %v3401
    %v3729 = vunpack.c.l.b16 %v3402
    %v3730 = vunpack.c.h.b16 %v3402
    %v3731 = vunpack.c.l.b16 %v3403
    %v3732 = vunpack.c.h.b16 %v3403
    %v3733 = vunpack.c.l.b16 %v3404
    %v3734 = vunpack.c.h.b16 %v3404
    %v3735 = vunpack.c.l.b16 %v3405
    %v3736 = vunpack.c.h.b16 %v3405
    %v3737 = vunpack.c.l.b16 %v3406
    %v3738 = vunpack.c.h.b16 %v3406
    %v3739 = vunpack.c.l.b16 %v3407
    %v3740 = vunpack.c.h.b16 %v3407
    %v3741 = vunpack.c.l.b16 %v3408
    %v3742 = vunpack.c.h.b16 %v3408
    %v3743 = vunpack.c.l.b16 %v3409
    %v3744 = vunpack.c.h.b16 %v3409
    %v3745 = vunpack.c.l.b16 %v3410
    %v3746 = vunpack.c.h.b16 %v3410
    %v3747 = vunpack.c.l.b16 %v3411
    %v3748 = vunpack.c.h.b16 %v3411
    %v3749 = vunpack.c.l.b16 %v3412
    %v3750 = vunpack.c.h.b16 %v3412
    %v3751 = vunpack.c.l.b16 %v3413
    %v3752 = vunpack.c.h.b16 %v3413
    %v3753 = vunpack.c.l.b16 %v3414
    %v3754 = vunpack.c.h.b16 %v3414
    %v3755 = vunpack.c.l.b16 %v3415
    %v3756 = vunpack.c.h.b16 %v3415
    %v3757 = vunpack.c.l.b16 %v3416
    %v3758 = vunpack.c.h.b16 %v3416
    %v3759 = vunpack.c.l.b16 %v3417
    %v3760 = vunpack.c.h.b16 %v3417
    %v3761 = vunpack.c.l.b16 %v3418
    %v3762 = vunpack.c.h.b16 %v3418
    %v3763 = vunpack.c.l.b16 %v3419
    %v3764 = vunpack.c.h.b16 %v3419
    %v3765 = vunpack.c.l.b16 %v3420
    %v3766 = vunpack.c.h.b16 %v3420
    %v3767 = vunpack.c.l.b16 %v3421
    %v3768 = vunpack.c.h.b16 %v3421
    %v3769 = vunpack.c.l.b16 %v3422
    %v3770 = vunpack.c.h.b16 %v3422
    %v3771 = vunpack.c.l.b16 %v3423
    %v3772 = vunpack.c.h.b16 %v3423
    %v3773 = vunpack.c.l.b16 %v3424
    %v3774 = vunpack.c.h.b16 %v3424
    %v3775 = vunpack.c.l.b16 %v3425
    %v3776 = vunpack.c.h.b16 %v3425
    %v3777 = vunpack.c.l.b16 %v3426
    %v3778 = vunpack.c.h.b16 %v3426
    %v3779 = vunpack.c.l.b16 %v3427
    %v3780 = vunpack.c.h.b16 %v3427
    %v3781 = vunpack.c.l.b16 %v3428
    %v3782 = vunpack.c.h.b16 %v3428
    %v3783 = vunpack.c.l.b16 %v3429
    %v3784 = vunpack.c.h.b16 %v3429
    %v3785 = vunpack.c.l.b16 %v3430
    %v3786 = vunpack.c.h.b16 %v3430
    %v3787 = vunpack.c.l.b16 %v3431
    %v3788 = vunpack.c.h.b16 %v3431
    %v3789 = vunpack.c.l.b16 %v3432
    %v3790 = vunpack.c.h.b16 %v3432
    %v3791 = vunpack.c.l.b16 %v3433
    %v3792 = vunpack.c.h.b16 %v3433
    %v3793 = vunpack.c.l.b16 %v3434
    %v3794 = vunpack.c.h.b16 %v3434
    %v3795 = vunpack.c.l.b16 %v3435
    %v3796 = vunpack.c.h.b16 %v3435
    %v3797 = vunpack.c.l.b16 %v3436
    %v3798 = vunpack.c.h.b16 %v3436
    %v3799 = vunpack.c.l.b16 %v3437
    %v3800 = vunpack.c.h.b16 %v3437
    %v3801 = vunpack.c.l.b16 %v3438
    %v3802 = vunpack.c.h.b16 %v3438
    %v3803 = vunpack.c.l.b16 %v3439
    %v3804 = vunpack.c.h.b16 %v3439
    %v3805 = vunpack.c.l.b16 %v3440
    %v3806 = vunpack.c.h.b16 %v3440
    %v3807 = vunpack.c.l.b16 %v3441
    %v3808 = vunpack.c.h.b16 %v3441
    %v3809 = vunpack.c.l.b16 %v3442
    %v3810 = vunpack.c.h.b16 %v3442
    %v3811 = vunpack.c.l.b16 %v3443
    %v3812 = vunpack.c.h.b16 %v3443
    %v3813 = vunpack.c.l.b16 %v3444
    %v3814 = vunpack.c.h.b16 %v3444
    %v3815 = vunpack.c.l.b16 %v3445
    %v3816 = vunpack.c.h.b16 %v3445
    %v3817 = vunpack.c.l.b16 %v3446
    %v3818 = vunpack.c.h.b16 %v3446
    %v3819 = vunpack.c.l.b16 %v3447
    %v3820 = vunpack.c.h.b16 %v3447
    %v3821 = vunpack.c.l.b16 %v3448
    %v3822 = vunpack.c.h.b16 %v3448
    %v3823 = vunpack.c.l.b16 %v3449
    %v3824 = vunpack.c.h.b16 %v3449
    %v3825 = vunpack.c.l.b16 %v3450
    %v3826 = vunpack.c.h.b16 %v3450
    %v3827 = vunpack.c.l.b16 %v3451
    %v3828 = vunpack.c.h.b16 %v3451
    %v3829 = vunpack.c.l.b16 %v3452
    %v3830 = vunpack.c.h.b16 %v3452
    %v3831 = vunpack.c.l.b16 %v3453
    %v3832 = vunpack.c.h.b16 %v3453
    %v3833 = vunpack.c.l.b16 %v3454
    %v3834 = vunpack.c.h.b16 %v3454
    %v3835 = vunpack.c.l.b16 %v3455
    %v3836 = vunpack.c.h.b16 %v3455
    %v3837 = vunpack.c.l.b16 %v3456
    %v3838 = vunpack.c.h.b16 %v3456
    %v3839 = vunpack.c.l.b16 %v3457
    %v3840 = vunpack.c.h.b16 %v3457
    %v3841 = vunpack.c.l.b16 %v3458
    %v3842 = vunpack.c.h.b16 %v3458
    %v3843 = vunpack.c.l.b16 %v3459
    %v3844 = vunpack.c.h.b16 %v3459
    %v3845 = vunpack.c.l.b16 %v3460
    %v3846 = vunpack.c.h.b16 %v3460
    %v3847 = vunpack.c.l.b16 %v3461
    %v3848 = vunpack.c.h.b16 %v3461
    %v3849 = vunpack.c.l.b16 %v3462
    %v3850 = vunpack.c.h.b16 %v3462
    %v3851 = vunpack.c.l.b16 %v3463
    %v3852 = vunpack.c.h.b16 %v3463
    %v3853 = vunpack.c.l.b16 %v3464
    %v3854 = vunpack.c.h.b16 %v3464
    %v3855 = vunpack.c.l.b16 %v3465
    %v3856 = vunpack.c.h.b16 %v3465
    %v3857 = vunpack.c.l.b16 %v3466
    %v3858 = vunpack.c.h.b16 %v3466
    %v3859 = vunpack.c.l.b16 %v3467
    %v3860 = vunpack.c.h.b16 %v3467
    %v3861 = vunpack.c.l.b16 %v3468
    %v3862 = vunpack.c.h.b16 %v3468
    %v3863 = vunpack.c.l.b16 %v3469
    %v3864 = vunpack.c.h.b16 %v3469
    %v3865 = vunpack.c.l.b16 %v3470
    %v3866 = vunpack.c.h.b16 %v3470
    %v3867 = vunpack.c.l.b16 %v3471
    %v3868 = vunpack.c.h.b16 %v3471
    %v3869 = vunpack.c.l.b16 %v3472
    %v3870 = vunpack.c.h.b16 %v3472
    %v3871 = vunpack.c.l.b16 %v3473
    %v3872 = vunpack.c.h.b16 %v3473
    %v3873 = vunpack.c.l.b16 %v3474
    %v3874 = vunpack.c.h.b16 %v3474
    %v3875 = vunpack.c.l.b16 %v3475
    %v3876 = vunpack.c.h.b16 %v3475
    %v3877 = vunpack.c.l.b16 %v3476
    %v3878 = vunpack.c.h.b16 %v3476
    %v3879 = vunpack.c.l.b16 %v3477
    %v3880 = vunpack.c.h.b16 %v3477
    %v3881 = vunpack.c.l.b16 %v3478
    %v3882 = vunpack.c.h.b16 %v3478
    %v3883 = vunpack.c.l.b16 %v3479
    %v3884 = vunpack.c.h.b16 %v3479
    %v3885 = vunpack.c.l.b16 %v3480
    %v3886 = vunpack.c.h.b16 %v3480
    %v3887 = vunpack.c.l.b16 %v3481
    %v3888 = vunpack.c.h.b16 %v3481
    %v3889 = vunpack.c.l.b16 %v3482
    %v3890 = vunpack.c.h.b16 %v3482
    %v3891 = vunpack.c.l.b16 %v3483
    %v3892 = vunpack.c.h.b16 %v3483
    %v3893 = vunpack.c.l.b16 %v3484
    %v3894 = vunpack.c.h.b16 %v3484
    %v3895 = vunpack.c.l.b16 %v3485
    %v3896 = vunpack.c.h.b16 %v3485
    %v3897 = vunpack.c.l.b16 %v3486
    %v3898 = vunpack.c.h.b16 %v3486
    %v3899 = vunpack.c.l.b16 %v3487
    %v3900 = vunpack.c.h.b16 %v3487
    %v3901 = vunpack.c.l.b16 %v3488
    %v3902 = vunpack.c.h.b16 %v3488
    %v3903 = vunpack.c.l.b16 %v3489
    %v3904 = vunpack.c.h.b16 %v3489
    %v3905 = vunpack.c.l.b16 %v3490
    %v3906 = vunpack.c.h.b16 %v3490
    %v3907 = vunpack.c.l.b16 %v3491
    %v3908 = vunpack.c.h.b16 %v3491
    %v3909 = vunpack.c.l.b16 %v3492
    %v3910 = vunpack.c.h.b16 %v3492
    %v3911 = vunpack.c.l.b16 %v3493
    %v3912 = vunpack.c.h.b16 %v3493
    %v3913 = vunpack.c.l.b16 %v3494
    %v3914 = vunpack.c.h.b16 %v3494
    %v3915 = vunpack.c.l.b16 %v3495
    %v3916 = vunpack.c.h.b16 %v3495
    %v3917 = vunpack.c.l.b16 %v3496
    %v3918 = vunpack.c.h.b16 %v3496
    %v3919 = vunpack.c.l.b16 %v3497
    %v3920 = vunpack.c.h.b16 %v3497
    %v3921 = vunpack.c.l.b16 %v3498
    %v3922 = vunpack.c.h.b16 %v3498
    %v3923 = vunpack.c.l.b16 %v3499
    %v3924 = vunpack.c.h.b16 %v3499
    %v3925 = vunpack.c.l.b16 %v3500
    %v3926 = vunpack.c.h.b16 %v3500
    %v3927 = vunpack.c.l.b16 %v3501
    %v3928 = vunpack.c.h.b16 %v3501
    %v3929 = vunpack.c.l.b16 %v3502
    %v3930 = vunpack.c.h.b16 %v3502
    %v3931 = vpack.c.b16 %v3679, %v3675
    %v3932 = vpack.c.b16 %v3680, %v3676
    %v3933 = vpack.c.b16 %v3681, %v3677
    %v3934 = vpack.c.b16 %v3682, %v3678
    %v3935 = vpack.c.b16 %v3687, %v3683
    %v3936 = vpack.c.b16 %v3688, %v3684
    %v3937 = vpack.c.b16 %v3689, %v3685
    %v3938 = vpack.c.b16 %v3690, %v3686
    %v3939 = vpack.c.b16 %v3695, %v3691
    %v3940 = vpack.c.b16 %v3696, %v3692
    %v3941 = vpack.c.b16 %v3697, %v3693
    %v3942 = vpack.c.b16 %v3698, %v3694
    %v3943 = vpack.c.b16 %v3703, %v3699
    %v3944 = vpack.c.b16 %v3704, %v3700
    %v3945 = vpack.c.b16 %v3705, %v3701
    %v3946 = vpack.c.b16 %v3706, %v3702
    %v3947 = vpack.c.b16 %v3711, %v3707
    %v3948 = vpack.c.b16 %v3712, %v3708
    %v3949 = vpack.c.b16 %v3713, %v3709
    %v3950 = vpack.c.b16 %v3714, %v3710
    %v3951 = vpack.c.b16 %v3719, %v3715
    %v3952 = vpack.c.b16 %v3720, %v3716
    %v3953 = vpack.c.b16 %v3721, %v3717
    %v3954 = vpack.c.b16 %v3722, %v3718
    %v3955 = vpack.c.b16 %v3727, %v3723
    %v3956 = vpack.c.b16 %v3728, %v3724
    %v3957 = vpack.c.b16 %v3729, %v3725
    %v3958 = vpack.c.b16 %v3730, %v3726
    %v3959 = vpack.c.b16 %v3735, %v3731
    %v3960 = vpack.c.b16 %v3736, %v3732
    %v3961 = vpack.c.b16 %v3737, %v3733
    %v3962 = vpack.c.b16 %v3738, %v3734
    %v3963 = vpack.c.b16 %v3743, %v3739
    %v3964 = vpack.c.b16 %v3744, %v3740
    %v3965 = vpack.c.b16 %v3745, %v3741
    %v3966 = vpack.c.b16 %v3746, %v3742
    %v3967 = vpack.c.b16 %v3751, %v3747
    %v3968 = vpack.c.b16 %v3752, %v3748
    %v3969 = vpack.c.b16 %v3753, %v3749
    %v3970 = vpack.c.b16 %v3754, %v3750
    %v3971 = vpack.c.b16 %v3759, %v3755
    %v3972 = vpack.c.b16 %v3760, %v3756
    %v3973 = vpack.c.b16 %v3761, %v3757
    %v3974 = vpack.c.b16 %v3762, %v3758
    %v3975 = vpack.c.b16 %v3767, %v3763
    %v3976 = vpack.c.b16 %v3768, %v3764
    %v3977 = vpack.c.b16 %v3769, %v3765
    %v3978 = vpack.c.b16 %v3770, %v3766
    %v3979 = vpack.c.b16 %v3775, %v3771
    %v3980 = vpack.c.b16 %v3776, %v3772
    %v3981 = vpack.c.b16 %v3777, %v3773
    %v3982 = vpack.c.b16 %v3778, %v3774
    %v3983 = vpack.c.b16 %v3783, %v3779
    %v3984 = vpack.c.b16 %v3784, %v3780
    %v3985 = vpack.c.b16 %v3785, %v3781
    %v3986 = vpack.c.b16 %v3786, %v3782
    %v3987 = vpack.c.b16 %v3791, %v3787
    %v3988 = vpack.c.b16 %v3792, %v3788
    %v3989 = vpack.c.b16 %v3793, %v3789
    %v3990 = vpack.c.b16 %v3794, %v3790
    %v3991 = vpack.c.b16 %v3799, %v3795
    %v3992 = vpack.c.b16 %v3800, %v3796
    %v3993 = vpack.c.b16 %v3801, %v3797
    %v3994 = vpack.c.b16 %v3802, %v3798
    %v3995 = vpack.c.b16 %v3807, %v3803
    %v3996 = vpack.c.b16 %v3808, %v3804
    %v3997 = vpack.c.b16 %v3809, %v3805
    %v3998 = vpack.c.b16 %v3810, %v3806
    %v3999 = vpack.c.b16 %v3815, %v3811
    %v4000 = vpack.c.b16 %v3816, %v3812
    %v4001 = vpack.c.b16 %v3817, %v3813
    %v4002 = vpack.c.b16 %v3818, %v3814
    %v4003 = vpack.c.b16 %v3823, %v3819
    %v4004 = vpack.c.b16 %v3824, %v3820
    %v4005 = vpack.c.b16 %v3825, %v3821
    %v4006 = vpack.c.b16 %v3826, %v3822
    %v4007 = vpack.c.b16 %v3831, %v3827
    %v4008 = vpack.c.b16 %v3832, %v3828
    %v4009 = vpack.c.b16 %v3833, %v3829
    %v4010 = vpack.c.b16 %v3834, %v3830
    %v4011 = vpack.c.b16 %v3839, %v3835
    %v4012 = vpack.c.b16 %v3840, %v3836
    %v4013 = vpack.c.b16 %v3841, %v3837
    %v4014 = vpack.c.b16 %v3842, %v3838
    %v4015 = vpack.c.b16 %v3847, %v3843
    %v4016 = vpack.c.b16 %v3848, %v3844
    %v4017 = vpack.c.b16 %v3849, %v3845
    %v4018 = vpack.c.b16 %v3850, %v3846
    %v4019 = vpack.c.b16 %v3855, %v3851
    %v4020 = vpack.c.b16 %v3856, %v3852
    %v4021 = vpack.c.b16 %v3857, %v3853
    %v4022 = vpack.c.b16 %v3858, %v3854
    %v4023 = vpack.c.b16 %v3863, %v3859
    %v4024 = vpack.c.b16 %v3864, %v3860
    %v4025 = vpack.c.b16 %v3865, %v3861
    %v4026 = vpack.c.b16 %v3866, %v3862
    %v4027 = vpack.c.b16 %v3871, %v3867
    %v4028 = vpack.c.b16 %v3872, %v3868
    %v4029 = vpack.c.b16 %v3873, %v3869
    %v4030 = vpack.c.b16 %v3874, %v3870
    %v4031 = vpack.c.b16 %v3879, %v3875
    %v4032 = vpack.c.b16 %v3880, %v3876
    %v4033 = vpack.c.b16 %v3881, %v3877
    %v4034 = vpack.c.b16 %v3882, %v3878
    %v4035 = vpack.c.b16 %v3887, %v3883
    %v4036 = vpack.c.b16 %v3888, %v3884
    %v4037 = vpack.c.b16 %v3889, %v3885
    %v4038 = vpack.c.b16 %v3890, %v3886
    %v4039 = vpack.c.b16 %v3895, %v3891
    %v4040 = vpack.c.b16 %v3896, %v3892
    %v4041 = vpack.c.b16 %v3897, %v3893
    %v4042 = vpack.c.b16 %v3898, %v3894
    %v4043 = vpack.c.b16 %v3903, %v3899
    %v4044 = vpack.c.b16 %v3904, %v3900
    %v4045 = vpack.c.b16 %v3905, %v3901
    %v4046 = vpack.c.b16 %v3906, %v3902
    %v4047 = vpack.c.b16 %v3911, %v3907
    %v4048 = vpack.c.b16 %v3912, %v3908
    %v4049 = vpack.c.b16 %v3913, %v3909
    %v4050 = vpack.c.b16 %v3914, %v3910
    %v4051 = vpack.c.b16 %v3919, %v3915
    %v4052 = vpack.c.b16 %v3920, %v3916
    %v4053 = vpack.c.b16 %v3921, %v3917
    %v4054 = vpack.c.b16 %v3922, %v3918
    %v4055 = vpack.c.b16 %v3927, %v3923
    %v4056 = vpack.c.b16 %v3928, %v3924
    %v4057 = vpack.c.b16 %v3929, %v3925
    %v4058 = vpack.c.b16 %v3930, %v3926
    %4187 = vmatprep.subr.bf16.mxu0 %v3932
    %4188 = vmatpush1.bf16.msra.mxu0 %v3931
    %4189 = vmatprep.subr.bf16.mxu0 %v3936
    %4190 = vmatpush1.bf16.msra.mxu0 %v3935
    %4191 = vmatprep.subr.bf16.mxu0 %v3940
    %4192 = vmatpush1.bf16.msra.mxu0 %v3939
    %4193 = vmatprep.subr.bf16.mxu0 %v3944
    %4194 = vmatpush1.bf16.msra.mxu0 %v3943
    %4195 = vmatprep.subr.bf16.mxu0 %v3948
    %4196 = vmatpush1.bf16.msra.mxu0 %v3947
    %4197 = vmatprep.subr.bf16.mxu0 %v3952
    %4198 = vmatpush1.bf16.msra.mxu0 %v3951
    %4199 = vmatprep.subr.bf16.mxu0 %v3956
    %4200 = vmatpush1.bf16.msra.mxu0 %v3955
    %4201 = vmatprep.subr.bf16.mxu0 %v3960
    %4202 = vmatpush1.bf16.msra.mxu0 %v3959
    %4203 = vmatprep.subr.bf16.mxu0 %v3964
    %4204 = vmatpush1.bf16.msra.mxu0 %v3963
    %4205 = vmatprep.subr.bf16.mxu0 %v3968
    %4206 = vmatpush1.bf16.msra.mxu0 %v3967
    %4207 = vmatprep.subr.bf16.mxu0 %v3972
    %4208 = vmatpush1.bf16.msra.mxu0 %v3971
    %4209 = vmatprep.subr.bf16.mxu0 %v3976
    %4210 = vmatpush1.bf16.msra.mxu0 %v3975
    %4211 = vmatprep.subr.bf16.mxu0 %v3980
    %4212 = vmatpush1.bf16.msra.mxu0 %v3979
    %4213 = vmatprep.subr.bf16.mxu0 %v3984
    %4214 = vmatpush1.bf16.msra.mxu0 %v3983
    %4215 = vmatprep.subr.bf16.mxu0 %v3988
    %4216 = vmatpush1.bf16.msra.mxu0 %v3987
    %4217 = vmatprep.subr.bf16.mxu0 %v3992
    %4218 = vmatpush1.bf16.msra.mxu0 %v3991
    %4219 = vmatprep.mubr.bf16.mxu0 %v3508
    %4220 = vmatmul.mubr.bf16.gmra.mrb[0].mxu0 %v3505
    %v4221 = vpop.f32.mrb[0].mxu0
    %v4222 = vadd.f32 0.0, %v4221
    %v4223 = vpop.f32.mrb[0].mxu0
    %v4224 = vadd.f32 0.0, %v4223
    %v4225 = vpop.f32.mrb[0].mxu0
    %v4226 = vadd.f32 0.0, %v4225
    %v4227 = vpop.f32.mrb[0].mxu0
    %v4228 = vadd.f32 0.0, %v4227
    %4229 = vmatprep.mubr.bf16.mxu0 %v3518
    %4230 = vmatmul.mubr.bf16.gmra.mrb[0].mxu0 %v3516
    %v4231 = vpop.f32.mrb[0].mxu0
    %v4232 = vadd.f32 0.0, %v4231
    %v4233 = vpop.f32.mrb[0].mxu0
    %v4234 = vadd.f32 0.0, %v4233
    %v4235 = vpop.f32.mrb[0].mxu0
    %v4236 = vadd.f32 0.0, %v4235
    %v4237 = vpop.f32.mrb[0].mxu0
    %v4238 = vadd.f32 0.0, %v4237
    %4239 = vmatprep.mubr.bf16.mxu0 %v3526
    %4240 = vmatmul.mubr.bf16.gmra.mrb[0].mxu0 %v3524
    %v4241 = vpop.f32.mrb[0].mxu0
    %v4242 = vadd.f32 0.0, %v4241
    %v4243 = vpop.f32.mrb[0].mxu0
    %v4244 = vadd.f32 0.0, %v4243
    %v4245 = vpop.f32.mrb[0].mxu0
    %v4246 = vadd.f32 0.0, %v4245
    %v4247 = vpop.f32.mrb[0].mxu0
    %v4248 = vadd.f32 0.0, %v4247
    %4249 = vmatprep.mubr.bf16.mxu0 %v3525
    %4250 = vmatmul.mubr.bf16.gmra.mrb[0].mxu0 %v3523
    %v4251 = vpop.f32.mrb[0].mxu0
    %v4252 = vadd.f32 0.0, %v4251
    %v4253 = vpop.f32.mrb[0].mxu0
    %v4254 = vadd.f32 0.0, %v4253
    %v4255 = vpop.f32.mrb[0].mxu0
    %v4256 = vpop.f32.mrb[0].mxu0
    %4257 = vdwg.mxu0
    %4258 = vmatprep.subr.bf16.mxu0 %v3996
    %4259 = vmatpush1.bf16.msra.mxu0 %v3995
    %4260 = vmatprep.subr.bf16.mxu0 %v4000
    %4261 = vmatpush1.bf16.msra.mxu0 %v3999
    %4262 = vmatprep.subr.bf16.mxu0 %v4004
    %4263 = vmatpush1.bf16.msra.mxu0 %v4003
    %4264 = vmatprep.subr.bf16.mxu0 %v4008
    %4265 = vmatpush1.bf16.msra.mxu0 %v4007
    %4266 = vmatprep.subr.bf16.mxu0 %v4012
    %4267 = vmatpush1.bf16.msra.mxu0 %v4011
    %4268 = vmatprep.subr.bf16.mxu0 %v4016
    %4269 = vmatpush1.bf16.msra.mxu0 %v4015
    %4270 = vmatprep.subr.bf16.mxu0 %v4020
    %4271 = vmatpush1.bf16.msra.mxu0 %v4019
    %4272 = vmatprep.subr.bf16.mxu0 %v4024
    %4273 = vmatpush1.bf16.msra.mxu0 %v4023
    %4274 = vmatprep.subr.bf16.mxu0 %v4028
    %4275 = vmatpush1.bf16.msra.mxu0 %v4027
    %4276 = vmatprep.subr.bf16.mxu0 %v4032
    %4277 = vmatpush1.bf16.msra.mxu0 %v4031
    %4278 = vmatprep.subr.bf16.mxu0 %v4036
    %4279 = vmatpush1.bf16.msra.mxu0 %v4035
    %4280 = vmatprep.subr.bf16.mxu0 %v4040
    %4281 = vmatpush1.bf16.msra.mxu0 %v4039
    %4282 = vmatprep.subr.bf16.mxu0 %v4044
    %4283 = vmatpush1.bf16.msra.mxu0 %v4043
    %4284 = vmatprep.subr.bf16.mxu0 %v4048
    %4285 = vmatpush1.bf16.msra.mxu0 %v4047
    %4286 = vmatprep.subr.bf16.mxu0 %v4052
    %4287 = vmatpush1.bf16.msra.mxu0 %v4051
    %4288 = vmatprep.subr.bf16.mxu0 %v4056
    %4289 = vmatpush1.bf16.msra.mxu0 %v4055
    %4290 = vmatprep.mubr.bf16.mxu0 %v3514
    %4291 = vmatmul.mubr.bf16.gmra.mrb[0].mxu0 %v3511
    %v4292 = vpop.f32.mrb[0].mxu0
    %v4293 = vadd.f32 %v4222, %v4292
    %v4294 = vpop.f32.mrb[0].mxu0
    %v4295 = vadd.f32 %v4224, %v4294
    %v4296 = vpop.f32.mrb[0].mxu0
    %v4297 = vadd.f32 %v4226, %v4296
    %v4298 = vpop.f32.mrb[0].mxu0
    %v4299 = vadd.f32 %v4228, %v4298
    %4300 = vmatprep.mubr.bf16.mxu0 %v3522
    %4301 = vmatmul.mubr.bf16.gmra.mrb[0].mxu0 %v3520
    %v4302 = vpop.f32.mrb[0].mxu0
    %v4303 = vadd.f32 %v4232, %v4302
    %v4304 = vpop.f32.mrb[0].mxu0
    %v4305 = vadd.f32 %v4234, %v4304
    %v4306 = vpop.f32.mrb[0].mxu0
    %v4307 = vadd.f32 %v4236, %v4306
    %v4308 = vpop.f32.mrb[0].mxu0
    %v4309 = vadd.f32 %v4238, %v4308
    %4310 = vmatprep.mubr.bf16.mxu0 %v3530
    %4311 = vmatmul.mubr.bf16.gmra.mrb[0].mxu0 %v3528
    %v4312 = vpop.f32.mrb[0].mxu0
    %v4313 = vadd.f32 %v4242, %v4312
    %v4314 = vpop.f32.mrb[0].mxu0
    %v4315 = vadd.f32 %v4244, %v4314
    %v4316 = vpop.f32.mrb[0].mxu0
    %v4317 = vadd.f32 %v4246, %v4316
    %v4318 = vpop.f32.mrb[0].mxu0
    %v4319 = vadd.f32 %v4248, %v4318
    %4320 = vmatprep.mubr.bf16.mxu0 %v3529
    %4321 = vmatmul.mubr.bf16.gmra.mrb[0].mxu0 %v3527
    %v4322 = vpop.f32.mrb[0].mxu0
    %v4323 = vadd.f32 %v4252, %v4322
    %v4324 = vpop.f32.mrb[0].mxu0
    %v4325 = vadd.f32 %v4254, %v4324
    %v4326 = vpop.f32.mrb[0].mxu0
    %v4327 = vpop.f32.mrb[0].mxu0
    %4328 = vdwg.mxu0
    %4329 = vmatprep.subr.bf16.mxu0 %v3934
    %4330 = vmatpush1.bf16.msra.mxu0 %v3933
    %4331 = vmatprep.subr.bf16.mxu0 %v3938
    %4332 = vmatpush1.bf16.msra.mxu0 %v3937
    %4333 = vmatprep.subr.bf16.mxu0 %v3942
    %4334 = vmatpush1.bf16.msra.mxu0 %v3941
    %4335 = vmatprep.subr.bf16.mxu0 %v3946
    %4336 = vmatpush1.bf16.msra.mxu0 %v3945
    %4337 = vmatprep.subr.bf16.mxu0 %v3950
    %4338 = vmatpush1.bf16.msra.mxu0 %v3949
    %4339 = vmatprep.subr.bf16.mxu0 %v3954
    %4340 = vmatpush1.bf16.msra.mxu0 %v3953
    %4341 = vmatprep.subr.bf16.mxu0 %v3958
    %4342 = vmatpush1.bf16.msra.mxu0 %v3957
    %4343 = vmatprep.subr.bf16.mxu0 %v3962
    %4344 = vmatpush1.bf16.msra.mxu0 %v3961
    %4345 = vmatprep.subr.bf16.mxu0 %v3966
    %4346 = vmatpush1.bf16.msra.mxu0 %v3965
    %4347 = vmatprep.subr.bf16.mxu0 %v3970
    %4348 = vmatpush1.bf16.msra.mxu0 %v3969
    %4349 = vmatprep.subr.bf16.mxu0 %v3974
    %4350 = vmatpush1.bf16.msra.mxu0 %v3973
    %4351 = vmatprep.subr.bf16.mxu0 %v3978
    %4352 = vmatpush1.bf16.msra.mxu0 %v3977
    %4353 = vmatprep.subr.bf16.mxu0 %v3982
    %4354 = vmatpush1.bf16.msra.mxu0 %v3981
    %4355 = vmatprep.subr.bf16.mxu0 %v3986
    %4356 = vmatpush1.bf16.msra.mxu0 %v3985
    %4357 = vmatprep.subr.bf16.mxu0 %v3990
    %4358 = vmatpush1.bf16.msra.mxu0 %v3989
    %4359 = vmatprep.subr.bf16.mxu0 %v3994
    %4360 = vmatpush1.bf16.msra.mxu0 %v3993
    %4361 = vmatprep.mubr.bf16.mxu0 %v3508
    %4362 = vmatmul.mubr.bf16.gmra.mrb[0].mxu0 %v3505
    %v4363 = vpop.f32.mrb[0].mxu0
    %v4364 = vadd.f32 0.0, %v4363
    %v4365 = vpop.f32.mrb[0].mxu0
    %v4366 = vadd.f32 0.0, %v4365
    %v4367 = vpop.f32.mrb[0].mxu0
    %v4368 = vadd.f32 0.0, %v4367
    %v4369 = vpop.f32.mrb[0].mxu0
    %v4370 = vadd.f32 0.0, %v4369
    %4371 = vmatprep.mubr.bf16.mxu0 %v3518
    %4372 = vmatmul.mubr.bf16.gmra.mrb[0].mxu0 %v3516
    %v4373 = vpop.f32.mrb[0].mxu0
    %v4374 = vadd.f32 0.0, %v4373
    %v4375 = vpop.f32.mrb[0].mxu0
    %v4376 = vadd.f32 0.0, %v4375
    %v4377 = vpop.f32.mrb[0].mxu0
    %v4378 = vadd.f32 0.0, %v4377
    %v4379 = vpop.f32.mrb[0].mxu0
    %v4380 = vadd.f32 0.0, %v4379
    %4381 = vmatprep.mubr.bf16.mxu0 %v3526
    %4382 = vmatmul.mubr.bf16.gmra.mrb[0].mxu0 %v3524
    %v4383 = vpop.f32.mrb[0].mxu0
    %v4384 = vadd.f32 0.0, %v4383
    %v4385 = vpop.f32.mrb[0].mxu0
    %v4386 = vadd.f32 0.0, %v4385
    %v4387 = vpop.f32.mrb[0].mxu0
    %v4388 = vadd.f32 0.0, %v4387
    %v4389 = vpop.f32.mrb[0].mxu0
    %v4390 = vadd.f32 0.0, %v4389
    %4391 = vmatprep.mubr.bf16.mxu0 %v3525
    %4392 = vmatmul.mubr.bf16.gmra.mrb[0].mxu0 %v3523
    %v4393 = vpop.f32.mrb[0].mxu0
    %v4394 = vadd.f32 0.0, %v4393
    %v4395 = vpop.f32.mrb[0].mxu0
    %v4396 = vadd.f32 0.0, %v4395
    %v4397 = vpop.f32.mrb[0].mxu0
    %v4398 = vpop.f32.mrb[0].mxu0
    %4399 = vdwg.mxu0
    %4400 = vmatprep.subr.bf16.mxu0 %v3998
    %4401 = vmatpush1.bf16.msra.mxu0 %v3997
    %4402 = vmatprep.subr.bf16.mxu0 %v4002
    %4403 = vmatpush1.bf16.msra.mxu0 %v4001
    %4404 = vmatprep.subr.bf16.mxu0 %v4006
    %4405 = vmatpush1.bf16.msra.mxu0 %v4005
    %4406 = vmatprep.subr.bf16.mxu0 %v4010
    %4407 = vmatpush1.bf16.msra.mxu0 %v4009
    %4408 = vmatprep.subr.bf16.mxu0 %v4014
    %4409 = vmatpush1.bf16.msra.mxu0 %v4013
    %4410 = vmatprep.subr.bf16.mxu0 %v4018
    %4411 = vmatpush1.bf16.msra.mxu0 %v4017
    %4412 = vmatprep.subr.bf16.mxu0 %v4022
    %4413 = vmatpush1.bf16.msra.mxu0 %v4021
    %4414 = vmatprep.subr.bf16.mxu0 %v4026
    %4415 = vmatpush1.bf16.msra.mxu0 %v4025
    %4416 = vmatprep.subr.bf16.mxu0 %v4030
    %4417 = vmatpush1.bf16.msra.mxu0 %v4029
    %4418 = vmatprep.subr.bf16.mxu0 %v4034
    %4419 = vmatpush1.bf16.msra.mxu0 %v4033
    %4420 = vmatprep.subr.bf16.mxu0 %v4038
    %4421 = vmatpush1.bf16.msra.mxu0 %v4037
    %4422 = vmatprep.subr.bf16.mxu0 %v4042
    %4423 = vmatpush1.bf16.msra.mxu0 %v4041
    %4424 = vmatprep.subr.bf16.mxu0 %v4046
    %4425 = vmatpush1.bf16.msra.mxu0 %v4045
    %4426 = vmatprep.subr.bf16.mxu0 %v4050
    %4427 = vmatpush1.bf16.msra.mxu0 %v4049
    %4428 = vmatprep.subr.bf16.mxu0 %v4054
    %4429 = vmatpush1.bf16.msra.mxu0 %v4053
    %4430 = vmatprep.subr.bf16.mxu0 %v4058
    %4431 = vmatpush1.bf16.msra.mxu0 %v4057
    %4432 = vmatprep.mubr.bf16.mxu0 %v3514
    %4433 = vmatmul.mubr.bf16.gmra.mrb[0].mxu0 %v3511
    %v4434 = vpop.f32.mrb[0].mxu0
    %v4435 = vadd.f32 %v4364, %v4434
    %v4436 = vpop.f32.mrb[0].mxu0
    %v4437 = vadd.f32 %v4366, %v4436
    %v4438 = vpop.f32.mrb[0].mxu0
    %v4439 = vadd.f32 %v4368, %v4438
    %v4440 = vpop.f32.mrb[0].mxu0
    %v4441 = vadd.f32 %v4370, %v4440
    %4442 = vmatprep.mubr.bf16.mxu0 %v3522
    %4443 = vmatmul.mubr.bf16.gmra.mrb[0].mxu0 %v3520
    %v4444 = vpop.f32.mrb[0].mxu0
    %v4445 = vadd.f32 %v4374, %v4444
    %v4446 = vpop.f32.mrb[0].mxu0
    %v4447 = vadd.f32 %v4376, %v4446
    %v4448 = vpop.f32.mrb[0].mxu0
    %v4449 = vadd.f32 %v4378, %v4448
    %v4450 = vpop.f32.mrb[0].mxu0
    %v4451 = vadd.f32 %v4380, %v4450
    %4452 = vmatprep.mubr.bf16.mxu0 %v3530
    %4453 = vmatmul.mubr.bf16.gmra.mrb[0].mxu0 %v3528
    %v4454 = vpop.f32.mrb[0].mxu0
    %v4455 = vadd.f32 %v4384, %v4454
    %v4456 = vpop.f32.mrb[0].mxu0
    %v4457 = vadd.f32 %v4386, %v4456
    %v4458 = vpop.f32.mrb[0].mxu0
    %v4459 = vadd.f32 %v4388, %v4458
    %v4460 = vpop.f32.mrb[0].mxu0
    %v4461 = vadd.f32 %v4390, %v4460
    %4462 = vmatprep.mubr.bf16.mxu0 %v3529
    %4463 = vmatmul.mubr.bf16.gmra.mrb[0].mxu0 %v3527
    %v4464 = vpop.f32.mrb[0].mxu0
    %v4465 = vadd.f32 %v4394, %v4464
    %v4466 = vpop.f32.mrb[0].mxu0
    %v4467 = vadd.f32 %v4396, %v4466
    %v4468 = vpop.f32.mrb[0].mxu0
    %v4469 = vpop.f32.mrb[0].mxu0
    %4470 = vdwg.mxu0
    %v4471 = vadd.f32 %v3196, %v4293
    %v4472 = vadd.f32 %v3198, %v4295
    %v4473 = vadd.f32 %v3338, %v4435
    %v4474 = vadd.f32 %v3340, %v4437
    %v4475 = vadd.f32 %v3200, %v4297
    %v4476 = vadd.f32 %v3202, %v4299
    %v4477 = vadd.f32 %v3342, %v4439
    %v4478 = vadd.f32 %v3344, %v4441
    %v4479 = vadd.f32 %v3206, %v4303
    %v4480 = vadd.f32 %v3208, %v4305
    %v4481 = vadd.f32 %v3348, %v4445
    %v4482 = vadd.f32 %v3350, %v4447
    %v4483 = vadd.f32 %v3210, %v4307
    %v4484 = vadd.f32 %v3212, %v4309
    %v4485 = vadd.f32 %v3352, %v4449
    %v4486 = vadd.f32 %v3354, %v4451
    %v4487 = vadd.f32 %v3216, %v4313
    %v4488 = vadd.f32 %v3218, %v4315
    %v4489 = vadd.f32 %v3358, %v4455
    %v4490 = vadd.f32 %v3360, %v4457
    %v4491 = vadd.f32 %v3220, %v4317
    %v4492 = vadd.f32 %v3222, %v4319
    %v4493 = vadd.f32 %v3362, %v4459
    %v4494 = vadd.f32 %v3364, %v4461
    %v4495 = vadd.f32 %v3226, %v4323
    %v4496 = vadd.f32 %v3228, %v4325
    %v4497 = vadd.f32 %v3368, %v4465
    %v4498 = vadd.f32 %v3370, %v4467
    %v4499 = vld [vmem:[#allocation15] sm:$0xf]
    %v4501 = vlaneseq
    %v4502 = vshrl.u32 %v4501, 7
    %v4503 = vsub.s32 0, %v4502
    %v4504 = vrot.slane %v4499, %v4503
    %v4505 = vlaneseq
    %v4506 = vshrl.u32 %v4505, 7
    %v4507 = vsub.s32 1, %v4506
    %v4508 = vrot.slane %v4499, %v4507
    %v4509 = vlaneseq
    %v4510 = vshrl.u32 %v4509, 7
    %v4511 = vsub.s32 2, %v4510
    %v4512 = vrot.slane %v4499, %v4511
    %v4513 = vlaneseq
    %v4514 = vshrl.u32 %v4513, 7
    %v4515 = vsub.s32 3, %v4514
    %v4516 = vrot.slane %v4499, %v4515
    %v4521 = vadd.f32 %v4471, %v4504
    %v4522 = vadd.f32 %v4472, %v4508
    %v4523 = vadd.f32 %v4473, %v4512
    %v4524 = vadd.f32 %v4474, %v4516
    %v4525 = vadd.f32 %v4475, %v4504
    %v4526 = vadd.f32 %v4476, %v4508
    %v4527 = vadd.f32 %v4477, %v4512
    %v4528 = vadd.f32 %v4478, %v4516
    %v4529 = vadd.f32 %v4479, %v4504
    %v4530 = vadd.f32 %v4480, %v4508
    %v4531 = vadd.f32 %v4481, %v4512
    %v4532 = vadd.f32 %v4482, %v4516
    %v4533 = vadd.f32 %v4483, %v4504
    %v4534 = vadd.f32 %v4484, %v4508
    %v4535 = vadd.f32 %v4485, %v4512
    %v4536 = vadd.f32 %v4486, %v4516
    %v4537 = vadd.f32 %v4487, %v4504
    %v4538 = vadd.f32 %v4488, %v4508
    %v4539 = vadd.f32 %v4489, %v4512
    %v4540 = vadd.f32 %v4490, %v4516
    %v4541 = vadd.f32 %v4491, %v4504
    %v4542 = vadd.f32 %v4492, %v4508
    %v4543 = vadd.f32 %v4493, %v4512
    %v4544 = vadd.f32 %v4494, %v4516
    %v4545 = vadd.f32 %v4495, %v4504
    %v4546 = vadd.f32 %v4496, %v4508
    %v4547 = vadd.f32 %v4497, %v4512
    %v4548 = vadd.f32 %v4498, %v4516
    %v4549 = vmax.f32 %v4521, 0.0
    %v4550 = vmax.f32 %v4522, 0.0
    %v4551 = vmax.f32 %v4523, 0.0
    %v4552 = vmax.f32 %v4524, 0.0
    %v4553 = vmax.f32 %v4525, 0.0
    %v4554 = vmax.f32 %v4526, 0.0
    %v4555 = vmax.f32 %v4527, 0.0
    %v4556 = vmax.f32 %v4528, 0.0
    %v4557 = vmax.f32 %v4529, 0.0
    %v4558 = vmax.f32 %v4530, 0.0
    %v4559 = vmax.f32 %v4531, 0.0
    %v4560 = vmax.f32 %v4532, 0.0
    %v4561 = vmax.f32 %v4533, 0.0
    %v4562 = vmax.f32 %v4534, 0.0
    %v4563 = vmax.f32 %v4535, 0.0
    %v4564 = vmax.f32 %v4536, 0.0
    %v4565 = vmax.f32 %v4537, 0.0
    %v4566 = vmax.f32 %v4538, 0.0
    %v4567 = vmax.f32 %v4539, 0.0
    %v4568 = vmax.f32 %v4540, 0.0
    %v4569 = vmax.f32 %v4541, 0.0
    %v4570 = vmax.f32 %v4542, 0.0
    %v4571 = vmax.f32 %v4543, 0.0
    %v4572 = vmax.f32 %v4544, 0.0
    %v4573 = vmax.f32 %v4545, 0.0
    %v4574 = vmax.f32 %v4546, 0.0
    %v4575 = vmax.f32 %v4547, 0.0
    %v4576 = vmax.f32 %v4548, 0.0
    %v4577 = vpack.c.bf16 %v4553, %v4549
    %v4578 = vpack.c.bf16 %v4554, %v4550
    %v4579 = vpack.c.bf16 %v4555, %v4551
    %v4580 = vpack.c.bf16 %v4556, %v4552
    %v4581 = vpack.c.bf16 %v4561, %v4557
    %v4582 = vpack.c.bf16 %v4562, %v4558
    %v4583 = vpack.c.bf16 %v4563, %v4559
    %v4584 = vpack.c.bf16 %v4564, %v4560
    %v4585 = vpack.c.bf16 %v4569, %v4565
    %v4586 = vpack.c.bf16 %v4570, %v4566
    %v4587 = vpack.c.bf16 %v4571, %v4567
    %v4588 = vpack.c.bf16 %v4572, %v4568
    %v4589 = vpack.c.bf16 %v4573, %v4573
    %v4590 = vpack.c.bf16 %v4574, %v4574
    %v4591 = vpack.c.bf16 %v4575, %v4575
    %v4592 = vpack.c.bf16 %v4576, %v4576
    %v4593 = vld [vmem:[%s5] sm:$0xf]
    %v4594 = vld [vmem:[%s5 + $0x4] sm:$0xf]
    %v4595 = vld [vmem:[%s5 + $0x8] sm:$0xf]
    %v4596 = vld [vmem:[%s5 + $0xc] sm:$0x3]
    %v4601 = vunpack.c.l.b16 %v4593
    %v4602 = vunpack.c.l.b16 %v4594
    %v4603 = vunpack.c.l.b16 %v4595
    %v4604 = vunpack.c.l.b16 %v4596
    %v4605 = vpack.c.b16 %v4602, %v4601
    %v4606 = vpack.c.b16 %v4604, %v4603
    %vm4607 = vcmask 457728
    %v4609 = vsel %vm4607, %v4605, 0
    %v4612 = vsel %vm4607, %v4606, 0
    %vm4614 = vcmask 1043456
    %v4616 = vsel %vm4614, %v4589, 0
    %v4619 = vsel %vm4614, %v4590, 0
    %v4622 = vsel %vm4614, %v4591, 0
    %v4625 = vsel %vm4614, %v4592, 0
    %4627 = vmatprep.subr.bf16.mxu0 %v4578
    %4628 = vmatpush1.bf16.msra.mxu0 %v4577
    %4629 = vmatprep.subr.bf16.mxu0 %v4582
    %4630 = vmatpush1.bf16.msra.mxu0 %v4581
    %4631 = vmatprep.subr.bf16.mxu0 %v4586
    %4632 = vmatpush1.bf16.msra.mxu0 %v4585
    %4633 = vmatprep.subr.bf16.mxu0 %v4619
    %4634 = vmatpush1.bf16.msra.mxu0 %v4616
    %4635 = vmatprep.subr.bf16.mxu0 0
    %4636 = vmatpush1.bf16.msra.mxu0 0
    %4637 = vmatprep.subr.bf16.mxu0 0
    %4638 = vmatpush1.bf16.msra.mxu0 0
    %4639 = vmatprep.subr.bf16.mxu0 0
    %4640 = vmatpush1.bf16.msra.mxu0 0
    %4641 = vmatprep.subr.bf16.mxu0 0
    %4642 = vmatpush1.bf16.msra.mxu0 0
    %4643 = vmatprep.subr.bf16.mxu0 0
    %4644 = vmatpush1.bf16.msra.mxu0 0
    %4645 = vmatprep.subr.bf16.mxu0 0
    %4646 = vmatpush1.bf16.msra.mxu0 0
    %4647 = vmatprep.subr.bf16.mxu0 0
    %4648 = vmatpush1.bf16.msra.mxu0 0
    %4649 = vmatprep.subr.bf16.mxu0 0
    %4650 = vmatpush1.bf16.msra.mxu0 0
    %4651 = vmatprep.subr.bf16.mxu0 0
    %4652 = vmatpush1.bf16.msra.mxu0 0
    %4653 = vmatprep.subr.bf16.mxu0 0
    %4654 = vmatpush1.bf16.msra.mxu0 0
    %4655 = vmatprep.subr.bf16.mxu0 0
    %4656 = vmatpush1.bf16.msra.mxu0 0
    %4657 = vmatprep.subr.bf16.mxu0 0
    %4658 = vmatpush1.bf16.msra.mxu0 0
    %4659 = vmatprep.mubr.bf16.mxu0 0
    %4660 = vmatmul.mubr.bf16.gmra.mrb[0].mxu0 %v4609
    %v4661 = vpop.f32.mrb[0].mxu0
    %v4662 = vadd.f32 0.0, %v4661
    %v4663 = vpop.f32.mrb[0].mxu0
    %v4664 = vadd.f32 0.0, %v4663
    %v4665 = vpop.f32.mrb[0].mxu0
    %v4666 = vadd.f32 0.0, %v4665
    %v4667 = vpop.f32.mrb[0].mxu0
    %v4668 = vadd.f32 0.0, %v4667
    %4669 = vmatprep.mubr.bf16.mxu0 0
    %4670 = vmatmul.mubr.bf16.gmra.mrb[0].mxu0 %v4612
    %v4671 = vpop.f32.mrb[0].mxu0
    %v4672 = vadd.f32 0.0, %v4671
    %v4673 = vpop.f32.mrb[0].mxu0
    %v4674 = vadd.f32 0.0, %v4673
    %v4675 = vpop.f32.mrb[0].mxu0
    %v4676 = vadd.f32 0.0, %v4675
    %v4677 = vpop.f32.mrb[0].mxu0
    %v4678 = vadd.f32 0.0, %v4677
    %4679 = vdwg.mxu0
    %4680 = vmatprep.subr.bf16.mxu0 %v4580
    %4681 = vmatpush1.bf16.msra.mxu0 %v4579
    %4682 = vmatprep.subr.bf16.mxu0 %v4584
    %4683 = vmatpush1.bf16.msra.mxu0 %v4583
    %4684 = vmatprep.subr.bf16.mxu0 %v4588
    %4685 = vmatpush1.bf16.msra.mxu0 %v4587
    %4686 = vmatprep.subr.bf16.mxu0 %v4625
    %4687 = vmatpush1.bf16.msra.mxu0 %v4622
    %4688 = vmatprep.subr.bf16.mxu0 0
    %4689 = vmatpush1.bf16.msra.mxu0 0
    %4690 = vmatprep.subr.bf16.mxu0 0
    %4691 = vmatpush1.bf16.msra.mxu0 0
    %4692 = vmatprep.subr.bf16.mxu0 0
    %4693 = vmatpush1.bf16.msra.mxu0 0
    %4694 = vmatprep.subr.bf16.mxu0 0
    %4695 = vmatpush1.bf16.msra.mxu0 0
    %4696 = vmatprep.subr.bf16.mxu0 0
    %4697 = vmatpush1.bf16.msra.mxu0 0
    %4698 = vmatprep.subr.bf16.mxu0 0
    %4699 = vmatpush1.bf16.msra.mxu0 0
    %4700 = vmatprep.subr.bf16.mxu0 0
    %4701 = vmatpush1.bf16.msra.mxu0 0
    %4702 = vmatprep.subr.bf16.mxu0 0
    %4703 = vmatpush1.bf16.msra.mxu0 0
    %4704 = vmatprep.subr.bf16.mxu0 0
    %4705 = vmatpush1.bf16.msra.mxu0 0
    %4706 = vmatprep.subr.bf16.mxu0 0
    %4707 = vmatpush1.bf16.msra.mxu0 0
    %4708 = vmatprep.subr.bf16.mxu0 0
    %4709 = vmatpush1.bf16.msra.mxu0 0
    %4710 = vmatprep.subr.bf16.mxu0 0
    %4711 = vmatpush1.bf16.msra.mxu0 0
    %4712 = vmatprep.mubr.bf16.mxu0 0
    %4713 = vmatmul.mubr.bf16.gmra.mrb[0].mxu0 %v4609
    %v4714 = vpop.f32.mrb[0].mxu0
    %v4715 = vadd.f32 0.0, %v4714
    %v4716 = vpop.f32.mrb[0].mxu0
    %v4717 = vadd.f32 0.0, %v4716
    %v4718 = vpop.f32.mrb[0].mxu0
    %v4719 = vadd.f32 0.0, %v4718
    %v4720 = vpop.f32.mrb[0].mxu0
    %v4721 = vadd.f32 0.0, %v4720
    %4722 = vmatprep.mubr.bf16.mxu0 0
    %4723 = vmatmul.mubr.bf16.gmra.mrb[0].mxu0 %v4612
    %v4724 = vpop.f32.mrb[0].mxu0
    %v4725 = vadd.f32 0.0, %v4724
    %v4726 = vpop.f32.mrb[0].mxu0
    %v4727 = vadd.f32 0.0, %v4726
    %v4728 = vpop.f32.mrb[0].mxu0
    %v4729 = vadd.f32 0.0, %v4728
    %v4730 = vpop.f32.mrb[0].mxu0
    %v4731 = vadd.f32 0.0, %v4730
    %4732 = vdwg.mxu0
    %s4733 = scalar_lea.vmem %s5, 16
    %v4734 = vld [vmem:[%s4733] sm:$0xf]
    %v4735 = vld [vmem:[%s4733 + $0x4] sm:$0xf]
    %v4736 = vld [vmem:[%s4733 + $0x8] sm:$0xf]
    %v4737 = vld [vmem:[%s4733 + $0xc] sm:$0x3]
    %v4742 = vunpack.c.l.b16 %v4734
    %v4743 = vunpack.c.l.b16 %v4735
    %v4744 = vunpack.c.l.b16 %v4736
    %v4745 = vunpack.c.l.b16 %v4737
    %v4746 = vpack.c.b16 %v4743, %v4742
    %v4747 = vpack.c.b16 %v4745, %v4744
    %v4749 = vsel %vm4607, %v4746, 0
    %v4752 = vsel %vm4607, %v4747, 0
    %4754 = vmatprep.subr.bf16.mxu0 %v4578
    %4755 = vmatpush1.bf16.msra.mxu0 %v4577
    %4756 = vmatprep.subr.bf16.mxu0 %v4582
    %4757 = vmatpush1.bf16.msra.mxu0 %v4581
    %4758 = vmatprep.subr.bf16.mxu0 %v4586
    %4759 = vmatpush1.bf16.msra.mxu0 %v4585
    %4760 = vmatprep.subr.bf16.mxu0 %v4619
    %4761 = vmatpush1.bf16.msra.mxu0 %v4616
    %4762 = vmatprep.subr.bf16.mxu0 0
    %4763 = vmatpush1.bf16.msra.mxu0 0
    %4764 = vmatprep.subr.bf16.mxu0 0
    %4765 = vmatpush1.bf16.msra.mxu0 0
    %4766 = vmatprep.subr.bf16.mxu0 0
    %4767 = vmatpush1.bf16.msra.mxu0 0
    %4768 = vmatprep.subr.bf16.mxu0 0
    %4769 = vmatpush1.bf16.msra.mxu0 0
    %4770 = vmatprep.subr.bf16.mxu0 0
    %4771 = vmatpush1.bf16.msra.mxu0 0
    %4772 = vmatprep.subr.bf16.mxu0 0
    %4773 = vmatpush1.bf16.msra.mxu0 0
    %4774 = vmatprep.subr.bf16.mxu0 0
    %4775 = vmatpush1.bf16.msra.mxu0 0
    %4776 = vmatprep.subr.bf16.mxu0 0
    %4777 = vmatpush1.bf16.msra.mxu0 0
    %4778 = vmatprep.subr.bf16.mxu0 0
    %4779 = vmatpush1.bf16.msra.mxu0 0
    %4780 = vmatprep.subr.bf16.mxu0 0
    %4781 = vmatpush1.bf16.msra.mxu0 0
    %4782 = vmatprep.subr.bf16.mxu0 0
    %4783 = vmatpush1.bf16.msra.mxu0 0
    %4784 = vmatprep.subr.bf16.mxu0 0
    %4785 = vmatpush1.bf16.msra.mxu0 0
    %4786 = vmatprep.mubr.bf16.mxu0 0
    %4787 = vmatmul.mubr.bf16.gmra.mrb[0].mxu0 %v4749
    %v4788 = vpop.f32.mrb[0].mxu0
    %v4789 = vadd.f32 0.0, %v4788
    %v4790 = vpop.f32.mrb[0].mxu0
    %v4791 = vadd.f32 0.0, %v4790
    %v4792 = vpop.f32.mrb[0].mxu0
    %v4793 = vadd.f32 0.0, %v4792
    %v4794 = vpop.f32.mrb[0].mxu0
    %v4795 = vadd.f32 0.0, %v4794
    %4796 = vmatprep.mubr.bf16.mxu0 0
    %4797 = vmatmul.mubr.bf16.gmra.mrb[0].mxu0 %v4752
    %v4798 = vpop.f32.mrb[0].mxu0
    %v4799 = vadd.f32 0.0, %v4798
    %v4800 = vpop.f32.mrb[0].mxu0
    %v4801 = vadd.f32 0.0, %v4800
    %v4802 = vpop.f32.mrb[0].mxu0
    %v4803 = vadd.f32 0.0, %v4802
    %v4804 = vpop.f32.mrb[0].mxu0
    %v4805 = vadd.f32 0.0, %v4804
    %4806 = vdwg.mxu0
    %4807 = vmatprep.subr.bf16.mxu0 %v4580
    %4808 = vmatpush1.bf16.msra.mxu0 %v4579
    %4809 = vmatprep.subr.bf16.mxu0 %v4584
    %4810 = vmatpush1.bf16.msra.mxu0 %v4583
    %4811 = vmatprep.subr.bf16.mxu0 %v4588
    %4812 = vmatpush1.bf16.msra.mxu0 %v4587
    %4813 = vmatprep.subr.bf16.mxu0 %v4625
    %4814 = vmatpush1.bf16.msra.mxu0 %v4622
    %4815 = vmatprep.subr.bf16.mxu0 0
    %4816 = vmatpush1.bf16.msra.mxu0 0
    %4817 = vmatprep.subr.bf16.mxu0 0
    %4818 = vmatpush1.bf16.msra.mxu0 0
    %4819 = vmatprep.subr.bf16.mxu0 0
    %4820 = vmatpush1.bf16.msra.mxu0 0
    %4821 = vmatprep.subr.bf16.mxu0 0
    %4822 = vmatpush1.bf16.msra.mxu0 0
    %4823 = vmatprep.subr.bf16.mxu0 0
    %4824 = vmatpush1.bf16.msra.mxu0 0
    %4825 = vmatprep.subr.bf16.mxu0 0
    %4826 = vmatpush1.bf16.msra.mxu0 0
    %4827 = vmatprep.subr.bf16.mxu0 0
    %4828 = vmatpush1.bf16.msra.mxu0 0
    %4829 = vmatprep.subr.bf16.mxu0 0
    %4830 = vmatpush1.bf16.msra.mxu0 0
    %4831 = vmatprep.subr.bf16.mxu0 0
    %4832 = vmatpush1.bf16.msra.mxu0 0
    %4833 = vmatprep.subr.bf16.mxu0 0
    %4834 = vmatpush1.bf16.msra.mxu0 0
    %4835 = vmatprep.subr.bf16.mxu0 0
    %4836 = vmatpush1.bf16.msra.mxu0 0
    %4837 = vmatprep.subr.bf16.mxu0 0
    %4838 = vmatpush1.bf16.msra.mxu0 0
    %4839 = vmatprep.mubr.bf16.mxu0 0
    %4840 = vmatmul.mubr.bf16.gmra.mrb[0].mxu0 %v4749
    %v4841 = vpop.f32.mrb[0].mxu0
    %v4842 = vadd.f32 0.0, %v4841
    %v4843 = vpop.f32.mrb[0].mxu0
    %v4844 = vadd.f32 0.0, %v4843
    %v4845 = vpop.f32.mrb[0].mxu0
    %v4846 = vadd.f32 0.0, %v4845
    %v4847 = vpop.f32.mrb[0].mxu0
    %v4848 = vadd.f32 0.0, %v4847
    %4849 = vmatprep.mubr.bf16.mxu0 0
    %4850 = vmatmul.mubr.bf16.gmra.mrb[0].mxu0 %v4752
    %v4851 = vpop.f32.mrb[0].mxu0
    %v4852 = vadd.f32 0.0, %v4851
    %v4853 = vpop.f32.mrb[0].mxu0
    %v4854 = vadd.f32 0.0, %v4853
    %v4855 = vpop.f32.mrb[0].mxu0
    %v4856 = vadd.f32 0.0, %v4855
    %v4857 = vpop.f32.mrb[0].mxu0
    %v4858 = vadd.f32 0.0, %v4857
    %4859 = vdwg.mxu0
    %v4860 = vmax.f32 %v4662, %v4789
    %v4861 = vmax.f32 %v4664, %v4791
    %v4862 = vmax.f32 %v4715, %v4842
    %v4863 = vmax.f32 %v4717, %v4844
    %v4864 = vmax.f32 %v4666, %v4793
    %v4865 = vmax.f32 %v4668, %v4795
    %v4866 = vmax.f32 %v4719, %v4846
    %v4867 = vmax.f32 %v4721, %v4848
    %v4868 = vmax.f32 %v4672, %v4799
    %v4869 = vmax.f32 %v4674, %v4801
    %v4870 = vmax.f32 %v4725, %v4852
    %v4871 = vmax.f32 %v4727, %v4854
    %v4872 = vmax.f32 %v4676, %v4803
    %v4873 = vmax.f32 %v4678, %v4805
    %v4874 = vmax.f32 %v4729, %v4856
    %v4875 = vmax.f32 %v4731, %v4858
    %v4876 = vmax.f32 %v4860, %v4862
    %v4877 = vmax.f32 %v4861, %v4863
    %v4878 = vmax.f32 %v4864, %v4866
    %v4879 = vmax.f32 %v4865, %v4867
    %v4880 = vmax.f32 %v4868, %v4870
    %v4881 = vmax.f32 %v4869, %v4871
    %v4882 = vmax.f32 %v4872, %v4874
    %v4883 = vmax.f32 %v4873, %v4875
    %v4884 = vpack.c.bf16 %v4878, %v4876
    %v4885 = vpack.c.bf16 %v4879, %v4877
    %v4886 = vpack.c.bf16 %v4882, %v4880
    %v4887 = vpack.c.bf16 %v4883, %v4881
    %v4892 = vrot.slane %v4884, 7
    %v4893 = vrot.slane %v4885, 7
    %v4894 = vrot.slane %v4886, 7
    %v4895 = vsel %vm1050, %v4892, %v4894
    %v4896 = vrot.slane %v4887, 7
    %v4897 = vsel %vm1050, %v4893, %v4896
    %4902 = vst [vmem:[#allocation3] sm:$0xfe] %v4892
    %4903 = vst [vmem:[#allocation3 + $0x8] sm:$0xfe] %v4893
    %4904 = vst [vmem:[#allocation3 + $0x10] sm:$0x7f] %v4895
    %4905 = vst [vmem:[#allocation3 + $0x18] sm:$0x7f] %v4897
    %s4906 = smul.u32 4, 3
    %s4907 = smul.u32 %s4906, 32
    %s4908 = smul.u32 %s4907, 4
    %s4909 = sshll.u32 %s4908, 4
    %4910 = dma.done [#allocation8], %s4909
    %v4911 = vld [vmem:[#allocation3] sm:$0xff]
    %v4912 = vld [vmem:[#allocation3 + $0x8] sm:$0xff]
    %v4913 = vld [vmem:[#allocation3 + $0x10] sm:$0xff]
    %v4914 = vld [vmem:[#allocation3 + $0x18] sm:$0xff]
    %v4915 = vld [vmem:[#allocation5] sm:$0xff]
    %v4916 = vld [vmem:[#allocation5 + $0x8] sm:$0xff]
    %v4917 = vld [vmem:[#allocation5 + $0x10] sm:$0xff]
    %v4918 = vld [vmem:[#allocation5 + $0x18] sm:$0xff]
    %v4919 = vld [vmem:[#allocation5 + $0x20] sm:$0xff]
    %v4920 = vld [vmem:[#allocation5 + $0x28] sm:$0xff]
    %v4921 = vld [vmem:[#allocation5 + $0x30] sm:$0xff]
    %v4922 = vld [vmem:[#allocation5 + $0x38] sm:$0xff]
    %v4923 = vld [vmem:[#allocation5 + $0x40] sm:$0xff]
    %v4924 = vld [vmem:[#allocation5 + $0x48] sm:$0xff]
    %v4925 = vld [vmem:[#allocation5 + $0x50] sm:$0xff]
    %v4926 = vld [vmem:[#allocation5 + $0x58] sm:$0xff]
    %v4927 = vld [vmem:[#allocation5 + $0x60] sm:$0xff]
    %v4928 = vld [vmem:[#allocation5 + $0x68] sm:$0xff]
    %v4929 = vld [vmem:[#allocation5 + $0x70] sm:$0xff]
    %v4930 = vld [vmem:[#allocation5 + $0x78] sm:$0xff]
    %v4931 = vld [vmem:[#allocation5 + $0x80] sm:$0xff]
    %v4932 = vld [vmem:[#allocation5 + $0x88] sm:$0xff]
    %v4933 = vld [vmem:[#allocation5 + $0x90] sm:$0xff]
    %v4934 = vld [vmem:[#allocation5 + $0x98] sm:$0xff]
    %v4935 = vld [vmem:[#allocation5 + $0xa0] sm:$0xff]
    %v4936 = vld [vmem:[#allocation5 + $0xa8] sm:$0xff]
    %v4937 = vld [vmem:[#allocation5 + $0xb0] sm:$0xff]
    %v4938 = vld [vmem:[#allocation5 + $0xb8] sm:$0xff]
    %v4939 = vld [vmem:[#allocation5 + $0xc0] sm:$0xff]
    %v4940 = vld [vmem:[#allocation5 + $0xc8] sm:$0xff]
    %v4941 = vld [vmem:[#allocation5 + $0xd0] sm:$0xff]
    %v4942 = vld [vmem:[#allocation5 + $0xd8] sm:$0xff]
    %v4943 = vld [vmem:[#allocation5 + $0xe0] sm:$0xff]
    %v4944 = vld [vmem:[#allocation5 + $0xe8] sm:$0xff]
    %v4945 = vld [vmem:[#allocation5 + $0xf0] sm:$0xff]
    %v4946 = vld [vmem:[#allocation5 + $0xf8] sm:$0xff]
    %v4947 = vld [vmem:[#allocation5 + $0x100] sm:$0xff]
    %v4948 = vld [vmem:[#allocation5 + $0x108] sm:$0xff]
    %v4949 = vld [vmem:[#allocation5 + $0x110] sm:$0xff]
    %v4950 = vld [vmem:[#allocation5 + $0x118] sm:$0xff]
    %v4951 = vld [vmem:[#allocation5 + $0x120] sm:$0xff]
    %v4952 = vld [vmem:[#allocation5 + $0x128] sm:$0xff]
    %v4953 = vld [vmem:[#allocation5 + $0x130] sm:$0xff]
    %v4954 = vld [vmem:[#allocation5 + $0x138] sm:$0xff]
    %v4955 = vld [vmem:[#allocation5 + $0x140] sm:$0xff]
    %v4956 = vld [vmem:[#allocation5 + $0x148] sm:$0xff]
    %v4957 = vld [vmem:[#allocation5 + $0x150] sm:$0xff]
    %v4958 = vld [vmem:[#allocation5 + $0x158] sm:$0xff]
    %v4959 = vld [vmem:[#allocation5 + $0x160] sm:$0xff]
    %v4960 = vld [vmem:[#allocation5 + $0x168] sm:$0xff]
    %v4961 = vld [vmem:[#allocation5 + $0x170] sm:$0xff]
    %v4962 = vld [vmem:[#allocation5 + $0x178] sm:$0xff]
    %v4963 = vld [vmem:[#allocation5 + $0x180] sm:$0xff]
    %v4964 = vld [vmem:[#allocation5 + $0x188] sm:$0xff]
    %v4965 = vld [vmem:[#allocation5 + $0x190] sm:$0xff]
    %v4966 = vld [vmem:[#allocation5 + $0x198] sm:$0xff]
    %v4967 = vld [vmem:[#allocation5 + $0x1a0] sm:$0xff]
    %v4968 = vld [vmem:[#allocation5 + $0x1a8] sm:$0xff]
    %v4969 = vld [vmem:[#allocation5 + $0x1b0] sm:$0xff]
    %v4970 = vld [vmem:[#allocation5 + $0x1b8] sm:$0xff]
    %v4971 = vld [vmem:[#allocation5 + $0x1c0] sm:$0xff]
    %v4972 = vld [vmem:[#allocation5 + $0x1c8] sm:$0xff]
    %v4973 = vld [vmem:[#allocation5 + $0x1d0] sm:$0xff]
    %v4974 = vld [vmem:[#allocation5 + $0x1d8] sm:$0xff]
    %v4975 = vld [vmem:[#allocation5 + $0x1e0] sm:$0xff]
    %v4976 = vld [vmem:[#allocation5 + $0x1e8] sm:$0xff]
    %v4977 = vld [vmem:[#allocation5 + $0x1f0] sm:$0xff]
    %v4978 = vld [vmem:[#allocation5 + $0x1f8] sm:$0xff]
    %s4979 = scalar_lea.vmem [#allocation5], 512
    %v4980 = vld [vmem:[%s4979] sm:$0xff]
    %v4981 = vld [vmem:[%s4979 + $0x8] sm:$0xff]
    %v4982 = vld [vmem:[%s4979 + $0x10] sm:$0xff]
    %v4983 = vld [vmem:[%s4979 + $0x18] sm:$0xff]
    %v4984 = vld [vmem:[%s4979 + $0x20] sm:$0xff]
    %v4985 = vld [vmem:[%s4979 + $0x28] sm:$0xff]
    %v4986 = vld [vmem:[%s4979 + $0x30] sm:$0xff]
    %v4987 = vld [vmem:[%s4979 + $0x38] sm:$0xff]
    %v4988 = vld [vmem:[%s4979 + $0x40] sm:$0xff]
    %v4989 = vld [vmem:[%s4979 + $0x48] sm:$0xff]
    %v4990 = vld [vmem:[%s4979 + $0x50] sm:$0xff]
    %v4991 = vld [vmem:[%s4979 + $0x58] sm:$0xff]
    %v4992 = vld [vmem:[%s4979 + $0x60] sm:$0xff]
    %v4993 = vld [vmem:[%s4979 + $0x68] sm:$0xff]
    %v4994 = vld [vmem:[%s4979 + $0x70] sm:$0xff]
    %v4995 = vld [vmem:[%s4979 + $0x78] sm:$0xff]
    %v4996 = vld [vmem:[%s4979 + $0x80] sm:$0xff]
    %v4997 = vld [vmem:[%s4979 + $0x88] sm:$0xff]
    %v4998 = vld [vmem:[%s4979 + $0x90] sm:$0xff]
    %v4999 = vld [vmem:[%s4979 + $0x98] sm:$0xff]
    %v5000 = vld [vmem:[%s4979 + $0xa0] sm:$0xff]
    %v5001 = vld [vmem:[%s4979 + $0xa8] sm:$0xff]
    %v5002 = vld [vmem:[%s4979 + $0xb0] sm:$0xff]
    %v5003 = vld [vmem:[%s4979 + $0xb8] sm:$0xff]
    %v5004 = vld [vmem:[%s4979 + $0xc0] sm:$0xff]
    %v5005 = vld [vmem:[%s4979 + $0xc8] sm:$0xff]
    %v5006 = vld [vmem:[%s4979 + $0xd0] sm:$0xff]
    %v5007 = vld [vmem:[%s4979 + $0xd8] sm:$0xff]
    %v5008 = vld [vmem:[%s4979 + $0xe0] sm:$0xff]
    %v5009 = vld [vmem:[%s4979 + $0xe8] sm:$0xff]
    %v5010 = vld [vmem:[%s4979 + $0xf0] sm:$0xff]
    %v5011 = vld [vmem:[%s4979 + $0xf8] sm:$0xff]
    %v5012 = vld [vmem:[%s4979 + $0x100] sm:$0xff]
    %v5013 = vld [vmem:[%s4979 + $0x108] sm:$0xff]
    %v5014 = vld [vmem:[%s4979 + $0x110] sm:$0xff]
    %v5015 = vld [vmem:[%s4979 + $0x118] sm:$0xff]
    %v5016 = vld [vmem:[%s4979 + $0x120] sm:$0xff]
    %v5017 = vld [vmem:[%s4979 + $0x128] sm:$0xff]
    %v5018 = vld [vmem:[%s4979 + $0x130] sm:$0xff]
    %v5019 = vld [vmem:[%s4979 + $0x138] sm:$0xff]
    %v5020 = vld [vmem:[%s4979 + $0x140] sm:$0xff]
    %v5021 = vld [vmem:[%s4979 + $0x148] sm:$0xff]
    %v5022 = vld [vmem:[%s4979 + $0x150] sm:$0xff]
    %v5023 = vld [vmem:[%s4979 + $0x158] sm:$0xff]
    %v5024 = vld [vmem:[%s4979 + $0x160] sm:$0xff]
    %v5025 = vld [vmem:[%s4979 + $0x168] sm:$0xff]
    %v5026 = vld [vmem:[%s4979 + $0x170] sm:$0xff]
    %v5027 = vld [vmem:[%s4979 + $0x178] sm:$0xff]
    %v5028 = vld [vmem:[%s4979 + $0x180] sm:$0xff]
    %v5029 = vld [vmem:[%s4979 + $0x188] sm:$0xff]
    %v5030 = vld [vmem:[%s4979 + $0x190] sm:$0xff]
    %v5031 = vld [vmem:[%s4979 + $0x198] sm:$0xff]
    %v5032 = vld [vmem:[%s4979 + $0x1a0] sm:$0xff]
    %v5033 = vld [vmem:[%s4979 + $0x1a8] sm:$0xff]
    %v5034 = vld [vmem:[%s4979 + $0x1b0] sm:$0xff]
    %v5035 = vld [vmem:[%s4979 + $0x1b8] sm:$0xff]
    %v5036 = vld [vmem:[%s4979 + $0x1c0] sm:$0xff]
    %v5037 = vld [vmem:[%s4979 + $0x1c8] sm:$0xff]
    %v5038 = vld [vmem:[%s4979 + $0x1d0] sm:$0xff]
    %v5039 = vld [vmem:[%s4979 + $0x1d8] sm:$0xff]
    %v5040 = vld [vmem:[%s4979 + $0x1e0] sm:$0xff]
    %v5041 = vld [vmem:[%s4979 + $0x1e8] sm:$0xff]
    %v5042 = vld [vmem:[%s4979 + $0x1f0] sm:$0xff]
    %v5043 = vld [vmem:[%s4979 + $0x1f8] sm:$0xff]
    %v5048 = vrot.slane %v4911, 1
    %v5049 = vrot.slane %v4913, 1
    %v5050 = vsel %vm301, %v5048, %v5049
    %v5051 = vrot.slane %v4912, 1
    %v5052 = vrot.slane %v4914, 1
    %v5053 = vsel %vm301, %v5051, %v5052
    %5058 = vmatprep.subr.bf16.mxu0 %v4981
    %5059 = vmatpush1.bf16.msra.mxu0 %v4980
    %5060 = vmatprep.subr.bf16.mxu0 %v4985
    %5061 = vmatpush1.bf16.msra.mxu0 %v4984
    %5062 = vmatprep.subr.bf16.mxu0 %v4989
    %5063 = vmatpush1.bf16.msra.mxu0 %v4988
    %5064 = vmatprep.subr.bf16.mxu0 %v4993
    %5065 = vmatpush1.bf16.msra.mxu0 %v4992
    %5066 = vmatprep.subr.bf16.mxu0 %v4997
    %5067 = vmatpush1.bf16.msra.mxu0 %v4996
    %5068 = vmatprep.subr.bf16.mxu0 %v5001
    %5069 = vmatpush1.bf16.msra.mxu0 %v5000
    %5070 = vmatprep.subr.bf16.mxu0 %v5005
    %5071 = vmatpush1.bf16.msra.mxu0 %v5004
    %5072 = vmatprep.subr.bf16.mxu0 %v5009
    %5073 = vmatpush1.bf16.msra.mxu0 %v5008
    %5074 = vmatprep.subr.bf16.mxu0 %v5013
    %5075 = vmatpush1.bf16.msra.mxu0 %v5012
    %5076 = vmatprep.subr.bf16.mxu0 %v5017
    %5077 = vmatpush1.bf16.msra.mxu0 %v5016
    %5078 = vmatprep.subr.bf16.mxu0 %v5021
    %5079 = vmatpush1.bf16.msra.mxu0 %v5020
    %5080 = vmatprep.subr.bf16.mxu0 %v5025
    %5081 = vmatpush1.bf16.msra.mxu0 %v5024
    %5082 = vmatprep.subr.bf16.mxu0 %v5029
    %5083 = vmatpush1.bf16.msra.mxu0 %v5028
    %5084 = vmatprep.subr.bf16.mxu0 %v5033
    %5085 = vmatpush1.bf16.msra.mxu0 %v5032
    %5086 = vmatprep.subr.bf16.mxu0 %v5037
    %5087 = vmatpush1.bf16.msra.mxu0 %v5036
    %5088 = vmatprep.subr.bf16.mxu0 %v5041
    %5089 = vmatpush1.bf16.msra.mxu0 %v5040
    %5090 = vmatprep.mubr.bf16.mxu0 %v5053
    %5091 = vmatmul.mubr.bf16.gmra.mrb[0].mxu0 %v5050
    %v5092 = vpop.f32.mrb[0].mxu0
    %v5093 = vadd.f32 0.0, %v5092
    %v5094 = vpop.f32.mrb[0].mxu0
    %v5095 = vadd.f32 0.0, %v5094
    %v5096 = vpop.f32.mrb[0].mxu0
    %v5097 = vadd.f32 0.0, %v5096
    %v5098 = vpop.f32.mrb[0].mxu0
    %v5099 = vadd.f32 0.0, %v5098
    %5100 = vmatprep.mubr.bf16.mxu0 %v5052
    %5101 = vmatmul.mubr.bf16.gmra.mrb[0].mxu0 %v5049
    %v5102 = vpop.f32.mrb[0].mxu0
    %v5103 = vadd.f32 0.0, %v5102
    %v5104 = vpop.f32.mrb[0].mxu0
    %v5105 = vadd.f32 0.0, %v5104
    %v5106 = vpop.f32.mrb[0].mxu0
    %v5107 = vadd.f32 0.0, %v5106
    %v5108 = vpop.f32.mrb[0].mxu0
    %v5109 = vadd.f32 0.0, %v5108
    %5110 = vdwg.mxu0
    %5111 = vmatprep.subr.bf16.mxu0 %v4983
    %5112 = vmatpush1.bf16.msra.mxu0 %v4982
    %5113 = vmatprep.subr.bf16.mxu0 %v4987
    %5114 = vmatpush1.bf16.msra.mxu0 %v4986
    %5115 = vmatprep.subr.bf16.mxu0 %v4991
    %5116 = vmatpush1.bf16.msra.mxu0 %v4990
    %5117 = vmatprep.subr.bf16.mxu0 %v4995
    %5118 = vmatpush1.bf16.msra.mxu0 %v4994
    %5119 = vmatprep.subr.bf16.mxu0 %v4999
    %5120 = vmatpush1.bf16.msra.mxu0 %v4998
    %5121 = vmatprep.subr.bf16.mxu0 %v5003
    %5122 = vmatpush1.bf16.msra.mxu0 %v5002
    %5123 = vmatprep.subr.bf16.mxu0 %v5007
    %5124 = vmatpush1.bf16.msra.mxu0 %v5006
    %5125 = vmatprep.subr.bf16.mxu0 %v5011
    %5126 = vmatpush1.bf16.msra.mxu0 %v5010
    %5127 = vmatprep.subr.bf16.mxu0 %v5015
    %5128 = vmatpush1.bf16.msra.mxu0 %v5014
    %5129 = vmatprep.subr.bf16.mxu0 %v5019
    %5130 = vmatpush1.bf16.msra.mxu0 %v5018
    %5131 = vmatprep.subr.bf16.mxu0 %v5023
    %5132 = vmatpush1.bf16.msra.mxu0 %v5022
    %5133 = vmatprep.subr.bf16.mxu0 %v5027
    %5134 = vmatpush1.bf16.msra.mxu0 %v5026
    %5135 = vmatprep.subr.bf16.mxu0 %v5031
    %5136 = vmatpush1.bf16.msra.mxu0 %v5030
    %5137 = vmatprep.subr.bf16.mxu0 %v5035
    %5138 = vmatpush1.bf16.msra.mxu0 %v5034
    %5139 = vmatprep.subr.bf16.mxu0 %v5039
    %5140 = vmatpush1.bf16.msra.mxu0 %v5038
    %5141 = vmatprep.subr.bf16.mxu0 %v5043
    %5142 = vmatpush1.bf16.msra.mxu0 %v5042
    %5143 = vmatprep.mubr.bf16.mxu0 %v5053
    %5144 = vmatmul.mubr.bf16.gmra.mrb[0].mxu0 %v5050
    %v5145 = vpop.f32.mrb[0].mxu0
    %v5146 = vadd.f32 0.0, %v5145
    %v5147 = vpop.f32.mrb[0].mxu0
    %v5148 = vadd.f32 0.0, %v5147
    %v5149 = vpop.f32.mrb[0].mxu0
    %v5150 = vadd.f32 0.0, %v5149
    %v5151 = vpop.f32.mrb[0].mxu0
    %v5152 = vadd.f32 0.0, %v5151
    %5153 = vmatprep.mubr.bf16.mxu0 %v5052
    %5154 = vmatmul.mubr.bf16.gmra.mrb[0].mxu0 %v5049
    %v5155 = vpop.f32.mrb[0].mxu0
    %v5156 = vadd.f32 0.0, %v5155
    %v5157 = vpop.f32.mrb[0].mxu0
    %v5158 = vadd.f32 0.0, %v5157
    %v5159 = vpop.f32.mrb[0].mxu0
    %v5160 = vadd.f32 0.0, %v5159
    %v5161 = vpop.f32.mrb[0].mxu0
    %v5162 = vadd.f32 0.0, %v5161
    %5163 = vdwg.mxu0
    %5164 = vmatprep.subr.bf16.mxu0 %v4916
    %5165 = vmatpush1.bf16.msra.mxu0 %v4915
    %5166 = vmatprep.subr.bf16.mxu0 %v4920
    %5167 = vmatpush1.bf16.msra.mxu0 %v4919
    %5168 = vmatprep.subr.bf16.mxu0 %v4924
    %5169 = vmatpush1.bf16.msra.mxu0 %v4923
    %5170 = vmatprep.subr.bf16.mxu0 %v4928
    %5171 = vmatpush1.bf16.msra.mxu0 %v4927
    %5172 = vmatprep.subr.bf16.mxu0 %v4932
    %5173 = vmatpush1.bf16.msra.mxu0 %v4931
    %5174 = vmatprep.subr.bf16.mxu0 %v4936
    %5175 = vmatpush1.bf16.msra.mxu0 %v4935
    %5176 = vmatprep.subr.bf16.mxu0 %v4940
    %5177 = vmatpush1.bf16.msra.mxu0 %v4939
    %5178 = vmatprep.subr.bf16.mxu0 %v4944
    %5179 = vmatpush1.bf16.msra.mxu0 %v4943
    %5180 = vmatprep.subr.bf16.mxu0 %v4948
    %5181 = vmatpush1.bf16.msra.mxu0 %v4947
    %5182 = vmatprep.subr.bf16.mxu0 %v4952
    %5183 = vmatpush1.bf16.msra.mxu0 %v4951
    %5184 = vmatprep.subr.bf16.mxu0 %v4956
    %5185 = vmatpush1.bf16.msra.mxu0 %v4955
    %5186 = vmatprep.subr.bf16.mxu0 %v4960
    %5187 = vmatpush1.bf16.msra.mxu0 %v4959
    %5188 = vmatprep.subr.bf16.mxu0 %v4964
    %5189 = vmatpush1.bf16.msra.mxu0 %v4963
    %5190 = vmatprep.subr.bf16.mxu0 %v4968
    %5191 = vmatpush1.bf16.msra.mxu0 %v4967
    %5192 = vmatprep.subr.bf16.mxu0 %v4972
    %5193 = vmatpush1.bf16.msra.mxu0 %v4971
    %5194 = vmatprep.subr.bf16.mxu0 %v4976
    %5195 = vmatpush1.bf16.msra.mxu0 %v4975
    %5196 = vmatprep.mubr.bf16.mxu0 %v4912
    %5197 = vmatmul.mubr.bf16.gmra.mrb[0].mxu0 %v4911
    %v5198 = vpop.f32.mrb[0].mxu0
    %v5199 = vadd.f32 %v5093, %v5198
    %v5200 = vpop.f32.mrb[0].mxu0
    %v5201 = vadd.f32 %v5095, %v5200
    %v5202 = vpop.f32.mrb[0].mxu0
    %v5203 = vadd.f32 %v5097, %v5202
    %v5204 = vpop.f32.mrb[0].mxu0
    %v5205 = vadd.f32 %v5099, %v5204
    %5206 = vmatprep.mubr.bf16.mxu0 %v4914
    %5207 = vmatmul.mubr.bf16.gmra.mrb[0].mxu0 %v4913
    %v5208 = vpop.f32.mrb[0].mxu0
    %v5209 = vadd.f32 %v5103, %v5208
    %v5210 = vpop.f32.mrb[0].mxu0
    %v5211 = vadd.f32 %v5105, %v5210
    %v5212 = vpop.f32.mrb[0].mxu0
    %v5213 = vadd.f32 %v5107, %v5212
    %v5214 = vpop.f32.mrb[0].mxu0
    %v5215 = vadd.f32 %v5109, %v5214
    %5216 = vdwg.mxu0
    %5217 = vmatprep.subr.bf16.mxu0 %v4918
    %5218 = vmatpush1.bf16.msra.mxu0 %v4917
    %5219 = vmatprep.subr.bf16.mxu0 %v4922
    %5220 = vmatpush1.bf16.msra.mxu0 %v4921
    %5221 = vmatprep.subr.bf16.mxu0 %v4926
    %5222 = vmatpush1.bf16.msra.mxu0 %v4925
    %5223 = vmatprep.subr.bf16.mxu0 %v4930
    %5224 = vmatpush1.bf16.msra.mxu0 %v4929
    %5225 = vmatprep.subr.bf16.mxu0 %v4934
    %5226 = vmatpush1.bf16.msra.mxu0 %v4933
    %5227 = vmatprep.subr.bf16.mxu0 %v4938
    %5228 = vmatpush1.bf16.msra.mxu0 %v4937
    %5229 = vmatprep.subr.bf16.mxu0 %v4942
    %5230 = vmatpush1.bf16.msra.mxu0 %v4941
    %5231 = vmatprep.subr.bf16.mxu0 %v4946
    %5232 = vmatpush1.bf16.msra.mxu0 %v4945
    %5233 = vmatprep.subr.bf16.mxu0 %v4950
    %5234 = vmatpush1.bf16.msra.mxu0 %v4949
    %5235 = vmatprep.subr.bf16.mxu0 %v4954
    %5236 = vmatpush1.bf16.msra.mxu0 %v4953
    %5237 = vmatprep.subr.bf16.mxu0 %v4958
    %5238 = vmatpush1.bf16.msra.mxu0 %v4957
    %5239 = vmatprep.subr.bf16.mxu0 %v4962
    %5240 = vmatpush1.bf16.msra.mxu0 %v4961
    %5241 = vmatprep.subr.bf16.mxu0 %v4966
    %5242 = vmatpush1.bf16.msra.mxu0 %v4965
    %5243 = vmatprep.subr.bf16.mxu0 %v4970
    %5244 = vmatpush1.bf16.msra.mxu0 %v4969
    %5245 = vmatprep.subr.bf16.mxu0 %v4974
    %5246 = vmatpush1.bf16.msra.mxu0 %v4973
    %5247 = vmatprep.subr.bf16.mxu0 %v4978
    %5248 = vmatpush1.bf16.msra.mxu0 %v4977
    %5249 = vmatprep.mubr.bf16.mxu0 %v4912
    %5250 = vmatmul.mubr.bf16.gmra.mrb[0].mxu0 %v4911
    %v5251 = vpop.f32.mrb[0].mxu0
    %v5252 = vadd.f32 %v5146, %v5251
    %v5253 = vpop.f32.mrb[0].mxu0
    %v5254 = vadd.f32 %v5148, %v5253
    %v5255 = vpop.f32.mrb[0].mxu0
    %v5256 = vadd.f32 %v5150, %v5255
    %v5257 = vpop.f32.mrb[0].mxu0
    %v5258 = vadd.f32 %v5152, %v5257
    %5259 = vmatprep.mubr.bf16.mxu0 %v4914
    %5260 = vmatmul.mubr.bf16.gmra.mrb[0].mxu0 %v4913
    %v5261 = vpop.f32.mrb[0].mxu0
    %v5262 = vadd.f32 %v5156, %v5261
    %v5263 = vpop.f32.mrb[0].mxu0
    %v5264 = vadd.f32 %v5158, %v5263
    %v5265 = vpop.f32.mrb[0].mxu0
    %v5266 = vadd.f32 %v5160, %v5265
    %v5267 = vpop.f32.mrb[0].mxu0
    %v5268 = vadd.f32 %v5162, %v5267
    %5269 = vdwg.mxu0
    %s5270 = scalar_lea.vmem [#allocation5], 1024
    %v5271 = vld [vmem:[%s5270] sm:$0xff]
    %v5272 = vld [vmem:[%s5270 + $0x8] sm:$0xff]
    %v5273 = vld [vmem:[%s5270 + $0x10] sm:$0xff]
    %v5274 = vld [vmem:[%s5270 + $0x18] sm:$0xff]
    %v5275 = vld [vmem:[%s5270 + $0x20] sm:$0xff]
    %v5276 = vld [vmem:[%s5270 + $0x28] sm:$0xff]
    %v5277 = vld [vmem:[%s5270 + $0x30] sm:$0xff]
    %v5278 = vld [vmem:[%s5270 + $0x38] sm:$0xff]
    %v5279 = vld [vmem:[%s5270 + $0x40] sm:$0xff]
    %v5280 = vld [vmem:[%s5270 + $0x48] sm:$0xff]
    %v5281 = vld [vmem:[%s5270 + $0x50] sm:$0xff]
    %v5282 = vld [vmem:[%s5270 + $0x58] sm:$0xff]
    %v5283 = vld [vmem:[%s5270 + $0x60] sm:$0xff]
    %v5284 = vld [vmem:[%s5270 + $0x68] sm:$0xff]
    %v5285 = vld [vmem:[%s5270 + $0x70] sm:$0xff]
    %v5286 = vld [vmem:[%s5270 + $0x78] sm:$0xff]
    %v5287 = vld [vmem:[%s5270 + $0x80] sm:$0xff]
    %v5288 = vld [vmem:[%s5270 + $0x88] sm:$0xff]
    %v5289 = vld [vmem:[%s5270 + $0x90] sm:$0xff]
    %v5290 = vld [vmem:[%s5270 + $0x98] sm:$0xff]
    %v5291 = vld [vmem:[%s5270 + $0xa0] sm:$0xff]
    %v5292 = vld [vmem:[%s5270 + $0xa8] sm:$0xff]
    %v5293 = vld [vmem:[%s5270 + $0xb0] sm:$0xff]
    %v5294 = vld [vmem:[%s5270 + $0xb8] sm:$0xff]
    %v5295 = vld [vmem:[%s5270 + $0xc0] sm:$0xff]
    %v5296 = vld [vmem:[%s5270 + $0xc8] sm:$0xff]
    %v5297 = vld [vmem:[%s5270 + $0xd0] sm:$0xff]
    %v5298 = vld [vmem:[%s5270 + $0xd8] sm:$0xff]
    %v5299 = vld [vmem:[%s5270 + $0xe0] sm:$0xff]
    %v5300 = vld [vmem:[%s5270 + $0xe8] sm:$0xff]
    %v5301 = vld [vmem:[%s5270 + $0xf0] sm:$0xff]
    %v5302 = vld [vmem:[%s5270 + $0xf8] sm:$0xff]
    %v5303 = vld [vmem:[%s5270 + $0x100] sm:$0xff]
    %v5304 = vld [vmem:[%s5270 + $0x108] sm:$0xff]
    %v5305 = vld [vmem:[%s5270 + $0x110] sm:$0xff]
    %v5306 = vld [vmem:[%s5270 + $0x118] sm:$0xff]
    %v5307 = vld [vmem:[%s5270 + $0x120] sm:$0xff]
    %v5308 = vld [vmem:[%s5270 + $0x128] sm:$0xff]
    %v5309 = vld [vmem:[%s5270 + $0x130] sm:$0xff]
    %v5310 = vld [vmem:[%s5270 + $0x138] sm:$0xff]
    %v5311 = vld [vmem:[%s5270 + $0x140] sm:$0xff]
    %v5312 = vld [vmem:[%s5270 + $0x148] sm:$0xff]
    %v5313 = vld [vmem:[%s5270 + $0x150] sm:$0xff]
    %v5314 = vld [vmem:[%s5270 + $0x158] sm:$0xff]
    %v5315 = vld [vmem:[%s5270 + $0x160] sm:$0xff]
    %v5316 = vld [vmem:[%s5270 + $0x168] sm:$0xff]
    %v5317 = vld [vmem:[%s5270 + $0x170] sm:$0xff]
    %v5318 = vld [vmem:[%s5270 + $0x178] sm:$0xff]
    %v5319 = vld [vmem:[%s5270 + $0x180] sm:$0xff]
    %v5320 = vld [vmem:[%s5270 + $0x188] sm:$0xff]
    %v5321 = vld [vmem:[%s5270 + $0x190] sm:$0xff]
    %v5322 = vld [vmem:[%s5270 + $0x198] sm:$0xff]
    %v5323 = vld [vmem:[%s5270 + $0x1a0] sm:$0xff]
    %v5324 = vld [vmem:[%s5270 + $0x1a8] sm:$0xff]
    %v5325 = vld [vmem:[%s5270 + $0x1b0] sm:$0xff]
    %v5326 = vld [vmem:[%s5270 + $0x1b8] sm:$0xff]
    %v5327 = vld [vmem:[%s5270 + $0x1c0] sm:$0xff]
    %v5328 = vld [vmem:[%s5270 + $0x1c8] sm:$0xff]
    %v5329 = vld [vmem:[%s5270 + $0x1d0] sm:$0xff]
    %v5330 = vld [vmem:[%s5270 + $0x1d8] sm:$0xff]
    %v5331 = vld [vmem:[%s5270 + $0x1e0] sm:$0xff]
    %v5332 = vld [vmem:[%s5270 + $0x1e8] sm:$0xff]
    %v5333 = vld [vmem:[%s5270 + $0x1f0] sm:$0xff]
    %v5334 = vld [vmem:[%s5270 + $0x1f8] sm:$0xff]
    %v5335 = vrot.slane %v4911, 2
    %v5336 = vrot.slane %v4913, 2
    %v5337 = vsel %vm680, %v5335, %v5336
    %v5338 = vrot.slane %v4912, 2
    %v5339 = vrot.slane %v4914, 2
    %v5340 = vsel %vm680, %v5338, %v5339
    %5345 = vmatprep.subr.bf16.mxu0 %v5272
    %5346 = vmatpush1.bf16.msra.mxu0 %v5271
    %5347 = vmatprep.subr.bf16.mxu0 %v5276
    %5348 = vmatpush1.bf16.msra.mxu0 %v5275
    %5349 = vmatprep.subr.bf16.mxu0 %v5280
    %5350 = vmatpush1.bf16.msra.mxu0 %v5279
    %5351 = vmatprep.subr.bf16.mxu0 %v5284
    %5352 = vmatpush1.bf16.msra.mxu0 %v5283
    %5353 = vmatprep.subr.bf16.mxu0 %v5288
    %5354 = vmatpush1.bf16.msra.mxu0 %v5287
    %5355 = vmatprep.subr.bf16.mxu0 %v5292
    %5356 = vmatpush1.bf16.msra.mxu0 %v5291
    %5357 = vmatprep.subr.bf16.mxu0 %v5296
    %5358 = vmatpush1.bf16.msra.mxu0 %v5295
    %5359 = vmatprep.subr.bf16.mxu0 %v5300
    %5360 = vmatpush1.bf16.msra.mxu0 %v5299
    %5361 = vmatprep.subr.bf16.mxu0 %v5304
    %5362 = vmatpush1.bf16.msra.mxu0 %v5303
    %5363 = vmatprep.subr.bf16.mxu0 %v5308
    %5364 = vmatpush1.bf16.msra.mxu0 %v5307
    %5365 = vmatprep.subr.bf16.mxu0 %v5312
    %5366 = vmatpush1.bf16.msra.mxu0 %v5311
    %5367 = vmatprep.subr.bf16.mxu0 %v5316
    %5368 = vmatpush1.bf16.msra.mxu0 %v5315
    %5369 = vmatprep.subr.bf16.mxu0 %v5320
    %5370 = vmatpush1.bf16.msra.mxu0 %v5319
    %5371 = vmatprep.subr.bf16.mxu0 %v5324
    %5372 = vmatpush1.bf16.msra.mxu0 %v5323
    %5373 = vmatprep.subr.bf16.mxu0 %v5328
    %5374 = vmatpush1.bf16.msra.mxu0 %v5327
    %5375 = vmatprep.subr.bf16.mxu0 %v5332
    %5376 = vmatpush1.bf16.msra.mxu0 %v5331
    %5377 = vmatprep.mubr.bf16.mxu0 %v5340
    %5378 = vmatmul.mubr.bf16.gmra.mrb[0].mxu0 %v5337
    %v5379 = vpop.f32.mrb[0].mxu0
    %v5380 = vadd.f32 0.0, %v5379
    %v5381 = vpop.f32.mrb[0].mxu0
    %v5382 = vadd.f32 0.0, %v5381
    %v5383 = vpop.f32.mrb[0].mxu0
    %v5384 = vadd.f32 0.0, %v5383
    %v5385 = vpop.f32.mrb[0].mxu0
    %v5386 = vadd.f32 0.0, %v5385
    %5387 = vmatprep.mubr.bf16.mxu0 %v5339
    %5388 = vmatmul.mubr.bf16.gmra.mrb[0].mxu0 %v5336
    %v5389 = vpop.f32.mrb[0].mxu0
    %v5390 = vadd.f32 0.0, %v5389
    %v5391 = vpop.f32.mrb[0].mxu0
    %v5392 = vadd.f32 0.0, %v5391
    %v5393 = vpop.f32.mrb[0].mxu0
    %v5394 = vadd.f32 0.0, %v5393
    %v5395 = vpop.f32.mrb[0].mxu0
    %v5396 = vadd.f32 0.0, %v5395
    %5397 = vdwg.mxu0
    %5398 = vmatprep.subr.bf16.mxu0 %v5274
    %5399 = vmatpush1.bf16.msra.mxu0 %v5273
    %5400 = vmatprep.subr.bf16.mxu0 %v5278
    %5401 = vmatpush1.bf16.msra.mxu0 %v5277
    %5402 = vmatprep.subr.bf16.mxu0 %v5282
    %5403 = vmatpush1.bf16.msra.mxu0 %v5281
    %5404 = vmatprep.subr.bf16.mxu0 %v5286
    %5405 = vmatpush1.bf16.msra.mxu0 %v5285
    %5406 = vmatprep.subr.bf16.mxu0 %v5290
    %5407 = vmatpush1.bf16.msra.mxu0 %v5289
    %5408 = vmatprep.subr.bf16.mxu0 %v5294
    %5409 = vmatpush1.bf16.msra.mxu0 %v5293
    %5410 = vmatprep.subr.bf16.mxu0 %v5298
    %5411 = vmatpush1.bf16.msra.mxu0 %v5297
    %5412 = vmatprep.subr.bf16.mxu0 %v5302
    %5413 = vmatpush1.bf16.msra.mxu0 %v5301
    %5414 = vmatprep.subr.bf16.mxu0 %v5306
    %5415 = vmatpush1.bf16.msra.mxu0 %v5305
    %5416 = vmatprep.subr.bf16.mxu0 %v5310
    %5417 = vmatpush1.bf16.msra.mxu0 %v5309
    %5418 = vmatprep.subr.bf16.mxu0 %v5314
    %5419 = vmatpush1.bf16.msra.mxu0 %v5313
    %5420 = vmatprep.subr.bf16.mxu0 %v5318
    %5421 = vmatpush1.bf16.msra.mxu0 %v5317
    %5422 = vmatprep.subr.bf16.mxu0 %v5322
    %5423 = vmatpush1.bf16.msra.mxu0 %v5321
    %5424 = vmatprep.subr.bf16.mxu0 %v5326
    %5425 = vmatpush1.bf16.msra.mxu0 %v5325
    %5426 = vmatprep.subr.bf16.mxu0 %v5330
    %5427 = vmatpush1.bf16.msra.mxu0 %v5329
    %5428 = vmatprep.subr.bf16.mxu0 %v5334
    %5429 = vmatpush1.bf16.msra.mxu0 %v5333
    %5430 = vmatprep.mubr.bf16.mxu0 %v5340
    %5431 = vmatmul.mubr.bf16.gmra.mrb[0].mxu0 %v5337
    %v5432 = vpop.f32.mrb[0].mxu0
    %v5433 = vadd.f32 0.0, %v5432
    %v5434 = vpop.f32.mrb[0].mxu0
    %v5435 = vadd.f32 0.0, %v5434
    %v5436 = vpop.f32.mrb[0].mxu0
    %v5437 = vadd.f32 0.0, %v5436
    %v5438 = vpop.f32.mrb[0].mxu0
    %v5439 = vadd.f32 0.0, %v5438
    %5440 = vmatprep.mubr.bf16.mxu0 %v5339
    %5441 = vmatmul.mubr.bf16.gmra.mrb[0].mxu0 %v5336
    %v5442 = vpop.f32.mrb[0].mxu0
    %v5443 = vadd.f32 0.0, %v5442
    %v5444 = vpop.f32.mrb[0].mxu0
    %v5445 = vadd.f32 0.0, %v5444
    %v5446 = vpop.f32.mrb[0].mxu0
    %v5447 = vadd.f32 0.0, %v5446
    %v5448 = vpop.f32.mrb[0].mxu0
    %v5449 = vadd.f32 0.0, %v5448
    %5450 = vdwg.mxu0
    %v5451 = vadd.f32 %v5199, %v5380
    %v5452 = vadd.f32 %v5201, %v5382
    %v5453 = vadd.f32 %v5252, %v5433
    %v5454 = vadd.f32 %v5254, %v5435
    %v5455 = vadd.f32 %v5203, %v5384
    %v5456 = vadd.f32 %v5205, %v5386
    %v5457 = vadd.f32 %v5256, %v5437
    %v5458 = vadd.f32 %v5258, %v5439
    %v5459 = vadd.f32 %v5209, %v5390
    %v5460 = vadd.f32 %v5211, %v5392
    %v5461 = vadd.f32 %v5262, %v5443
    %v5462 = vadd.f32 %v5264, %v5445
    %v5463 = vadd.f32 %v5213, %v5394
    %v5464 = vadd.f32 %v5215, %v5396
    %v5465 = vadd.f32 %v5266, %v5447
    %v5466 = vadd.f32 %v5268, %v5449
    %v5467 = vld [vmem:[#allocation17] sm:$0xf]
    %v5469 = vlaneseq
    %v5470 = vshrl.u32 %v5469, 7
    %v5471 = vsub.s32 0, %v5470
    %v5472 = vrot.slane %v5467, %v5471
    %v5473 = vlaneseq
    %v5474 = vshrl.u32 %v5473, 7
    %v5475 = vsub.s32 1, %v5474
    %v5476 = vrot.slane %v5467, %v5475
    %v5477 = vlaneseq
    %v5478 = vshrl.u32 %v5477, 7
    %v5479 = vsub.s32 2, %v5478
    %v5480 = vrot.slane %v5467, %v5479
    %v5481 = vlaneseq
    %v5482 = vshrl.u32 %v5481, 7
    %v5483 = vsub.s32 3, %v5482
    %v5484 = vrot.slane %v5467, %v5483
    %v5489 = vadd.f32 %v5451, %v5472
    %v5490 = vadd.f32 %v5452, %v5476
    %v5491 = vadd.f32 %v5453, %v5480
    %v5492 = vadd.f32 %v5454, %v5484
    %v5493 = vadd.f32 %v5455, %v5472
    %v5494 = vadd.f32 %v5456, %v5476
    %v5495 = vadd.f32 %v5457, %v5480
    %v5496 = vadd.f32 %v5458, %v5484
    %v5497 = vadd.f32 %v5459, %v5472
    %v5498 = vadd.f32 %v5460, %v5476
    %v5499 = vadd.f32 %v5461, %v5480
    %v5500 = vadd.f32 %v5462, %v5484
    %v5501 = vadd.f32 %v5463, %v5472
    %v5502 = vadd.f32 %v5464, %v5476
    %v5503 = vadd.f32 %v5465, %v5480
    %v5504 = vadd.f32 %v5466, %v5484
    %v5505 = vmax.f32 %v5489, 0.0
    %v5506 = vmax.f32 %v5490, 0.0
    %v5507 = vmax.f32 %v5491, 0.0
    %v5508 = vmax.f32 %v5492, 0.0
    %v5509 = vmax.f32 %v5493, 0.0
    %v5510 = vmax.f32 %v5494, 0.0
    %v5511 = vmax.f32 %v5495, 0.0
    %v5512 = vmax.f32 %v5496, 0.0
    %v5513 = vmax.f32 %v5497, 0.0
    %v5514 = vmax.f32 %v5498, 0.0
    %v5515 = vmax.f32 %v5499, 0.0
    %v5516 = vmax.f32 %v5500, 0.0
    %v5517 = vmax.f32 %v5501, 0.0
    %v5518 = vmax.f32 %v5502, 0.0
    %v5519 = vmax.f32 %v5503, 0.0
    %v5520 = vmax.f32 %v5504, 0.0
    %v5521 = vpack.c.bf16 %v5509, %v5505
    %v5522 = vpack.c.bf16 %v5510, %v5506
    %v5523 = vpack.c.bf16 %v5511, %v5507
    %v5524 = vpack.c.bf16 %v5512, %v5508
    %v5525 = vpack.c.bf16 %v5517, %v5513
    %v5526 = vpack.c.bf16 %v5518, %v5514
    %v5527 = vpack.c.bf16 %v5519, %v5515
    %v5528 = vpack.c.bf16 %v5520, %v5516
    %v5537 = vrot.slane %v5521, 7
    %v5538 = vrot.slane %v5522, 7
    %v5539 = vrot.slane %v5523, 7
    %v5540 = vrot.slane %v5524, 7
    %v5541 = vrot.slane %v5525, 7
    %v5542 = vsel %vm1050, %v5537, %v5541
    %v5543 = vrot.slane %v5526, 7
    %v5544 = vsel %vm1050, %v5538, %v5543
    %v5545 = vrot.slane %v5527, 7
    %v5546 = vsel %vm1050, %v5539, %v5545
    %v5547 = vrot.slane %v5528, 7
    %v5548 = vsel %vm1050, %v5540, %v5547
    %5557 = vst [vmem:[#allocation4] sm:$0xfe] %v5537
    %5558 = vst [vmem:[#allocation4 + $0x8] sm:$0xfe] %v5538
    %5559 = vst [vmem:[#allocation4 + $0x10] sm:$0xfe] %v5539
    %5560 = vst [vmem:[#allocation4 + $0x18] sm:$0xfe] %v5540
    %5561 = vst [vmem:[#allocation4 + $0x20] sm:$0x7f] %v5542
    %5562 = vst [vmem:[#allocation4 + $0x28] sm:$0x7f] %v5544
    %5563 = vst [vmem:[#allocation4 + $0x30] sm:$0x7f] %v5546
    %5564 = vst [vmem:[#allocation4 + $0x38] sm:$0x7f] %v5548
    %s5565 = smul.u32 %s4906, 64
    %s5566 = smul.u32 %s5565, 4
    %s5567 = sshll.u32 %s5566, 4
    %5568 = dma.done %s178, %s5567
    %v5569 = vld [vmem:[#allocation4] sm:$0xff]
    %v5570 = vld [vmem:[#allocation4 + $0x8] sm:$0xff]
    %v5571 = vld [vmem:[#allocation4 + $0x10] sm:$0xff]
    %v5572 = vld [vmem:[#allocation4 + $0x18] sm:$0xff]
    %v5573 = vld [vmem:[#allocation4 + $0x20] sm:$0xff]
    %v5574 = vld [vmem:[#allocation4 + $0x28] sm:$0xff]
    %v5575 = vld [vmem:[#allocation4 + $0x30] sm:$0xff]
    %v5576 = vld [vmem:[#allocation4 + $0x38] sm:$0xff]
    %v5577 = vld [vmem:[#allocation6] sm:$0xff]
    %v5578 = vld [vmem:[#allocation6 + $0x8] sm:$0xff]
    %v5579 = vld [vmem:[#allocation6 + $0x10] sm:$0xff]
    %v5580 = vld [vmem:[#allocation6 + $0x18] sm:$0xff]
    %v5581 = vld [vmem:[#allocation6 + $0x20] sm:$0xff]
    %v5582 = vld [vmem:[#allocation6 + $0x28] sm:$0xff]
    %v5583 = vld [vmem:[#allocation6 + $0x30] sm:$0xff]
    %v5584 = vld [vmem:[#allocation6 + $0x38] sm:$0xff]
    %v5585 = vld [vmem:[#allocation6 + $0x40] sm:$0xff]
    %v5586 = vld [vmem:[#allocation6 + $0x48] sm:$0xff]
    %v5587 = vld [vmem:[#allocation6 + $0x50] sm:$0xff]
    %v5588 = vld [vmem:[#allocation6 + $0x58] sm:$0xff]
    %v5589 = vld [vmem:[#allocation6 + $0x60] sm:$0xff]
    %v5590 = vld [vmem:[#allocation6 + $0x68] sm:$0xff]
    %v5591 = vld [vmem:[#allocation6 + $0x70] sm:$0xff]
    %v5592 = vld [vmem:[#allocation6 + $0x78] sm:$0xff]
    %v5593 = vld [vmem:[#allocation6 + $0x80] sm:$0xff]
    %v5594 = vld [vmem:[#allocation6 + $0x88] sm:$0xff]
    %v5595 = vld [vmem:[#allocation6 + $0x90] sm:$0xff]
    %v5596 = vld [vmem:[#allocation6 + $0x98] sm:$0xff]
    %v5597 = vld [vmem:[#allocation6 + $0xa0] sm:$0xff]
    %v5598 = vld [vmem:[#allocation6 + $0xa8] sm:$0xff]
    %v5599 = vld [vmem:[#allocation6 + $0xb0] sm:$0xff]
    %v5600 = vld [vmem:[#allocation6 + $0xb8] sm:$0xff]
    %v5601 = vld [vmem:[#allocation6 + $0xc0] sm:$0xff]
    %v5602 = vld [vmem:[#allocation6 + $0xc8] sm:$0xff]
    %v5603 = vld [vmem:[#allocation6 + $0xd0] sm:$0xff]
    %v5604 = vld [vmem:[#allocation6 + $0xd8] sm:$0xff]
    %v5605 = vld [vmem:[#allocation6 + $0xe0] sm:$0xff]
    %v5606 = vld [vmem:[#allocation6 + $0xe8] sm:$0xff]
    %v5607 = vld [vmem:[#allocation6 + $0xf0] sm:$0xff]
    %v5608 = vld [vmem:[#allocation6 + $0xf8] sm:$0xff]
    %v5609 = vld [vmem:[#allocation6 + $0x100] sm:$0xff]
    %v5610 = vld [vmem:[#allocation6 + $0x108] sm:$0xff]
    %v5611 = vld [vmem:[#allocation6 + $0x110] sm:$0xff]
    %v5612 = vld [vmem:[#allocation6 + $0x118] sm:$0xff]
    %v5613 = vld [vmem:[#allocation6 + $0x120] sm:$0xff]
    %v5614 = vld [vmem:[#allocation6 + $0x128] sm:$0xff]
    %v5615 = vld [vmem:[#allocation6 + $0x130] sm:$0xff]
    %v5616 = vld [vmem:[#allocation6 + $0x138] sm:$0xff]
    %v5617 = vld [vmem:[#allocation6 + $0x140] sm:$0xff]
    %v5618 = vld [vmem:[#allocation6 + $0x148] sm:$0xff]
    %v5619 = vld [vmem:[#allocation6 + $0x150] sm:$0xff]
    %v5620 = vld [vmem:[#allocation6 + $0x158] sm:$0xff]
    %v5621 = vld [vmem:[#allocation6 + $0x160] sm:$0xff]
    %v5622 = vld [vmem:[#allocation6 + $0x168] sm:$0xff]
    %v5623 = vld [vmem:[#allocation6 + $0x170] sm:$0xff]
    %v5624 = vld [vmem:[#allocation6 + $0x178] sm:$0xff]
    %v5625 = vld [vmem:[#allocation6 + $0x180] sm:$0xff]
    %v5626 = vld [vmem:[#allocation6 + $0x188] sm:$0xff]
    %v5627 = vld [vmem:[#allocation6 + $0x190] sm:$0xff]
    %v5628 = vld [vmem:[#allocation6 + $0x198] sm:$0xff]
    %v5629 = vld [vmem:[#allocation6 + $0x1a0] sm:$0xff]
    %v5630 = vld [vmem:[#allocation6 + $0x1a8] sm:$0xff]
    %v5631 = vld [vmem:[#allocation6 + $0x1b0] sm:$0xff]
    %v5632 = vld [vmem:[#allocation6 + $0x1b8] sm:$0xff]
    %v5633 = vld [vmem:[#allocation6 + $0x1c0] sm:$0xff]
    %v5634 = vld [vmem:[#allocation6 + $0x1c8] sm:$0xff]
    %v5635 = vld [vmem:[#allocation6 + $0x1d0] sm:$0xff]
    %v5636 = vld [vmem:[#allocation6 + $0x1d8] sm:$0xff]
    %v5637 = vld [vmem:[#allocation6 + $0x1e0] sm:$0xff]
    %v5638 = vld [vmem:[#allocation6 + $0x1e8] sm:$0xff]
    %v5639 = vld [vmem:[#allocation6 + $0x1f0] sm:$0xff]
    %v5640 = vld [vmem:[#allocation6 + $0x1f8] sm:$0xff]
    %v5641 = vld [vmem:[#allocation6 + $0x200] sm:$0xff]
    %v5642 = vld [vmem:[#allocation6 + $0x208] sm:$0xff]
    %v5643 = vld [vmem:[#allocation6 + $0x210] sm:$0xff]
    %v5644 = vld [vmem:[#allocation6 + $0x218] sm:$0xff]
    %v5645 = vld [vmem:[#allocation6 + $0x220] sm:$0xff]
    %v5646 = vld [vmem:[#allocation6 + $0x228] sm:$0xff]
    %v5647 = vld [vmem:[#allocation6 + $0x230] sm:$0xff]
    %v5648 = vld [vmem:[#allocation6 + $0x238] sm:$0xff]
    %v5649 = vld [vmem:[#allocation6 + $0x240] sm:$0xff]
    %v5650 = vld [vmem:[#allocation6 + $0x248] sm:$0xff]
    %v5651 = vld [vmem:[#allocation6 + $0x250] sm:$0xff]
    %v5652 = vld [vmem:[#allocation6 + $0x258] sm:$0xff]
    %v5653 = vld [vmem:[#allocation6 + $0x260] sm:$0xff]
    %v5654 = vld [vmem:[#allocation6 + $0x268] sm:$0xff]
    %v5655 = vld [vmem:[#allocation6 + $0x270] sm:$0xff]
    %v5656 = vld [vmem:[#allocation6 + $0x278] sm:$0xff]
    %v5657 = vld [vmem:[#allocation6 + $0x280] sm:$0xff]
    %v5658 = vld [vmem:[#allocation6 + $0x288] sm:$0xff]
    %v5659 = vld [vmem:[#allocation6 + $0x290] sm:$0xff]
    %v5660 = vld [vmem:[#allocation6 + $0x298] sm:$0xff]
    %v5661 = vld [vmem:[#allocation6 + $0x2a0] sm:$0xff]
    %v5662 = vld [vmem:[#allocation6 + $0x2a8] sm:$0xff]
    %v5663 = vld [vmem:[#allocation6 + $0x2b0] sm:$0xff]
    %v5664 = vld [vmem:[#allocation6 + $0x2b8] sm:$0xff]
    %v5665 = vld [vmem:[#allocation6 + $0x2c0] sm:$0xff]
    %v5666 = vld [vmem:[#allocation6 + $0x2c8] sm:$0xff]
    %v5667 = vld [vmem:[#allocation6 + $0x2d0] sm:$0xff]
    %v5668 = vld [vmem:[#allocation6 + $0x2d8] sm:$0xff]
    %v5669 = vld [vmem:[#allocation6 + $0x2e0] sm:$0xff]
    %v5670 = vld [vmem:[#allocation6 + $0x2e8] sm:$0xff]
    %v5671 = vld [vmem:[#allocation6 + $0x2f0] sm:$0xff]
    %v5672 = vld [vmem:[#allocation6 + $0x2f8] sm:$0xff]
    %v5673 = vld [vmem:[#allocation6 + $0x300] sm:$0xff]
    %v5674 = vld [vmem:[#allocation6 + $0x308] sm:$0xff]
    %v5675 = vld [vmem:[#allocation6 + $0x310] sm:$0xff]
    %v5676 = vld [vmem:[#allocation6 + $0x318] sm:$0xff]
    %v5677 = vld [vmem:[#allocation6 + $0x320] sm:$0xff]
    %v5678 = vld [vmem:[#allocation6 + $0x328] sm:$0xff]
    %v5679 = vld [vmem:[#allocation6 + $0x330] sm:$0xff]
    %v5680 = vld [vmem:[#allocation6 + $0x338] sm:$0xff]
    %v5681 = vld [vmem:[#allocation6 + $0x340] sm:$0xff]
    %v5682 = vld [vmem:[#allocation6 + $0x348] sm:$0xff]
    %v5683 = vld [vmem:[#allocation6 + $0x350] sm:$0xff]
    %v5684 = vld [vmem:[#allocation6 + $0x358] sm:$0xff]
    %v5685 = vld [vmem:[#allocation6 + $0x360] sm:$0xff]
    %v5686 = vld [vmem:[#allocation6 + $0x368] sm:$0xff]
    %v5687 = vld [vmem:[#allocation6 + $0x370] sm:$0xff]
    %v5688 = vld [vmem:[#allocation6 + $0x378] sm:$0xff]
    %v5689 = vld [vmem:[#allocation6 + $0x380] sm:$0xff]
    %v5690 = vld [vmem:[#allocation6 + $0x388] sm:$0xff]
    %v5691 = vld [vmem:[#allocation6 + $0x390] sm:$0xff]
    %v5692 = vld [vmem:[#allocation6 + $0x398] sm:$0xff]
    %v5693 = vld [vmem:[#allocation6 + $0x3a0] sm:$0xff]
    %v5694 = vld [vmem:[#allocation6 + $0x3a8] sm:$0xff]
    %v5695 = vld [vmem:[#allocation6 + $0x3b0] sm:$0xff]
    %v5696 = vld [vmem:[#allocation6 + $0x3b8] sm:$0xff]
    %v5697 = vld [vmem:[#allocation6 + $0x3c0] sm:$0xff]
    %v5698 = vld [vmem:[#allocation6 + $0x3c8] sm:$0xff]
    %v5699 = vld [vmem:[#allocation6 + $0x3d0] sm:$0xff]
    %v5700 = vld [vmem:[#allocation6 + $0x3d8] sm:$0xff]
    %v5701 = vld [vmem:[#allocation6 + $0x3e0] sm:$0xff]
    %v5702 = vld [vmem:[#allocation6 + $0x3e8] sm:$0xff]
    %v5703 = vld [vmem:[#allocation6 + $0x3f0] sm:$0xff]
    %v5704 = vld [vmem:[#allocation6 + $0x3f8] sm:$0xff]
    %s5705 = scalar_lea.vmem [#allocation6], 1024
    %v5706 = vld [vmem:[%s5705] sm:$0xff]
    %v5707 = vld [vmem:[%s5705 + $0x8] sm:$0xff]
    %v5708 = vld [vmem:[%s5705 + $0x10] sm:$0xff]
    %v5709 = vld [vmem:[%s5705 + $0x18] sm:$0xff]
    %v5710 = vld [vmem:[%s5705 + $0x20] sm:$0xff]
    %v5711 = vld [vmem:[%s5705 + $0x28] sm:$0xff]
    %v5712 = vld [vmem:[%s5705 + $0x30] sm:$0xff]
    %v5713 = vld [vmem:[%s5705 + $0x38] sm:$0xff]
    %v5714 = vld [vmem:[%s5705 + $0x40] sm:$0xff]
    %v5715 = vld [vmem:[%s5705 + $0x48] sm:$0xff]
    %v5716 = vld [vmem:[%s5705 + $0x50] sm:$0xff]
    %v5717 = vld [vmem:[%s5705 + $0x58] sm:$0xff]
    %v5718 = vld [vmem:[%s5705 + $0x60] sm:$0xff]
    %v5719 = vld [vmem:[%s5705 + $0x68] sm:$0xff]
    %v5720 = vld [vmem:[%s5705 + $0x70] sm:$0xff]
    %v5721 = vld [vmem:[%s5705 + $0x78] sm:$0xff]
    %v5722 = vld [vmem:[%s5705 + $0x80] sm:$0xff]
    %v5723 = vld [vmem:[%s5705 + $0x88] sm:$0xff]
    %v5724 = vld [vmem:[%s5705 + $0x90] sm:$0xff]
    %v5725 = vld [vmem:[%s5705 + $0x98] sm:$0xff]
    %v5726 = vld [vmem:[%s5705 + $0xa0] sm:$0xff]
    %v5727 = vld [vmem:[%s5705 + $0xa8] sm:$0xff]
    %v5728 = vld [vmem:[%s5705 + $0xb0] sm:$0xff]
    %v5729 = vld [vmem:[%s5705 + $0xb8] sm:$0xff]
    %v5730 = vld [vmem:[%s5705 + $0xc0] sm:$0xff]
    %v5731 = vld [vmem:[%s5705 + $0xc8] sm:$0xff]
    %v5732 = vld [vmem:[%s5705 + $0xd0] sm:$0xff]
    %v5733 = vld [vmem:[%s5705 + $0xd8] sm:$0xff]
    %v5734 = vld [vmem:[%s5705 + $0xe0] sm:$0xff]
    %v5735 = vld [vmem:[%s5705 + $0xe8] sm:$0xff]
    %v5736 = vld [vmem:[%s5705 + $0xf0] sm:$0xff]
    %v5737 = vld [vmem:[%s5705 + $0xf8] sm:$0xff]
    %v5738 = vld [vmem:[%s5705 + $0x100] sm:$0xff]
    %v5739 = vld [vmem:[%s5705 + $0x108] sm:$0xff]
    %v5740 = vld [vmem:[%s5705 + $0x110] sm:$0xff]
    %v5741 = vld [vmem:[%s5705 + $0x118] sm:$0xff]
    %v5742 = vld [vmem:[%s5705 + $0x120] sm:$0xff]
    %v5743 = vld [vmem:[%s5705 + $0x128] sm:$0xff]
    %v5744 = vld [vmem:[%s5705 + $0x130] sm:$0xff]
    %v5745 = vld [vmem:[%s5705 + $0x138] sm:$0xff]
    %v5746 = vld [vmem:[%s5705 + $0x140] sm:$0xff]
    %v5747 = vld [vmem:[%s5705 + $0x148] sm:$0xff]
    %v5748 = vld [vmem:[%s5705 + $0x150] sm:$0xff]
    %v5749 = vld [vmem:[%s5705 + $0x158] sm:$0xff]
    %v5750 = vld [vmem:[%s5705 + $0x160] sm:$0xff]
    %v5751 = vld [vmem:[%s5705 + $0x168] sm:$0xff]
    %v5752 = vld [vmem:[%s5705 + $0x170] sm:$0xff]
    %v5753 = vld [vmem:[%s5705 + $0x178] sm:$0xff]
    %v5754 = vld [vmem:[%s5705 + $0x180] sm:$0xff]
    %v5755 = vld [vmem:[%s5705 + $0x188] sm:$0xff]
    %v5756 = vld [vmem:[%s5705 + $0x190] sm:$0xff]
    %v5757 = vld [vmem:[%s5705 + $0x198] sm:$0xff]
    %v5758 = vld [vmem:[%s5705 + $0x1a0] sm:$0xff]
    %v5759 = vld [vmem:[%s5705 + $0x1a8] sm:$0xff]
    %v5760 = vld [vmem:[%s5705 + $0x1b0] sm:$0xff]
    %v5761 = vld [vmem:[%s5705 + $0x1b8] sm:$0xff]
    %v5762 = vld [vmem:[%s5705 + $0x1c0] sm:$0xff]
    %v5763 = vld [vmem:[%s5705 + $0x1c8] sm:$0xff]
    %v5764 = vld [vmem:[%s5705 + $0x1d0] sm:$0xff]
    %v5765 = vld [vmem:[%s5705 + $0x1d8] sm:$0xff]
    %v5766 = vld [vmem:[%s5705 + $0x1e0] sm:$0xff]
    %v5767 = vld [vmem:[%s5705 + $0x1e8] sm:$0xff]
    %v5768 = vld [vmem:[%s5705 + $0x1f0] sm:$0xff]
    %v5769 = vld [vmem:[%s5705 + $0x1f8] sm:$0xff]
    %v5770 = vld [vmem:[%s5705 + $0x200] sm:$0xff]
    %v5771 = vld [vmem:[%s5705 + $0x208] sm:$0xff]
    %v5772 = vld [vmem:[%s5705 + $0x210] sm:$0xff]
    %v5773 = vld [vmem:[%s5705 + $0x218] sm:$0xff]
    %v5774 = vld [vmem:[%s5705 + $0x220] sm:$0xff]
    %v5775 = vld [vmem:[%s5705 + $0x228] sm:$0xff]
    %v5776 = vld [vmem:[%s5705 + $0x230] sm:$0xff]
    %v5777 = vld [vmem:[%s5705 + $0x238] sm:$0xff]
    %v5778 = vld [vmem:[%s5705 + $0x240] sm:$0xff]
    %v5779 = vld [vmem:[%s5705 + $0x248] sm:$0xff]
    %v5780 = vld [vmem:[%s5705 + $0x250] sm:$0xff]
    %v5781 = vld [vmem:[%s5705 + $0x258] sm:$0xff]
    %v5782 = vld [vmem:[%s5705 + $0x260] sm:$0xff]
    %v5783 = vld [vmem:[%s5705 + $0x268] sm:$0xff]
    %v5784 = vld [vmem:[%s5705 + $0x270] sm:$0xff]
    %v5785 = vld [vmem:[%s5705 + $0x278] sm:$0xff]
    %v5786 = vld [vmem:[%s5705 + $0x280] sm:$0xff]
    %v5787 = vld [vmem:[%s5705 + $0x288] sm:$0xff]
    %v5788 = vld [vmem:[%s5705 + $0x290] sm:$0xff]
    %v5789 = vld [vmem:[%s5705 + $0x298] sm:$0xff]
    %v5790 = vld [vmem:[%s5705 + $0x2a0] sm:$0xff]
    %v5791 = vld [vmem:[%s5705 + $0x2a8] sm:$0xff]
    %v5792 = vld [vmem:[%s5705 + $0x2b0] sm:$0xff]
    %v5793 = vld [vmem:[%s5705 + $0x2b8] sm:$0xff]
    %v5794 = vld [vmem:[%s5705 + $0x2c0] sm:$0xff]
    %v5795 = vld [vmem:[%s5705 + $0x2c8] sm:$0xff]
    %v5796 = vld [vmem:[%s5705 + $0x2d0] sm:$0xff]
    %v5797 = vld [vmem:[%s5705 + $0x2d8] sm:$0xff]
    %v5798 = vld [vmem:[%s5705 + $0x2e0] sm:$0xff]
    %v5799 = vld [vmem:[%s5705 + $0x2e8] sm:$0xff]
    %v5800 = vld [vmem:[%s5705 + $0x2f0] sm:$0xff]
    %v5801 = vld [vmem:[%s5705 + $0x2f8] sm:$0xff]
    %v5802 = vld [vmem:[%s5705 + $0x300] sm:$0xff]
    %v5803 = vld [vmem:[%s5705 + $0x308] sm:$0xff]
    %v5804 = vld [vmem:[%s5705 + $0x310] sm:$0xff]
    %v5805 = vld [vmem:[%s5705 + $0x318] sm:$0xff]
    %v5806 = vld [vmem:[%s5705 + $0x320] sm:$0xff]
    %v5807 = vld [vmem:[%s5705 + $0x328] sm:$0xff]
    %v5808 = vld [vmem:[%s5705 + $0x330] sm:$0xff]
    %v5809 = vld [vmem:[%s5705 + $0x338] sm:$0xff]
    %v5810 = vld [vmem:[%s5705 + $0x340] sm:$0xff]
    %v5811 = vld [vmem:[%s5705 + $0x348] sm:$0xff]
    %v5812 = vld [vmem:[%s5705 + $0x350] sm:$0xff]
    %v5813 = vld [vmem:[%s5705 + $0x358] sm:$0xff]
    %v5814 = vld [vmem:[%s5705 + $0x360] sm:$0xff]
    %v5815 = vld [vmem:[%s5705 + $0x368] sm:$0xff]
    %v5816 = vld [vmem:[%s5705 + $0x370] sm:$0xff]
    %v5817 = vld [vmem:[%s5705 + $0x378] sm:$0xff]
    %v5818 = vld [vmem:[%s5705 + $0x380] sm:$0xff]
    %v5819 = vld [vmem:[%s5705 + $0x388] sm:$0xff]
    %v5820 = vld [vmem:[%s5705 + $0x390] sm:$0xff]
    %v5821 = vld [vmem:[%s5705 + $0x398] sm:$0xff]
    %v5822 = vld [vmem:[%s5705 + $0x3a0] sm:$0xff]
    %v5823 = vld [vmem:[%s5705 + $0x3a8] sm:$0xff]
    %v5824 = vld [vmem:[%s5705 + $0x3b0] sm:$0xff]
    %v5825 = vld [vmem:[%s5705 + $0x3b8] sm:$0xff]
    %v5826 = vld [vmem:[%s5705 + $0x3c0] sm:$0xff]
    %v5827 = vld [vmem:[%s5705 + $0x3c8] sm:$0xff]
    %v5828 = vld [vmem:[%s5705 + $0x3d0] sm:$0xff]
    %v5829 = vld [vmem:[%s5705 + $0x3d8] sm:$0xff]
    %v5830 = vld [vmem:[%s5705 + $0x3e0] sm:$0xff]
    %v5831 = vld [vmem:[%s5705 + $0x3e8] sm:$0xff]
    %v5832 = vld [vmem:[%s5705 + $0x3f0] sm:$0xff]
    %v5833 = vld [vmem:[%s5705 + $0x3f8] sm:$0xff]
    %v5842 = vrot.slane %v5569, 1
    %v5843 = vrot.slane %v5573, 1
    %v5844 = vsel %vm301, %v5842, %v5843
    %v5845 = vrot.slane %v5570, 1
    %v5846 = vrot.slane %v5574, 1
    %v5847 = vsel %vm301, %v5845, %v5846
    %v5848 = vrot.slane %v5571, 1
    %v5849 = vrot.slane %v5575, 1
    %v5850 = vsel %vm301, %v5848, %v5849
    %v5851 = vrot.slane %v5572, 1
    %v5852 = vrot.slane %v5576, 1
    %v5853 = vsel %vm301, %v5851, %v5852
    %5862 = vmatprep.subr.bf16.mxu0 %v5707
    %5863 = vmatpush1.bf16.msra.mxu0 %v5706
    %5864 = vmatprep.subr.bf16.mxu0 %v5711
    %5865 = vmatpush1.bf16.msra.mxu0 %v5710
    %5866 = vmatprep.subr.bf16.mxu0 %v5715
    %5867 = vmatpush1.bf16.msra.mxu0 %v5714
    %5868 = vmatprep.subr.bf16.mxu0 %v5719
    %5869 = vmatpush1.bf16.msra.mxu0 %v5718
    %5870 = vmatprep.subr.bf16.mxu0 %v5723
    %5871 = vmatpush1.bf16.msra.mxu0 %v5722
    %5872 = vmatprep.subr.bf16.mxu0 %v5727
    %5873 = vmatpush1.bf16.msra.mxu0 %v5726
    %5874 = vmatprep.subr.bf16.mxu0 %v5731
    %5875 = vmatpush1.bf16.msra.mxu0 %v5730
    %5876 = vmatprep.subr.bf16.mxu0 %v5735
    %5877 = vmatpush1.bf16.msra.mxu0 %v5734
    %5878 = vmatprep.subr.bf16.mxu0 %v5739
    %5879 = vmatpush1.bf16.msra.mxu0 %v5738
    %5880 = vmatprep.subr.bf16.mxu0 %v5743
    %5881 = vmatpush1.bf16.msra.mxu0 %v5742
    %5882 = vmatprep.subr.bf16.mxu0 %v5747
    %5883 = vmatpush1.bf16.msra.mxu0 %v5746
    %5884 = vmatprep.subr.bf16.mxu0 %v5751
    %5885 = vmatpush1.bf16.msra.mxu0 %v5750
    %5886 = vmatprep.subr.bf16.mxu0 %v5755
    %5887 = vmatpush1.bf16.msra.mxu0 %v5754
    %5888 = vmatprep.subr.bf16.mxu0 %v5759
    %5889 = vmatpush1.bf16.msra.mxu0 %v5758
    %5890 = vmatprep.subr.bf16.mxu0 %v5763
    %5891 = vmatpush1.bf16.msra.mxu0 %v5762
    %5892 = vmatprep.subr.bf16.mxu0 %v5767
    %5893 = vmatpush1.bf16.msra.mxu0 %v5766
    %5894 = vmatprep.mubr.bf16.mxu0 %v5847
    %5895 = vmatmul.mubr.bf16.gmra.mrb[0].mxu0 %v5844
    %v5896 = vpop.f32.mrb[0].mxu0
    %v5897 = vadd.f32 0.0, %v5896
    %v5898 = vpop.f32.mrb[0].mxu0
    %v5899 = vadd.f32 0.0, %v5898
    %v5900 = vpop.f32.mrb[0].mxu0
    %v5901 = vadd.f32 0.0, %v5900
    %v5902 = vpop.f32.mrb[0].mxu0
    %v5903 = vadd.f32 0.0, %v5902
    %5904 = vmatprep.mubr.bf16.mxu0 %v5846
    %5905 = vmatmul.mubr.bf16.gmra.mrb[0].mxu0 %v5843
    %v5906 = vpop.f32.mrb[0].mxu0
    %v5907 = vadd.f32 0.0, %v5906
    %v5908 = vpop.f32.mrb[0].mxu0
    %v5909 = vadd.f32 0.0, %v5908
    %v5910 = vpop.f32.mrb[0].mxu0
    %v5911 = vadd.f32 0.0, %v5910
    %v5912 = vpop.f32.mrb[0].mxu0
    %v5913 = vadd.f32 0.0, %v5912
    %5914 = vdwg.mxu0
    %5915 = vmatprep.subr.bf16.mxu0 %v5771
    %5916 = vmatpush1.bf16.msra.mxu0 %v5770
    %5917 = vmatprep.subr.bf16.mxu0 %v5775
    %5918 = vmatpush1.bf16.msra.mxu0 %v5774
    %5919 = vmatprep.subr.bf16.mxu0 %v5779
    %5920 = vmatpush1.bf16.msra.mxu0 %v5778
    %5921 = vmatprep.subr.bf16.mxu0 %v5783
    %5922 = vmatpush1.bf16.msra.mxu0 %v5782
    %5923 = vmatprep.subr.bf16.mxu0 %v5787
    %5924 = vmatpush1.bf16.msra.mxu0 %v5786
    %5925 = vmatprep.subr.bf16.mxu0 %v5791
    %5926 = vmatpush1.bf16.msra.mxu0 %v5790
    %5927 = vmatprep.subr.bf16.mxu0 %v5795
    %5928 = vmatpush1.bf16.msra.mxu0 %v5794
    %5929 = vmatprep.subr.bf16.mxu0 %v5799
    %5930 = vmatpush1.bf16.msra.mxu0 %v5798
    %5931 = vmatprep.subr.bf16.mxu0 %v5803
    %5932 = vmatpush1.bf16.msra.mxu0 %v5802
    %5933 = vmatprep.subr.bf16.mxu0 %v5807
    %5934 = vmatpush1.bf16.msra.mxu0 %v5806
    %5935 = vmatprep.subr.bf16.mxu0 %v5811
    %5936 = vmatpush1.bf16.msra.mxu0 %v5810
    %5937 = vmatprep.subr.bf16.mxu0 %v5815
    %5938 = vmatpush1.bf16.msra.mxu0 %v5814
    %5939 = vmatprep.subr.bf16.mxu0 %v5819
    %5940 = vmatpush1.bf16.msra.mxu0 %v5818
    %5941 = vmatprep.subr.bf16.mxu0 %v5823
    %5942 = vmatpush1.bf16.msra.mxu0 %v5822
    %5943 = vmatprep.subr.bf16.mxu0 %v5827
    %5944 = vmatpush1.bf16.msra.mxu0 %v5826
    %5945 = vmatprep.subr.bf16.mxu0 %v5831
    %5946 = vmatpush1.bf16.msra.mxu0 %v5830
    %5947 = vmatprep.mubr.bf16.mxu0 %v5853
    %5948 = vmatmul.mubr.bf16.gmra.mrb[0].mxu0 %v5850
    %v5949 = vpop.f32.mrb[0].mxu0
    %v5950 = vadd.f32 %v5897, %v5949
    %v5951 = vpop.f32.mrb[0].mxu0
    %v5952 = vadd.f32 %v5899, %v5951
    %v5953 = vpop.f32.mrb[0].mxu0
    %v5954 = vadd.f32 %v5901, %v5953
    %v5955 = vpop.f32.mrb[0].mxu0
    %v5956 = vadd.f32 %v5903, %v5955
    %5957 = vmatprep.mubr.bf16.mxu0 %v5852
    %5958 = vmatmul.mubr.bf16.gmra.mrb[0].mxu0 %v5849
    %v5959 = vpop.f32.mrb[0].mxu0
    %v5960 = vadd.f32 %v5907, %v5959
    %v5961 = vpop.f32.mrb[0].mxu0
    %v5962 = vadd.f32 %v5909, %v5961
    %v5963 = vpop.f32.mrb[0].mxu0
    %v5964 = vadd.f32 %v5911, %v5963
    %v5965 = vpop.f32.mrb[0].mxu0
    %v5966 = vadd.f32 %v5913, %v5965
    %5967 = vdwg.mxu0
    %5968 = vmatprep.subr.bf16.mxu0 %v5709
    %5969 = vmatpush1.bf16.msra.mxu0 %v5708
    %5970 = vmatprep.subr.bf16.mxu0 %v5713
    %5971 = vmatpush1.bf16.msra.mxu0 %v5712
    %5972 = vmatprep.subr.bf16.mxu0 %v5717
    %5973 = vmatpush1.bf16.msra.mxu0 %v5716
    %5974 = vmatprep.subr.bf16.mxu0 %v5721
    %5975 = vmatpush1.bf16.msra.mxu0 %v5720
    %5976 = vmatprep.subr.bf16.mxu0 %v5725
    %5977 = vmatpush1.bf16.msra.mxu0 %v5724
    %5978 = vmatprep.subr.bf16.mxu0 %v5729
    %5979 = vmatpush1.bf16.msra.mxu0 %v5728
    %5980 = vmatprep.subr.bf16.mxu0 %v5733
    %5981 = vmatpush1.bf16.msra.mxu0 %v5732
    %5982 = vmatprep.subr.bf16.mxu0 %v5737
    %5983 = vmatpush1.bf16.msra.mxu0 %v5736
    %5984 = vmatprep.subr.bf16.mxu0 %v5741
    %5985 = vmatpush1.bf16.msra.mxu0 %v5740
    %5986 = vmatprep.subr.bf16.mxu0 %v5745
    %5987 = vmatpush1.bf16.msra.mxu0 %v5744
    %5988 = vmatprep.subr.bf16.mxu0 %v5749
    %5989 = vmatpush1.bf16.msra.mxu0 %v5748
    %5990 = vmatprep.subr.bf16.mxu0 %v5753
    %5991 = vmatpush1.bf16.msra.mxu0 %v5752
    %5992 = vmatprep.subr.bf16.mxu0 %v5757
    %5993 = vmatpush1.bf16.msra.mxu0 %v5756
    %5994 = vmatprep.subr.bf16.mxu0 %v5761
    %5995 = vmatpush1.bf16.msra.mxu0 %v5760
    %5996 = vmatprep.subr.bf16.mxu0 %v5765
    %5997 = vmatpush1.bf16.msra.mxu0 %v5764
    %5998 = vmatprep.subr.bf16.mxu0 %v5769
    %5999 = vmatpush1.bf16.msra.mxu0 %v5768
    %6000 = vmatprep.mubr.bf16.mxu0 %v5847
    %6001 = vmatmul.mubr.bf16.gmra.mrb[0].mxu0 %v5844
    %v6002 = vpop.f32.mrb[0].mxu0
    %v6003 = vadd.f32 0.0, %v6002
    %v6004 = vpop.f32.mrb[0].mxu0
    %v6005 = vadd.f32 0.0, %v6004
    %v6006 = vpop.f32.mrb[0].mxu0
    %v6007 = vadd.f32 0.0, %v6006
    %v6008 = vpop.f32.mrb[0].mxu0
    %v6009 = vadd.f32 0.0, %v6008
    %6010 = vmatprep.mubr.bf16.mxu0 %v5846
    %6011 = vmatmul.mubr.bf16.gmra.mrb[0].mxu0 %v5843
    %v6012 = vpop.f32.mrb[0].mxu0
    %v6013 = vadd.f32 0.0, %v6012
    %v6014 = vpop.f32.mrb[0].mxu0
    %v6015 = vadd.f32 0.0, %v6014
    %v6016 = vpop.f32.mrb[0].mxu0
    %v6017 = vadd.f32 0.0, %v6016
    %v6018 = vpop.f32.mrb[0].mxu0
    %v6019 = vadd.f32 0.0, %v6018
    %6020 = vdwg.mxu0
    %6021 = vmatprep.subr.bf16.mxu0 %v5773
    %6022 = vmatpush1.bf16.msra.mxu0 %v5772
    %6023 = vmatprep.subr.bf16.mxu0 %v5777
    %6024 = vmatpush1.bf16.msra.mxu0 %v5776
    %6025 = vmatprep.subr.bf16.mxu0 %v5781
    %6026 = vmatpush1.bf16.msra.mxu0 %v5780
    %6027 = vmatprep.subr.bf16.mxu0 %v5785
    %6028 = vmatpush1.bf16.msra.mxu0 %v5784
    %6029 = vmatprep.subr.bf16.mxu0 %v5789
    %6030 = vmatpush1.bf16.msra.mxu0 %v5788
    %6031 = vmatprep.subr.bf16.mxu0 %v5793
    %6032 = vmatpush1.bf16.msra.mxu0 %v5792
    %6033 = vmatprep.subr.bf16.mxu0 %v5797
    %6034 = vmatpush1.bf16.msra.mxu0 %v5796
    %6035 = vmatprep.subr.bf16.mxu0 %v5801
    %6036 = vmatpush1.bf16.msra.mxu0 %v5800
    %6037 = vmatprep.subr.bf16.mxu0 %v5805
    %6038 = vmatpush1.bf16.msra.mxu0 %v5804
    %6039 = vmatprep.subr.bf16.mxu0 %v5809
    %6040 = vmatpush1.bf16.msra.mxu0 %v5808
    %6041 = vmatprep.subr.bf16.mxu0 %v5813
    %6042 = vmatpush1.bf16.msra.mxu0 %v5812
    %6043 = vmatprep.subr.bf16.mxu0 %v5817
    %6044 = vmatpush1.bf16.msra.mxu0 %v5816
    %6045 = vmatprep.subr.bf16.mxu0 %v5821
    %6046 = vmatpush1.bf16.msra.mxu0 %v5820
    %6047 = vmatprep.subr.bf16.mxu0 %v5825
    %6048 = vmatpush1.bf16.msra.mxu0 %v5824
    %6049 = vmatprep.subr.bf16.mxu0 %v5829
    %6050 = vmatpush1.bf16.msra.mxu0 %v5828
    %6051 = vmatprep.subr.bf16.mxu0 %v5833
    %6052 = vmatpush1.bf16.msra.mxu0 %v5832
    %6053 = vmatprep.mubr.bf16.mxu0 %v5853
    %6054 = vmatmul.mubr.bf16.gmra.mrb[0].mxu0 %v5850
    %v6055 = vpop.f32.mrb[0].mxu0
    %v6056 = vadd.f32 %v6003, %v6055
    %v6057 = vpop.f32.mrb[0].mxu0
    %v6058 = vadd.f32 %v6005, %v6057
    %v6059 = vpop.f32.mrb[0].mxu0
    %v6060 = vadd.f32 %v6007, %v6059
    %v6061 = vpop.f32.mrb[0].mxu0
    %v6062 = vadd.f32 %v6009, %v6061
    %6063 = vmatprep.mubr.bf16.mxu0 %v5852
    %6064 = vmatmul.mubr.bf16.gmra.mrb[0].mxu0 %v5849
    %v6065 = vpop.f32.mrb[0].mxu0
    %v6066 = vadd.f32 %v6013, %v6065
    %v6067 = vpop.f32.mrb[0].mxu0
    %v6068 = vadd.f32 %v6015, %v6067
    %v6069 = vpop.f32.mrb[0].mxu0
    %v6070 = vadd.f32 %v6017, %v6069
    %v6071 = vpop.f32.mrb[0].mxu0
    %v6072 = vadd.f32 %v6019, %v6071
    %6073 = vdwg.mxu0
    %6074 = vmatprep.subr.bf16.mxu0 %v5578
    %6075 = vmatpush1.bf16.msra.mxu0 %v5577
    %6076 = vmatprep.subr.bf16.mxu0 %v5582
    %6077 = vmatpush1.bf16.msra.mxu0 %v5581
    %6078 = vmatprep.subr.bf16.mxu0 %v5586
    %6079 = vmatpush1.bf16.msra.mxu0 %v5585
    %6080 = vmatprep.subr.bf16.mxu0 %v5590
    %6081 = vmatpush1.bf16.msra.mxu0 %v5589
    %6082 = vmatprep.subr.bf16.mxu0 %v5594
    %6083 = vmatpush1.bf16.msra.mxu0 %v5593
    %6084 = vmatprep.subr.bf16.mxu0 %v5598
    %6085 = vmatpush1.bf16.msra.mxu0 %v5597
    %6086 = vmatprep.subr.bf16.mxu0 %v5602
    %6087 = vmatpush1.bf16.msra.mxu0 %v5601
    %6088 = vmatprep.subr.bf16.mxu0 %v5606
    %6089 = vmatpush1.bf16.msra.mxu0 %v5605
    %6090 = vmatprep.subr.bf16.mxu0 %v5610
    %6091 = vmatpush1.bf16.msra.mxu0 %v5609
    %6092 = vmatprep.subr.bf16.mxu0 %v5614
    %6093 = vmatpush1.bf16.msra.mxu0 %v5613
    %6094 = vmatprep.subr.bf16.mxu0 %v5618
    %6095 = vmatpush1.bf16.msra.mxu0 %v5617
    %6096 = vmatprep.subr.bf16.mxu0 %v5622
    %6097 = vmatpush1.bf16.msra.mxu0 %v5621
    %6098 = vmatprep.subr.bf16.mxu0 %v5626
    %6099 = vmatpush1.bf16.msra.mxu0 %v5625
    %6100 = vmatprep.subr.bf16.mxu0 %v5630
    %6101 = vmatpush1.bf16.msra.mxu0 %v5629
    %6102 = vmatprep.subr.bf16.mxu0 %v5634
    %6103 = vmatpush1.bf16.msra.mxu0 %v5633
    %6104 = vmatprep.subr.bf16.mxu0 %v5638
    %6105 = vmatpush1.bf16.msra.mxu0 %v5637
    %6106 = vmatprep.mubr.bf16.mxu0 %v5570
    %6107 = vmatmul.mubr.bf16.gmra.mrb[0].mxu0 %v5569
    %v6108 = vpop.f32.mrb[0].mxu0
    %v6109 = vadd.f32 %v5950, %v6108
    %v6110 = vpop.f32.mrb[0].mxu0
    %v6111 = vadd.f32 %v5952, %v6110
    %v6112 = vpop.f32.mrb[0].mxu0
    %v6113 = vadd.f32 %v5954, %v6112
    %v6114 = vpop.f32.mrb[0].mxu0
    %v6115 = vadd.f32 %v5956, %v6114
    %6116 = vmatprep.mubr.bf16.mxu0 %v5574
    %6117 = vmatmul.mubr.bf16.gmra.mrb[0].mxu0 %v5573
    %v6118 = vpop.f32.mrb[0].mxu0
    %v6119 = vadd.f32 %v5960, %v6118
    %v6120 = vpop.f32.mrb[0].mxu0
    %v6121 = vadd.f32 %v5962, %v6120
    %v6122 = vpop.f32.mrb[0].mxu0
    %v6123 = vadd.f32 %v5964, %v6122
    %v6124 = vpop.f32.mrb[0].mxu0
    %v6125 = vadd.f32 %v5966, %v6124
    %6126 = vdwg.mxu0
    %6127 = vmatprep.subr.bf16.mxu0 %v5642
    %6128 = vmatpush1.bf16.msra.mxu0 %v5641
    %6129 = vmatprep.subr.bf16.mxu0 %v5646
    %6130 = vmatpush1.bf16.msra.mxu0 %v5645
    %6131 = vmatprep.subr.bf16.mxu0 %v5650
    %6132 = vmatpush1.bf16.msra.mxu0 %v5649
    %6133 = vmatprep.subr.bf16.mxu0 %v5654
    %6134 = vmatpush1.bf16.msra.mxu0 %v5653
    %6135 = vmatprep.subr.bf16.mxu0 %v5658
    %6136 = vmatpush1.bf16.msra.mxu0 %v5657
    %6137 = vmatprep.subr.bf16.mxu0 %v5662
    %6138 = vmatpush1.bf16.msra.mxu0 %v5661
    %6139 = vmatprep.subr.bf16.mxu0 %v5666
    %6140 = vmatpush1.bf16.msra.mxu0 %v5665
    %6141 = vmatprep.subr.bf16.mxu0 %v5670
    %6142 = vmatpush1.bf16.msra.mxu0 %v5669
    %6143 = vmatprep.subr.bf16.mxu0 %v5674
    %6144 = vmatpush1.bf16.msra.mxu0 %v5673
    %6145 = vmatprep.subr.bf16.mxu0 %v5678
    %6146 = vmatpush1.bf16.msra.mxu0 %v5677
    %6147 = vmatprep.subr.bf16.mxu0 %v5682
    %6148 = vmatpush1.bf16.msra.mxu0 %v5681
    %6149 = vmatprep.subr.bf16.mxu0 %v5686
    %6150 = vmatpush1.bf16.msra.mxu0 %v5685
    %6151 = vmatprep.subr.bf16.mxu0 %v5690
    %6152 = vmatpush1.bf16.msra.mxu0 %v5689
    %6153 = vmatprep.subr.bf16.mxu0 %v5694
    %6154 = vmatpush1.bf16.msra.mxu0 %v5693
    %6155 = vmatprep.subr.bf16.mxu0 %v5698
    %6156 = vmatpush1.bf16.msra.mxu0 %v5697
    %6157 = vmatprep.subr.bf16.mxu0 %v5702
    %6158 = vmatpush1.bf16.msra.mxu0 %v5701
    %6159 = vmatprep.mubr.bf16.mxu0 %v5572
    %6160 = vmatmul.mubr.bf16.gmra.mrb[0].mxu0 %v5571
    %v6161 = vpop.f32.mrb[0].mxu0
    %v6162 = vadd.f32 %v6109, %v6161
    %v6163 = vpop.f32.mrb[0].mxu0
    %v6164 = vadd.f32 %v6111, %v6163
    %v6165 = vpop.f32.mrb[0].mxu0
    %v6166 = vadd.f32 %v6113, %v6165
    %v6167 = vpop.f32.mrb[0].mxu0
    %v6168 = vadd.f32 %v6115, %v6167
    %6169 = vmatprep.mubr.bf16.mxu0 %v5576
    %6170 = vmatmul.mubr.bf16.gmra.mrb[0].mxu0 %v5575
    %v6171 = vpop.f32.mrb[0].mxu0
    %v6172 = vadd.f32 %v6119, %v6171
    %v6173 = vpop.f32.mrb[0].mxu0
    %v6174 = vadd.f32 %v6121, %v6173
    %v6175 = vpop.f32.mrb[0].mxu0
    %v6176 = vadd.f32 %v6123, %v6175
    %v6177 = vpop.f32.mrb[0].mxu0
    %v6178 = vadd.f32 %v6125, %v6177
    %6179 = vdwg.mxu0
    %6180 = vmatprep.subr.bf16.mxu0 %v5580
    %6181 = vmatpush1.bf16.msra.mxu0 %v5579
    %6182 = vmatprep.subr.bf16.mxu0 %v5584
    %6183 = vmatpush1.bf16.msra.mxu0 %v5583
    %6184 = vmatprep.subr.bf16.mxu0 %v5588
    %6185 = vmatpush1.bf16.msra.mxu0 %v5587
    %6186 = vmatprep.subr.bf16.mxu0 %v5592
    %6187 = vmatpush1.bf16.msra.mxu0 %v5591
    %6188 = vmatprep.subr.bf16.mxu0 %v5596
    %6189 = vmatpush1.bf16.msra.mxu0 %v5595
    %6190 = vmatprep.subr.bf16.mxu0 %v5600
    %6191 = vmatpush1.bf16.msra.mxu0 %v5599
    %6192 = vmatprep.subr.bf16.mxu0 %v5604
    %6193 = vmatpush1.bf16.msra.mxu0 %v5603
    %6194 = vmatprep.subr.bf16.mxu0 %v5608
    %6195 = vmatpush1.bf16.msra.mxu0 %v5607
    %6196 = vmatprep.subr.bf16.mxu0 %v5612
    %6197 = vmatpush1.bf16.msra.mxu0 %v5611
    %6198 = vmatprep.subr.bf16.mxu0 %v5616
    %6199 = vmatpush1.bf16.msra.mxu0 %v5615
    %6200 = vmatprep.subr.bf16.mxu0 %v5620
    %6201 = vmatpush1.bf16.msra.mxu0 %v5619
    %6202 = vmatprep.subr.bf16.mxu0 %v5624
    %6203 = vmatpush1.bf16.msra.mxu0 %v5623
    %6204 = vmatprep.subr.bf16.mxu0 %v5628
    %6205 = vmatpush1.bf16.msra.mxu0 %v5627
    %6206 = vmatprep.subr.bf16.mxu0 %v5632
    %6207 = vmatpush1.bf16.msra.mxu0 %v5631
    %6208 = vmatprep.subr.bf16.mxu0 %v5636
    %6209 = vmatpush1.bf16.msra.mxu0 %v5635
    %6210 = vmatprep.subr.bf16.mxu0 %v5640
    %6211 = vmatpush1.bf16.msra.mxu0 %v5639
    %6212 = vmatprep.mubr.bf16.mxu0 %v5570
    %6213 = vmatmul.mubr.bf16.gmra.mrb[0].mxu0 %v5569
    %v6214 = vpop.f32.mrb[0].mxu0
    %v6215 = vadd.f32 %v6056, %v6214
    %v6216 = vpop.f32.mrb[0].mxu0
    %v6217 = vadd.f32 %v6058, %v6216
    %v6218 = vpop.f32.mrb[0].mxu0
    %v6219 = vadd.f32 %v6060, %v6218
    %v6220 = vpop.f32.mrb[0].mxu0
    %v6221 = vadd.f32 %v6062, %v6220
    %6222 = vmatprep.mubr.bf16.mxu0 %v5574
    %6223 = vmatmul.mubr.bf16.gmra.mrb[0].mxu0 %v5573
    %v6224 = vpop.f32.mrb[0].mxu0
    %v6225 = vadd.f32 %v6066, %v6224
    %v6226 = vpop.f32.mrb[0].mxu0
    %v6227 = vadd.f32 %v6068, %v6226
    %v6228 = vpop.f32.mrb[0].mxu0
    %v6229 = vadd.f32 %v6070, %v6228
    %v6230 = vpop.f32.mrb[0].mxu0
    %v6231 = vadd.f32 %v6072, %v6230
    %6232 = vdwg.mxu0
    %6233 = vmatprep.subr.bf16.mxu0 %v5644
    %6234 = vmatpush1.bf16.msra.mxu0 %v5643
    %6235 = vmatprep.subr.bf16.mxu0 %v5648
    %6236 = vmatpush1.bf16.msra.mxu0 %v5647
    %6237 = vmatprep.subr.bf16.mxu0 %v5652
    %6238 = vmatpush1.bf16.msra.mxu0 %v5651
    %6239 = vmatprep.subr.bf16.mxu0 %v5656
    %6240 = vmatpush1.bf16.msra.mxu0 %v5655
    %6241 = vmatprep.subr.bf16.mxu0 %v5660
    %6242 = vmatpush1.bf16.msra.mxu0 %v5659
    %6243 = vmatprep.subr.bf16.mxu0 %v5664
    %6244 = vmatpush1.bf16.msra.mxu0 %v5663
    %6245 = vmatprep.subr.bf16.mxu0 %v5668
    %6246 = vmatpush1.bf16.msra.mxu0 %v5667
    %6247 = vmatprep.subr.bf16.mxu0 %v5672
    %6248 = vmatpush1.bf16.msra.mxu0 %v5671
    %6249 = vmatprep.subr.bf16.mxu0 %v5676
    %6250 = vmatpush1.bf16.msra.mxu0 %v5675
    %6251 = vmatprep.subr.bf16.mxu0 %v5680
    %6252 = vmatpush1.bf16.msra.mxu0 %v5679
    %6253 = vmatprep.subr.bf16.mxu0 %v5684
    %6254 = vmatpush1.bf16.msra.mxu0 %v5683
    %6255 = vmatprep.subr.bf16.mxu0 %v5688
    %6256 = vmatpush1.bf16.msra.mxu0 %v5687
    %6257 = vmatprep.subr.bf16.mxu0 %v5692
    %6258 = vmatpush1.bf16.msra.mxu0 %v5691
    %6259 = vmatprep.subr.bf16.mxu0 %v5696
    %6260 = vmatpush1.bf16.msra.mxu0 %v5695
    %6261 = vmatprep.subr.bf16.mxu0 %v5700
    %6262 = vmatpush1.bf16.msra.mxu0 %v5699
    %6263 = vmatprep.subr.bf16.mxu0 %v5704
    %6264 = vmatpush1.bf16.msra.mxu0 %v5703
    %6265 = vmatprep.mubr.bf16.mxu0 %v5572
    %6266 = vmatmul.mubr.bf16.gmra.mrb[0].mxu0 %v5571
    %v6267 = vpop.f32.mrb[0].mxu0
    %v6268 = vadd.f32 %v6215, %v6267
    %v6269 = vpop.f32.mrb[0].mxu0
    %v6270 = vadd.f32 %v6217, %v6269
    %v6271 = vpop.f32.mrb[0].mxu0
    %v6272 = vadd.f32 %v6219, %v6271
    %v6273 = vpop.f32.mrb[0].mxu0
    %v6274 = vadd.f32 %v6221, %v6273
    %6275 = vmatprep.mubr.bf16.mxu0 %v5576
    %6276 = vmatmul.mubr.bf16.gmra.mrb[0].mxu0 %v5575
    %v6277 = vpop.f32.mrb[0].mxu0
    %v6278 = vadd.f32 %v6225, %v6277
    %v6279 = vpop.f32.mrb[0].mxu0
    %v6280 = vadd.f32 %v6227, %v6279
    %v6281 = vpop.f32.mrb[0].mxu0
    %v6282 = vadd.f32 %v6229, %v6281
    %v6283 = vpop.f32.mrb[0].mxu0
    %v6284 = vadd.f32 %v6231, %v6283
    %6285 = vdwg.mxu0
    %s6286 = scalar_lea.vmem [#allocation6], 2048
    %v6287 = vld [vmem:[%s6286] sm:$0xff]
    %v6288 = vld [vmem:[%s6286 + $0x8] sm:$0xff]
    %v6289 = vld [vmem:[%s6286 + $0x10] sm:$0xff]
    %v6290 = vld [vmem:[%s6286 + $0x18] sm:$0xff]
    %v6291 = vld [vmem:[%s6286 + $0x20] sm:$0xff]
    %v6292 = vld [vmem:[%s6286 + $0x28] sm:$0xff]
    %v6293 = vld [vmem:[%s6286 + $0x30] sm:$0xff]
    %v6294 = vld [vmem:[%s6286 + $0x38] sm:$0xff]
    %v6295 = vld [vmem:[%s6286 + $0x40] sm:$0xff]
    %v6296 = vld [vmem:[%s6286 + $0x48] sm:$0xff]
    %v6297 = vld [vmem:[%s6286 + $0x50] sm:$0xff]
    %v6298 = vld [vmem:[%s6286 + $0x58] sm:$0xff]
    %v6299 = vld [vmem:[%s6286 + $0x60] sm:$0xff]
    %v6300 = vld [vmem:[%s6286 + $0x68] sm:$0xff]
    %v6301 = vld [vmem:[%s6286 + $0x70] sm:$0xff]
    %v6302 = vld [vmem:[%s6286 + $0x78] sm:$0xff]
    %v6303 = vld [vmem:[%s6286 + $0x80] sm:$0xff]
    %v6304 = vld [vmem:[%s6286 + $0x88] sm:$0xff]
    %v6305 = vld [vmem:[%s6286 + $0x90] sm:$0xff]
    %v6306 = vld [vmem:[%s6286 + $0x98] sm:$0xff]
    %v6307 = vld [vmem:[%s6286 + $0xa0] sm:$0xff]
    %v6308 = vld [vmem:[%s6286 + $0xa8] sm:$0xff]
    %v6309 = vld [vmem:[%s6286 + $0xb0] sm:$0xff]
    %v6310 = vld [vmem:[%s6286 + $0xb8] sm:$0xff]
    %v6311 = vld [vmem:[%s6286 + $0xc0] sm:$0xff]
    %v6312 = vld [vmem:[%s6286 + $0xc8] sm:$0xff]
    %v6313 = vld [vmem:[%s6286 + $0xd0] sm:$0xff]
    %v6314 = vld [vmem:[%s6286 + $0xd8] sm:$0xff]
    %v6315 = vld [vmem:[%s6286 + $0xe0] sm:$0xff]
    %v6316 = vld [vmem:[%s6286 + $0xe8] sm:$0xff]
    %v6317 = vld [vmem:[%s6286 + $0xf0] sm:$0xff]
    %v6318 = vld [vmem:[%s6286 + $0xf8] sm:$0xff]
    %v6319 = vld [vmem:[%s6286 + $0x100] sm:$0xff]
    %v6320 = vld [vmem:[%s6286 + $0x108] sm:$0xff]
    %v6321 = vld [vmem:[%s6286 + $0x110] sm:$0xff]
    %v6322 = vld [vmem:[%s6286 + $0x118] sm:$0xff]
    %v6323 = vld [vmem:[%s6286 + $0x120] sm:$0xff]
    %v6324 = vld [vmem:[%s6286 + $0x128] sm:$0xff]
    %v6325 = vld [vmem:[%s6286 + $0x130] sm:$0xff]
    %v6326 = vld [vmem:[%s6286 + $0x138] sm:$0xff]
    %v6327 = vld [vmem:[%s6286 + $0x140] sm:$0xff]
    %v6328 = vld [vmem:[%s6286 + $0x148] sm:$0xff]
    %v6329 = vld [vmem:[%s6286 + $0x150] sm:$0xff]
    %v6330 = vld [vmem:[%s6286 + $0x158] sm:$0xff]
    %v6331 = vld [vmem:[%s6286 + $0x160] sm:$0xff]
    %v6332 = vld [vmem:[%s6286 + $0x168] sm:$0xff]
    %v6333 = vld [vmem:[%s6286 + $0x170] sm:$0xff]
    %v6334 = vld [vmem:[%s6286 + $0x178] sm:$0xff]
    %v6335 = vld [vmem:[%s6286 + $0x180] sm:$0xff]
    %v6336 = vld [vmem:[%s6286 + $0x188] sm:$0xff]
    %v6337 = vld [vmem:[%s6286 + $0x190] sm:$0xff]
    %v6338 = vld [vmem:[%s6286 + $0x198] sm:$0xff]
    %v6339 = vld [vmem:[%s6286 + $0x1a0] sm:$0xff]
    %v6340 = vld [vmem:[%s6286 + $0x1a8] sm:$0xff]
    %v6341 = vld [vmem:[%s6286 + $0x1b0] sm:$0xff]
    %v6342 = vld [vmem:[%s6286 + $0x1b8] sm:$0xff]
    %v6343 = vld [vmem:[%s6286 + $0x1c0] sm:$0xff]
    %v6344 = vld [vmem:[%s6286 + $0x1c8] sm:$0xff]
    %v6345 = vld [vmem:[%s6286 + $0x1d0] sm:$0xff]
    %v6346 = vld [vmem:[%s6286 + $0x1d8] sm:$0xff]
    %v6347 = vld [vmem:[%s6286 + $0x1e0] sm:$0xff]
    %v6348 = vld [vmem:[%s6286 + $0x1e8] sm:$0xff]
    %v6349 = vld [vmem:[%s6286 + $0x1f0] sm:$0xff]
    %v6350 = vld [vmem:[%s6286 + $0x1f8] sm:$0xff]
    %v6351 = vld [vmem:[%s6286 + $0x200] sm:$0xff]
    %v6352 = vld [vmem:[%s6286 + $0x208] sm:$0xff]
    %v6353 = vld [vmem:[%s6286 + $0x210] sm:$0xff]
    %v6354 = vld [vmem:[%s6286 + $0x218] sm:$0xff]
    %v6355 = vld [vmem:[%s6286 + $0x220] sm:$0xff]
    %v6356 = vld [vmem:[%s6286 + $0x228] sm:$0xff]
    %v6357 = vld [vmem:[%s6286 + $0x230] sm:$0xff]
    %v6358 = vld [vmem:[%s6286 + $0x238] sm:$0xff]
    %v6359 = vld [vmem:[%s6286 + $0x240] sm:$0xff]
    %v6360 = vld [vmem:[%s6286 + $0x248] sm:$0xff]
    %v6361 = vld [vmem:[%s6286 + $0x250] sm:$0xff]
    %v6362 = vld [vmem:[%s6286 + $0x258] sm:$0xff]
    %v6363 = vld [vmem:[%s6286 + $0x260] sm:$0xff]
    %v6364 = vld [vmem:[%s6286 + $0x268] sm:$0xff]
    %v6365 = vld [vmem:[%s6286 + $0x270] sm:$0xff]
    %v6366 = vld [vmem:[%s6286 + $0x278] sm:$0xff]
    %v6367 = vld [vmem:[%s6286 + $0x280] sm:$0xff]
    %v6368 = vld [vmem:[%s6286 + $0x288] sm:$0xff]
    %v6369 = vld [vmem:[%s6286 + $0x290] sm:$0xff]
    %v6370 = vld [vmem:[%s6286 + $0x298] sm:$0xff]
    %v6371 = vld [vmem:[%s6286 + $0x2a0] sm:$0xff]
    %v6372 = vld [vmem:[%s6286 + $0x2a8] sm:$0xff]
    %v6373 = vld [vmem:[%s6286 + $0x2b0] sm:$0xff]
    %v6374 = vld [vmem:[%s6286 + $0x2b8] sm:$0xff]
    %v6375 = vld [vmem:[%s6286 + $0x2c0] sm:$0xff]
    %v6376 = vld [vmem:[%s6286 + $0x2c8] sm:$0xff]
    %v6377 = vld [vmem:[%s6286 + $0x2d0] sm:$0xff]
    %v6378 = vld [vmem:[%s6286 + $0x2d8] sm:$0xff]
    %v6379 = vld [vmem:[%s6286 + $0x2e0] sm:$0xff]
    %v6380 = vld [vmem:[%s6286 + $0x2e8] sm:$0xff]
    %v6381 = vld [vmem:[%s6286 + $0x2f0] sm:$0xff]
    %v6382 = vld [vmem:[%s6286 + $0x2f8] sm:$0xff]
    %v6383 = vld [vmem:[%s6286 + $0x300] sm:$0xff]
    %v6384 = vld [vmem:[%s6286 + $0x308] sm:$0xff]
    %v6385 = vld [vmem:[%s6286 + $0x310] sm:$0xff]
    %v6386 = vld [vmem:[%s6286 + $0x318] sm:$0xff]
    %v6387 = vld [vmem:[%s6286 + $0x320] sm:$0xff]
    %v6388 = vld [vmem:[%s6286 + $0x328] sm:$0xff]
    %v6389 = vld [vmem:[%s6286 + $0x330] sm:$0xff]
    %v6390 = vld [vmem:[%s6286 + $0x338] sm:$0xff]
    %v6391 = vld [vmem:[%s6286 + $0x340] sm:$0xff]
    %v6392 = vld [vmem:[%s6286 + $0x348] sm:$0xff]
    %v6393 = vld [vmem:[%s6286 + $0x350] sm:$0xff]
    %v6394 = vld [vmem:[%s6286 + $0x358] sm:$0xff]
    %v6395 = vld [vmem:[%s6286 + $0x360] sm:$0xff]
    %v6396 = vld [vmem:[%s6286 + $0x368] sm:$0xff]
    %v6397 = vld [vmem:[%s6286 + $0x370] sm:$0xff]
    %v6398 = vld [vmem:[%s6286 + $0x378] sm:$0xff]
    %v6399 = vld [vmem:[%s6286 + $0x380] sm:$0xff]
    %v6400 = vld [vmem:[%s6286 + $0x388] sm:$0xff]
    %v6401 = vld [vmem:[%s6286 + $0x390] sm:$0xff]
    %v6402 = vld [vmem:[%s6286 + $0x398] sm:$0xff]
    %v6403 = vld [vmem:[%s6286 + $0x3a0] sm:$0xff]
    %v6404 = vld [vmem:[%s6286 + $0x3a8] sm:$0xff]
    %v6405 = vld [vmem:[%s6286 + $0x3b0] sm:$0xff]
    %v6406 = vld [vmem:[%s6286 + $0x3b8] sm:$0xff]
    %v6407 = vld [vmem:[%s6286 + $0x3c0] sm:$0xff]
    %v6408 = vld [vmem:[%s6286 + $0x3c8] sm:$0xff]
    %v6409 = vld [vmem:[%s6286 + $0x3d0] sm:$0xff]
    %v6410 = vld [vmem:[%s6286 + $0x3d8] sm:$0xff]
    %v6411 = vld [vmem:[%s6286 + $0x3e0] sm:$0xff]
    %v6412 = vld [vmem:[%s6286 + $0x3e8] sm:$0xff]
    %v6413 = vld [vmem:[%s6286 + $0x3f0] sm:$0xff]
    %v6414 = vld [vmem:[%s6286 + $0x3f8] sm:$0xff]
    %v6415 = vrot.slane %v5569, 2
    %v6416 = vrot.slane %v5573, 2
    %v6417 = vsel %vm680, %v6415, %v6416
    %v6418 = vrot.slane %v5570, 2
    %v6419 = vrot.slane %v5574, 2
    %v6420 = vsel %vm680, %v6418, %v6419
    %v6421 = vrot.slane %v5571, 2
    %v6422 = vrot.slane %v5575, 2
    %v6423 = vsel %vm680, %v6421, %v6422
    %v6424 = vrot.slane %v5572, 2
    %v6425 = vrot.slane %v5576, 2
    %v6426 = vsel %vm680, %v6424, %v6425
    %6435 = vmatprep.subr.bf16.mxu0 %v6288
    %6436 = vmatpush1.bf16.msra.mxu0 %v6287
    %6437 = vmatprep.subr.bf16.mxu0 %v6292
    %6438 = vmatpush1.bf16.msra.mxu0 %v6291
    %6439 = vmatprep.subr.bf16.mxu0 %v6296
    %6440 = vmatpush1.bf16.msra.mxu0 %v6295
    %6441 = vmatprep.subr.bf16.mxu0 %v6300
    %6442 = vmatpush1.bf16.msra.mxu0 %v6299
    %6443 = vmatprep.subr.bf16.mxu0 %v6304
    %6444 = vmatpush1.bf16.msra.mxu0 %v6303
    %6445 = vmatprep.subr.bf16.mxu0 %v6308
    %6446 = vmatpush1.bf16.msra.mxu0 %v6307
    %6447 = vmatprep.subr.bf16.mxu0 %v6312
    %6448 = vmatpush1.bf16.msra.mxu0 %v6311
    %6449 = vmatprep.subr.bf16.mxu0 %v6316
    %6450 = vmatpush1.bf16.msra.mxu0 %v6315
    %6451 = vmatprep.subr.bf16.mxu0 %v6320
    %6452 = vmatpush1.bf16.msra.mxu0 %v6319
    %6453 = vmatprep.subr.bf16.mxu0 %v6324
    %6454 = vmatpush1.bf16.msra.mxu0 %v6323
    %6455 = vmatprep.subr.bf16.mxu0 %v6328
    %6456 = vmatpush1.bf16.msra.mxu0 %v6327
    %6457 = vmatprep.subr.bf16.mxu0 %v6332
    %6458 = vmatpush1.bf16.msra.mxu0 %v6331
    %6459 = vmatprep.subr.bf16.mxu0 %v6336
    %6460 = vmatpush1.bf16.msra.mxu0 %v6335
    %6461 = vmatprep.subr.bf16.mxu0 %v6340
    %6462 = vmatpush1.bf16.msra.mxu0 %v6339
    %6463 = vmatprep.subr.bf16.mxu0 %v6344
    %6464 = vmatpush1.bf16.msra.mxu0 %v6343
    %6465 = vmatprep.subr.bf16.mxu0 %v6348
    %6466 = vmatpush1.bf16.msra.mxu0 %v6347
    %6467 = vmatprep.mubr.bf16.mxu0 %v6420
    %6468 = vmatmul.mubr.bf16.gmra.mrb[0].mxu0 %v6417
    %v6469 = vpop.f32.mrb[0].mxu0
    %v6470 = vadd.f32 0.0, %v6469
    %v6471 = vpop.f32.mrb[0].mxu0
    %v6472 = vadd.f32 0.0, %v6471
    %v6473 = vpop.f32.mrb[0].mxu0
    %v6474 = vadd.f32 0.0, %v6473
    %v6475 = vpop.f32.mrb[0].mxu0
    %v6476 = vadd.f32 0.0, %v6475
    %6477 = vmatprep.mubr.bf16.mxu0 %v6419
    %6478 = vmatmul.mubr.bf16.gmra.mrb[0].mxu0 %v6416
    %v6479 = vpop.f32.mrb[0].mxu0
    %v6480 = vadd.f32 0.0, %v6479
    %v6481 = vpop.f32.mrb[0].mxu0
    %v6482 = vadd.f32 0.0, %v6481
    %v6483 = vpop.f32.mrb[0].mxu0
    %v6484 = vadd.f32 0.0, %v6483
    %v6485 = vpop.f32.mrb[0].mxu0
    %v6486 = vadd.f32 0.0, %v6485
    %6487 = vdwg.mxu0
    %6488 = vmatprep.subr.bf16.mxu0 %v6352
    %6489 = vmatpush1.bf16.msra.mxu0 %v6351
    %6490 = vmatprep.subr.bf16.mxu0 %v6356
    %6491 = vmatpush1.bf16.msra.mxu0 %v6355
    %6492 = vmatprep.subr.bf16.mxu0 %v6360
    %6493 = vmatpush1.bf16.msra.mxu0 %v6359
    %6494 = vmatprep.subr.bf16.mxu0 %v6364
    %6495 = vmatpush1.bf16.msra.mxu0 %v6363
    %6496 = vmatprep.subr.bf16.mxu0 %v6368
    %6497 = vmatpush1.bf16.msra.mxu0 %v6367
    %6498 = vmatprep.subr.bf16.mxu0 %v6372
    %6499 = vmatpush1.bf16.msra.mxu0 %v6371
    %6500 = vmatprep.subr.bf16.mxu0 %v6376
    %6501 = vmatpush1.bf16.msra.mxu0 %v6375
    %6502 = vmatprep.subr.bf16.mxu0 %v6380
    %6503 = vmatpush1.bf16.msra.mxu0 %v6379
    %6504 = vmatprep.subr.bf16.mxu0 %v6384
    %6505 = vmatpush1.bf16.msra.mxu0 %v6383
    %6506 = vmatprep.subr.bf16.mxu0 %v6388
    %6507 = vmatpush1.bf16.msra.mxu0 %v6387
    %6508 = vmatprep.subr.bf16.mxu0 %v6392
    %6509 = vmatpush1.bf16.msra.mxu0 %v6391
    %6510 = vmatprep.subr.bf16.mxu0 %v6396
    %6511 = vmatpush1.bf16.msra.mxu0 %v6395
    %6512 = vmatprep.subr.bf16.mxu0 %v6400
    %6513 = vmatpush1.bf16.msra.mxu0 %v6399
    %6514 = vmatprep.subr.bf16.mxu0 %v6404
    %6515 = vmatpush1.bf16.msra.mxu0 %v6403
    %6516 = vmatprep.subr.bf16.mxu0 %v6408
    %6517 = vmatpush1.bf16.msra.mxu0 %v6407
    %6518 = vmatprep.subr.bf16.mxu0 %v6412
    %6519 = vmatpush1.bf16.msra.mxu0 %v6411
    %6520 = vmatprep.mubr.bf16.mxu0 %v6426
    %6521 = vmatmul.mubr.bf16.gmra.mrb[0].mxu0 %v6423
    %v6522 = vpop.f32.mrb[0].mxu0
    %v6523 = vadd.f32 %v6470, %v6522
    %v6524 = vpop.f32.mrb[0].mxu0
    %v6525 = vadd.f32 %v6472, %v6524
    %v6526 = vpop.f32.mrb[0].mxu0
    %v6527 = vadd.f32 %v6474, %v6526
    %v6528 = vpop.f32.mrb[0].mxu0
    %v6529 = vadd.f32 %v6476, %v6528
    %6530 = vmatprep.mubr.bf16.mxu0 %v6425
    %6531 = vmatmul.mubr.bf16.gmra.mrb[0].mxu0 %v6422
    %v6532 = vpop.f32.mrb[0].mxu0
    %v6533 = vadd.f32 %v6480, %v6532
    %v6534 = vpop.f32.mrb[0].mxu0
    %v6535 = vadd.f32 %v6482, %v6534
    %v6536 = vpop.f32.mrb[0].mxu0
    %v6537 = vadd.f32 %v6484, %v6536
    %v6538 = vpop.f32.mrb[0].mxu0
    %v6539 = vadd.f32 %v6486, %v6538
    %6540 = vdwg.mxu0
    %6541 = vmatprep.subr.bf16.mxu0 %v6290
    %6542 = vmatpush1.bf16.msra.mxu0 %v6289
    %6543 = vmatprep.subr.bf16.mxu0 %v6294
    %6544 = vmatpush1.bf16.msra.mxu0 %v6293
    %6545 = vmatprep.subr.bf16.mxu0 %v6298
    %6546 = vmatpush1.bf16.msra.mxu0 %v6297
    %6547 = vmatprep.subr.bf16.mxu0 %v6302
    %6548 = vmatpush1.bf16.msra.mxu0 %v6301
    %6549 = vmatprep.subr.bf16.mxu0 %v6306
    %6550 = vmatpush1.bf16.msra.mxu0 %v6305
    %6551 = vmatprep.subr.bf16.mxu0 %v6310
    %6552 = vmatpush1.bf16.msra.mxu0 %v6309
    %6553 = vmatprep.subr.bf16.mxu0 %v6314
    %6554 = vmatpush1.bf16.msra.mxu0 %v6313
    %6555 = vmatprep.subr.bf16.mxu0 %v6318
    %6556 = vmatpush1.bf16.msra.mxu0 %v6317
    %6557 = vmatprep.subr.bf16.mxu0 %v6322
    %6558 = vmatpush1.bf16.msra.mxu0 %v6321
    %6559 = vmatprep.subr.bf16.mxu0 %v6326
    %6560 = vmatpush1.bf16.msra.mxu0 %v6325
    %6561 = vmatprep.subr.bf16.mxu0 %v6330
    %6562 = vmatpush1.bf16.msra.mxu0 %v6329
    %6563 = vmatprep.subr.bf16.mxu0 %v6334
    %6564 = vmatpush1.bf16.msra.mxu0 %v6333
    %6565 = vmatprep.subr.bf16.mxu0 %v6338
    %6566 = vmatpush1.bf16.msra.mxu0 %v6337
    %6567 = vmatprep.subr.bf16.mxu0 %v6342
    %6568 = vmatpush1.bf16.msra.mxu0 %v6341
    %6569 = vmatprep.subr.bf16.mxu0 %v6346
    %6570 = vmatpush1.bf16.msra.mxu0 %v6345
    %6571 = vmatprep.subr.bf16.mxu0 %v6350
    %6572 = vmatpush1.bf16.msra.mxu0 %v6349
    %6573 = vmatprep.mubr.bf16.mxu0 %v6420
    %6574 = vmatmul.mubr.bf16.gmra.mrb[0].mxu0 %v6417
    %v6575 = vpop.f32.mrb[0].mxu0
    %v6576 = vadd.f32 0.0, %v6575
    %v6577 = vpop.f32.mrb[0].mxu0
    %v6578 = vadd.f32 0.0, %v6577
    %v6579 = vpop.f32.mrb[0].mxu0
    %v6580 = vadd.f32 0.0, %v6579
    %v6581 = vpop.f32.mrb[0].mxu0
    %v6582 = vadd.f32 0.0, %v6581
    %6583 = vmatprep.mubr.bf16.mxu0 %v6419
    %6584 = vmatmul.mubr.bf16.gmra.mrb[0].mxu0 %v6416
    %v6585 = vpop.f32.mrb[0].mxu0
    %v6586 = vadd.f32 0.0, %v6585
    %v6587 = vpop.f32.mrb[0].mxu0
    %v6588 = vadd.f32 0.0, %v6587
    %v6589 = vpop.f32.mrb[0].mxu0
    %v6590 = vadd.f32 0.0, %v6589
    %v6591 = vpop.f32.mrb[0].mxu0
    %v6592 = vadd.f32 0.0, %v6591
    %6593 = vdwg.mxu0
    %6594 = vmatprep.subr.bf16.mxu0 %v6354
    %6595 = vmatpush1.bf16.msra.mxu0 %v6353
    %6596 = vmatprep.subr.bf16.mxu0 %v6358
    %6597 = vmatpush1.bf16.msra.mxu0 %v6357
    %6598 = vmatprep.subr.bf16.mxu0 %v6362
    %6599 = vmatpush1.bf16.msra.mxu0 %v6361
    %6600 = vmatprep.subr.bf16.mxu0 %v6366
    %6601 = vmatpush1.bf16.msra.mxu0 %v6365
    %6602 = vmatprep.subr.bf16.mxu0 %v6370
    %6603 = vmatpush1.bf16.msra.mxu0 %v6369
    %6604 = vmatprep.subr.bf16.mxu0 %v6374
    %6605 = vmatpush1.bf16.msra.mxu0 %v6373
    %6606 = vmatprep.subr.bf16.mxu0 %v6378
    %6607 = vmatpush1.bf16.msra.mxu0 %v6377
    %6608 = vmatprep.subr.bf16.mxu0 %v6382
    %6609 = vmatpush1.bf16.msra.mxu0 %v6381
    %6610 = vmatprep.subr.bf16.mxu0 %v6386
    %6611 = vmatpush1.bf16.msra.mxu0 %v6385
    %6612 = vmatprep.subr.bf16.mxu0 %v6390
    %6613 = vmatpush1.bf16.msra.mxu0 %v6389
    %6614 = vmatprep.subr.bf16.mxu0 %v6394
    %6615 = vmatpush1.bf16.msra.mxu0 %v6393
    %6616 = vmatprep.subr.bf16.mxu0 %v6398
    %6617 = vmatpush1.bf16.msra.mxu0 %v6397
    %6618 = vmatprep.subr.bf16.mxu0 %v6402
    %6619 = vmatpush1.bf16.msra.mxu0 %v6401
    %6620 = vmatprep.subr.bf16.mxu0 %v6406
    %6621 = vmatpush1.bf16.msra.mxu0 %v6405
    %6622 = vmatprep.subr.bf16.mxu0 %v6410
    %6623 = vmatpush1.bf16.msra.mxu0 %v6409
    %6624 = vmatprep.subr.bf16.mxu0 %v6414
    %6625 = vmatpush1.bf16.msra.mxu0 %v6413
    %6626 = vmatprep.mubr.bf16.mxu0 %v6426
    %6627 = vmatmul.mubr.bf16.gmra.mrb[0].mxu0 %v6423
    %v6628 = vpop.f32.mrb[0].mxu0
    %v6629 = vadd.f32 %v6576, %v6628
    %v6630 = vpop.f32.mrb[0].mxu0
    %v6631 = vadd.f32 %v6578, %v6630
    %v6632 = vpop.f32.mrb[0].mxu0
    %v6633 = vadd.f32 %v6580, %v6632
    %v6634 = vpop.f32.mrb[0].mxu0
    %v6635 = vadd.f32 %v6582, %v6634
    %6636 = vmatprep.mubr.bf16.mxu0 %v6425
    %6637 = vmatmul.mubr.bf16.gmra.mrb[0].mxu0 %v6422
    %v6638 = vpop.f32.mrb[0].mxu0
    %v6639 = vadd.f32 %v6586, %v6638
    %v6640 = vpop.f32.mrb[0].mxu0
    %v6641 = vadd.f32 %v6588, %v6640
    %v6642 = vpop.f32.mrb[0].mxu0
    %v6643 = vadd.f32 %v6590, %v6642
    %v6644 = vpop.f32.mrb[0].mxu0
    %v6645 = vadd.f32 %v6592, %v6644
    %6646 = vdwg.mxu0
    %v6647 = vadd.f32 %v6162, %v6523
    %v6648 = vadd.f32 %v6164, %v6525
    %v6649 = vadd.f32 %v6268, %v6629
    %v6650 = vadd.f32 %v6270, %v6631
    %v6651 = vadd.f32 %v6166, %v6527
    %v6652 = vadd.f32 %v6168, %v6529
    %v6653 = vadd.f32 %v6272, %v6633
    %v6654 = vadd.f32 %v6274, %v6635
    %v6655 = vadd.f32 %v6172, %v6533
    %v6656 = vadd.f32 %v6174, %v6535
    %v6657 = vadd.f32 %v6278, %v6639
    %v6658 = vadd.f32 %v6280, %v6641
    %v6659 = vadd.f32 %v6176, %v6537
    %v6660 = vadd.f32 %v6178, %v6539
    %v6661 = vadd.f32 %v6282, %v6643
    %v6662 = vadd.f32 %v6284, %v6645
    %v6663 = vld [vmem:[#allocation18] sm:$0xf]
    %v6665 = vlaneseq
    %v6666 = vshrl.u32 %v6665, 7
    %v6667 = vsub.s32 0, %v6666
    %v6668 = vrot.slane %v6663, %v6667
    %v6669 = vlaneseq
    %v6670 = vshrl.u32 %v6669, 7
    %v6671 = vsub.s32 1, %v6670
    %v6672 = vrot.slane %v6663, %v6671
    %v6673 = vlaneseq
    %v6674 = vshrl.u32 %v6673, 7
    %v6675 = vsub.s32 2, %v6674
    %v6676 = vrot.slane %v6663, %v6675
    %v6677 = vlaneseq
    %v6678 = vshrl.u32 %v6677, 7
    %v6679 = vsub.s32 3, %v6678
    %v6680 = vrot.slane %v6663, %v6679
    %v6685 = vadd.f32 %v6647, %v6668
    %v6686 = vadd.f32 %v6648, %v6672
    %v6687 = vadd.f32 %v6649, %v6676
    %v6688 = vadd.f32 %v6650, %v6680
    %v6689 = vadd.f32 %v6651, %v6668
    %v6690 = vadd.f32 %v6652, %v6672
    %v6691 = vadd.f32 %v6653, %v6676
    %v6692 = vadd.f32 %v6654, %v6680
    %v6693 = vadd.f32 %v6655, %v6668
    %v6694 = vadd.f32 %v6656, %v6672
    %v6695 = vadd.f32 %v6657, %v6676
    %v6696 = vadd.f32 %v6658, %v6680
    %v6697 = vadd.f32 %v6659, %v6668
    %v6698 = vadd.f32 %v6660, %v6672
    %v6699 = vadd.f32 %v6661, %v6676
    %v6700 = vadd.f32 %v6662, %v6680
    %v6701 = vmax.f32 %v6685, 0.0
    %v6702 = vmax.f32 %v6686, 0.0
    %v6703 = vmax.f32 %v6687, 0.0
    %v6704 = vmax.f32 %v6688, 0.0
    %v6705 = vmax.f32 %v6689, 0.0
    %v6706 = vmax.f32 %v6690, 0.0
    %v6707 = vmax.f32 %v6691, 0.0
    %v6708 = vmax.f32 %v6692, 0.0
    %v6709 = vmax.f32 %v6693, 0.0
    %v6710 = vmax.f32 %v6694, 0.0
    %v6711 = vmax.f32 %v6695, 0.0
    %v6712 = vmax.f32 %v6696, 0.0
    %v6713 = vmax.f32 %v6697, 0.0
    %v6714 = vmax.f32 %v6698, 0.0
    %v6715 = vmax.f32 %v6699, 0.0
    %v6716 = vmax.f32 %v6700, 0.0
    %v6717 = vpack.c.bf16 %v6705, %v6701
    %v6718 = vpack.c.bf16 %v6706, %v6702
    %v6719 = vpack.c.bf16 %v6707, %v6703
    %v6720 = vpack.c.bf16 %v6708, %v6704
    %v6721 = vpack.c.bf16 %v6713, %v6709
    %v6722 = vpack.c.bf16 %v6714, %v6710
    %v6723 = vpack.c.bf16 %v6715, %v6711
    %v6724 = vpack.c.bf16 %v6716, %v6712
    %s6725 = smul.u32 4, 14
    %s6726 = smul.u32 %s6725, 64
    %s6727 = smul.u32 %s6726, 2
    %s6728 = sshll.u32 %s6727, 4
    %6729 = dma.done %s213, %s6728
    %v6730 = vld [vmem:[#allocation7] sm:$0xff]
    %v6731 = vld [vmem:[#allocation7 + $0x8] sm:$0xff]
    %v6732 = vld [vmem:[#allocation7 + $0x10] sm:$0xff]
    %v6733 = vld [vmem:[#allocation7 + $0x18] sm:$0xff]
    %v6734 = vld [vmem:[#allocation7 + $0x20] sm:$0xff]
    %v6735 = vld [vmem:[#allocation7 + $0x28] sm:$0xff]
    %v6736 = vld [vmem:[#allocation7 + $0x30] sm:$0xff]
    %v6737 = vld [vmem:[#allocation7 + $0x38] sm:$0xff]
    %v6738 = vld [vmem:[#allocation7 + $0x40] sm:$0xff]
    %v6739 = vld [vmem:[#allocation7 + $0x48] sm:$0xff]
    %v6740 = vld [vmem:[#allocation7 + $0x50] sm:$0xff]
    %v6741 = vld [vmem:[#allocation7 + $0x58] sm:$0xff]
    %v6742 = vld [vmem:[#allocation7 + $0x60] sm:$0xff]
    %v6743 = vld [vmem:[#allocation7 + $0x68] sm:$0xff]
    %v6744 = vld [vmem:[#allocation7 + $0x70] sm:$0xff]
    %v6745 = vld [vmem:[#allocation7 + $0x78] sm:$0xff]
    %v6746 = vld [vmem:[#allocation7 + $0x80] sm:$0xff]
    %v6747 = vld [vmem:[#allocation7 + $0x88] sm:$0xff]
    %v6748 = vld [vmem:[#allocation7 + $0x90] sm:$0xff]
    %v6749 = vld [vmem:[#allocation7 + $0x98] sm:$0xff]
    %v6750 = vld [vmem:[#allocation7 + $0xa0] sm:$0xff]
    %v6751 = vld [vmem:[#allocation7 + $0xa8] sm:$0xff]
    %v6752 = vld [vmem:[#allocation7 + $0xb0] sm:$0xff]
    %v6753 = vld [vmem:[#allocation7 + $0xb8] sm:$0xff]
    %v6754 = vld [vmem:[#allocation7 + $0xc0] sm:$0xff]
    %v6755 = vld [vmem:[#allocation7 + $0xc8] sm:$0xff]
    %v6756 = vld [vmem:[#allocation7 + $0xd0] sm:$0xff]
    %v6757 = vld [vmem:[#allocation7 + $0xd8] sm:$0xff]
    %v6758 = vld [vmem:[#allocation7 + $0xe0] sm:$0xff]
    %v6759 = vld [vmem:[#allocation7 + $0xe8] sm:$0xff]
    %v6760 = vld [vmem:[#allocation7 + $0xf0] sm:$0xff]
    %v6761 = vld [vmem:[#allocation7 + $0xf8] sm:$0xff]
    %v6762 = vld [vmem:[#allocation7 + $0x100] sm:$0xff]
    %v6763 = vld [vmem:[#allocation7 + $0x108] sm:$0xff]
    %v6764 = vld [vmem:[#allocation7 + $0x110] sm:$0xff]
    %v6765 = vld [vmem:[#allocation7 + $0x118] sm:$0xff]
    %v6766 = vld [vmem:[#allocation7 + $0x120] sm:$0xff]
    %v6767 = vld [vmem:[#allocation7 + $0x128] sm:$0xff]
    %v6768 = vld [vmem:[#allocation7 + $0x130] sm:$0xff]
    %v6769 = vld [vmem:[#allocation7 + $0x138] sm:$0xff]
    %v6770 = vld [vmem:[#allocation7 + $0x140] sm:$0xff]
    %v6771 = vld [vmem:[#allocation7 + $0x148] sm:$0xff]
    %v6772 = vld [vmem:[#allocation7 + $0x150] sm:$0xff]
    %v6773 = vld [vmem:[#allocation7 + $0x158] sm:$0xff]
    %v6774 = vld [vmem:[#allocation7 + $0x160] sm:$0xff]
    %v6775 = vld [vmem:[#allocation7 + $0x168] sm:$0xff]
    %v6776 = vld [vmem:[#allocation7 + $0x170] sm:$0xff]
    %v6777 = vld [vmem:[#allocation7 + $0x178] sm:$0xff]
    %v6778 = vld [vmem:[#allocation7 + $0x180] sm:$0xff]
    %v6779 = vld [vmem:[#allocation7 + $0x188] sm:$0xff]
    %v6780 = vld [vmem:[#allocation7 + $0x190] sm:$0xff]
    %v6781 = vld [vmem:[#allocation7 + $0x198] sm:$0xff]
    %v6782 = vld [vmem:[#allocation7 + $0x1a0] sm:$0xff]
    %v6783 = vld [vmem:[#allocation7 + $0x1a8] sm:$0xff]
    %v6784 = vld [vmem:[#allocation7 + $0x1b0] sm:$0xff]
    %v6785 = vld [vmem:[#allocation7 + $0x1b8] sm:$0xff]
    %v6786 = vld [vmem:[#allocation7 + $0x1c0] sm:$0xff]
    %v6787 = vld [vmem:[#allocation7 + $0x1c8] sm:$0xff]
    %v6788 = vld [vmem:[#allocation7 + $0x1d0] sm:$0xff]
    %v6789 = vld [vmem:[#allocation7 + $0x1d8] sm:$0xff]
    %v6790 = vld [vmem:[#allocation7 + $0x1e0] sm:$0xff]
    %v6791 = vld [vmem:[#allocation7 + $0x1e8] sm:$0xff]
    %v6792 = vld [vmem:[#allocation7 + $0x1f0] sm:$0xff]
    %v6793 = vld [vmem:[#allocation7 + $0x1f8] sm:$0xff]
    %s6794 = scalar_lea.vmem [#allocation7], 512
    %v6795 = vld [vmem:[%s6794] sm:$0xff]
    %v6796 = vld [vmem:[%s6794 + $0x8] sm:$0xff]
    %v6797 = vld [vmem:[%s6794 + $0x10] sm:$0xff]
    %v6798 = vld [vmem:[%s6794 + $0x18] sm:$0xff]
    %v6799 = vld [vmem:[%s6794 + $0x20] sm:$0xff]
    %v6800 = vld [vmem:[%s6794 + $0x28] sm:$0xff]
    %v6801 = vld [vmem:[%s6794 + $0x30] sm:$0xff]
    %v6802 = vld [vmem:[%s6794 + $0x38] sm:$0xff]
    %v6803 = vld [vmem:[%s6794 + $0x40] sm:$0xff]
    %v6804 = vld [vmem:[%s6794 + $0x48] sm:$0xff]
    %v6805 = vld [vmem:[%s6794 + $0x50] sm:$0xff]
    %v6806 = vld [vmem:[%s6794 + $0x58] sm:$0xff]
    %v6807 = vld [vmem:[%s6794 + $0x60] sm:$0xff]
    %v6808 = vld [vmem:[%s6794 + $0x68] sm:$0xff]
    %v6809 = vld [vmem:[%s6794 + $0x70] sm:$0xff]
    %v6810 = vld [vmem:[%s6794 + $0x78] sm:$0xff]
    %v6811 = vld [vmem:[%s6794 + $0x80] sm:$0xff]
    %v6812 = vld [vmem:[%s6794 + $0x88] sm:$0xff]
    %v6813 = vld [vmem:[%s6794 + $0x90] sm:$0xff]
    %v6814 = vld [vmem:[%s6794 + $0x98] sm:$0xff]
    %v6815 = vld [vmem:[%s6794 + $0xa0] sm:$0xff]
    %v6816 = vld [vmem:[%s6794 + $0xa8] sm:$0xff]
    %v6817 = vld [vmem:[%s6794 + $0xb0] sm:$0xff]
    %v6818 = vld [vmem:[%s6794 + $0xb8] sm:$0xff]
    %v6819 = vld [vmem:[%s6794 + $0xc0] sm:$0xff]
    %v6820 = vld [vmem:[%s6794 + $0xc8] sm:$0xff]
    %v6821 = vld [vmem:[%s6794 + $0xd0] sm:$0xff]
    %v6822 = vld [vmem:[%s6794 + $0xd8] sm:$0xff]
    %v6823 = vld [vmem:[%s6794 + $0xe0] sm:$0xff]
    %v6824 = vld [vmem:[%s6794 + $0xe8] sm:$0xff]
    %v6825 = vld [vmem:[%s6794 + $0xf0] sm:$0xff]
    %v6826 = vld [vmem:[%s6794 + $0xf8] sm:$0xff]
    %v6827 = vld [vmem:[%s6794 + $0x100] sm:$0xff]
    %v6828 = vld [vmem:[%s6794 + $0x108] sm:$0xff]
    %v6829 = vld [vmem:[%s6794 + $0x110] sm:$0xff]
    %v6830 = vld [vmem:[%s6794 + $0x118] sm:$0xff]
    %v6831 = vld [vmem:[%s6794 + $0x120] sm:$0xff]
    %v6832 = vld [vmem:[%s6794 + $0x128] sm:$0xff]
    %v6833 = vld [vmem:[%s6794 + $0x130] sm:$0xff]
    %v6834 = vld [vmem:[%s6794 + $0x138] sm:$0xff]
    %v6835 = vld [vmem:[%s6794 + $0x140] sm:$0xff]
    %v6836 = vld [vmem:[%s6794 + $0x148] sm:$0xff]
    %v6837 = vld [vmem:[%s6794 + $0x150] sm:$0xff]
    %v6838 = vld [vmem:[%s6794 + $0x158] sm:$0xff]
    %v6839 = vld [vmem:[%s6794 + $0x160] sm:$0xff]
    %v6840 = vld [vmem:[%s6794 + $0x168] sm:$0xff]
    %v6841 = vld [vmem:[%s6794 + $0x170] sm:$0xff]
    %v6842 = vld [vmem:[%s6794 + $0x178] sm:$0xff]
    %v6843 = vld [vmem:[%s6794 + $0x180] sm:$0xff]
    %v6844 = vld [vmem:[%s6794 + $0x188] sm:$0xff]
    %v6845 = vld [vmem:[%s6794 + $0x190] sm:$0xff]
    %v6846 = vld [vmem:[%s6794 + $0x198] sm:$0xff]
    %v6847 = vld [vmem:[%s6794 + $0x1a0] sm:$0xff]
    %v6848 = vld [vmem:[%s6794 + $0x1a8] sm:$0xff]
    %v6849 = vld [vmem:[%s6794 + $0x1b0] sm:$0xff]
    %v6850 = vld [vmem:[%s6794 + $0x1b8] sm:$0xff]
    %v6851 = vld [vmem:[%s6794 + $0x1c0] sm:$0xff]
    %v6852 = vld [vmem:[%s6794 + $0x1c8] sm:$0xff]
    %v6853 = vld [vmem:[%s6794 + $0x1d0] sm:$0xff]
    %v6854 = vld [vmem:[%s6794 + $0x1d8] sm:$0xff]
    %v6855 = vld [vmem:[%s6794 + $0x1e0] sm:$0xff]
    %v6856 = vld [vmem:[%s6794 + $0x1e8] sm:$0xff]
    %v6857 = vld [vmem:[%s6794 + $0x1f0] sm:$0xff]
    %v6858 = vld [vmem:[%s6794 + $0x1f8] sm:$0xff]
    %v6863 = vrot.slane %v6717, 1
    %v6864 = vrot.slane %v6718, 1
    %v6865 = vrot.slane %v6719, 1
    %v6866 = vrot.slane %v6720, 1
    %6871 = vmatprep.subr.bf16.mxu0 %v6796
    %6872 = vmatpush1.bf16.msra.mxu0 %v6795
    %6873 = vmatprep.subr.bf16.mxu0 %v6798
    %6874 = vmatpush1.bf16.msra.mxu0 %v6797
    %6875 = vmatprep.subr.bf16.mxu0 %v6800
    %6876 = vmatpush1.bf16.msra.mxu0 %v6799
    %6877 = vmatprep.subr.bf16.mxu0 %v6802
    %6878 = vmatpush1.bf16.msra.mxu0 %v6801
    %6879 = vmatprep.subr.bf16.mxu0 %v6804
    %6880 = vmatpush1.bf16.msra.mxu0 %v6803
    %6881 = vmatprep.subr.bf16.mxu0 %v6806
    %6882 = vmatpush1.bf16.msra.mxu0 %v6805
    %6883 = vmatprep.subr.bf16.mxu0 %v6808
    %6884 = vmatpush1.bf16.msra.mxu0 %v6807
    %6885 = vmatprep.subr.bf16.mxu0 %v6810
    %6886 = vmatpush1.bf16.msra.mxu0 %v6809
    %6887 = vmatprep.subr.bf16.mxu0 %v6812
    %6888 = vmatpush1.bf16.msra.mxu0 %v6811
    %6889 = vmatprep.subr.bf16.mxu0 %v6814
    %6890 = vmatpush1.bf16.msra.mxu0 %v6813
    %6891 = vmatprep.subr.bf16.mxu0 %v6816
    %6892 = vmatpush1.bf16.msra.mxu0 %v6815
    %6893 = vmatprep.subr.bf16.mxu0 %v6818
    %6894 = vmatpush1.bf16.msra.mxu0 %v6817
    %6895 = vmatprep.subr.bf16.mxu0 %v6820
    %6896 = vmatpush1.bf16.msra.mxu0 %v6819
    %6897 = vmatprep.subr.bf16.mxu0 %v6822
    %6898 = vmatpush1.bf16.msra.mxu0 %v6821
    %6899 = vmatprep.subr.bf16.mxu0 %v6824
    %6900 = vmatpush1.bf16.msra.mxu0 %v6823
    %6901 = vmatprep.subr.bf16.mxu0 %v6826
    %6902 = vmatpush1.bf16.msra.mxu0 %v6825
    %6903 = vmatprep.mubr.bf16.mxu0 %v6864
    %6904 = vmatmul.mubr.bf16.gmra.mrb[0].mxu0 %v6863
    %v6905 = vpop.f32.mrb[0].mxu0
    %v6906 = vadd.f32 0.0, %v6905
    %v6907 = vpop.f32.mrb[0].mxu0
    %v6908 = vadd.f32 0.0, %v6907
    %v6909 = vpop.f32.mrb[0].mxu0
    %v6910 = vpop.f32.mrb[0].mxu0
    %6911 = vdwg.mxu0
    %6912 = vmatprep.subr.bf16.mxu0 %v6828
    %6913 = vmatpush1.bf16.msra.mxu0 %v6827
    %6914 = vmatprep.subr.bf16.mxu0 %v6830
    %6915 = vmatpush1.bf16.msra.mxu0 %v6829
    %6916 = vmatprep.subr.bf16.mxu0 %v6832
    %6917 = vmatpush1.bf16.msra.mxu0 %v6831
    %6918 = vmatprep.subr.bf16.mxu0 %v6834
    %6919 = vmatpush1.bf16.msra.mxu0 %v6833
    %6920 = vmatprep.subr.bf16.mxu0 %v6836
    %6921 = vmatpush1.bf16.msra.mxu0 %v6835
    %6922 = vmatprep.subr.bf16.mxu0 %v6838
    %6923 = vmatpush1.bf16.msra.mxu0 %v6837
    %6924 = vmatprep.subr.bf16.mxu0 %v6840
    %6925 = vmatpush1.bf16.msra.mxu0 %v6839
    %6926 = vmatprep.subr.bf16.mxu0 %v6842
    %6927 = vmatpush1.bf16.msra.mxu0 %v6841
    %6928 = vmatprep.subr.bf16.mxu0 %v6844
    %6929 = vmatpush1.bf16.msra.mxu0 %v6843
    %6930 = vmatprep.subr.bf16.mxu0 %v6846
    %6931 = vmatpush1.bf16.msra.mxu0 %v6845
    %6932 = vmatprep.subr.bf16.mxu0 %v6848
    %6933 = vmatpush1.bf16.msra.mxu0 %v6847
    %6934 = vmatprep.subr.bf16.mxu0 %v6850
    %6935 = vmatpush1.bf16.msra.mxu0 %v6849
    %6936 = vmatprep.subr.bf16.mxu0 %v6852
    %6937 = vmatpush1.bf16.msra.mxu0 %v6851
    %6938 = vmatprep.subr.bf16.mxu0 %v6854
    %6939 = vmatpush1.bf16.msra.mxu0 %v6853
    %6940 = vmatprep.subr.bf16.mxu0 %v6856
    %6941 = vmatpush1.bf16.msra.mxu0 %v6855
    %6942 = vmatprep.subr.bf16.mxu0 %v6858
    %6943 = vmatpush1.bf16.msra.mxu0 %v6857
    %6944 = vmatprep.mubr.bf16.mxu0 %v6866
    %6945 = vmatmul.mubr.bf16.gmra.mrb[0].mxu0 %v6865
    %v6946 = vpop.f32.mrb[0].mxu0
    %v6947 = vadd.f32 %v6906, %v6946
    %v6948 = vpop.f32.mrb[0].mxu0
    %v6949 = vadd.f32 %v6908, %v6948
    %v6950 = vpop.f32.mrb[0].mxu0
    %v6951 = vpop.f32.mrb[0].mxu0
    %6952 = vdwg.mxu0
    %6953 = vmatprep.subr.bf16.mxu0 %v6731
    %6954 = vmatpush1.bf16.msra.mxu0 %v6730
    %6955 = vmatprep.subr.bf16.mxu0 %v6733
    %6956 = vmatpush1.bf16.msra.mxu0 %v6732
    %6957 = vmatprep.subr.bf16.mxu0 %v6735
    %6958 = vmatpush1.bf16.msra.mxu0 %v6734
    %6959 = vmatprep.subr.bf16.mxu0 %v6737
    %6960 = vmatpush1.bf16.msra.mxu0 %v6736
    %6961 = vmatprep.subr.bf16.mxu0 %v6739
    %6962 = vmatpush1.bf16.msra.mxu0 %v6738
    %6963 = vmatprep.subr.bf16.mxu0 %v6741
    %6964 = vmatpush1.bf16.msra.mxu0 %v6740
    %6965 = vmatprep.subr.bf16.mxu0 %v6743
    %6966 = vmatpush1.bf16.msra.mxu0 %v6742
    %6967 = vmatprep.subr.bf16.mxu0 %v6745
    %6968 = vmatpush1.bf16.msra.mxu0 %v6744
    %6969 = vmatprep.subr.bf16.mxu0 %v6747
    %6970 = vmatpush1.bf16.msra.mxu0 %v6746
    %6971 = vmatprep.subr.bf16.mxu0 %v6749
    %6972 = vmatpush1.bf16.msra.mxu0 %v6748
    %6973 = vmatprep.subr.bf16.mxu0 %v6751
    %6974 = vmatpush1.bf16.msra.mxu0 %v6750
    %6975 = vmatprep.subr.bf16.mxu0 %v6753
    %6976 = vmatpush1.bf16.msra.mxu0 %v6752
    %6977 = vmatprep.subr.bf16.mxu0 %v6755
    %6978 = vmatpush1.bf16.msra.mxu0 %v6754
    %6979 = vmatprep.subr.bf16.mxu0 %v6757
    %6980 = vmatpush1.bf16.msra.mxu0 %v6756
    %6981 = vmatprep.subr.bf16.mxu0 %v6759
    %6982 = vmatpush1.bf16.msra.mxu0 %v6758
    %6983 = vmatprep.subr.bf16.mxu0 %v6761
    %6984 = vmatpush1.bf16.msra.mxu0 %v6760
    %6985 = vmatprep.mubr.bf16.mxu0 %v6718
    %6986 = vmatmul.mubr.bf16.gmra.mrb[0].mxu0 %v6717
    %v6987 = vpop.f32.mrb[0].mxu0
    %v6988 = vadd.f32 %v6947, %v6987
    %v6989 = vpop.f32.mrb[0].mxu0
    %v6990 = vadd.f32 %v6949, %v6989
    %v6991 = vpop.f32.mrb[0].mxu0
    %v6992 = vpop.f32.mrb[0].mxu0
    %6993 = vdwg.mxu0
    %6994 = vmatprep.subr.bf16.mxu0 %v6763
    %6995 = vmatpush1.bf16.msra.mxu0 %v6762
    %6996 = vmatprep.subr.bf16.mxu0 %v6765
    %6997 = vmatpush1.bf16.msra.mxu0 %v6764
    %6998 = vmatprep.subr.bf16.mxu0 %v6767
    %6999 = vmatpush1.bf16.msra.mxu0 %v6766
    %7000 = vmatprep.subr.bf16.mxu0 %v6769
    %7001 = vmatpush1.bf16.msra.mxu0 %v6768
    %7002 = vmatprep.subr.bf16.mxu0 %v6771
    %7003 = vmatpush1.bf16.msra.mxu0 %v6770
    %7004 = vmatprep.subr.bf16.mxu0 %v6773
    %7005 = vmatpush1.bf16.msra.mxu0 %v6772
    %7006 = vmatprep.subr.bf16.mxu0 %v6775
    %7007 = vmatpush1.bf16.msra.mxu0 %v6774
    %7008 = vmatprep.subr.bf16.mxu0 %v6777
    %7009 = vmatpush1.bf16.msra.mxu0 %v6776
    %7010 = vmatprep.subr.bf16.mxu0 %v6779
    %7011 = vmatpush1.bf16.msra.mxu0 %v6778
    %7012 = vmatprep.subr.bf16.mxu0 %v6781
    %7013 = vmatpush1.bf16.msra.mxu0 %v6780
    %7014 = vmatprep.subr.bf16.mxu0 %v6783
    %7015 = vmatpush1.bf16.msra.mxu0 %v6782
    %7016 = vmatprep.subr.bf16.mxu0 %v6785
    %7017 = vmatpush1.bf16.msra.mxu0 %v6784
    %7018 = vmatprep.subr.bf16.mxu0 %v6787
    %7019 = vmatpush1.bf16.msra.mxu0 %v6786
    %7020 = vmatprep.subr.bf16.mxu0 %v6789
    %7021 = vmatpush1.bf16.msra.mxu0 %v6788
    %7022 = vmatprep.subr.bf16.mxu0 %v6791
    %7023 = vmatpush1.bf16.msra.mxu0 %v6790
    %7024 = vmatprep.subr.bf16.mxu0 %v6793
    %7025 = vmatpush1.bf16.msra.mxu0 %v6792
    %7026 = vmatprep.mubr.bf16.mxu0 %v6720
    %7027 = vmatmul.mubr.bf16.gmra.mrb[0].mxu0 %v6719
    %v7028 = vpop.f32.mrb[0].mxu0
    %v7029 = vadd.f32 %v6988, %v7028
    %v7030 = vpop.f32.mrb[0].mxu0
    %v7031 = vadd.f32 %v6990, %v7030
    %v7032 = vpop.f32.mrb[0].mxu0
    %v7033 = vpop.f32.mrb[0].mxu0
    %7034 = vdwg.mxu0
    %s7035 = scalar_lea.vmem [#allocation7], 1024
    %v7036 = vld [vmem:[%s7035] sm:$0xff]
    %v7037 = vld [vmem:[%s7035 + $0x8] sm:$0xff]
    %v7038 = vld [vmem:[%s7035 + $0x10] sm:$0xff]
    %v7039 = vld [vmem:[%s7035 + $0x18] sm:$0xff]
    %v7040 = vld [vmem:[%s7035 + $0x20] sm:$0xff]
    %v7041 = vld [vmem:[%s7035 + $0x28] sm:$0xff]
    %v7042 = vld [vmem:[%s7035 + $0x30] sm:$0xff]
    %v7043 = vld [vmem:[%s7035 + $0x38] sm:$0xff]
    %v7044 = vld [vmem:[%s7035 + $0x40] sm:$0xff]
    %v7045 = vld [vmem:[%s7035 + $0x48] sm:$0xff]
    %v7046 = vld [vmem:[%s7035 + $0x50] sm:$0xff]
    %v7047 = vld [vmem:[%s7035 + $0x58] sm:$0xff]
    %v7048 = vld [vmem:[%s7035 + $0x60] sm:$0xff]
    %v7049 = vld [vmem:[%s7035 + $0x68] sm:$0xff]
    %v7050 = vld [vmem:[%s7035 + $0x70] sm:$0xff]
    %v7051 = vld [vmem:[%s7035 + $0x78] sm:$0xff]
    %v7052 = vld [vmem:[%s7035 + $0x80] sm:$0xff]
    %v7053 = vld [vmem:[%s7035 + $0x88] sm:$0xff]
    %v7054 = vld [vmem:[%s7035 + $0x90] sm:$0xff]
    %v7055 = vld [vmem:[%s7035 + $0x98] sm:$0xff]
    %v7056 = vld [vmem:[%s7035 + $0xa0] sm:$0xff]
    %v7057 = vld [vmem:[%s7035 + $0xa8] sm:$0xff]
    %v7058 = vld [vmem:[%s7035 + $0xb0] sm:$0xff]
    %v7059 = vld [vmem:[%s7035 + $0xb8] sm:$0xff]
    %v7060 = vld [vmem:[%s7035 + $0xc0] sm:$0xff]
    %v7061 = vld [vmem:[%s7035 + $0xc8] sm:$0xff]
    %v7062 = vld [vmem:[%s7035 + $0xd0] sm:$0xff]
    %v7063 = vld [vmem:[%s7035 + $0xd8] sm:$0xff]
    %v7064 = vld [vmem:[%s7035 + $0xe0] sm:$0xff]
    %v7065 = vld [vmem:[%s7035 + $0xe8] sm:$0xff]
    %v7066 = vld [vmem:[%s7035 + $0xf0] sm:$0xff]
    %v7067 = vld [vmem:[%s7035 + $0xf8] sm:$0xff]
    %v7068 = vld [vmem:[%s7035 + $0x100] sm:$0xff]
    %v7069 = vld [vmem:[%s7035 + $0x108] sm:$0xff]
    %v7070 = vld [vmem:[%s7035 + $0x110] sm:$0xff]
    %v7071 = vld [vmem:[%s7035 + $0x118] sm:$0xff]
    %v7072 = vld [vmem:[%s7035 + $0x120] sm:$0xff]
    %v7073 = vld [vmem:[%s7035 + $0x128] sm:$0xff]
    %v7074 = vld [vmem:[%s7035 + $0x130] sm:$0xff]
    %v7075 = vld [vmem:[%s7035 + $0x138] sm:$0xff]
    %v7076 = vld [vmem:[%s7035 + $0x140] sm:$0xff]
    %v7077 = vld [vmem:[%s7035 + $0x148] sm:$0xff]
    %v7078 = vld [vmem:[%s7035 + $0x150] sm:$0xff]
    %v7079 = vld [vmem:[%s7035 + $0x158] sm:$0xff]
    %v7080 = vld [vmem:[%s7035 + $0x160] sm:$0xff]
    %v7081 = vld [vmem:[%s7035 + $0x168] sm:$0xff]
    %v7082 = vld [vmem:[%s7035 + $0x170] sm:$0xff]
    %v7083 = vld [vmem:[%s7035 + $0x178] sm:$0xff]
    %v7084 = vld [vmem:[%s7035 + $0x180] sm:$0xff]
    %v7085 = vld [vmem:[%s7035 + $0x188] sm:$0xff]
    %v7086 = vld [vmem:[%s7035 + $0x190] sm:$0xff]
    %v7087 = vld [vmem:[%s7035 + $0x198] sm:$0xff]
    %v7088 = vld [vmem:[%s7035 + $0x1a0] sm:$0xff]
    %v7089 = vld [vmem:[%s7035 + $0x1a8] sm:$0xff]
    %v7090 = vld [vmem:[%s7035 + $0x1b0] sm:$0xff]
    %v7091 = vld [vmem:[%s7035 + $0x1b8] sm:$0xff]
    %v7092 = vld [vmem:[%s7035 + $0x1c0] sm:$0xff]
    %v7093 = vld [vmem:[%s7035 + $0x1c8] sm:$0xff]
    %v7094 = vld [vmem:[%s7035 + $0x1d0] sm:$0xff]
    %v7095 = vld [vmem:[%s7035 + $0x1d8] sm:$0xff]
    %v7096 = vld [vmem:[%s7035 + $0x1e0] sm:$0xff]
    %v7097 = vld [vmem:[%s7035 + $0x1e8] sm:$0xff]
    %v7098 = vld [vmem:[%s7035 + $0x1f0] sm:$0xff]
    %v7099 = vld [vmem:[%s7035 + $0x1f8] sm:$0xff]
    %v7100 = vrot.slane %v6717, 2
    %v7101 = vrot.slane %v6718, 2
    %v7102 = vrot.slane %v6719, 2
    %v7103 = vrot.slane %v6720, 2
    %7108 = vmatprep.subr.bf16.mxu0 %v7037
    %7109 = vmatpush1.bf16.msra.mxu0 %v7036
    %7110 = vmatprep.subr.bf16.mxu0 %v7039
    %7111 = vmatpush1.bf16.msra.mxu0 %v7038
    %7112 = vmatprep.subr.bf16.mxu0 %v7041
    %7113 = vmatpush1.bf16.msra.mxu0 %v7040
    %7114 = vmatprep.subr.bf16.mxu0 %v7043
    %7115 = vmatpush1.bf16.msra.mxu0 %v7042
    %7116 = vmatprep.subr.bf16.mxu0 %v7045
    %7117 = vmatpush1.bf16.msra.mxu0 %v7044
    %7118 = vmatprep.subr.bf16.mxu0 %v7047
    %7119 = vmatpush1.bf16.msra.mxu0 %v7046
    %7120 = vmatprep.subr.bf16.mxu0 %v7049
    %7121 = vmatpush1.bf16.msra.mxu0 %v7048
    %7122 = vmatprep.subr.bf16.mxu0 %v7051
    %7123 = vmatpush1.bf16.msra.mxu0 %v7050
    %7124 = vmatprep.subr.bf16.mxu0 %v7053
    %7125 = vmatpush1.bf16.msra.mxu0 %v7052
    %7126 = vmatprep.subr.bf16.mxu0 %v7055
    %7127 = vmatpush1.bf16.msra.mxu0 %v7054
    %7128 = vmatprep.subr.bf16.mxu0 %v7057
    %7129 = vmatpush1.bf16.msra.mxu0 %v7056
    %7130 = vmatprep.subr.bf16.mxu0 %v7059
    %7131 = vmatpush1.bf16.msra.mxu0 %v7058
    %7132 = vmatprep.subr.bf16.mxu0 %v7061
    %7133 = vmatpush1.bf16.msra.mxu0 %v7060
    %7134 = vmatprep.subr.bf16.mxu0 %v7063
    %7135 = vmatpush1.bf16.msra.mxu0 %v7062
    %7136 = vmatprep.subr.bf16.mxu0 %v7065
    %7137 = vmatpush1.bf16.msra.mxu0 %v7064
    %7138 = vmatprep.subr.bf16.mxu0 %v7067
    %7139 = vmatpush1.bf16.msra.mxu0 %v7066
    %7140 = vmatprep.mubr.bf16.mxu0 %v7101
    %7141 = vmatmul.mubr.bf16.gmra.mrb[0].mxu0 %v7100
    %v7142 = vpop.f32.mrb[0].mxu0
    %v7143 = vadd.f32 0.0, %v7142
    %v7144 = vpop.f32.mrb[0].mxu0
    %v7145 = vadd.f32 0.0, %v7144
    %v7146 = vpop.f32.mrb[0].mxu0
    %v7147 = vpop.f32.mrb[0].mxu0
    %7148 = vdwg.mxu0
    %7149 = vmatprep.subr.bf16.mxu0 %v7069
    %7150 = vmatpush1.bf16.msra.mxu0 %v7068
    %7151 = vmatprep.subr.bf16.mxu0 %v7071
    %7152 = vmatpush1.bf16.msra.mxu0 %v7070
    %7153 = vmatprep.subr.bf16.mxu0 %v7073
    %7154 = vmatpush1.bf16.msra.mxu0 %v7072
    %7155 = vmatprep.subr.bf16.mxu0 %v7075
    %7156 = vmatpush1.bf16.msra.mxu0 %v7074
    %7157 = vmatprep.subr.bf16.mxu0 %v7077
    %7158 = vmatpush1.bf16.msra.mxu0 %v7076
    %7159 = vmatprep.subr.bf16.mxu0 %v7079
    %7160 = vmatpush1.bf16.msra.mxu0 %v7078
    %7161 = vmatprep.subr.bf16.mxu0 %v7081
    %7162 = vmatpush1.bf16.msra.mxu0 %v7080
    %7163 = vmatprep.subr.bf16.mxu0 %v7083
    %7164 = vmatpush1.bf16.msra.mxu0 %v7082
    %7165 = vmatprep.subr.bf16.mxu0 %v7085
    %7166 = vmatpush1.bf16.msra.mxu0 %v7084
    %7167 = vmatprep.subr.bf16.mxu0 %v7087
    %7168 = vmatpush1.bf16.msra.mxu0 %v7086
    %7169 = vmatprep.subr.bf16.mxu0 %v7089
    %7170 = vmatpush1.bf16.msra.mxu0 %v7088
    %7171 = vmatprep.subr.bf16.mxu0 %v7091
    %7172 = vmatpush1.bf16.msra.mxu0 %v7090
    %7173 = vmatprep.subr.bf16.mxu0 %v7093
    %7174 = vmatpush1.bf16.msra.mxu0 %v7092
    %7175 = vmatprep.subr.bf16.mxu0 %v7095
    %7176 = vmatpush1.bf16.msra.mxu0 %v7094
    %7177 = vmatprep.subr.bf16.mxu0 %v7097
    %7178 = vmatpush1.bf16.msra.mxu0 %v7096
    %7179 = vmatprep.subr.bf16.mxu0 %v7099
    %7180 = vmatpush1.bf16.msra.mxu0 %v7098
    %7181 = vmatprep.mubr.bf16.mxu0 %v7103
    %7182 = vmatmul.mubr.bf16.gmra.mrb[0].mxu0 %v7102
    %v7183 = vpop.f32.mrb[0].mxu0
    %v7184 = vadd.f32 %v7143, %v7183
    %v7185 = vpop.f32.mrb[0].mxu0
    %v7186 = vadd.f32 %v7145, %v7185
    %v7187 = vpop.f32.mrb[0].mxu0
    %v7188 = vpop.f32.mrb[0].mxu0
    %7189 = vdwg.mxu0
    %v7190 = vadd.f32 %v7029, %v7184
    %v7191 = vadd.f32 %v7031, %v7186
    %s7192 = scalar_lea.vmem [#allocation7], 1536
    %v7193 = vld [vmem:[%s7192] sm:$0xff]
    %v7194 = vld [vmem:[%s7192 + $0x8] sm:$0xff]
    %v7195 = vld [vmem:[%s7192 + $0x10] sm:$0xff]
    %v7196 = vld [vmem:[%s7192 + $0x18] sm:$0xff]
    %v7197 = vld [vmem:[%s7192 + $0x20] sm:$0xff]
    %v7198 = vld [vmem:[%s7192 + $0x28] sm:$0xff]
    %v7199 = vld [vmem:[%s7192 + $0x30] sm:$0xff]
    %v7200 = vld [vmem:[%s7192 + $0x38] sm:$0xff]
    %v7201 = vld [vmem:[%s7192 + $0x40] sm:$0xff]
    %v7202 = vld [vmem:[%s7192 + $0x48] sm:$0xff]
    %v7203 = vld [vmem:[%s7192 + $0x50] sm:$0xff]
    %v7204 = vld [vmem:[%s7192 + $0x58] sm:$0xff]
    %v7205 = vld [vmem:[%s7192 + $0x60] sm:$0xff]
    %v7206 = vld [vmem:[%s7192 + $0x68] sm:$0xff]
    %v7207 = vld [vmem:[%s7192 + $0x70] sm:$0xff]
    %v7208 = vld [vmem:[%s7192 + $0x78] sm:$0xff]
    %v7209 = vld [vmem:[%s7192 + $0x80] sm:$0xff]
    %v7210 = vld [vmem:[%s7192 + $0x88] sm:$0xff]
    %v7211 = vld [vmem:[%s7192 + $0x90] sm:$0xff]
    %v7212 = vld [vmem:[%s7192 + $0x98] sm:$0xff]
    %v7213 = vld [vmem:[%s7192 + $0xa0] sm:$0xff]
    %v7214 = vld [vmem:[%s7192 + $0xa8] sm:$0xff]
    %v7215 = vld [vmem:[%s7192 + $0xb0] sm:$0xff]
    %v7216 = vld [vmem:[%s7192 + $0xb8] sm:$0xff]
    %v7217 = vld [vmem:[%s7192 + $0xc0] sm:$0xff]
    %v7218 = vld [vmem:[%s7192 + $0xc8] sm:$0xff]
    %v7219 = vld [vmem:[%s7192 + $0xd0] sm:$0xff]
    %v7220 = vld [vmem:[%s7192 + $0xd8] sm:$0xff]
    %v7221 = vld [vmem:[%s7192 + $0xe0] sm:$0xff]
    %v7222 = vld [vmem:[%s7192 + $0xe8] sm:$0xff]
    %v7223 = vld [vmem:[%s7192 + $0xf0] sm:$0xff]
    %v7224 = vld [vmem:[%s7192 + $0xf8] sm:$0xff]
    %v7225 = vld [vmem:[%s7192 + $0x100] sm:$0xff]
    %v7226 = vld [vmem:[%s7192 + $0x108] sm:$0xff]
    %v7227 = vld [vmem:[%s7192 + $0x110] sm:$0xff]
    %v7228 = vld [vmem:[%s7192 + $0x118] sm:$0xff]
    %v7229 = vld [vmem:[%s7192 + $0x120] sm:$0xff]
    %v7230 = vld [vmem:[%s7192 + $0x128] sm:$0xff]
    %v7231 = vld [vmem:[%s7192 + $0x130] sm:$0xff]
    %v7232 = vld [vmem:[%s7192 + $0x138] sm:$0xff]
    %v7233 = vld [vmem:[%s7192 + $0x140] sm:$0xff]
    %v7234 = vld [vmem:[%s7192 + $0x148] sm:$0xff]
    %v7235 = vld [vmem:[%s7192 + $0x150] sm:$0xff]
    %v7236 = vld [vmem:[%s7192 + $0x158] sm:$0xff]
    %v7237 = vld [vmem:[%s7192 + $0x160] sm:$0xff]
    %v7238 = vld [vmem:[%s7192 + $0x168] sm:$0xff]
    %v7239 = vld [vmem:[%s7192 + $0x170] sm:$0xff]
    %v7240 = vld [vmem:[%s7192 + $0x178] sm:$0xff]
    %v7241 = vld [vmem:[%s7192 + $0x180] sm:$0xff]
    %v7242 = vld [vmem:[%s7192 + $0x188] sm:$0xff]
    %v7243 = vld [vmem:[%s7192 + $0x190] sm:$0xff]
    %v7244 = vld [vmem:[%s7192 + $0x198] sm:$0xff]
    %v7245 = vld [vmem:[%s7192 + $0x1a0] sm:$0xff]
    %v7246 = vld [vmem:[%s7192 + $0x1a8] sm:$0xff]
    %v7247 = vld [vmem:[%s7192 + $0x1b0] sm:$0xff]
    %v7248 = vld [vmem:[%s7192 + $0x1b8] sm:$0xff]
    %v7249 = vld [vmem:[%s7192 + $0x1c0] sm:$0xff]
    %v7250 = vld [vmem:[%s7192 + $0x1c8] sm:$0xff]
    %v7251 = vld [vmem:[%s7192 + $0x1d0] sm:$0xff]
    %v7252 = vld [vmem:[%s7192 + $0x1d8] sm:$0xff]
    %v7253 = vld [vmem:[%s7192 + $0x1e0] sm:$0xff]
    %v7254 = vld [vmem:[%s7192 + $0x1e8] sm:$0xff]
    %v7255 = vld [vmem:[%s7192 + $0x1f0] sm:$0xff]
    %v7256 = vld [vmem:[%s7192 + $0x1f8] sm:$0xff]
    %v7257 = vrot.slane %v6717, 3
    %v7258 = vrot.slane %v6718, 3
    %v7259 = vrot.slane %v6719, 3
    %v7260 = vrot.slane %v6720, 3
    %7265 = vmatprep.subr.bf16.mxu0 %v7194
    %7266 = vmatpush1.bf16.msra.mxu0 %v7193
    %7267 = vmatprep.subr.bf16.mxu0 %v7196
    %7268 = vmatpush1.bf16.msra.mxu0 %v7195
    %7269 = vmatprep.subr.bf16.mxu0 %v7198
    %7270 = vmatpush1.bf16.msra.mxu0 %v7197
    %7271 = vmatprep.subr.bf16.mxu0 %v7200
    %7272 = vmatpush1.bf16.msra.mxu0 %v7199
    %7273 = vmatprep.subr.bf16.mxu0 %v7202
    %7274 = vmatpush1.bf16.msra.mxu0 %v7201
    %7275 = vmatprep.subr.bf16.mxu0 %v7204
    %7276 = vmatpush1.bf16.msra.mxu0 %v7203
    %7277 = vmatprep.subr.bf16.mxu0 %v7206
    %7278 = vmatpush1.bf16.msra.mxu0 %v7205
    %7279 = vmatprep.subr.bf16.mxu0 %v7208
    %7280 = vmatpush1.bf16.msra.mxu0 %v7207
    %7281 = vmatprep.subr.bf16.mxu0 %v7210
    %7282 = vmatpush1.bf16.msra.mxu0 %v7209
    %7283 = vmatprep.subr.bf16.mxu0 %v7212
    %7284 = vmatpush1.bf16.msra.mxu0 %v7211
    %7285 = vmatprep.subr.bf16.mxu0 %v7214
    %7286 = vmatpush1.bf16.msra.mxu0 %v7213
    %7287 = vmatprep.subr.bf16.mxu0 %v7216
    %7288 = vmatpush1.bf16.msra.mxu0 %v7215
    %7289 = vmatprep.subr.bf16.mxu0 %v7218
    %7290 = vmatpush1.bf16.msra.mxu0 %v7217
    %7291 = vmatprep.subr.bf16.mxu0 %v7220
    %7292 = vmatpush1.bf16.msra.mxu0 %v7219
    %7293 = vmatprep.subr.bf16.mxu0 %v7222
    %7294 = vmatpush1.bf16.msra.mxu0 %v7221
    %7295 = vmatprep.subr.bf16.mxu0 %v7224
    %7296 = vmatpush1.bf16.msra.mxu0 %v7223
    %7297 = vmatprep.mubr.bf16.mxu0 %v7258
    %7298 = vmatmul.mubr.bf16.gmra.mrb[0].mxu0 %v7257
    %v7299 = vpop.f32.mrb[0].mxu0
    %v7300 = vadd.f32 0.0, %v7299
    %v7301 = vpop.f32.mrb[0].mxu0
    %v7302 = vadd.f32 0.0, %v7301
    %v7303 = vpop.f32.mrb[0].mxu0
    %v7304 = vpop.f32.mrb[0].mxu0
    %7305 = vdwg.mxu0
    %7306 = vmatprep.subr.bf16.mxu0 %v7226
    %7307 = vmatpush1.bf16.msra.mxu0 %v7225
    %7308 = vmatprep.subr.bf16.mxu0 %v7228
    %7309 = vmatpush1.bf16.msra.mxu0 %v7227
    %7310 = vmatprep.subr.bf16.mxu0 %v7230
    %7311 = vmatpush1.bf16.msra.mxu0 %v7229
    %7312 = vmatprep.subr.bf16.mxu0 %v7232
    %7313 = vmatpush1.bf16.msra.mxu0 %v7231
    %7314 = vmatprep.subr.bf16.mxu0 %v7234
    %7315 = vmatpush1.bf16.msra.mxu0 %v7233
    %7316 = vmatprep.subr.bf16.mxu0 %v7236
    %7317 = vmatpush1.bf16.msra.mxu0 %v7235
    %7318 = vmatprep.subr.bf16.mxu0 %v7238
    %7319 = vmatpush1.bf16.msra.mxu0 %v7237
    %7320 = vmatprep.subr.bf16.mxu0 %v7240
    %7321 = vmatpush1.bf16.msra.mxu0 %v7239
    %7322 = vmatprep.subr.bf16.mxu0 %v7242
    %7323 = vmatpush1.bf16.msra.mxu0 %v7241
    %7324 = vmatprep.subr.bf16.mxu0 %v7244
    %7325 = vmatpush1.bf16.msra.mxu0 %v7243
    %7326 = vmatprep.subr.bf16.mxu0 %v7246
    %7327 = vmatpush1.bf16.msra.mxu0 %v7245
    %7328 = vmatprep.subr.bf16.mxu0 %v7248
    %7329 = vmatpush1.bf16.msra.mxu0 %v7247
    %7330 = vmatprep.subr.bf16.mxu0 %v7250
    %7331 = vmatpush1.bf16.msra.mxu0 %v7249
    %7332 = vmatprep.subr.bf16.mxu0 %v7252
    %7333 = vmatpush1.bf16.msra.mxu0 %v7251
    %7334 = vmatprep.subr.bf16.mxu0 %v7254
    %7335 = vmatpush1.bf16.msra.mxu0 %v7253
    %7336 = vmatprep.subr.bf16.mxu0 %v7256
    %7337 = vmatpush1.bf16.msra.mxu0 %v7255
    %7338 = vmatprep.mubr.bf16.mxu0 %v7260
    %7339 = vmatmul.mubr.bf16.gmra.mrb[0].mxu0 %v7259
    %v7340 = vpop.f32.mrb[0].mxu0
    %v7341 = vadd.f32 %v7300, %v7340
    %v7342 = vpop.f32.mrb[0].mxu0
    %v7343 = vadd.f32 %v7302, %v7342
    %v7344 = vpop.f32.mrb[0].mxu0
    %v7345 = vpop.f32.mrb[0].mxu0
    %7346 = vdwg.mxu0
    %v7347 = vadd.f32 %v7190, %v7341
    %v7348 = vadd.f32 %v7191, %v7343
    %s7349 = scalar_lea.vmem [#allocation7], 2048
    %v7350 = vld [vmem:[%s7349] sm:$0xff]
    %v7351 = vld [vmem:[%s7349 + $0x8] sm:$0xff]
    %v7352 = vld [vmem:[%s7349 + $0x10] sm:$0xff]
    %v7353 = vld [vmem:[%s7349 + $0x18] sm:$0xff]
    %v7354 = vld [vmem:[%s7349 + $0x20] sm:$0xff]
    %v7355 = vld [vmem:[%s7349 + $0x28] sm:$0xff]
    %v7356 = vld [vmem:[%s7349 + $0x30] sm:$0xff]
    %v7357 = vld [vmem:[%s7349 + $0x38] sm:$0xff]
    %v7358 = vld [vmem:[%s7349 + $0x40] sm:$0xff]
    %v7359 = vld [vmem:[%s7349 + $0x48] sm:$0xff]
    %v7360 = vld [vmem:[%s7349 + $0x50] sm:$0xff]
    %v7361 = vld [vmem:[%s7349 + $0x58] sm:$0xff]
    %v7362 = vld [vmem:[%s7349 + $0x60] sm:$0xff]
    %v7363 = vld [vmem:[%s7349 + $0x68] sm:$0xff]
    %v7364 = vld [vmem:[%s7349 + $0x70] sm:$0xff]
    %v7365 = vld [vmem:[%s7349 + $0x78] sm:$0xff]
    %v7366 = vld [vmem:[%s7349 + $0x80] sm:$0xff]
    %v7367 = vld [vmem:[%s7349 + $0x88] sm:$0xff]
    %v7368 = vld [vmem:[%s7349 + $0x90] sm:$0xff]
    %v7369 = vld [vmem:[%s7349 + $0x98] sm:$0xff]
    %v7370 = vld [vmem:[%s7349 + $0xa0] sm:$0xff]
    %v7371 = vld [vmem:[%s7349 + $0xa8] sm:$0xff]
    %v7372 = vld [vmem:[%s7349 + $0xb0] sm:$0xff]
    %v7373 = vld [vmem:[%s7349 + $0xb8] sm:$0xff]
    %v7374 = vld [vmem:[%s7349 + $0xc0] sm:$0xff]
    %v7375 = vld [vmem:[%s7349 + $0xc8] sm:$0xff]
    %v7376 = vld [vmem:[%s7349 + $0xd0] sm:$0xff]
    %v7377 = vld [vmem:[%s7349 + $0xd8] sm:$0xff]
    %v7378 = vld [vmem:[%s7349 + $0xe0] sm:$0xff]
    %v7379 = vld [vmem:[%s7349 + $0xe8] sm:$0xff]
    %v7380 = vld [vmem:[%s7349 + $0xf0] sm:$0xff]
    %v7381 = vld [vmem:[%s7349 + $0xf8] sm:$0xff]
    %v7382 = vld [vmem:[%s7349 + $0x100] sm:$0xff]
    %v7383 = vld [vmem:[%s7349 + $0x108] sm:$0xff]
    %v7384 = vld [vmem:[%s7349 + $0x110] sm:$0xff]
    %v7385 = vld [vmem:[%s7349 + $0x118] sm:$0xff]
    %v7386 = vld [vmem:[%s7349 + $0x120] sm:$0xff]
    %v7387 = vld [vmem:[%s7349 + $0x128] sm:$0xff]
    %v7388 = vld [vmem:[%s7349 + $0x130] sm:$0xff]
    %v7389 = vld [vmem:[%s7349 + $0x138] sm:$0xff]
    %v7390 = vld [vmem:[%s7349 + $0x140] sm:$0xff]
    %v7391 = vld [vmem:[%s7349 + $0x148] sm:$0xff]
    %v7392 = vld [vmem:[%s7349 + $0x150] sm:$0xff]
    %v7393 = vld [vmem:[%s7349 + $0x158] sm:$0xff]
    %v7394 = vld [vmem:[%s7349 + $0x160] sm:$0xff]
    %v7395 = vld [vmem:[%s7349 + $0x168] sm:$0xff]
    %v7396 = vld [vmem:[%s7349 + $0x170] sm:$0xff]
    %v7397 = vld [vmem:[%s7349 + $0x178] sm:$0xff]
    %v7398 = vld [vmem:[%s7349 + $0x180] sm:$0xff]
    %v7399 = vld [vmem:[%s7349 + $0x188] sm:$0xff]
    %v7400 = vld [vmem:[%s7349 + $0x190] sm:$0xff]
    %v7401 = vld [vmem:[%s7349 + $0x198] sm:$0xff]
    %v7402 = vld [vmem:[%s7349 + $0x1a0] sm:$0xff]
    %v7403 = vld [vmem:[%s7349 + $0x1a8] sm:$0xff]
    %v7404 = vld [vmem:[%s7349 + $0x1b0] sm:$0xff]
    %v7405 = vld [vmem:[%s7349 + $0x1b8] sm:$0xff]
    %v7406 = vld [vmem:[%s7349 + $0x1c0] sm:$0xff]
    %v7407 = vld [vmem:[%s7349 + $0x1c8] sm:$0xff]
    %v7408 = vld [vmem:[%s7349 + $0x1d0] sm:$0xff]
    %v7409 = vld [vmem:[%s7349 + $0x1d8] sm:$0xff]
    %v7410 = vld [vmem:[%s7349 + $0x1e0] sm:$0xff]
    %v7411 = vld [vmem:[%s7349 + $0x1e8] sm:$0xff]
    %v7412 = vld [vmem:[%s7349 + $0x1f0] sm:$0xff]
    %v7413 = vld [vmem:[%s7349 + $0x1f8] sm:$0xff]
    %v7414 = vrot.slane %v6717, 4
    %v7415 = vrot.slane %v6718, 4
    %v7416 = vrot.slane %v6719, 4
    %v7417 = vrot.slane %v6720, 4
    %7422 = vmatprep.subr.bf16.mxu0 %v7351
    %7423 = vmatpush1.bf16.msra.mxu0 %v7350
    %7424 = vmatprep.subr.bf16.mxu0 %v7353
    %7425 = vmatpush1.bf16.msra.mxu0 %v7352
    %7426 = vmatprep.subr.bf16.mxu0 %v7355
    %7427 = vmatpush1.bf16.msra.mxu0 %v7354
    %7428 = vmatprep.subr.bf16.mxu0 %v7357
    %7429 = vmatpush1.bf16.msra.mxu0 %v7356
    %7430 = vmatprep.subr.bf16.mxu0 %v7359
    %7431 = vmatpush1.bf16.msra.mxu0 %v7358
    %7432 = vmatprep.subr.bf16.mxu0 %v7361
    %7433 = vmatpush1.bf16.msra.mxu0 %v7360
    %7434 = vmatprep.subr.bf16.mxu0 %v7363
    %7435 = vmatpush1.bf16.msra.mxu0 %v7362
    %7436 = vmatprep.subr.bf16.mxu0 %v7365
    %7437 = vmatpush1.bf16.msra.mxu0 %v7364
    %7438 = vmatprep.subr.bf16.mxu0 %v7367
    %7439 = vmatpush1.bf16.msra.mxu0 %v7366
    %7440 = vmatprep.subr.bf16.mxu0 %v7369
    %7441 = vmatpush1.bf16.msra.mxu0 %v7368
    %7442 = vmatprep.subr.bf16.mxu0 %v7371
    %7443 = vmatpush1.bf16.msra.mxu0 %v7370
    %7444 = vmatprep.subr.bf16.mxu0 %v7373
    %7445 = vmatpush1.bf16.msra.mxu0 %v7372
    %7446 = vmatprep.subr.bf16.mxu0 %v7375
    %7447 = vmatpush1.bf16.msra.mxu0 %v7374
    %7448 = vmatprep.subr.bf16.mxu0 %v7377
    %7449 = vmatpush1.bf16.msra.mxu0 %v7376
    %7450 = vmatprep.subr.bf16.mxu0 %v7379
    %7451 = vmatpush1.bf16.msra.mxu0 %v7378
    %7452 = vmatprep.subr.bf16.mxu0 %v7381
    %7453 = vmatpush1.bf16.msra.mxu0 %v7380
    %7454 = vmatprep.mubr.bf16.mxu0 %v7415
    %7455 = vmatmul.mubr.bf16.gmra.mrb[0].mxu0 %v7414
    %v7456 = vpop.f32.mrb[0].mxu0
    %v7457 = vadd.f32 0.0, %v7456
    %v7458 = vpop.f32.mrb[0].mxu0
    %v7459 = vadd.f32 0.0, %v7458
    %v7460 = vpop.f32.mrb[0].mxu0
    %v7461 = vpop.f32.mrb[0].mxu0
    %7462 = vdwg.mxu0
    %7463 = vmatprep.subr.bf16.mxu0 %v7383
    %7464 = vmatpush1.bf16.msra.mxu0 %v7382
    %7465 = vmatprep.subr.bf16.mxu0 %v7385
    %7466 = vmatpush1.bf16.msra.mxu0 %v7384
    %7467 = vmatprep.subr.bf16.mxu0 %v7387
    %7468 = vmatpush1.bf16.msra.mxu0 %v7386
    %7469 = vmatprep.subr.bf16.mxu0 %v7389
    %7470 = vmatpush1.bf16.msra.mxu0 %v7388
    %7471 = vmatprep.subr.bf16.mxu0 %v7391
    %7472 = vmatpush1.bf16.msra.mxu0 %v7390
    %7473 = vmatprep.subr.bf16.mxu0 %v7393
    %7474 = vmatpush1.bf16.msra.mxu0 %v7392
    %7475 = vmatprep.subr.bf16.mxu0 %v7395
    %7476 = vmatpush1.bf16.msra.mxu0 %v7394
    %7477 = vmatprep.subr.bf16.mxu0 %v7397
    %7478 = vmatpush1.bf16.msra.mxu0 %v7396
    %7479 = vmatprep.subr.bf16.mxu0 %v7399
    %7480 = vmatpush1.bf16.msra.mxu0 %v7398
    %7481 = vmatprep.subr.bf16.mxu0 %v7401
    %7482 = vmatpush1.bf16.msra.mxu0 %v7400
    %7483 = vmatprep.subr.bf16.mxu0 %v7403
    %7484 = vmatpush1.bf16.msra.mxu0 %v7402
    %7485 = vmatprep.subr.bf16.mxu0 %v7405
    %7486 = vmatpush1.bf16.msra.mxu0 %v7404
    %7487 = vmatprep.subr.bf16.mxu0 %v7407
    %7488 = vmatpush1.bf16.msra.mxu0 %v7406
    %7489 = vmatprep.subr.bf16.mxu0 %v7409
    %7490 = vmatpush1.bf16.msra.mxu0 %v7408
    %7491 = vmatprep.subr.bf16.mxu0 %v7411
    %7492 = vmatpush1.bf16.msra.mxu0 %v7410
    %7493 = vmatprep.subr.bf16.mxu0 %v7413
    %7494 = vmatpush1.bf16.msra.mxu0 %v7412
    %7495 = vmatprep.mubr.bf16.mxu0 %v7417
    %7496 = vmatmul.mubr.bf16.gmra.mrb[0].mxu0 %v7416
    %v7497 = vpop.f32.mrb[0].mxu0
    %v7498 = vadd.f32 %v7457, %v7497
    %v7499 = vpop.f32.mrb[0].mxu0
    %v7500 = vadd.f32 %v7459, %v7499
    %v7501 = vpop.f32.mrb[0].mxu0
    %v7502 = vpop.f32.mrb[0].mxu0
    %7503 = vdwg.mxu0
    %v7504 = vadd.f32 %v7347, %v7498
    %v7505 = vadd.f32 %v7348, %v7500
    %s7506 = scalar_lea.vmem [#allocation7], 2560
    %v7507 = vld [vmem:[%s7506] sm:$0xff]
    %v7508 = vld [vmem:[%s7506 + $0x8] sm:$0xff]
    %v7509 = vld [vmem:[%s7506 + $0x10] sm:$0xff]
    %v7510 = vld [vmem:[%s7506 + $0x18] sm:$0xff]
    %v7511 = vld [vmem:[%s7506 + $0x20] sm:$0xff]
    %v7512 = vld [vmem:[%s7506 + $0x28] sm:$0xff]
    %v7513 = vld [vmem:[%s7506 + $0x30] sm:$0xff]
    %v7514 = vld [vmem:[%s7506 + $0x38] sm:$0xff]
    %v7515 = vld [vmem:[%s7506 + $0x40] sm:$0xff]
    %v7516 = vld [vmem:[%s7506 + $0x48] sm:$0xff]
    %v7517 = vld [vmem:[%s7506 + $0x50] sm:$0xff]
    %v7518 = vld [vmem:[%s7506 + $0x58] sm:$0xff]
    %v7519 = vld [vmem:[%s7506 + $0x60] sm:$0xff]
    %v7520 = vld [vmem:[%s7506 + $0x68] sm:$0xff]
    %v7521 = vld [vmem:[%s7506 + $0x70] sm:$0xff]
    %v7522 = vld [vmem:[%s7506 + $0x78] sm:$0xff]
    %v7523 = vld [vmem:[%s7506 + $0x80] sm:$0xff]
    %v7524 = vld [vmem:[%s7506 + $0x88] sm:$0xff]
    %v7525 = vld [vmem:[%s7506 + $0x90] sm:$0xff]
    %v7526 = vld [vmem:[%s7506 + $0x98] sm:$0xff]
    %v7527 = vld [vmem:[%s7506 + $0xa0] sm:$0xff]
    %v7528 = vld [vmem:[%s7506 + $0xa8] sm:$0xff]
    %v7529 = vld [vmem:[%s7506 + $0xb0] sm:$0xff]
    %v7530 = vld [vmem:[%s7506 + $0xb8] sm:$0xff]
    %v7531 = vld [vmem:[%s7506 + $0xc0] sm:$0xff]
    %v7532 = vld [vmem:[%s7506 + $0xc8] sm:$0xff]
    %v7533 = vld [vmem:[%s7506 + $0xd0] sm:$0xff]
    %v7534 = vld [vmem:[%s7506 + $0xd8] sm:$0xff]
    %v7535 = vld [vmem:[%s7506 + $0xe0] sm:$0xff]
    %v7536 = vld [vmem:[%s7506 + $0xe8] sm:$0xff]
    %v7537 = vld [vmem:[%s7506 + $0xf0] sm:$0xff]
    %v7538 = vld [vmem:[%s7506 + $0xf8] sm:$0xff]
    %v7539 = vld [vmem:[%s7506 + $0x100] sm:$0xff]
    %v7540 = vld [vmem:[%s7506 + $0x108] sm:$0xff]
    %v7541 = vld [vmem:[%s7506 + $0x110] sm:$0xff]
    %v7542 = vld [vmem:[%s7506 + $0x118] sm:$0xff]
    %v7543 = vld [vmem:[%s7506 + $0x120] sm:$0xff]
    %v7544 = vld [vmem:[%s7506 + $0x128] sm:$0xff]
    %v7545 = vld [vmem:[%s7506 + $0x130] sm:$0xff]
    %v7546 = vld [vmem:[%s7506 + $0x138] sm:$0xff]
    %v7547 = vld [vmem:[%s7506 + $0x140] sm:$0xff]
    %v7548 = vld [vmem:[%s7506 + $0x148] sm:$0xff]
    %v7549 = vld [vmem:[%s7506 + $0x150] sm:$0xff]
    %v7550 = vld [vmem:[%s7506 + $0x158] sm:$0xff]
    %v7551 = vld [vmem:[%s7506 + $0x160] sm:$0xff]
    %v7552 = vld [vmem:[%s7506 + $0x168] sm:$0xff]
    %v7553 = vld [vmem:[%s7506 + $0x170] sm:$0xff]
    %v7554 = vld [vmem:[%s7506 + $0x178] sm:$0xff]
    %v7555 = vld [vmem:[%s7506 + $0x180] sm:$0xff]
    %v7556 = vld [vmem:[%s7506 + $0x188] sm:$0xff]
    %v7557 = vld [vmem:[%s7506 + $0x190] sm:$0xff]
    %v7558 = vld [vmem:[%s7506 + $0x198] sm:$0xff]
    %v7559 = vld [vmem:[%s7506 + $0x1a0] sm:$0xff]
    %v7560 = vld [vmem:[%s7506 + $0x1a8] sm:$0xff]
    %v7561 = vld [vmem:[%s7506 + $0x1b0] sm:$0xff]
    %v7562 = vld [vmem:[%s7506 + $0x1b8] sm:$0xff]
    %v7563 = vld [vmem:[%s7506 + $0x1c0] sm:$0xff]
    %v7564 = vld [vmem:[%s7506 + $0x1c8] sm:$0xff]
    %v7565 = vld [vmem:[%s7506 + $0x1d0] sm:$0xff]
    %v7566 = vld [vmem:[%s7506 + $0x1d8] sm:$0xff]
    %v7567 = vld [vmem:[%s7506 + $0x1e0] sm:$0xff]
    %v7568 = vld [vmem:[%s7506 + $0x1e8] sm:$0xff]
    %v7569 = vld [vmem:[%s7506 + $0x1f0] sm:$0xff]
    %v7570 = vld [vmem:[%s7506 + $0x1f8] sm:$0xff]
    %v7571 = vrot.slane %v6717, 5
    %v7572 = vrot.slane %v6718, 5
    %v7573 = vrot.slane %v6719, 5
    %v7574 = vrot.slane %v6720, 5
    %7579 = vmatprep.subr.bf16.mxu0 %v7508
    %7580 = vmatpush1.bf16.msra.mxu0 %v7507
    %7581 = vmatprep.subr.bf16.mxu0 %v7510
    %7582 = vmatpush1.bf16.msra.mxu0 %v7509
    %7583 = vmatprep.subr.bf16.mxu0 %v7512
    %7584 = vmatpush1.bf16.msra.mxu0 %v7511
    %7585 = vmatprep.subr.bf16.mxu0 %v7514
    %7586 = vmatpush1.bf16.msra.mxu0 %v7513
    %7587 = vmatprep.subr.bf16.mxu0 %v7516
    %7588 = vmatpush1.bf16.msra.mxu0 %v7515
    %7589 = vmatprep.subr.bf16.mxu0 %v7518
    %7590 = vmatpush1.bf16.msra.mxu0 %v7517
    %7591 = vmatprep.subr.bf16.mxu0 %v7520
    %7592 = vmatpush1.bf16.msra.mxu0 %v7519
    %7593 = vmatprep.subr.bf16.mxu0 %v7522
    %7594 = vmatpush1.bf16.msra.mxu0 %v7521
    %7595 = vmatprep.subr.bf16.mxu0 %v7524
    %7596 = vmatpush1.bf16.msra.mxu0 %v7523
    %7597 = vmatprep.subr.bf16.mxu0 %v7526
    %7598 = vmatpush1.bf16.msra.mxu0 %v7525
    %7599 = vmatprep.subr.bf16.mxu0 %v7528
    %7600 = vmatpush1.bf16.msra.mxu0 %v7527
    %7601 = vmatprep.subr.bf16.mxu0 %v7530
    %7602 = vmatpush1.bf16.msra.mxu0 %v7529
    %7603 = vmatprep.subr.bf16.mxu0 %v7532
    %7604 = vmatpush1.bf16.msra.mxu0 %v7531
    %7605 = vmatprep.subr.bf16.mxu0 %v7534
    %7606 = vmatpush1.bf16.msra.mxu0 %v7533
    %7607 = vmatprep.subr.bf16.mxu0 %v7536
    %7608 = vmatpush1.bf16.msra.mxu0 %v7535
    %7609 = vmatprep.subr.bf16.mxu0 %v7538
    %7610 = vmatpush1.bf16.msra.mxu0 %v7537
    %7611 = vmatprep.mubr.bf16.mxu0 %v7572
    %7612 = vmatmul.mubr.bf16.gmra.mrb[0].mxu0 %v7571
    %v7613 = vpop.f32.mrb[0].mxu0
    %v7614 = vadd.f32 0.0, %v7613
    %v7615 = vpop.f32.mrb[0].mxu0
    %v7616 = vadd.f32 0.0, %v7615
    %v7617 = vpop.f32.mrb[0].mxu0
    %v7618 = vpop.f32.mrb[0].mxu0
    %7619 = vdwg.mxu0
    %7620 = vmatprep.subr.bf16.mxu0 %v7540
    %7621 = vmatpush1.bf16.msra.mxu0 %v7539
    %7622 = vmatprep.subr.bf16.mxu0 %v7542
    %7623 = vmatpush1.bf16.msra.mxu0 %v7541
    %7624 = vmatprep.subr.bf16.mxu0 %v7544
    %7625 = vmatpush1.bf16.msra.mxu0 %v7543
    %7626 = vmatprep.subr.bf16.mxu0 %v7546
    %7627 = vmatpush1.bf16.msra.mxu0 %v7545
    %7628 = vmatprep.subr.bf16.mxu0 %v7548
    %7629 = vmatpush1.bf16.msra.mxu0 %v7547
    %7630 = vmatprep.subr.bf16.mxu0 %v7550
    %7631 = vmatpush1.bf16.msra.mxu0 %v7549
    %7632 = vmatprep.subr.bf16.mxu0 %v7552
    %7633 = vmatpush1.bf16.msra.mxu0 %v7551
    %7634 = vmatprep.subr.bf16.mxu0 %v7554
    %7635 = vmatpush1.bf16.msra.mxu0 %v7553
    %7636 = vmatprep.subr.bf16.mxu0 %v7556
    %7637 = vmatpush1.bf16.msra.mxu0 %v7555
    %7638 = vmatprep.subr.bf16.mxu0 %v7558
    %7639 = vmatpush1.bf16.msra.mxu0 %v7557
    %7640 = vmatprep.subr.bf16.mxu0 %v7560
    %7641 = vmatpush1.bf16.msra.mxu0 %v7559
    %7642 = vmatprep.subr.bf16.mxu0 %v7562
    %7643 = vmatpush1.bf16.msra.mxu0 %v7561
    %7644 = vmatprep.subr.bf16.mxu0 %v7564
    %7645 = vmatpush1.bf16.msra.mxu0 %v7563
    %7646 = vmatprep.subr.bf16.mxu0 %v7566
    %7647 = vmatpush1.bf16.msra.mxu0 %v7565
    %7648 = vmatprep.subr.bf16.mxu0 %v7568
    %7649 = vmatpush1.bf16.msra.mxu0 %v7567
    %7650 = vmatprep.subr.bf16.mxu0 %v7570
    %7651 = vmatpush1.bf16.msra.mxu0 %v7569
    %7652 = vmatprep.mubr.bf16.mxu0 %v7574
    %7653 = vmatmul.mubr.bf16.gmra.mrb[0].mxu0 %v7573
    %v7654 = vpop.f32.mrb[0].mxu0
    %v7655 = vadd.f32 %v7614, %v7654
    %v7656 = vpop.f32.mrb[0].mxu0
    %v7657 = vadd.f32 %v7616, %v7656
    %v7658 = vpop.f32.mrb[0].mxu0
    %v7659 = vpop.f32.mrb[0].mxu0
    %7660 = vdwg.mxu0
    %v7661 = vadd.f32 %v7504, %v7655
    %v7662 = vadd.f32 %v7505, %v7657
    %s7663 = scalar_lea.vmem [#allocation7], 3072
    %v7664 = vld [vmem:[%s7663] sm:$0xff]
    %v7665 = vld [vmem:[%s7663 + $0x8] sm:$0xff]
    %v7666 = vld [vmem:[%s7663 + $0x10] sm:$0xff]
    %v7667 = vld [vmem:[%s7663 + $0x18] sm:$0xff]
    %v7668 = vld [vmem:[%s7663 + $0x20] sm:$0xff]
    %v7669 = vld [vmem:[%s7663 + $0x28] sm:$0xff]
    %v7670 = vld [vmem:[%s7663 + $0x30] sm:$0xff]
    %v7671 = vld [vmem:[%s7663 + $0x38] sm:$0xff]
    %v7672 = vld [vmem:[%s7663 + $0x40] sm:$0xff]
    %v7673 = vld [vmem:[%s7663 + $0x48] sm:$0xff]
    %v7674 = vld [vmem:[%s7663 + $0x50] sm:$0xff]
    %v7675 = vld [vmem:[%s7663 + $0x58] sm:$0xff]
    %v7676 = vld [vmem:[%s7663 + $0x60] sm:$0xff]
    %v7677 = vld [vmem:[%s7663 + $0x68] sm:$0xff]
    %v7678 = vld [vmem:[%s7663 + $0x70] sm:$0xff]
    %v7679 = vld [vmem:[%s7663 + $0x78] sm:$0xff]
    %v7680 = vld [vmem:[%s7663 + $0x80] sm:$0xff]
    %v7681 = vld [vmem:[%s7663 + $0x88] sm:$0xff]
    %v7682 = vld [vmem:[%s7663 + $0x90] sm:$0xff]
    %v7683 = vld [vmem:[%s7663 + $0x98] sm:$0xff]
    %v7684 = vld [vmem:[%s7663 + $0xa0] sm:$0xff]
    %v7685 = vld [vmem:[%s7663 + $0xa8] sm:$0xff]
    %v7686 = vld [vmem:[%s7663 + $0xb0] sm:$0xff]
    %v7687 = vld [vmem:[%s7663 + $0xb8] sm:$0xff]
    %v7688 = vld [vmem:[%s7663 + $0xc0] sm:$0xff]
    %v7689 = vld [vmem:[%s7663 + $0xc8] sm:$0xff]
    %v7690 = vld [vmem:[%s7663 + $0xd0] sm:$0xff]
    %v7691 = vld [vmem:[%s7663 + $0xd8] sm:$0xff]
    %v7692 = vld [vmem:[%s7663 + $0xe0] sm:$0xff]
    %v7693 = vld [vmem:[%s7663 + $0xe8] sm:$0xff]
    %v7694 = vld [vmem:[%s7663 + $0xf0] sm:$0xff]
    %v7695 = vld [vmem:[%s7663 + $0xf8] sm:$0xff]
    %v7696 = vld [vmem:[%s7663 + $0x100] sm:$0xff]
    %v7697 = vld [vmem:[%s7663 + $0x108] sm:$0xff]
    %v7698 = vld [vmem:[%s7663 + $0x110] sm:$0xff]
    %v7699 = vld [vmem:[%s7663 + $0x118] sm:$0xff]
    %v7700 = vld [vmem:[%s7663 + $0x120] sm:$0xff]
    %v7701 = vld [vmem:[%s7663 + $0x128] sm:$0xff]
    %v7702 = vld [vmem:[%s7663 + $0x130] sm:$0xff]
    %v7703 = vld [vmem:[%s7663 + $0x138] sm:$0xff]
    %v7704 = vld [vmem:[%s7663 + $0x140] sm:$0xff]
    %v7705 = vld [vmem:[%s7663 + $0x148] sm:$0xff]
    %v7706 = vld [vmem:[%s7663 + $0x150] sm:$0xff]
    %v7707 = vld [vmem:[%s7663 + $0x158] sm:$0xff]
    %v7708 = vld [vmem:[%s7663 + $0x160] sm:$0xff]
    %v7709 = vld [vmem:[%s7663 + $0x168] sm:$0xff]
    %v7710 = vld [vmem:[%s7663 + $0x170] sm:$0xff]
    %v7711 = vld [vmem:[%s7663 + $0x178] sm:$0xff]
    %v7712 = vld [vmem:[%s7663 + $0x180] sm:$0xff]
    %v7713 = vld [vmem:[%s7663 + $0x188] sm:$0xff]
    %v7714 = vld [vmem:[%s7663 + $0x190] sm:$0xff]
    %v7715 = vld [vmem:[%s7663 + $0x198] sm:$0xff]
    %v7716 = vld [vmem:[%s7663 + $0x1a0] sm:$0xff]
    %v7717 = vld [vmem:[%s7663 + $0x1a8] sm:$0xff]
    %v7718 = vld [vmem:[%s7663 + $0x1b0] sm:$0xff]
    %v7719 = vld [vmem:[%s7663 + $0x1b8] sm:$0xff]
    %v7720 = vld [vmem:[%s7663 + $0x1c0] sm:$0xff]
    %v7721 = vld [vmem:[%s7663 + $0x1c8] sm:$0xff]
    %v7722 = vld [vmem:[%s7663 + $0x1d0] sm:$0xff]
    %v7723 = vld [vmem:[%s7663 + $0x1d8] sm:$0xff]
    %v7724 = vld [vmem:[%s7663 + $0x1e0] sm:$0xff]
    %v7725 = vld [vmem:[%s7663 + $0x1e8] sm:$0xff]
    %v7726 = vld [vmem:[%s7663 + $0x1f0] sm:$0xff]
    %v7727 = vld [vmem:[%s7663 + $0x1f8] sm:$0xff]
    %v7728 = vrot.slane %v6717, 6
    %v7729 = vrot.slane %v6718, 6
    %v7730 = vrot.slane %v6719, 6
    %v7731 = vrot.slane %v6720, 6
    %7736 = vmatprep.subr.bf16.mxu0 %v7665
    %7737 = vmatpush1.bf16.msra.mxu0 %v7664
    %7738 = vmatprep.subr.bf16.mxu0 %v7667
    %7739 = vmatpush1.bf16.msra.mxu0 %v7666
    %7740 = vmatprep.subr.bf16.mxu0 %v7669
    %7741 = vmatpush1.bf16.msra.mxu0 %v7668
    %7742 = vmatprep.subr.bf16.mxu0 %v7671
    %7743 = vmatpush1.bf16.msra.mxu0 %v7670
    %7744 = vmatprep.subr.bf16.mxu0 %v7673
    %7745 = vmatpush1.bf16.msra.mxu0 %v7672
    %7746 = vmatprep.subr.bf16.mxu0 %v7675
    %7747 = vmatpush1.bf16.msra.mxu0 %v7674
    %7748 = vmatprep.subr.bf16.mxu0 %v7677
    %7749 = vmatpush1.bf16.msra.mxu0 %v7676
    %7750 = vmatprep.subr.bf16.mxu0 %v7679
    %7751 = vmatpush1.bf16.msra.mxu0 %v7678
    %7752 = vmatprep.subr.bf16.mxu0 %v7681
    %7753 = vmatpush1.bf16.msra.mxu0 %v7680
    %7754 = vmatprep.subr.bf16.mxu0 %v7683
    %7755 = vmatpush1.bf16.msra.mxu0 %v7682
    %7756 = vmatprep.subr.bf16.mxu0 %v7685
    %7757 = vmatpush1.bf16.msra.mxu0 %v7684
    %7758 = vmatprep.subr.bf16.mxu0 %v7687
    %7759 = vmatpush1.bf16.msra.mxu0 %v7686
    %7760 = vmatprep.subr.bf16.mxu0 %v7689
    %7761 = vmatpush1.bf16.msra.mxu0 %v7688
    %7762 = vmatprep.subr.bf16.mxu0 %v7691
    %7763 = vmatpush1.bf16.msra.mxu0 %v7690
    %7764 = vmatprep.subr.bf16.mxu0 %v7693
    %7765 = vmatpush1.bf16.msra.mxu0 %v7692
    %7766 = vmatprep.subr.bf16.mxu0 %v7695
    %7767 = vmatpush1.bf16.msra.mxu0 %v7694
    %7768 = vmatprep.mubr.bf16.mxu0 %v7729
    %7769 = vmatmul.mubr.bf16.gmra.mrb[0].mxu0 %v7728
    %v7770 = vpop.f32.mrb[0].mxu0
    %v7771 = vadd.f32 0.0, %v7770
    %v7772 = vpop.f32.mrb[0].mxu0
    %v7773 = vadd.f32 0.0, %v7772
    %v7774 = vpop.f32.mrb[0].mxu0
    %v7775 = vpop.f32.mrb[0].mxu0
    %7776 = vdwg.mxu0
    %7777 = vmatprep.subr.bf16.mxu0 %v7697
    %7778 = vmatpush1.bf16.msra.mxu0 %v7696
    %7779 = vmatprep.subr.bf16.mxu0 %v7699
    %7780 = vmatpush1.bf16.msra.mxu0 %v7698
    %7781 = vmatprep.subr.bf16.mxu0 %v7701
    %7782 = vmatpush1.bf16.msra.mxu0 %v7700
    %7783 = vmatprep.subr.bf16.mxu0 %v7703
    %7784 = vmatpush1.bf16.msra.mxu0 %v7702
    %7785 = vmatprep.subr.bf16.mxu0 %v7705
    %7786 = vmatpush1.bf16.msra.mxu0 %v7704
    %7787 = vmatprep.subr.bf16.mxu0 %v7707
    %7788 = vmatpush1.bf16.msra.mxu0 %v7706
    %7789 = vmatprep.subr.bf16.mxu0 %v7709
    %7790 = vmatpush1.bf16.msra.mxu0 %v7708
    %7791 = vmatprep.subr.bf16.mxu0 %v7711
    %7792 = vmatpush1.bf16.msra.mxu0 %v7710
    %7793 = vmatprep.subr.bf16.mxu0 %v7713
    %7794 = vmatpush1.bf16.msra.mxu0 %v7712
    %7795 = vmatprep.subr.bf16.mxu0 %v7715
    %7796 = vmatpush1.bf16.msra.mxu0 %v7714
    %7797 = vmatprep.subr.bf16.mxu0 %v7717
    %7798 = vmatpush1.bf16.msra.mxu0 %v7716
    %7799 = vmatprep.subr.bf16.mxu0 %v7719
    %7800 = vmatpush1.bf16.msra.mxu0 %v7718
    %7801 = vmatprep.subr.bf16.mxu0 %v7721
    %7802 = vmatpush1.bf16.msra.mxu0 %v7720
    %7803 = vmatprep.subr.bf16.mxu0 %v7723
    %7804 = vmatpush1.bf16.msra.mxu0 %v7722
    %7805 = vmatprep.subr.bf16.mxu0 %v7725
    %7806 = vmatpush1.bf16.msra.mxu0 %v7724
    %7807 = vmatprep.subr.bf16.mxu0 %v7727
    %7808 = vmatpush1.bf16.msra.mxu0 %v7726
    %7809 = vmatprep.mubr.bf16.mxu0 %v7731
    %7810 = vmatmul.mubr.bf16.gmra.mrb[0].mxu0 %v7730
    %v7811 = vpop.f32.mrb[0].mxu0
    %v7812 = vadd.f32 %v7771, %v7811
    %v7813 = vpop.f32.mrb[0].mxu0
    %v7814 = vadd.f32 %v7773, %v7813
    %v7815 = vpop.f32.mrb[0].mxu0
    %v7816 = vpop.f32.mrb[0].mxu0
    %7817 = vdwg.mxu0
    %v7818 = vadd.f32 %v7661, %v7812
    %v7819 = vadd.f32 %v7662, %v7814
    %s7820 = scalar_lea.vmem [#allocation7], 3584
    %v7821 = vld [vmem:[%s7820] sm:$0xff]
    %v7822 = vld [vmem:[%s7820 + $0x8] sm:$0xff]
    %v7823 = vld [vmem:[%s7820 + $0x10] sm:$0xff]
    %v7824 = vld [vmem:[%s7820 + $0x18] sm:$0xff]
    %v7825 = vld [vmem:[%s7820 + $0x20] sm:$0xff]
    %v7826 = vld [vmem:[%s7820 + $0x28] sm:$0xff]
    %v7827 = vld [vmem:[%s7820 + $0x30] sm:$0xff]
    %v7828 = vld [vmem:[%s7820 + $0x38] sm:$0xff]
    %v7829 = vld [vmem:[%s7820 + $0x40] sm:$0xff]
    %v7830 = vld [vmem:[%s7820 + $0x48] sm:$0xff]
    %v7831 = vld [vmem:[%s7820 + $0x50] sm:$0xff]
    %v7832 = vld [vmem:[%s7820 + $0x58] sm:$0xff]
    %v7833 = vld [vmem:[%s7820 + $0x60] sm:$0xff]
    %v7834 = vld [vmem:[%s7820 + $0x68] sm:$0xff]
    %v7835 = vld [vmem:[%s7820 + $0x70] sm:$0xff]
    %v7836 = vld [vmem:[%s7820 + $0x78] sm:$0xff]
    %v7837 = vld [vmem:[%s7820 + $0x80] sm:$0xff]
    %v7838 = vld [vmem:[%s7820 + $0x88] sm:$0xff]
    %v7839 = vld [vmem:[%s7820 + $0x90] sm:$0xff]
    %v7840 = vld [vmem:[%s7820 + $0x98] sm:$0xff]
    %v7841 = vld [vmem:[%s7820 + $0xa0] sm:$0xff]
    %v7842 = vld [vmem:[%s7820 + $0xa8] sm:$0xff]
    %v7843 = vld [vmem:[%s7820 + $0xb0] sm:$0xff]
    %v7844 = vld [vmem:[%s7820 + $0xb8] sm:$0xff]
    %v7845 = vld [vmem:[%s7820 + $0xc0] sm:$0xff]
    %v7846 = vld [vmem:[%s7820 + $0xc8] sm:$0xff]
    %v7847 = vld [vmem:[%s7820 + $0xd0] sm:$0xff]
    %v7848 = vld [vmem:[%s7820 + $0xd8] sm:$0xff]
    %v7849 = vld [vmem:[%s7820 + $0xe0] sm:$0xff]
    %v7850 = vld [vmem:[%s7820 + $0xe8] sm:$0xff]
    %v7851 = vld [vmem:[%s7820 + $0xf0] sm:$0xff]
    %v7852 = vld [vmem:[%s7820 + $0xf8] sm:$0xff]
    %v7853 = vld [vmem:[%s7820 + $0x100] sm:$0xff]
    %v7854 = vld [vmem:[%s7820 + $0x108] sm:$0xff]
    %v7855 = vld [vmem:[%s7820 + $0x110] sm:$0xff]
    %v7856 = vld [vmem:[%s7820 + $0x118] sm:$0xff]
    %v7857 = vld [vmem:[%s7820 + $0x120] sm:$0xff]
    %v7858 = vld [vmem:[%s7820 + $0x128] sm:$0xff]
    %v7859 = vld [vmem:[%s7820 + $0x130] sm:$0xff]
    %v7860 = vld [vmem:[%s7820 + $0x138] sm:$0xff]
    %v7861 = vld [vmem:[%s7820 + $0x140] sm:$0xff]
    %v7862 = vld [vmem:[%s7820 + $0x148] sm:$0xff]
    %v7863 = vld [vmem:[%s7820 + $0x150] sm:$0xff]
    %v7864 = vld [vmem:[%s7820 + $0x158] sm:$0xff]
    %v7865 = vld [vmem:[%s7820 + $0x160] sm:$0xff]
    %v7866 = vld [vmem:[%s7820 + $0x168] sm:$0xff]
    %v7867 = vld [vmem:[%s7820 + $0x170] sm:$0xff]
    %v7868 = vld [vmem:[%s7820 + $0x178] sm:$0xff]
    %v7869 = vld [vmem:[%s7820 + $0x180] sm:$0xff]
    %v7870 = vld [vmem:[%s7820 + $0x188] sm:$0xff]
    %v7871 = vld [vmem:[%s7820 + $0x190] sm:$0xff]
    %v7872 = vld [vmem:[%s7820 + $0x198] sm:$0xff]
    %v7873 = vld [vmem:[%s7820 + $0x1a0] sm:$0xff]
    %v7874 = vld [vmem:[%s7820 + $0x1a8] sm:$0xff]
    %v7875 = vld [vmem:[%s7820 + $0x1b0] sm:$0xff]
    %v7876 = vld [vmem:[%s7820 + $0x1b8] sm:$0xff]
    %v7877 = vld [vmem:[%s7820 + $0x1c0] sm:$0xff]
    %v7878 = vld [vmem:[%s7820 + $0x1c8] sm:$0xff]
    %v7879 = vld [vmem:[%s7820 + $0x1d0] sm:$0xff]
    %v7880 = vld [vmem:[%s7820 + $0x1d8] sm:$0xff]
    %v7881 = vld [vmem:[%s7820 + $0x1e0] sm:$0xff]
    %v7882 = vld [vmem:[%s7820 + $0x1e8] sm:$0xff]
    %v7883 = vld [vmem:[%s7820 + $0x1f0] sm:$0xff]
    %v7884 = vld [vmem:[%s7820 + $0x1f8] sm:$0xff]
    %v7885 = vrot.slane %v6717, 7
    %v7886 = vrot.slane %v6718, 7
    %v7887 = vrot.slane %v6719, 7
    %v7888 = vrot.slane %v6720, 7
    %7893 = vmatprep.subr.bf16.mxu0 %v7822
    %7894 = vmatpush1.bf16.msra.mxu0 %v7821
    %7895 = vmatprep.subr.bf16.mxu0 %v7824
    %7896 = vmatpush1.bf16.msra.mxu0 %v7823
    %7897 = vmatprep.subr.bf16.mxu0 %v7826
    %7898 = vmatpush1.bf16.msra.mxu0 %v7825
    %7899 = vmatprep.subr.bf16.mxu0 %v7828
    %7900 = vmatpush1.bf16.msra.mxu0 %v7827
    %7901 = vmatprep.subr.bf16.mxu0 %v7830
    %7902 = vmatpush1.bf16.msra.mxu0 %v7829
    %7903 = vmatprep.subr.bf16.mxu0 %v7832
    %7904 = vmatpush1.bf16.msra.mxu0 %v7831
    %7905 = vmatprep.subr.bf16.mxu0 %v7834
    %7906 = vmatpush1.bf16.msra.mxu0 %v7833
    %7907 = vmatprep.subr.bf16.mxu0 %v7836
    %7908 = vmatpush1.bf16.msra.mxu0 %v7835
    %7909 = vmatprep.subr.bf16.mxu0 %v7838
    %7910 = vmatpush1.bf16.msra.mxu0 %v7837
    %7911 = vmatprep.subr.bf16.mxu0 %v7840
    %7912 = vmatpush1.bf16.msra.mxu0 %v7839
    %7913 = vmatprep.subr.bf16.mxu0 %v7842
    %7914 = vmatpush1.bf16.msra.mxu0 %v7841
    %7915 = vmatprep.subr.bf16.mxu0 %v7844
    %7916 = vmatpush1.bf16.msra.mxu0 %v7843
    %7917 = vmatprep.subr.bf16.mxu0 %v7846
    %7918 = vmatpush1.bf16.msra.mxu0 %v7845
    %7919 = vmatprep.subr.bf16.mxu0 %v7848
    %7920 = vmatpush1.bf16.msra.mxu0 %v7847
    %7921 = vmatprep.subr.bf16.mxu0 %v7850
    %7922 = vmatpush1.bf16.msra.mxu0 %v7849
    %7923 = vmatprep.subr.bf16.mxu0 %v7852
    %7924 = vmatpush1.bf16.msra.mxu0 %v7851
    %7925 = vmatprep.mubr.bf16.mxu0 %v7886
    %7926 = vmatmul.mubr.bf16.gmra.mrb[0].mxu0 %v7885
    %v7927 = vpop.f32.mrb[0].mxu0
    %v7928 = vadd.f32 0.0, %v7927
    %v7929 = vpop.f32.mrb[0].mxu0
    %v7930 = vadd.f32 0.0, %v7929
    %v7931 = vpop.f32.mrb[0].mxu0
    %v7932 = vpop.f32.mrb[0].mxu0
    %7933 = vdwg.mxu0
    %7934 = vmatprep.subr.bf16.mxu0 %v7854
    %7935 = vmatpush1.bf16.msra.mxu0 %v7853
    %7936 = vmatprep.subr.bf16.mxu0 %v7856
    %7937 = vmatpush1.bf16.msra.mxu0 %v7855
    %7938 = vmatprep.subr.bf16.mxu0 %v7858
    %7939 = vmatpush1.bf16.msra.mxu0 %v7857
    %7940 = vmatprep.subr.bf16.mxu0 %v7860
    %7941 = vmatpush1.bf16.msra.mxu0 %v7859
    %7942 = vmatprep.subr.bf16.mxu0 %v7862
    %7943 = vmatpush1.bf16.msra.mxu0 %v7861
    %7944 = vmatprep.subr.bf16.mxu0 %v7864
    %7945 = vmatpush1.bf16.msra.mxu0 %v7863
    %7946 = vmatprep.subr.bf16.mxu0 %v7866
    %7947 = vmatpush1.bf16.msra.mxu0 %v7865
    %7948 = vmatprep.subr.bf16.mxu0 %v7868
    %7949 = vmatpush1.bf16.msra.mxu0 %v7867
    %7950 = vmatprep.subr.bf16.mxu0 %v7870
    %7951 = vmatpush1.bf16.msra.mxu0 %v7869
    %7952 = vmatprep.subr.bf16.mxu0 %v7872
    %7953 = vmatpush1.bf16.msra.mxu0 %v7871
    %7954 = vmatprep.subr.bf16.mxu0 %v7874
    %7955 = vmatpush1.bf16.msra.mxu0 %v7873
    %7956 = vmatprep.subr.bf16.mxu0 %v7876
    %7957 = vmatpush1.bf16.msra.mxu0 %v7875
    %7958 = vmatprep.subr.bf16.mxu0 %v7878
    %7959 = vmatpush1.bf16.msra.mxu0 %v7877
    %7960 = vmatprep.subr.bf16.mxu0 %v7880
    %7961 = vmatpush1.bf16.msra.mxu0 %v7879
    %7962 = vmatprep.subr.bf16.mxu0 %v7882
    %7963 = vmatpush1.bf16.msra.mxu0 %v7881
    %7964 = vmatprep.subr.bf16.mxu0 %v7884
    %7965 = vmatpush1.bf16.msra.mxu0 %v7883
    %7966 = vmatprep.mubr.bf16.mxu0 %v7888
    %7967 = vmatmul.mubr.bf16.gmra.mrb[0].mxu0 %v7887
    %v7968 = vpop.f32.mrb[0].mxu0
    %v7969 = vadd.f32 %v7928, %v7968
    %v7970 = vpop.f32.mrb[0].mxu0
    %v7971 = vadd.f32 %v7930, %v7970
    %v7972 = vpop.f32.mrb[0].mxu0
    %v7973 = vpop.f32.mrb[0].mxu0
    %7974 = vdwg.mxu0
    %v7975 = vadd.f32 %v7818, %v7969
    %v7976 = vadd.f32 %v7819, %v7971
    %s7977 = scalar_lea.vmem [#allocation7], 4096
    %v7978 = vld [vmem:[%s7977] sm:$0xff]
    %v7979 = vld [vmem:[%s7977 + $0x8] sm:$0xff]
    %v7980 = vld [vmem:[%s7977 + $0x10] sm:$0xff]
    %v7981 = vld [vmem:[%s7977 + $0x18] sm:$0xff]
    %v7982 = vld [vmem:[%s7977 + $0x20] sm:$0xff]
    %v7983 = vld [vmem:[%s7977 + $0x28] sm:$0xff]
    %v7984 = vld [vmem:[%s7977 + $0x30] sm:$0xff]
    %v7985 = vld [vmem:[%s7977 + $0x38] sm:$0xff]
    %v7986 = vld [vmem:[%s7977 + $0x40] sm:$0xff]
    %v7987 = vld [vmem:[%s7977 + $0x48] sm:$0xff]
    %v7988 = vld [vmem:[%s7977 + $0x50] sm:$0xff]
    %v7989 = vld [vmem:[%s7977 + $0x58] sm:$0xff]
    %v7990 = vld [vmem:[%s7977 + $0x60] sm:$0xff]
    %v7991 = vld [vmem:[%s7977 + $0x68] sm:$0xff]
    %v7992 = vld [vmem:[%s7977 + $0x70] sm:$0xff]
    %v7993 = vld [vmem:[%s7977 + $0x78] sm:$0xff]
    %v7994 = vld [vmem:[%s7977 + $0x80] sm:$0xff]
    %v7995 = vld [vmem:[%s7977 + $0x88] sm:$0xff]
    %v7996 = vld [vmem:[%s7977 + $0x90] sm:$0xff]
    %v7997 = vld [vmem:[%s7977 + $0x98] sm:$0xff]
    %v7998 = vld [vmem:[%s7977 + $0xa0] sm:$0xff]
    %v7999 = vld [vmem:[%s7977 + $0xa8] sm:$0xff]
    %v8000 = vld [vmem:[%s7977 + $0xb0] sm:$0xff]
    %v8001 = vld [vmem:[%s7977 + $0xb8] sm:$0xff]
    %v8002 = vld [vmem:[%s7977 + $0xc0] sm:$0xff]
    %v8003 = vld [vmem:[%s7977 + $0xc8] sm:$0xff]
    %v8004 = vld [vmem:[%s7977 + $0xd0] sm:$0xff]
    %v8005 = vld [vmem:[%s7977 + $0xd8] sm:$0xff]
    %v8006 = vld [vmem:[%s7977 + $0xe0] sm:$0xff]
    %v8007 = vld [vmem:[%s7977 + $0xe8] sm:$0xff]
    %v8008 = vld [vmem:[%s7977 + $0xf0] sm:$0xff]
    %v8009 = vld [vmem:[%s7977 + $0xf8] sm:$0xff]
    %v8010 = vld [vmem:[%s7977 + $0x100] sm:$0xff]
    %v8011 = vld [vmem:[%s7977 + $0x108] sm:$0xff]
    %v8012 = vld [vmem:[%s7977 + $0x110] sm:$0xff]
    %v8013 = vld [vmem:[%s7977 + $0x118] sm:$0xff]
    %v8014 = vld [vmem:[%s7977 + $0x120] sm:$0xff]
    %v8015 = vld [vmem:[%s7977 + $0x128] sm:$0xff]
    %v8016 = vld [vmem:[%s7977 + $0x130] sm:$0xff]
    %v8017 = vld [vmem:[%s7977 + $0x138] sm:$0xff]
    %v8018 = vld [vmem:[%s7977 + $0x140] sm:$0xff]
    %v8019 = vld [vmem:[%s7977 + $0x148] sm:$0xff]
    %v8020 = vld [vmem:[%s7977 + $0x150] sm:$0xff]
    %v8021 = vld [vmem:[%s7977 + $0x158] sm:$0xff]
    %v8022 = vld [vmem:[%s7977 + $0x160] sm:$0xff]
    %v8023 = vld [vmem:[%s7977 + $0x168] sm:$0xff]
    %v8024 = vld [vmem:[%s7977 + $0x170] sm:$0xff]
    %v8025 = vld [vmem:[%s7977 + $0x178] sm:$0xff]
    %v8026 = vld [vmem:[%s7977 + $0x180] sm:$0xff]
    %v8027 = vld [vmem:[%s7977 + $0x188] sm:$0xff]
    %v8028 = vld [vmem:[%s7977 + $0x190] sm:$0xff]
    %v8029 = vld [vmem:[%s7977 + $0x198] sm:$0xff]
    %v8030 = vld [vmem:[%s7977 + $0x1a0] sm:$0xff]
    %v8031 = vld [vmem:[%s7977 + $0x1a8] sm:$0xff]
    %v8032 = vld [vmem:[%s7977 + $0x1b0] sm:$0xff]
    %v8033 = vld [vmem:[%s7977 + $0x1b8] sm:$0xff]
    %v8034 = vld [vmem:[%s7977 + $0x1c0] sm:$0xff]
    %v8035 = vld [vmem:[%s7977 + $0x1c8] sm:$0xff]
    %v8036 = vld [vmem:[%s7977 + $0x1d0] sm:$0xff]
    %v8037 = vld [vmem:[%s7977 + $0x1d8] sm:$0xff]
    %v8038 = vld [vmem:[%s7977 + $0x1e0] sm:$0xff]
    %v8039 = vld [vmem:[%s7977 + $0x1e8] sm:$0xff]
    %v8040 = vld [vmem:[%s7977 + $0x1f0] sm:$0xff]
    %v8041 = vld [vmem:[%s7977 + $0x1f8] sm:$0xff]
    %8042 = vmatprep.subr.bf16.mxu0 %v7979
    %8043 = vmatpush1.bf16.msra.mxu0 %v7978
    %8044 = vmatprep.subr.bf16.mxu0 %v7981
    %8045 = vmatpush1.bf16.msra.mxu0 %v7980
    %8046 = vmatprep.subr.bf16.mxu0 %v7983
    %8047 = vmatpush1.bf16.msra.mxu0 %v7982
    %8048 = vmatprep.subr.bf16.mxu0 %v7985
    %8049 = vmatpush1.bf16.msra.mxu0 %v7984
    %8050 = vmatprep.subr.bf16.mxu0 %v7987
    %8051 = vmatpush1.bf16.msra.mxu0 %v7986
    %8052 = vmatprep.subr.bf16.mxu0 %v7989
    %8053 = vmatpush1.bf16.msra.mxu0 %v7988
    %8054 = vmatprep.subr.bf16.mxu0 %v7991
    %8055 = vmatpush1.bf16.msra.mxu0 %v7990
    %8056 = vmatprep.subr.bf16.mxu0 %v7993
    %8057 = vmatpush1.bf16.msra.mxu0 %v7992
    %8058 = vmatprep.subr.bf16.mxu0 %v7995
    %8059 = vmatpush1.bf16.msra.mxu0 %v7994
    %8060 = vmatprep.subr.bf16.mxu0 %v7997
    %8061 = vmatpush1.bf16.msra.mxu0 %v7996
    %8062 = vmatprep.subr.bf16.mxu0 %v7999
    %8063 = vmatpush1.bf16.msra.mxu0 %v7998
    %8064 = vmatprep.subr.bf16.mxu0 %v8001
    %8065 = vmatpush1.bf16.msra.mxu0 %v8000
    %8066 = vmatprep.subr.bf16.mxu0 %v8003
    %8067 = vmatpush1.bf16.msra.mxu0 %v8002
    %8068 = vmatprep.subr.bf16.mxu0 %v8005
    %8069 = vmatpush1.bf16.msra.mxu0 %v8004
    %8070 = vmatprep.subr.bf16.mxu0 %v8007
    %8071 = vmatpush1.bf16.msra.mxu0 %v8006
    %8072 = vmatprep.subr.bf16.mxu0 %v8009
    %8073 = vmatpush1.bf16.msra.mxu0 %v8008
    %8074 = vmatprep.mubr.bf16.mxu0 %v6722
    %8075 = vmatmul.mubr.bf16.gmra.mrb[0].mxu0 %v6721
    %v8076 = vpop.f32.mrb[0].mxu0
    %v8077 = vadd.f32 0.0, %v8076
    %v8078 = vpop.f32.mrb[0].mxu0
    %v8079 = vadd.f32 0.0, %v8078
    %v8080 = vpop.f32.mrb[0].mxu0
    %v8081 = vpop.f32.mrb[0].mxu0
    %8082 = vdwg.mxu0
    %8083 = vmatprep.subr.bf16.mxu0 %v8011
    %8084 = vmatpush1.bf16.msra.mxu0 %v8010
    %8085 = vmatprep.subr.bf16.mxu0 %v8013
    %8086 = vmatpush1.bf16.msra.mxu0 %v8012
    %8087 = vmatprep.subr.bf16.mxu0 %v8015
    %8088 = vmatpush1.bf16.msra.mxu0 %v8014
    %8089 = vmatprep.subr.bf16.mxu0 %v8017
    %8090 = vmatpush1.bf16.msra.mxu0 %v8016
    %8091 = vmatprep.subr.bf16.mxu0 %v8019
    %8092 = vmatpush1.bf16.msra.mxu0 %v8018
    %8093 = vmatprep.subr.bf16.mxu0 %v8021
    %8094 = vmatpush1.bf16.msra.mxu0 %v8020
    %8095 = vmatprep.subr.bf16.mxu0 %v8023
    %8096 = vmatpush1.bf16.msra.mxu0 %v8022
    %8097 = vmatprep.subr.bf16.mxu0 %v8025
    %8098 = vmatpush1.bf16.msra.mxu0 %v8024
    %8099 = vmatprep.subr.bf16.mxu0 %v8027
    %8100 = vmatpush1.bf16.msra.mxu0 %v8026
    %8101 = vmatprep.subr.bf16.mxu0 %v8029
    %8102 = vmatpush1.bf16.msra.mxu0 %v8028
    %8103 = vmatprep.subr.bf16.mxu0 %v8031
    %8104 = vmatpush1.bf16.msra.mxu0 %v8030
    %8105 = vmatprep.subr.bf16.mxu0 %v8033
    %8106 = vmatpush1.bf16.msra.mxu0 %v8032
    %8107 = vmatprep.subr.bf16.mxu0 %v8035
    %8108 = vmatpush1.bf16.msra.mxu0 %v8034
    %8109 = vmatprep.subr.bf16.mxu0 %v8037
    %8110 = vmatpush1.bf16.msra.mxu0 %v8036
    %8111 = vmatprep.subr.bf16.mxu0 %v8039
    %8112 = vmatpush1.bf16.msra.mxu0 %v8038
    %8113 = vmatprep.subr.bf16.mxu0 %v8041
    %8114 = vmatpush1.bf16.msra.mxu0 %v8040
    %8115 = vmatprep.mubr.bf16.mxu0 %v6724
    %8116 = vmatmul.mubr.bf16.gmra.mrb[0].mxu0 %v6723
    %v8117 = vpop.f32.mrb[0].mxu0
    %v8118 = vadd.f32 %v8077, %v8117
    %v8119 = vpop.f32.mrb[0].mxu0
    %v8120 = vadd.f32 %v8079, %v8119
    %v8121 = vpop.f32.mrb[0].mxu0
    %v8122 = vpop.f32.mrb[0].mxu0
    %8123 = vdwg.mxu0
    %v8124 = vadd.f32 %v7975, %v8118
    %v8125 = vadd.f32 %v7976, %v8120
    %s8126 = scalar_lea.vmem [#allocation7], 4608
    %v8127 = vld [vmem:[%s8126] sm:$0xff]
    %v8128 = vld [vmem:[%s8126 + $0x8] sm:$0xff]
    %v8129 = vld [vmem:[%s8126 + $0x10] sm:$0xff]
    %v8130 = vld [vmem:[%s8126 + $0x18] sm:$0xff]
    %v8131 = vld [vmem:[%s8126 + $0x20] sm:$0xff]
    %v8132 = vld [vmem:[%s8126 + $0x28] sm:$0xff]
    %v8133 = vld [vmem:[%s8126 + $0x30] sm:$0xff]
    %v8134 = vld [vmem:[%s8126 + $0x38] sm:$0xff]
    %v8135 = vld [vmem:[%s8126 + $0x40] sm:$0xff]
    %v8136 = vld [vmem:[%s8126 + $0x48] sm:$0xff]
    %v8137 = vld [vmem:[%s8126 + $0x50] sm:$0xff]
    %v8138 = vld [vmem:[%s8126 + $0x58] sm:$0xff]
    %v8139 = vld [vmem:[%s8126 + $0x60] sm:$0xff]
    %v8140 = vld [vmem:[%s8126 + $0x68] sm:$0xff]
    %v8141 = vld [vmem:[%s8126 + $0x70] sm:$0xff]
    %v8142 = vld [vmem:[%s8126 + $0x78] sm:$0xff]
    %v8143 = vld [vmem:[%s8126 + $0x80] sm:$0xff]
    %v8144 = vld [vmem:[%s8126 + $0x88] sm:$0xff]
    %v8145 = vld [vmem:[%s8126 + $0x90] sm:$0xff]
    %v8146 = vld [vmem:[%s8126 + $0x98] sm:$0xff]
    %v8147 = vld [vmem:[%s8126 + $0xa0] sm:$0xff]
    %v8148 = vld [vmem:[%s8126 + $0xa8] sm:$0xff]
    %v8149 = vld [vmem:[%s8126 + $0xb0] sm:$0xff]
    %v8150 = vld [vmem:[%s8126 + $0xb8] sm:$0xff]
    %v8151 = vld [vmem:[%s8126 + $0xc0] sm:$0xff]
    %v8152 = vld [vmem:[%s8126 + $0xc8] sm:$0xff]
    %v8153 = vld [vmem:[%s8126 + $0xd0] sm:$0xff]
    %v8154 = vld [vmem:[%s8126 + $0xd8] sm:$0xff]
    %v8155 = vld [vmem:[%s8126 + $0xe0] sm:$0xff]
    %v8156 = vld [vmem:[%s8126 + $0xe8] sm:$0xff]
    %v8157 = vld [vmem:[%s8126 + $0xf0] sm:$0xff]
    %v8158 = vld [vmem:[%s8126 + $0xf8] sm:$0xff]
    %v8159 = vld [vmem:[%s8126 + $0x100] sm:$0xff]
    %v8160 = vld [vmem:[%s8126 + $0x108] sm:$0xff]
    %v8161 = vld [vmem:[%s8126 + $0x110] sm:$0xff]
    %v8162 = vld [vmem:[%s8126 + $0x118] sm:$0xff]
    %v8163 = vld [vmem:[%s8126 + $0x120] sm:$0xff]
    %v8164 = vld [vmem:[%s8126 + $0x128] sm:$0xff]
    %v8165 = vld [vmem:[%s8126 + $0x130] sm:$0xff]
    %v8166 = vld [vmem:[%s8126 + $0x138] sm:$0xff]
    %v8167 = vld [vmem:[%s8126 + $0x140] sm:$0xff]
    %v8168 = vld [vmem:[%s8126 + $0x148] sm:$0xff]
    %v8169 = vld [vmem:[%s8126 + $0x150] sm:$0xff]
    %v8170 = vld [vmem:[%s8126 + $0x158] sm:$0xff]
    %v8171 = vld [vmem:[%s8126 + $0x160] sm:$0xff]
    %v8172 = vld [vmem:[%s8126 + $0x168] sm:$0xff]
    %v8173 = vld [vmem:[%s8126 + $0x170] sm:$0xff]
    %v8174 = vld [vmem:[%s8126 + $0x178] sm:$0xff]
    %v8175 = vld [vmem:[%s8126 + $0x180] sm:$0xff]
    %v8176 = vld [vmem:[%s8126 + $0x188] sm:$0xff]
    %v8177 = vld [vmem:[%s8126 + $0x190] sm:$0xff]
    %v8178 = vld [vmem:[%s8126 + $0x198] sm:$0xff]
    %v8179 = vld [vmem:[%s8126 + $0x1a0] sm:$0xff]
    %v8180 = vld [vmem:[%s8126 + $0x1a8] sm:$0xff]
    %v8181 = vld [vmem:[%s8126 + $0x1b0] sm:$0xff]
    %v8182 = vld [vmem:[%s8126 + $0x1b8] sm:$0xff]
    %v8183 = vld [vmem:[%s8126 + $0x1c0] sm:$0xff]
    %v8184 = vld [vmem:[%s8126 + $0x1c8] sm:$0xff]
    %v8185 = vld [vmem:[%s8126 + $0x1d0] sm:$0xff]
    %v8186 = vld [vmem:[%s8126 + $0x1d8] sm:$0xff]
    %v8187 = vld [vmem:[%s8126 + $0x1e0] sm:$0xff]
    %v8188 = vld [vmem:[%s8126 + $0x1e8] sm:$0xff]
    %v8189 = vld [vmem:[%s8126 + $0x1f0] sm:$0xff]
    %v8190 = vld [vmem:[%s8126 + $0x1f8] sm:$0xff]
    %v8195 = vrot.slane %v6721, 1
    %v8196 = vrot.slane %v6722, 1
    %v8197 = vrot.slane %v6723, 1
    %v8198 = vrot.slane %v6724, 1
    %8203 = vmatprep.subr.bf16.mxu0 %v8128
    %8204 = vmatpush1.bf16.msra.mxu0 %v8127
    %8205 = vmatprep.subr.bf16.mxu0 %v8130
    %8206 = vmatpush1.bf16.msra.mxu0 %v8129
    %8207 = vmatprep.subr.bf16.mxu0 %v8132
    %8208 = vmatpush1.bf16.msra.mxu0 %v8131
    %8209 = vmatprep.subr.bf16.mxu0 %v8134
    %8210 = vmatpush1.bf16.msra.mxu0 %v8133
    %8211 = vmatprep.subr.bf16.mxu0 %v8136
    %8212 = vmatpush1.bf16.msra.mxu0 %v8135
    %8213 = vmatprep.subr.bf16.mxu0 %v8138
    %8214 = vmatpush1.bf16.msra.mxu0 %v8137
    %8215 = vmatprep.subr.bf16.mxu0 %v8140
    %8216 = vmatpush1.bf16.msra.mxu0 %v8139
    %8217 = vmatprep.subr.bf16.mxu0 %v8142
    %8218 = vmatpush1.bf16.msra.mxu0 %v8141
    %8219 = vmatprep.subr.bf16.mxu0 %v8144
    %8220 = vmatpush1.bf16.msra.mxu0 %v8143
    %8221 = vmatprep.subr.bf16.mxu0 %v8146
    %8222 = vmatpush1.bf16.msra.mxu0 %v8145
    %8223 = vmatprep.subr.bf16.mxu0 %v8148
    %8224 = vmatpush1.bf16.msra.mxu0 %v8147
    %8225 = vmatprep.subr.bf16.mxu0 %v8150
    %8226 = vmatpush1.bf16.msra.mxu0 %v8149
    %8227 = vmatprep.subr.bf16.mxu0 %v8152
    %8228 = vmatpush1.bf16.msra.mxu0 %v8151
    %8229 = vmatprep.subr.bf16.mxu0 %v8154
    %8230 = vmatpush1.bf16.msra.mxu0 %v8153
    %8231 = vmatprep.subr.bf16.mxu0 %v8156
    %8232 = vmatpush1.bf16.msra.mxu0 %v8155
    %8233 = vmatprep.subr.bf16.mxu0 %v8158
    %8234 = vmatpush1.bf16.msra.mxu0 %v8157
    %8235 = vmatprep.mubr.bf16.mxu0 %v8196
    %8236 = vmatmul.mubr.bf16.gmra.mrb[0].mxu0 %v8195
    %v8237 = vpop.f32.mrb[0].mxu0
    %v8238 = vadd.f32 0.0, %v8237
    %v8239 = vpop.f32.mrb[0].mxu0
    %v8240 = vadd.f32 0.0, %v8239
    %v8241 = vpop.f32.mrb[0].mxu0
    %v8242 = vpop.f32.mrb[0].mxu0
    %8243 = vdwg.mxu0
    %8244 = vmatprep.subr.bf16.mxu0 %v8160
    %8245 = vmatpush1.bf16.msra.mxu0 %v8159
    %8246 = vmatprep.subr.bf16.mxu0 %v8162
    %8247 = vmatpush1.bf16.msra.mxu0 %v8161
    %8248 = vmatprep.subr.bf16.mxu0 %v8164
    %8249 = vmatpush1.bf16.msra.mxu0 %v8163
    %8250 = vmatprep.subr.bf16.mxu0 %v8166
    %8251 = vmatpush1.bf16.msra.mxu0 %v8165
    %8252 = vmatprep.subr.bf16.mxu0 %v8168
    %8253 = vmatpush1.bf16.msra.mxu0 %v8167
    %8254 = vmatprep.subr.bf16.mxu0 %v8170
    %8255 = vmatpush1.bf16.msra.mxu0 %v8169
    %8256 = vmatprep.subr.bf16.mxu0 %v8172
    %8257 = vmatpush1.bf16.msra.mxu0 %v8171
    %8258 = vmatprep.subr.bf16.mxu0 %v8174
    %8259 = vmatpush1.bf16.msra.mxu0 %v8173
    %8260 = vmatprep.subr.bf16.mxu0 %v8176
    %8261 = vmatpush1.bf16.msra.mxu0 %v8175
    %8262 = vmatprep.subr.bf16.mxu0 %v8178
    %8263 = vmatpush1.bf16.msra.mxu0 %v8177
    %8264 = vmatprep.subr.bf16.mxu0 %v8180
    %8265 = vmatpush1.bf16.msra.mxu0 %v8179
    %8266 = vmatprep.subr.bf16.mxu0 %v8182
    %8267 = vmatpush1.bf16.msra.mxu0 %v8181
    %8268 = vmatprep.subr.bf16.mxu0 %v8184
    %8269 = vmatpush1.bf16.msra.mxu0 %v8183
    %8270 = vmatprep.subr.bf16.mxu0 %v8186
    %8271 = vmatpush1.bf16.msra.mxu0 %v8185
    %8272 = vmatprep.subr.bf16.mxu0 %v8188
    %8273 = vmatpush1.bf16.msra.mxu0 %v8187
    %8274 = vmatprep.subr.bf16.mxu0 %v8190
    %8275 = vmatpush1.bf16.msra.mxu0 %v8189
    %8276 = vmatprep.mubr.bf16.mxu0 %v8198
    %8277 = vmatmul.mubr.bf16.gmra.mrb[0].mxu0 %v8197
    %v8278 = vpop.f32.mrb[0].mxu0
    %v8279 = vadd.f32 %v8238, %v8278
    %v8280 = vpop.f32.mrb[0].mxu0
    %v8281 = vadd.f32 %v8240, %v8280
    %v8282 = vpop.f32.mrb[0].mxu0
    %v8283 = vpop.f32.mrb[0].mxu0
    %8284 = vdwg.mxu0
    %v8285 = vadd.f32 %v8124, %v8279
    %v8286 = vadd.f32 %v8125, %v8281
    %s8287 = scalar_lea.vmem [#allocation7], 5120
    %v8288 = vld [vmem:[%s8287] sm:$0xff]
    %v8289 = vld [vmem:[%s8287 + $0x8] sm:$0xff]
    %v8290 = vld [vmem:[%s8287 + $0x10] sm:$0xff]
    %v8291 = vld [vmem:[%s8287 + $0x18] sm:$0xff]
    %v8292 = vld [vmem:[%s8287 + $0x20] sm:$0xff]
    %v8293 = vld [vmem:[%s8287 + $0x28] sm:$0xff]
    %v8294 = vld [vmem:[%s8287 + $0x30] sm:$0xff]
    %v8295 = vld [vmem:[%s8287 + $0x38] sm:$0xff]
    %v8296 = vld [vmem:[%s8287 + $0x40] sm:$0xff]
    %v8297 = vld [vmem:[%s8287 + $0x48] sm:$0xff]
    %v8298 = vld [vmem:[%s8287 + $0x50] sm:$0xff]
    %v8299 = vld [vmem:[%s8287 + $0x58] sm:$0xff]
    %v8300 = vld [vmem:[%s8287 + $0x60] sm:$0xff]
    %v8301 = vld [vmem:[%s8287 + $0x68] sm:$0xff]
    %v8302 = vld [vmem:[%s8287 + $0x70] sm:$0xff]
    %v8303 = vld [vmem:[%s8287 + $0x78] sm:$0xff]
    %v8304 = vld [vmem:[%s8287 + $0x80] sm:$0xff]
    %v8305 = vld [vmem:[%s8287 + $0x88] sm:$0xff]
    %v8306 = vld [vmem:[%s8287 + $0x90] sm:$0xff]
    %v8307 = vld [vmem:[%s8287 + $0x98] sm:$0xff]
    %v8308 = vld [vmem:[%s8287 + $0xa0] sm:$0xff]
    %v8309 = vld [vmem:[%s8287 + $0xa8] sm:$0xff]
    %v8310 = vld [vmem:[%s8287 + $0xb0] sm:$0xff]
    %v8311 = vld [vmem:[%s8287 + $0xb8] sm:$0xff]
    %v8312 = vld [vmem:[%s8287 + $0xc0] sm:$0xff]
    %v8313 = vld [vmem:[%s8287 + $0xc8] sm:$0xff]
    %v8314 = vld [vmem:[%s8287 + $0xd0] sm:$0xff]
    %v8315 = vld [vmem:[%s8287 + $0xd8] sm:$0xff]
    %v8316 = vld [vmem:[%s8287 + $0xe0] sm:$0xff]
    %v8317 = vld [vmem:[%s8287 + $0xe8] sm:$0xff]
    %v8318 = vld [vmem:[%s8287 + $0xf0] sm:$0xff]
    %v8319 = vld [vmem:[%s8287 + $0xf8] sm:$0xff]
    %v8320 = vld [vmem:[%s8287 + $0x100] sm:$0xff]
    %v8321 = vld [vmem:[%s8287 + $0x108] sm:$0xff]
    %v8322 = vld [vmem:[%s8287 + $0x110] sm:$0xff]
    %v8323 = vld [vmem:[%s8287 + $0x118] sm:$0xff]
    %v8324 = vld [vmem:[%s8287 + $0x120] sm:$0xff]
    %v8325 = vld [vmem:[%s8287 + $0x128] sm:$0xff]
    %v8326 = vld [vmem:[%s8287 + $0x130] sm:$0xff]
    %v8327 = vld [vmem:[%s8287 + $0x138] sm:$0xff]
    %v8328 = vld [vmem:[%s8287 + $0x140] sm:$0xff]
    %v8329 = vld [vmem:[%s8287 + $0x148] sm:$0xff]
    %v8330 = vld [vmem:[%s8287 + $0x150] sm:$0xff]
    %v8331 = vld [vmem:[%s8287 + $0x158] sm:$0xff]
    %v8332 = vld [vmem:[%s8287 + $0x160] sm:$0xff]
    %v8333 = vld [vmem:[%s8287 + $0x168] sm:$0xff]
    %v8334 = vld [vmem:[%s8287 + $0x170] sm:$0xff]
    %v8335 = vld [vmem:[%s8287 + $0x178] sm:$0xff]
    %v8336 = vld [vmem:[%s8287 + $0x180] sm:$0xff]
    %v8337 = vld [vmem:[%s8287 + $0x188] sm:$0xff]
    %v8338 = vld [vmem:[%s8287 + $0x190] sm:$0xff]
    %v8339 = vld [vmem:[%s8287 + $0x198] sm:$0xff]
    %v8340 = vld [vmem:[%s8287 + $0x1a0] sm:$0xff]
    %v8341 = vld [vmem:[%s8287 + $0x1a8] sm:$0xff]
    %v8342 = vld [vmem:[%s8287 + $0x1b0] sm:$0xff]
    %v8343 = vld [vmem:[%s8287 + $0x1b8] sm:$0xff]
    %v8344 = vld [vmem:[%s8287 + $0x1c0] sm:$0xff]
    %v8345 = vld [vmem:[%s8287 + $0x1c8] sm:$0xff]
    %v8346 = vld [vmem:[%s8287 + $0x1d0] sm:$0xff]
    %v8347 = vld [vmem:[%s8287 + $0x1d8] sm:$0xff]
    %v8348 = vld [vmem:[%s8287 + $0x1e0] sm:$0xff]
    %v8349 = vld [vmem:[%s8287 + $0x1e8] sm:$0xff]
    %v8350 = vld [vmem:[%s8287 + $0x1f0] sm:$0xff]
    %v8351 = vld [vmem:[%s8287 + $0x1f8] sm:$0xff]
    %v8352 = vrot.slane %v6721, 2
    %v8353 = vrot.slane %v6722, 2
    %v8354 = vrot.slane %v6723, 2
    %v8355 = vrot.slane %v6724, 2
    %8360 = vmatprep.subr.bf16.mxu0 %v8289
    %8361 = vmatpush1.bf16.msra.mxu0 %v8288
    %8362 = vmatprep.subr.bf16.mxu0 %v8291
    %8363 = vmatpush1.bf16.msra.mxu0 %v8290
    %8364 = vmatprep.subr.bf16.mxu0 %v8293
    %8365 = vmatpush1.bf16.msra.mxu0 %v8292
    %8366 = vmatprep.subr.bf16.mxu0 %v8295
    %8367 = vmatpush1.bf16.msra.mxu0 %v8294
    %8368 = vmatprep.subr.bf16.mxu0 %v8297
    %8369 = vmatpush1.bf16.msra.mxu0 %v8296
    %8370 = vmatprep.subr.bf16.mxu0 %v8299
    %8371 = vmatpush1.bf16.msra.mxu0 %v8298
    %8372 = vmatprep.subr.bf16.mxu0 %v8301
    %8373 = vmatpush1.bf16.msra.mxu0 %v8300
    %8374 = vmatprep.subr.bf16.mxu0 %v8303
    %8375 = vmatpush1.bf16.msra.mxu0 %v8302
    %8376 = vmatprep.subr.bf16.mxu0 %v8305
    %8377 = vmatpush1.bf16.msra.mxu0 %v8304
    %8378 = vmatprep.subr.bf16.mxu0 %v8307
    %8379 = vmatpush1.bf16.msra.mxu0 %v8306
    %8380 = vmatprep.subr.bf16.mxu0 %v8309
    %8381 = vmatpush1.bf16.msra.mxu0 %v8308
    %8382 = vmatprep.subr.bf16.mxu0 %v8311
    %8383 = vmatpush1.bf16.msra.mxu0 %v8310
    %8384 = vmatprep.subr.bf16.mxu0 %v8313
    %8385 = vmatpush1.bf16.msra.mxu0 %v8312
    %8386 = vmatprep.subr.bf16.mxu0 %v8315
    %8387 = vmatpush1.bf16.msra.mxu0 %v8314
    %8388 = vmatprep.subr.bf16.mxu0 %v8317
    %8389 = vmatpush1.bf16.msra.mxu0 %v8316
    %8390 = vmatprep.subr.bf16.mxu0 %v8319
    %8391 = vmatpush1.bf16.msra.mxu0 %v8318
    %8392 = vmatprep.mubr.bf16.mxu0 %v8353
    %8393 = vmatmul.mubr.bf16.gmra.mrb[0].mxu0 %v8352
    %v8394 = vpop.f32.mrb[0].mxu0
    %v8395 = vadd.f32 0.0, %v8394
    %v8396 = vpop.f32.mrb[0].mxu0
    %v8397 = vadd.f32 0.0, %v8396
    %v8398 = vpop.f32.mrb[0].mxu0
    %v8399 = vpop.f32.mrb[0].mxu0
    %8400 = vdwg.mxu0
    %8401 = vmatprep.subr.bf16.mxu0 %v8321
    %8402 = vmatpush1.bf16.msra.mxu0 %v8320
    %8403 = vmatprep.subr.bf16.mxu0 %v8323
    %8404 = vmatpush1.bf16.msra.mxu0 %v8322
    %8405 = vmatprep.subr.bf16.mxu0 %v8325
    %8406 = vmatpush1.bf16.msra.mxu0 %v8324
    %8407 = vmatprep.subr.bf16.mxu0 %v8327
    %8408 = vmatpush1.bf16.msra.mxu0 %v8326
    %8409 = vmatprep.subr.bf16.mxu0 %v8329
    %8410 = vmatpush1.bf16.msra.mxu0 %v8328
    %8411 = vmatprep.subr.bf16.mxu0 %v8331
    %8412 = vmatpush1.bf16.msra.mxu0 %v8330
    %8413 = vmatprep.subr.bf16.mxu0 %v8333
    %8414 = vmatpush1.bf16.msra.mxu0 %v8332
    %8415 = vmatprep.subr.bf16.mxu0 %v8335
    %8416 = vmatpush1.bf16.msra.mxu0 %v8334
    %8417 = vmatprep.subr.bf16.mxu0 %v8337
    %8418 = vmatpush1.bf16.msra.mxu0 %v8336
    %8419 = vmatprep.subr.bf16.mxu0 %v8339
    %8420 = vmatpush1.bf16.msra.mxu0 %v8338
    %8421 = vmatprep.subr.bf16.mxu0 %v8341
    %8422 = vmatpush1.bf16.msra.mxu0 %v8340
    %8423 = vmatprep.subr.bf16.mxu0 %v8343
    %8424 = vmatpush1.bf16.msra.mxu0 %v8342
    %8425 = vmatprep.subr.bf16.mxu0 %v8345
    %8426 = vmatpush1.bf16.msra.mxu0 %v8344
    %8427 = vmatprep.subr.bf16.mxu0 %v8347
    %8428 = vmatpush1.bf16.msra.mxu0 %v8346
    %8429 = vmatprep.subr.bf16.mxu0 %v8349
    %8430 = vmatpush1.bf16.msra.mxu0 %v8348
    %8431 = vmatprep.subr.bf16.mxu0 %v8351
    %8432 = vmatpush1.bf16.msra.mxu0 %v8350
    %8433 = vmatprep.mubr.bf16.mxu0 %v8355
    %8434 = vmatmul.mubr.bf16.gmra.mrb[0].mxu0 %v8354
    %v8435 = vpop.f32.mrb[0].mxu0
    %v8436 = vadd.f32 %v8395, %v8435
    %v8437 = vpop.f32.mrb[0].mxu0
    %v8438 = vadd.f32 %v8397, %v8437
    %v8439 = vpop.f32.mrb[0].mxu0
    %v8440 = vpop.f32.mrb[0].mxu0
    %8441 = vdwg.mxu0
    %v8442 = vadd.f32 %v8285, %v8436
    %v8443 = vadd.f32 %v8286, %v8438
    %s8444 = scalar_lea.vmem [#allocation7], 5632
    %v8445 = vld [vmem:[%s8444] sm:$0xff]
    %v8446 = vld [vmem:[%s8444 + $0x8] sm:$0xff]
    %v8447 = vld [vmem:[%s8444 + $0x10] sm:$0xff]
    %v8448 = vld [vmem:[%s8444 + $0x18] sm:$0xff]
    %v8449 = vld [vmem:[%s8444 + $0x20] sm:$0xff]
    %v8450 = vld [vmem:[%s8444 + $0x28] sm:$0xff]
    %v8451 = vld [vmem:[%s8444 + $0x30] sm:$0xff]
    %v8452 = vld [vmem:[%s8444 + $0x38] sm:$0xff]
    %v8453 = vld [vmem:[%s8444 + $0x40] sm:$0xff]
    %v8454 = vld [vmem:[%s8444 + $0x48] sm:$0xff]
    %v8455 = vld [vmem:[%s8444 + $0x50] sm:$0xff]
    %v8456 = vld [vmem:[%s8444 + $0x58] sm:$0xff]
    %v8457 = vld [vmem:[%s8444 + $0x60] sm:$0xff]
    %v8458 = vld [vmem:[%s8444 + $0x68] sm:$0xff]
    %v8459 = vld [vmem:[%s8444 + $0x70] sm:$0xff]
    %v8460 = vld [vmem:[%s8444 + $0x78] sm:$0xff]
    %v8461 = vld [vmem:[%s8444 + $0x80] sm:$0xff]
    %v8462 = vld [vmem:[%s8444 + $0x88] sm:$0xff]
    %v8463 = vld [vmem:[%s8444 + $0x90] sm:$0xff]
    %v8464 = vld [vmem:[%s8444 + $0x98] sm:$0xff]
    %v8465 = vld [vmem:[%s8444 + $0xa0] sm:$0xff]
    %v8466 = vld [vmem:[%s8444 + $0xa8] sm:$0xff]
    %v8467 = vld [vmem:[%s8444 + $0xb0] sm:$0xff]
    %v8468 = vld [vmem:[%s8444 + $0xb8] sm:$0xff]
    %v8469 = vld [vmem:[%s8444 + $0xc0] sm:$0xff]
    %v8470 = vld [vmem:[%s8444 + $0xc8] sm:$0xff]
    %v8471 = vld [vmem:[%s8444 + $0xd0] sm:$0xff]
    %v8472 = vld [vmem:[%s8444 + $0xd8] sm:$0xff]
    %v8473 = vld [vmem:[%s8444 + $0xe0] sm:$0xff]
    %v8474 = vld [vmem:[%s8444 + $0xe8] sm:$0xff]
    %v8475 = vld [vmem:[%s8444 + $0xf0] sm:$0xff]
    %v8476 = vld [vmem:[%s8444 + $0xf8] sm:$0xff]
    %v8477 = vld [vmem:[%s8444 + $0x100] sm:$0xff]
    %v8478 = vld [vmem:[%s8444 + $0x108] sm:$0xff]
    %v8479 = vld [vmem:[%s8444 + $0x110] sm:$0xff]
    %v8480 = vld [vmem:[%s8444 + $0x118] sm:$0xff]
    %v8481 = vld [vmem:[%s8444 + $0x120] sm:$0xff]
    %v8482 = vld [vmem:[%s8444 + $0x128] sm:$0xff]
    %v8483 = vld [vmem:[%s8444 + $0x130] sm:$0xff]
    %v8484 = vld [vmem:[%s8444 + $0x138] sm:$0xff]
    %v8485 = vld [vmem:[%s8444 + $0x140] sm:$0xff]
    %v8486 = vld [vmem:[%s8444 + $0x148] sm:$0xff]
    %v8487 = vld [vmem:[%s8444 + $0x150] sm:$0xff]
    %v8488 = vld [vmem:[%s8444 + $0x158] sm:$0xff]
    %v8489 = vld [vmem:[%s8444 + $0x160] sm:$0xff]
    %v8490 = vld [vmem:[%s8444 + $0x168] sm:$0xff]
    %v8491 = vld [vmem:[%s8444 + $0x170] sm:$0xff]
    %v8492 = vld [vmem:[%s8444 + $0x178] sm:$0xff]
    %v8493 = vld [vmem:[%s8444 + $0x180] sm:$0xff]
    %v8494 = vld [vmem:[%s8444 + $0x188] sm:$0xff]
    %v8495 = vld [vmem:[%s8444 + $0x190] sm:$0xff]
    %v8496 = vld [vmem:[%s8444 + $0x198] sm:$0xff]
    %v8497 = vld [vmem:[%s8444 + $0x1a0] sm:$0xff]
    %v8498 = vld [vmem:[%s8444 + $0x1a8] sm:$0xff]
    %v8499 = vld [vmem:[%s8444 + $0x1b0] sm:$0xff]
    %v8500 = vld [vmem:[%s8444 + $0x1b8] sm:$0xff]
    %v8501 = vld [vmem:[%s8444 + $0x1c0] sm:$0xff]
    %v8502 = vld [vmem:[%s8444 + $0x1c8] sm:$0xff]
    %v8503 = vld [vmem:[%s8444 + $0x1d0] sm:$0xff]
    %v8504 = vld [vmem:[%s8444 + $0x1d8] sm:$0xff]
    %v8505 = vld [vmem:[%s8444 + $0x1e0] sm:$0xff]
    %v8506 = vld [vmem:[%s8444 + $0x1e8] sm:$0xff]
    %v8507 = vld [vmem:[%s8444 + $0x1f0] sm:$0xff]
    %v8508 = vld [vmem:[%s8444 + $0x1f8] sm:$0xff]
    %v8509 = vrot.slane %v6721, 3
    %v8510 = vrot.slane %v6722, 3
    %v8511 = vrot.slane %v6723, 3
    %v8512 = vrot.slane %v6724, 3
    %8517 = vmatprep.subr.bf16.mxu0 %v8446
    %8518 = vmatpush1.bf16.msra.mxu0 %v8445
    %8519 = vmatprep.subr.bf16.mxu0 %v8448
    %8520 = vmatpush1.bf16.msra.mxu0 %v8447
    %8521 = vmatprep.subr.bf16.mxu0 %v8450
    %8522 = vmatpush1.bf16.msra.mxu0 %v8449
    %8523 = vmatprep.subr.bf16.mxu0 %v8452
    %8524 = vmatpush1.bf16.msra.mxu0 %v8451
    %8525 = vmatprep.subr.bf16.mxu0 %v8454
    %8526 = vmatpush1.bf16.msra.mxu0 %v8453
    %8527 = vmatprep.subr.bf16.mxu0 %v8456
    %8528 = vmatpush1.bf16.msra.mxu0 %v8455
    %8529 = vmatprep.subr.bf16.mxu0 %v8458
    %8530 = vmatpush1.bf16.msra.mxu0 %v8457
    %8531 = vmatprep.subr.bf16.mxu0 %v8460
    %8532 = vmatpush1.bf16.msra.mxu0 %v8459
    %8533 = vmatprep.subr.bf16.mxu0 %v8462
    %8534 = vmatpush1.bf16.msra.mxu0 %v8461
    %8535 = vmatprep.subr.bf16.mxu0 %v8464
    %8536 = vmatpush1.bf16.msra.mxu0 %v8463
    %8537 = vmatprep.subr.bf16.mxu0 %v8466
    %8538 = vmatpush1.bf16.msra.mxu0 %v8465
    %8539 = vmatprep.subr.bf16.mxu0 %v8468
    %8540 = vmatpush1.bf16.msra.mxu0 %v8467
    %8541 = vmatprep.subr.bf16.mxu0 %v8470
    %8542 = vmatpush1.bf16.msra.mxu0 %v8469
    %8543 = vmatprep.subr.bf16.mxu0 %v8472
    %8544 = vmatpush1.bf16.msra.mxu0 %v8471
    %8545 = vmatprep.subr.bf16.mxu0 %v8474
    %8546 = vmatpush1.bf16.msra.mxu0 %v8473
    %8547 = vmatprep.subr.bf16.mxu0 %v8476
    %8548 = vmatpush1.bf16.msra.mxu0 %v8475
    %8549 = vmatprep.mubr.bf16.mxu0 %v8510
    %8550 = vmatmul.mubr.bf16.gmra.mrb[0].mxu0 %v8509
    %v8551 = vpop.f32.mrb[0].mxu0
    %v8552 = vadd.f32 0.0, %v8551
    %v8553 = vpop.f32.mrb[0].mxu0
    %v8554 = vadd.f32 0.0, %v8553
    %v8555 = vpop.f32.mrb[0].mxu0
    %v8556 = vpop.f32.mrb[0].mxu0
    %8557 = vdwg.mxu0
    %8558 = vmatprep.subr.bf16.mxu0 %v8478
    %8559 = vmatpush1.bf16.msra.mxu0 %v8477
    %8560 = vmatprep.subr.bf16.mxu0 %v8480
    %8561 = vmatpush1.bf16.msra.mxu0 %v8479
    %8562 = vmatprep.subr.bf16.mxu0 %v8482
    %8563 = vmatpush1.bf16.msra.mxu0 %v8481
    %8564 = vmatprep.subr.bf16.mxu0 %v8484
    %8565 = vmatpush1.bf16.msra.mxu0 %v8483
    %8566 = vmatprep.subr.bf16.mxu0 %v8486
    %8567 = vmatpush1.bf16.msra.mxu0 %v8485
    %8568 = vmatprep.subr.bf16.mxu0 %v8488
    %8569 = vmatpush1.bf16.msra.mxu0 %v8487
    %8570 = vmatprep.subr.bf16.mxu0 %v8490
    %8571 = vmatpush1.bf16.msra.mxu0 %v8489
    %8572 = vmatprep.subr.bf16.mxu0 %v8492
    %8573 = vmatpush1.bf16.msra.mxu0 %v8491
    %8574 = vmatprep.subr.bf16.mxu0 %v8494
    %8575 = vmatpush1.bf16.msra.mxu0 %v8493
    %8576 = vmatprep.subr.bf16.mxu0 %v8496
    %8577 = vmatpush1.bf16.msra.mxu0 %v8495
    %8578 = vmatprep.subr.bf16.mxu0 %v8498
    %8579 = vmatpush1.bf16.msra.mxu0 %v8497
    %8580 = vmatprep.subr.bf16.mxu0 %v8500
    %8581 = vmatpush1.bf16.msra.mxu0 %v8499
    %8582 = vmatprep.subr.bf16.mxu0 %v8502
    %8583 = vmatpush1.bf16.msra.mxu0 %v8501
    %8584 = vmatprep.subr.bf16.mxu0 %v8504
    %8585 = vmatpush1.bf16.msra.mxu0 %v8503
    %8586 = vmatprep.subr.bf16.mxu0 %v8506
    %8587 = vmatpush1.bf16.msra.mxu0 %v8505
    %8588 = vmatprep.subr.bf16.mxu0 %v8508
    %8589 = vmatpush1.bf16.msra.mxu0 %v8507
    %8590 = vmatprep.mubr.bf16.mxu0 %v8512
    %8591 = vmatmul.mubr.bf16.gmra.mrb[0].mxu0 %v8511
    %v8592 = vpop.f32.mrb[0].mxu0
    %v8593 = vadd.f32 %v8552, %v8592
    %v8594 = vpop.f32.mrb[0].mxu0
    %v8595 = vadd.f32 %v8554, %v8594
    %v8596 = vpop.f32.mrb[0].mxu0
    %v8597 = vpop.f32.mrb[0].mxu0
    %8598 = vdwg.mxu0
    %v8599 = vadd.f32 %v8442, %v8593
    %v8600 = vadd.f32 %v8443, %v8595
    %s8601 = scalar_lea.vmem [#allocation7], 6144
    %v8602 = vld [vmem:[%s8601] sm:$0xff]
    %v8603 = vld [vmem:[%s8601 + $0x8] sm:$0xff]
    %v8604 = vld [vmem:[%s8601 + $0x10] sm:$0xff]
    %v8605 = vld [vmem:[%s8601 + $0x18] sm:$0xff]
    %v8606 = vld [vmem:[%s8601 + $0x20] sm:$0xff]
    %v8607 = vld [vmem:[%s8601 + $0x28] sm:$0xff]
    %v8608 = vld [vmem:[%s8601 + $0x30] sm:$0xff]
    %v8609 = vld [vmem:[%s8601 + $0x38] sm:$0xff]
    %v8610 = vld [vmem:[%s8601 + $0x40] sm:$0xff]
    %v8611 = vld [vmem:[%s8601 + $0x48] sm:$0xff]
    %v8612 = vld [vmem:[%s8601 + $0x50] sm:$0xff]
    %v8613 = vld [vmem:[%s8601 + $0x58] sm:$0xff]
    %v8614 = vld [vmem:[%s8601 + $0x60] sm:$0xff]
    %v8615 = vld [vmem:[%s8601 + $0x68] sm:$0xff]
    %v8616 = vld [vmem:[%s8601 + $0x70] sm:$0xff]
    %v8617 = vld [vmem:[%s8601 + $0x78] sm:$0xff]
    %v8618 = vld [vmem:[%s8601 + $0x80] sm:$0xff]
    %v8619 = vld [vmem:[%s8601 + $0x88] sm:$0xff]
    %v8620 = vld [vmem:[%s8601 + $0x90] sm:$0xff]
    %v8621 = vld [vmem:[%s8601 + $0x98] sm:$0xff]
    %v8622 = vld [vmem:[%s8601 + $0xa0] sm:$0xff]
    %v8623 = vld [vmem:[%s8601 + $0xa8] sm:$0xff]
    %v8624 = vld [vmem:[%s8601 + $0xb0] sm:$0xff]
    %v8625 = vld [vmem:[%s8601 + $0xb8] sm:$0xff]
    %v8626 = vld [vmem:[%s8601 + $0xc0] sm:$0xff]
    %v8627 = vld [vmem:[%s8601 + $0xc8] sm:$0xff]
    %v8628 = vld [vmem:[%s8601 + $0xd0] sm:$0xff]
    %v8629 = vld [vmem:[%s8601 + $0xd8] sm:$0xff]
    %v8630 = vld [vmem:[%s8601 + $0xe0] sm:$0xff]
    %v8631 = vld [vmem:[%s8601 + $0xe8] sm:$0xff]
    %v8632 = vld [vmem:[%s8601 + $0xf0] sm:$0xff]
    %v8633 = vld [vmem:[%s8601 + $0xf8] sm:$0xff]
    %v8634 = vld [vmem:[%s8601 + $0x100] sm:$0xff]
    %v8635 = vld [vmem:[%s8601 + $0x108] sm:$0xff]
    %v8636 = vld [vmem:[%s8601 + $0x110] sm:$0xff]
    %v8637 = vld [vmem:[%s8601 + $0x118] sm:$0xff]
    %v8638 = vld [vmem:[%s8601 + $0x120] sm:$0xff]
    %v8639 = vld [vmem:[%s8601 + $0x128] sm:$0xff]
    %v8640 = vld [vmem:[%s8601 + $0x130] sm:$0xff]
    %v8641 = vld [vmem:[%s8601 + $0x138] sm:$0xff]
    %v8642 = vld [vmem:[%s8601 + $0x140] sm:$0xff]
    %v8643 = vld [vmem:[%s8601 + $0x148] sm:$0xff]
    %v8644 = vld [vmem:[%s8601 + $0x150] sm:$0xff]
    %v8645 = vld [vmem:[%s8601 + $0x158] sm:$0xff]
    %v8646 = vld [vmem:[%s8601 + $0x160] sm:$0xff]
    %v8647 = vld [vmem:[%s8601 + $0x168] sm:$0xff]
    %v8648 = vld [vmem:[%s8601 + $0x170] sm:$0xff]
    %v8649 = vld [vmem:[%s8601 + $0x178] sm:$0xff]
    %v8650 = vld [vmem:[%s8601 + $0x180] sm:$0xff]
    %v8651 = vld [vmem:[%s8601 + $0x188] sm:$0xff]
    %v8652 = vld [vmem:[%s8601 + $0x190] sm:$0xff]
    %v8653 = vld [vmem:[%s8601 + $0x198] sm:$0xff]
    %v8654 = vld [vmem:[%s8601 + $0x1a0] sm:$0xff]
    %v8655 = vld [vmem:[%s8601 + $0x1a8] sm:$0xff]
    %v8656 = vld [vmem:[%s8601 + $0x1b0] sm:$0xff]
    %v8657 = vld [vmem:[%s8601 + $0x1b8] sm:$0xff]
    %v8658 = vld [vmem:[%s8601 + $0x1c0] sm:$0xff]
    %v8659 = vld [vmem:[%s8601 + $0x1c8] sm:$0xff]
    %v8660 = vld [vmem:[%s8601 + $0x1d0] sm:$0xff]
    %v8661 = vld [vmem:[%s8601 + $0x1d8] sm:$0xff]
    %v8662 = vld [vmem:[%s8601 + $0x1e0] sm:$0xff]
    %v8663 = vld [vmem:[%s8601 + $0x1e8] sm:$0xff]
    %v8664 = vld [vmem:[%s8601 + $0x1f0] sm:$0xff]
    %v8665 = vld [vmem:[%s8601 + $0x1f8] sm:$0xff]
    %v8666 = vrot.slane %v6721, 4
    %v8667 = vrot.slane %v6722, 4
    %v8668 = vrot.slane %v6723, 4
    %v8669 = vrot.slane %v6724, 4
    %8674 = vmatprep.subr.bf16.mxu0 %v8603
    %8675 = vmatpush1.bf16.msra.mxu0 %v8602
    %8676 = vmatprep.subr.bf16.mxu0 %v8605
    %8677 = vmatpush1.bf16.msra.mxu0 %v8604
    %8678 = vmatprep.subr.bf16.mxu0 %v8607
    %8679 = vmatpush1.bf16.msra.mxu0 %v8606
    %8680 = vmatprep.subr.bf16.mxu0 %v8609
    %8681 = vmatpush1.bf16.msra.mxu0 %v8608
    %8682 = vmatprep.subr.bf16.mxu0 %v8611
    %8683 = vmatpush1.bf16.msra.mxu0 %v8610
    %8684 = vmatprep.subr.bf16.mxu0 %v8613
    %8685 = vmatpush1.bf16.msra.mxu0 %v8612
    %8686 = vmatprep.subr.bf16.mxu0 %v8615
    %8687 = vmatpush1.bf16.msra.mxu0 %v8614
    %8688 = vmatprep.subr.bf16.mxu0 %v8617
    %8689 = vmatpush1.bf16.msra.mxu0 %v8616
    %8690 = vmatprep.subr.bf16.mxu0 %v8619
    %8691 = vmatpush1.bf16.msra.mxu0 %v8618
    %8692 = vmatprep.subr.bf16.mxu0 %v8621
    %8693 = vmatpush1.bf16.msra.mxu0 %v8620
    %8694 = vmatprep.subr.bf16.mxu0 %v8623
    %8695 = vmatpush1.bf16.msra.mxu0 %v8622
    %8696 = vmatprep.subr.bf16.mxu0 %v8625
    %8697 = vmatpush1.bf16.msra.mxu0 %v8624
    %8698 = vmatprep.subr.bf16.mxu0 %v8627
    %8699 = vmatpush1.bf16.msra.mxu0 %v8626
    %8700 = vmatprep.subr.bf16.mxu0 %v8629
    %8701 = vmatpush1.bf16.msra.mxu0 %v8628
    %8702 = vmatprep.subr.bf16.mxu0 %v8631
    %8703 = vmatpush1.bf16.msra.mxu0 %v8630
    %8704 = vmatprep.subr.bf16.mxu0 %v8633
    %8705 = vmatpush1.bf16.msra.mxu0 %v8632
    %8706 = vmatprep.mubr.bf16.mxu0 %v8667
    %8707 = vmatmul.mubr.bf16.gmra.mrb[0].mxu0 %v8666
    %v8708 = vpop.f32.mrb[0].mxu0
    %v8709 = vadd.f32 0.0, %v8708
    %v8710 = vpop.f32.mrb[0].mxu0
    %v8711 = vadd.f32 0.0, %v8710
    %v8712 = vpop.f32.mrb[0].mxu0
    %v8713 = vpop.f32.mrb[0].mxu0
    %8714 = vdwg.mxu0
    %8715 = vmatprep.subr.bf16.mxu0 %v8635
    %8716 = vmatpush1.bf16.msra.mxu0 %v8634
    %8717 = vmatprep.subr.bf16.mxu0 %v8637
    %8718 = vmatpush1.bf16.msra.mxu0 %v8636
    %8719 = vmatprep.subr.bf16.mxu0 %v8639
    %8720 = vmatpush1.bf16.msra.mxu0 %v8638
    %8721 = vmatprep.subr.bf16.mxu0 %v8641
    %8722 = vmatpush1.bf16.msra.mxu0 %v8640
    %8723 = vmatprep.subr.bf16.mxu0 %v8643
    %8724 = vmatpush1.bf16.msra.mxu0 %v8642
    %8725 = vmatprep.subr.bf16.mxu0 %v8645
    %8726 = vmatpush1.bf16.msra.mxu0 %v8644
    %8727 = vmatprep.subr.bf16.mxu0 %v8647
    %8728 = vmatpush1.bf16.msra.mxu0 %v8646
    %8729 = vmatprep.subr.bf16.mxu0 %v8649
    %8730 = vmatpush1.bf16.msra.mxu0 %v8648
    %8731 = vmatprep.subr.bf16.mxu0 %v8651
    %8732 = vmatpush1.bf16.msra.mxu0 %v8650
    %8733 = vmatprep.subr.bf16.mxu0 %v8653
    %8734 = vmatpush1.bf16.msra.mxu0 %v8652
    %8735 = vmatprep.subr.bf16.mxu0 %v8655
    %8736 = vmatpush1.bf16.msra.mxu0 %v8654
    %8737 = vmatprep.subr.bf16.mxu0 %v8657
    %8738 = vmatpush1.bf16.msra.mxu0 %v8656
    %8739 = vmatprep.subr.bf16.mxu0 %v8659
    %8740 = vmatpush1.bf16.msra.mxu0 %v8658
    %8741 = vmatprep.subr.bf16.mxu0 %v8661
    %8742 = vmatpush1.bf16.msra.mxu0 %v8660
    %8743 = vmatprep.subr.bf16.mxu0 %v8663
    %8744 = vmatpush1.bf16.msra.mxu0 %v8662
    %8745 = vmatprep.subr.bf16.mxu0 %v8665
    %8746 = vmatpush1.bf16.msra.mxu0 %v8664
    %8747 = vmatprep.mubr.bf16.mxu0 %v8669
    %8748 = vmatmul.mubr.bf16.gmra.mrb[0].mxu0 %v8668
    %v8749 = vpop.f32.mrb[0].mxu0
    %v8750 = vadd.f32 %v8709, %v8749
    %v8751 = vpop.f32.mrb[0].mxu0
    %v8752 = vadd.f32 %v8711, %v8751
    %v8753 = vpop.f32.mrb[0].mxu0
    %v8754 = vpop.f32.mrb[0].mxu0
    %8755 = vdwg.mxu0
    %v8756 = vadd.f32 %v8599, %v8750
    %v8757 = vadd.f32 %v8600, %v8752
    %s8758 = scalar_lea.vmem [#allocation7], 6656
    %v8759 = vld [vmem:[%s8758] sm:$0xff]
    %v8760 = vld [vmem:[%s8758 + $0x8] sm:$0xff]
    %v8761 = vld [vmem:[%s8758 + $0x10] sm:$0xff]
    %v8762 = vld [vmem:[%s8758 + $0x18] sm:$0xff]
    %v8763 = vld [vmem:[%s8758 + $0x20] sm:$0xff]
    %v8764 = vld [vmem:[%s8758 + $0x28] sm:$0xff]
    %v8765 = vld [vmem:[%s8758 + $0x30] sm:$0xff]
    %v8766 = vld [vmem:[%s8758 + $0x38] sm:$0xff]
    %v8767 = vld [vmem:[%s8758 + $0x40] sm:$0xff]
    %v8768 = vld [vmem:[%s8758 + $0x48] sm:$0xff]
    %v8769 = vld [vmem:[%s8758 + $0x50] sm:$0xff]
    %v8770 = vld [vmem:[%s8758 + $0x58] sm:$0xff]
    %v8771 = vld [vmem:[%s8758 + $0x60] sm:$0xff]
    %v8772 = vld [vmem:[%s8758 + $0x68] sm:$0xff]
    %v8773 = vld [vmem:[%s8758 + $0x70] sm:$0xff]
    %v8774 = vld [vmem:[%s8758 + $0x78] sm:$0xff]
    %v8775 = vld [vmem:[%s8758 + $0x80] sm:$0xff]
    %v8776 = vld [vmem:[%s8758 + $0x88] sm:$0xff]
    %v8777 = vld [vmem:[%s8758 + $0x90] sm:$0xff]
    %v8778 = vld [vmem:[%s8758 + $0x98] sm:$0xff]
    %v8779 = vld [vmem:[%s8758 + $0xa0] sm:$0xff]
    %v8780 = vld [vmem:[%s8758 + $0xa8] sm:$0xff]
    %v8781 = vld [vmem:[%s8758 + $0xb0] sm:$0xff]
    %v8782 = vld [vmem:[%s8758 + $0xb8] sm:$0xff]
    %v8783 = vld [vmem:[%s8758 + $0xc0] sm:$0xff]
    %v8784 = vld [vmem:[%s8758 + $0xc8] sm:$0xff]
    %v8785 = vld [vmem:[%s8758 + $0xd0] sm:$0xff]
    %v8786 = vld [vmem:[%s8758 + $0xd8] sm:$0xff]
    %v8787 = vld [vmem:[%s8758 + $0xe0] sm:$0xff]
    %v8788 = vld [vmem:[%s8758 + $0xe8] sm:$0xff]
    %v8789 = vld [vmem:[%s8758 + $0xf0] sm:$0xff]
    %v8790 = vld [vmem:[%s8758 + $0xf8] sm:$0xff]
    %v8791 = vld [vmem:[%s8758 + $0x100] sm:$0xff]
    %v8792 = vld [vmem:[%s8758 + $0x108] sm:$0xff]
    %v8793 = vld [vmem:[%s8758 + $0x110] sm:$0xff]
    %v8794 = vld [vmem:[%s8758 + $0x118] sm:$0xff]
    %v8795 = vld [vmem:[%s8758 + $0x120] sm:$0xff]
    %v8796 = vld [vmem:[%s8758 + $0x128] sm:$0xff]
    %v8797 = vld [vmem:[%s8758 + $0x130] sm:$0xff]
    %v8798 = vld [vmem:[%s8758 + $0x138] sm:$0xff]
    %v8799 = vld [vmem:[%s8758 + $0x140] sm:$0xff]
    %v8800 = vld [vmem:[%s8758 + $0x148] sm:$0xff]
    %v8801 = vld [vmem:[%s8758 + $0x150] sm:$0xff]
    %v8802 = vld [vmem:[%s8758 + $0x158] sm:$0xff]
    %v8803 = vld [vmem:[%s8758 + $0x160] sm:$0xff]
    %v8804 = vld [vmem:[%s8758 + $0x168] sm:$0xff]
    %v8805 = vld [vmem:[%s8758 + $0x170] sm:$0xff]
    %v8806 = vld [vmem:[%s8758 + $0x178] sm:$0xff]
    %v8807 = vld [vmem:[%s8758 + $0x180] sm:$0xff]
    %v8808 = vld [vmem:[%s8758 + $0x188] sm:$0xff]
    %v8809 = vld [vmem:[%s8758 + $0x190] sm:$0xff]
    %v8810 = vld [vmem:[%s8758 + $0x198] sm:$0xff]
    %v8811 = vld [vmem:[%s8758 + $0x1a0] sm:$0xff]
    %v8812 = vld [vmem:[%s8758 + $0x1a8] sm:$0xff]
    %v8813 = vld [vmem:[%s8758 + $0x1b0] sm:$0xff]
    %v8814 = vld [vmem:[%s8758 + $0x1b8] sm:$0xff]
    %v8815 = vld [vmem:[%s8758 + $0x1c0] sm:$0xff]
    %v8816 = vld [vmem:[%s8758 + $0x1c8] sm:$0xff]
    %v8817 = vld [vmem:[%s8758 + $0x1d0] sm:$0xff]
    %v8818 = vld [vmem:[%s8758 + $0x1d8] sm:$0xff]
    %v8819 = vld [vmem:[%s8758 + $0x1e0] sm:$0xff]
    %v8820 = vld [vmem:[%s8758 + $0x1e8] sm:$0xff]
    %v8821 = vld [vmem:[%s8758 + $0x1f0] sm:$0xff]
    %v8822 = vld [vmem:[%s8758 + $0x1f8] sm:$0xff]
    %v8823 = vrot.slane %v6721, 5
    %v8824 = vrot.slane %v6722, 5
    %v8825 = vrot.slane %v6723, 5
    %v8826 = vrot.slane %v6724, 5
    %8831 = vmatprep.subr.bf16.mxu0 %v8760
    %8832 = vmatpush1.bf16.msra.mxu0 %v8759
    %8833 = vmatprep.subr.bf16.mxu0 %v8762
    %8834 = vmatpush1.bf16.msra.mxu0 %v8761
    %8835 = vmatprep.subr.bf16.mxu0 %v8764
    %8836 = vmatpush1.bf16.msra.mxu0 %v8763
    %8837 = vmatprep.subr.bf16.mxu0 %v8766
    %8838 = vmatpush1.bf16.msra.mxu0 %v8765
    %8839 = vmatprep.subr.bf16.mxu0 %v8768
    %8840 = vmatpush1.bf16.msra.mxu0 %v8767
    %8841 = vmatprep.subr.bf16.mxu0 %v8770
    %8842 = vmatpush1.bf16.msra.mxu0 %v8769
    %8843 = vmatprep.subr.bf16.mxu0 %v8772
    %8844 = vmatpush1.bf16.msra.mxu0 %v8771
    %8845 = vmatprep.subr.bf16.mxu0 %v8774
    %8846 = vmatpush1.bf16.msra.mxu0 %v8773
    %8847 = vmatprep.subr.bf16.mxu0 %v8776
    %8848 = vmatpush1.bf16.msra.mxu0 %v8775
    %8849 = vmatprep.subr.bf16.mxu0 %v8778
    %8850 = vmatpush1.bf16.msra.mxu0 %v8777
    %8851 = vmatprep.subr.bf16.mxu0 %v8780
    %8852 = vmatpush1.bf16.msra.mxu0 %v8779
    %8853 = vmatprep.subr.bf16.mxu0 %v8782
    %8854 = vmatpush1.bf16.msra.mxu0 %v8781
    %8855 = vmatprep.subr.bf16.mxu0 %v8784
    %8856 = vmatpush1.bf16.msra.mxu0 %v8783
    %8857 = vmatprep.subr.bf16.mxu0 %v8786
    %8858 = vmatpush1.bf16.msra.mxu0 %v8785
    %8859 = vmatprep.subr.bf16.mxu0 %v8788
    %8860 = vmatpush1.bf16.msra.mxu0 %v8787
    %8861 = vmatprep.subr.bf16.mxu0 %v8790
    %8862 = vmatpush1.bf16.msra.mxu0 %v8789
    %8863 = vmatprep.mubr.bf16.mxu0 %v8824
    %8864 = vmatmul.mubr.bf16.gmra.mrb[0].mxu0 %v8823
    %v8865 = vpop.f32.mrb[0].mxu0
    %v8866 = vadd.f32 0.0, %v8865
    %v8867 = vpop.f32.mrb[0].mxu0
    %v8868 = vadd.f32 0.0, %v8867
    %v8869 = vpop.f32.mrb[0].mxu0
    %v8870 = vpop.f32.mrb[0].mxu0
    %8871 = vdwg.mxu0
    %8872 = vmatprep.subr.bf16.mxu0 %v8792
    %8873 = vmatpush1.bf16.msra.mxu0 %v8791
    %8874 = vmatprep.subr.bf16.mxu0 %v8794
    %8875 = vmatpush1.bf16.msra.mxu0 %v8793
    %8876 = vmatprep.subr.bf16.mxu0 %v8796
    %8877 = vmatpush1.bf16.msra.mxu0 %v8795
    %8878 = vmatprep.subr.bf16.mxu0 %v8798
    %8879 = vmatpush1.bf16.msra.mxu0 %v8797
    %8880 = vmatprep.subr.bf16.mxu0 %v8800
    %8881 = vmatpush1.bf16.msra.mxu0 %v8799
    %8882 = vmatprep.subr.bf16.mxu0 %v8802
    %8883 = vmatpush1.bf16.msra.mxu0 %v8801
    %8884 = vmatprep.subr.bf16.mxu0 %v8804
    %8885 = vmatpush1.bf16.msra.mxu0 %v8803
    %8886 = vmatprep.subr.bf16.mxu0 %v8806
    %8887 = vmatpush1.bf16.msra.mxu0 %v8805
    %8888 = vmatprep.subr.bf16.mxu0 %v8808
    %8889 = vmatpush1.bf16.msra.mxu0 %v8807
    %8890 = vmatprep.subr.bf16.mxu0 %v8810
    %8891 = vmatpush1.bf16.msra.mxu0 %v8809
    %8892 = vmatprep.subr.bf16.mxu0 %v8812
    %8893 = vmatpush1.bf16.msra.mxu0 %v8811
    %8894 = vmatprep.subr.bf16.mxu0 %v8814
    %8895 = vmatpush1.bf16.msra.mxu0 %v8813
    %8896 = vmatprep.subr.bf16.mxu0 %v8816
    %8897 = vmatpush1.bf16.msra.mxu0 %v8815
    %8898 = vmatprep.subr.bf16.mxu0 %v8818
    %8899 = vmatpush1.bf16.msra.mxu0 %v8817
    %8900 = vmatprep.subr.bf16.mxu0 %v8820
    %8901 = vmatpush1.bf16.msra.mxu0 %v8819
    %8902 = vmatprep.subr.bf16.mxu0 %v8822
    %8903 = vmatpush1.bf16.msra.mxu0 %v8821
    %8904 = vmatprep.mubr.bf16.mxu0 %v8826
    %8905 = vmatmul.mubr.bf16.gmra.mrb[0].mxu0 %v8825
    %v8906 = vpop.f32.mrb[0].mxu0
    %v8907 = vadd.f32 %v8866, %v8906
    %v8908 = vpop.f32.mrb[0].mxu0
    %v8909 = vadd.f32 %v8868, %v8908
    %v8910 = vpop.f32.mrb[0].mxu0
    %v8911 = vpop.f32.mrb[0].mxu0
    %8912 = vdwg.mxu0
    %v8913 = vadd.f32 %v8756, %v8907
    %v8914 = vadd.f32 %v8757, %v8909
    %v8915 = vld [vmem:[#allocation20] sm:$0x3]
    %v8917 = vlaneseq
    %v8918 = vshrl.u32 %v8917, 7
    %v8919 = vsub.s32 0, %v8918
    %v8920 = vrot.slane %v8915, %v8919
    %v8921 = vlaneseq
    %v8922 = vshrl.u32 %v8921, 7
    %v8923 = vsub.s32 1, %v8922
    %v8924 = vrot.slane %v8915, %v8923
    %v8927 = vadd.f32 %v8913, %v8920
    %v8928 = vadd.f32 %v8914, %v8924
    %v8931 = vcombine.low %v8927, %v8928
    %v8933 = vunpack.c.l.s4 1983009808
    %v8934 = vunpack.c.0.s8 %v8933
    %v8935 = vlaneseq
    %v8936 = vshrl.u32 %v8935, 7
    %v8937 = vsub.s32 %v8934, %v8936
    %v8938 = vrot.slane %v8931, %v8937
    %8940 = vst [vmem:[#allocation23] sm:$0xf] %v8938
    %v8941 = vpack.c.bf16 %v8927, %v8927
    %v8942 = vpack.c.bf16 %v8928, %v8928
    %v8943 = vld [vmem:[%s9] sm:$0xf]
    %v8944 = vld [vmem:[%s9 + $0x4] sm:$0xf]
    %v8945 = vld [vmem:[%s9 + $0x8] sm:$0xf]
    %v8946 = vld [vmem:[%s9 + $0xc] sm:$0xf]
    %v8947 = vld [vmem:[%s9 + $0x10] sm:$0xf]
    %v8948 = vld [vmem:[%s9 + $0x14] sm:$0xf]
    %v8949 = vld [vmem:[%s9 + $0x18] sm:$0xf]
    %v8950 = vld [vmem:[%s9 + $0x1c] sm:$0xf]
    %v8951 = vld [vmem:[%s9 + $0x20] sm:$0xf]
    %v8952 = vld [vmem:[%s9 + $0x24] sm:$0xf]
    %v8953 = vld [vmem:[%s9 + $0x28] sm:$0xf]
    %v8954 = vld [vmem:[%s9 + $0x2c] sm:$0xf]
    %v8955 = vld [vmem:[%s9 + $0x30] sm:$0xf]
    %v8956 = vld [vmem:[%s9 + $0x34] sm:$0xf]
    %v8957 = vld [vmem:[%s9 + $0x38] sm:$0xf]
    %v8958 = vld [vmem:[%s9 + $0x3c] sm:$0xf]
    %v8959 = vld [vmem:[%s9 + $0x40] sm:$0xf]
    %v8960 = vld [vmem:[%s9 + $0x44] sm:$0xf]
    %v8961 = vld [vmem:[%s9 + $0x48] sm:$0xf]
    %v8962 = vld [vmem:[%s9 + $0x4c] sm:$0xf]
    %v8963 = vld [vmem:[%s9 + $0x50] sm:$0xf]
    %v8964 = vld [vmem:[%s9 + $0x54] sm:$0xf]
    %v8965 = vld [vmem:[%s9 + $0x58] sm:$0xf]
    %v8966 = vld [vmem:[%s9 + $0x5c] sm:$0xf]
    %v8967 = vld [vmem:[%s9 + $0x60] sm:$0xf]
    %v8968 = vld [vmem:[%s9 + $0x64] sm:$0xf]
    %v8969 = vld [vmem:[%s9 + $0x68] sm:$0xf]
    %v8970 = vld [vmem:[%s9 + $0x6c] sm:$0xf]
    %v8971 = vld [vmem:[%s9 + $0x70] sm:$0xf]
    %v8972 = vld [vmem:[%s9 + $0x74] sm:$0xf]
    %v8973 = vld [vmem:[%s9 + $0x78] sm:$0xf]
    %v8974 = vld [vmem:[%s9 + $0x7c] sm:$0xf]
    %v8975 = vld [vmem:[#allocation21] sm:$0x1]
    %v8977 = vlaneseq
    %v8978 = vshrl.u32 %v8977, 7
    %v8979 = vsub.s32 0, %v8978
    %v8980 = vrot.slane %v8975, %v8979
    %v9014 = vunpack.c.l.b16 %v8943
    %v9015 = vunpack.c.l.b16 %v8944
    %v9016 = vunpack.c.l.b16 %v8945
    %v9017 = vunpack.c.l.b16 %v8946
    %v9018 = vunpack.c.l.b16 %v8947
    %v9019 = vunpack.c.l.b16 %v8948
    %v9020 = vunpack.c.l.b16 %v8949
    %v9021 = vunpack.c.l.b16 %v8950
    %v9022 = vunpack.c.l.b16 %v8951
    %v9023 = vunpack.c.l.b16 %v8952
    %v9024 = vunpack.c.l.b16 %v8953
    %v9025 = vunpack.c.l.b16 %v8954
    %v9026 = vunpack.c.l.b16 %v8955
    %v9027 = vunpack.c.l.b16 %v8956
    %v9028 = vunpack.c.l.b16 %v8957
    %v9029 = vunpack.c.l.b16 %v8958
    %v9030 = vunpack.c.l.b16 %v8959
    %v9031 = vunpack.c.l.b16 %v8960
    %v9032 = vunpack.c.l.b16 %v8961
    %v9033 = vunpack.c.l.b16 %v8962
    %v9034 = vunpack.c.l.b16 %v8963
    %v9035 = vunpack.c.l.b16 %v8964
    %v9036 = vunpack.c.l.b16 %v8965
    %v9037 = vunpack.c.l.b16 %v8966
    %v9038 = vunpack.c.l.b16 %v8967
    %v9039 = vunpack.c.l.b16 %v8968
    %v9040 = vunpack.c.l.b16 %v8969
    %v9041 = vunpack.c.l.b16 %v8970
    %v9042 = vunpack.c.l.b16 %v8971
    %v9043 = vunpack.c.l.b16 %v8972
    %v9044 = vunpack.c.l.b16 %v8973
    %v9045 = vunpack.c.l.b16 %v8974
    %v9046 = vpack.c.b16 %v9015, %v9014
    %v9047 = vpack.c.b16 %v9017, %v9016
    %v9048 = vpack.c.b16 %v9019, %v9018
    %v9049 = vpack.c.b16 %v9021, %v9020
    %v9050 = vpack.c.b16 %v9023, %v9022
    %v9051 = vpack.c.b16 %v9025, %v9024
    %v9052 = vpack.c.b16 %v9027, %v9026
    %v9053 = vpack.c.b16 %v9029, %v9028
    %v9054 = vpack.c.b16 %v9031, %v9030
    %v9055 = vpack.c.b16 %v9033, %v9032
    %v9056 = vpack.c.b16 %v9035, %v9034
    %v9057 = vpack.c.b16 %v9037, %v9036
    %v9058 = vpack.c.b16 %v9039, %v9038
    %v9059 = vpack.c.b16 %v9041, %v9040
    %v9060 = vpack.c.b16 %v9043, %v9042
    %v9061 = vpack.c.b16 %v9045, %v9044
    %9078 = vmatprep.subr.bf16.mxu0 0
    %9079 = vmatpush1.bf16.msra.mxu0 %v9046
    %9080 = vmatprep.subr.bf16.mxu0 0
    %9081 = vmatpush1.bf16.msra.mxu0 %v9047
    %9082 = vmatprep.subr.bf16.mxu0 0
    %9083 = vmatpush1.bf16.msra.mxu0 %v9048
    %9084 = vmatprep.subr.bf16.mxu0 0
    %9085 = vmatpush1.bf16.msra.mxu0 %v9049
    %9086 = vmatprep.subr.bf16.mxu0 0
    %9087 = vmatpush1.bf16.msra.mxu0 %v9050
    %9088 = vmatprep.subr.bf16.mxu0 0
    %9089 = vmatpush1.bf16.msra.mxu0 %v9051
    %9090 = vmatprep.subr.bf16.mxu0 0
    %9091 = vmatpush1.bf16.msra.mxu0 %v9052
    %9092 = vmatprep.subr.bf16.mxu0 0
    %9093 = vmatpush1.bf16.msra.mxu0 %v9053
    %9094 = vmatprep.subr.bf16.mxu0 0
    %9095 = vmatpush1.bf16.msra.mxu0 %v9054
    %9096 = vmatprep.subr.bf16.mxu0 0
    %9097 = vmatpush1.bf16.msra.mxu0 %v9055
    %9098 = vmatprep.subr.bf16.mxu0 0
    %9099 = vmatpush1.bf16.msra.mxu0 %v9056
    %9100 = vmatprep.subr.bf16.mxu0 0
    %9101 = vmatpush1.bf16.msra.mxu0 %v9057
    %9102 = vmatprep.subr.bf16.mxu0 0
    %9103 = vmatpush1.bf16.msra.mxu0 %v9058
    %9104 = vmatprep.subr.bf16.mxu0 0
    %9105 = vmatpush1.bf16.msra.mxu0 %v9059
    %9106 = vmatprep.subr.bf16.mxu0 0
    %9107 = vmatpush1.bf16.msra.mxu0 %v9060
    %9108 = vmatprep.subr.bf16.mxu0 0
    %9109 = vmatpush1.bf16.msra.mxu0 %v9061
    %9110 = vmatprep.mubr.bf16.mxu0 %v8942
    %9111 = vmatmul.mubr.bf16.gmra.mrb[0].mxu0 %v8941
    %v9112 = vpop.f32.mrb[0].mxu0
    %v9113 = vadd.f32 %v8980, %v9112
    %v9114 = vpop.f32.mrb[0].mxu0
    %v9115 = vpop.f32.mrb[0].mxu0
    %v9116 = vpop.f32.mrb[0].mxu0
    %9117 = vdwg.mxu0
    %vm9118 = vcmask 74752
    %9119 = vst.msk [vmem:[#allocation24] sm:$0x3] %vm9118, %v9113
    // Predicated region
    $region78: #{fwd.1} parent=1 // pred_check
      _
    $region79: #{fwd.1} parent=1 // pred_check_branch
      %9121 = sbr.rel (0) target = $region81
    $region80: #{fwd.1} parent=1 // pred_region
      %s9123 = ssub.s32 64, 64
      %9124 = vsyncadd [#allocation11], %s9123
      %s9126 = sshll.u32 [#allocation23], 4
      %s9127 = int_to_ptr.vmem [resolvable:$true] %s9126
      %9129 = dma.vmem_to_hbm [thread:$0]  %s9127, 64, %s14, [#allocation11]
    $region81: #{fwd.1} parent=1 // pred_fallthru
      _
    // Predicated region
    $region82: #{fwd.1} parent=1 // pred_check
      _
    $region83: #{fwd.1} parent=1 // pred_check_branch
      %9131 = sbr.rel (0) target = $region85
    $region84: #{fwd.1} parent=1 // pred_region
      %s9133 = ssub.s32 32, 32
      %9134 = vsyncadd [#allocation25], %s9133
      %s9136 = sshll.u32 [#allocation24], 4
      %s9137 = int_to_ptr.vmem [resolvable:$true] %s9136
      %9139 = dma.vmem_to_hbm [thread:$0]  %s9137, 32, %s15, [#allocation25]
    $region85: #{fwd.1} parent=1 // pred_fallthru
      _
    // Predicated region
    $region86: #{fwd.1} parent=1 // pred_check
      _
    $region87: #{fwd.1} parent=1 // pred_check_branch
      %9141 = sbr.rel (0) target = $region89
    $region88: #{fwd.1} parent=1 // pred_region
      %9142 = dma.done [#allocation11], 64
    $region89: #{fwd.1} parent=1 // pred_fallthru
      _
    // Predicated region
    $region90: #{fwd.1} parent=1 // pred_check
      _
    $region91: #{fwd.1} parent=1 // pred_check_branch
      %9144 = sbr.rel (0) target = $region93
    $region92: #{fwd.1} parent=1 // pred_region
      %9145 = dma.done [#allocation25], 32
    $region93: #{fwd.1} parent=1 // pred_fallthru
      _
    %9146 = vsyncpa [#allocation10], 1
    %9147 = vsyncpa [#allocation13], 1
    %9148 = vsyncpa [#allocation16], 1
    %9149 = vsyncpa [#allocation19], 1
    %9150 = vsyncpa [#allocation22], 1
    %9151 = vsyncpa [#allocation11], 1
    %9152 = vsyncpa [#allocation25], 1
  %9153 = vsyncmov [#allocation8]
  %s9154 = vpop.sfrf %9153
  %p9155 = scmp.eq.s32.totalorder %s9154, 0
  %p9156 = pneg %p9155
  %9158 = shalt.err (%p9156)
  %s9159 = scalar_lea.sflag [#allocation8], 1
  %9160 = vsyncmov %s9159
  %s9161 = vpop.sfrf %9160
  %p9162 = scmp.eq.s32.totalorder %s9161, 0
  %p9163 = pneg %p9162
  %9165 = shalt.err (%p9163)
  %s9166 = scalar_lea.sflag [#allocation8], 2
  %9167 = vsyncmov %s9166
  %s9168 = vpop.sfrf %9167
  %p9169 = scmp.eq.s32.totalorder %s9168, 0
  %p9170 = pneg %p9169
  %9172 = shalt.err (%p9170)

</llo_original>
